<compile_context>
chip_gen: v7x
topology: tpu7x:2x2x1
jax: 0.10.0
libtpu: 0.0.40
codegen_flags: <defaults>
</compile_context>

<pallas_src>
import jax
import jax.numpy as jnp
import numpy as np
from jax.experimental import pallas as pl
from jax.experimental.pallas import tpu as pltpu

NUM_HEADS = 8


def relation_memory_kernel(
    b_ref, a_ref,
    wq_ref, bq_ref, wk_ref, bk_ref, wv_ref, bv_ref,
    aoa_wt_ref, aoa_wb_ref, aoa_b_ref,
    ln_g_ref, ln_b_ref,
    mlp_w1_ref, mlp_b1_ref, mlp_w2_ref, mlp_b2_ref,
    w_ref, u_ref, gate_b_ref,
    out_ref,
):
    f32 = jnp.float32
    bf16 = jnp.bfloat16
    Bt, S, D = b_ref.shape
    R = Bt * S
    dh = D // NUM_HEADS

    # Flatten the fused batch block to (Bt*S, D) so the big projection / MLP /
    # gate matmuls present a tall M dimension to the MXU.
    Bx = b_ref[...].reshape(R, D)            # f32 activations
    Ax = a_ref[...].reshape(R, D)
    Bx_bf = Bx.astype(bf16)
    Ax_bf = Ax.astype(bf16)

    # ---- W_Q(B), W_K(A), W_V(A): bf16 operands, f32 accumulation ------------
    WQ_B = jnp.dot(Bx_bf, wq_ref[...], preferred_element_type=f32) + bq_ref[...]
    WK_A = jnp.dot(Ax_bf, wk_ref[...], preferred_element_type=f32) + bk_ref[...]
    WV_A = jnp.dot(Ax_bf, wv_ref[...], preferred_element_type=f32) + bv_ref[...]

    # ---- 8-head attention, batched over the Bt examples in this block -------
    # The SxS attention tiles are a negligible FLOP fraction; keep them f32
    # (softmax and the cosine row-sum normalization below are fragile).
    Q3 = WQ_B.reshape(Bt, S, D)
    K3 = WK_A.reshape(Bt, S, D)
    V3 = WV_A.reshape(Bt, S, D)
    Qs = Q3 * 0.125                          # fold the fixed /8 score scale once
    dn_qk = (((2,), (2,)), ((0,), (0,)))     # contract features, batch over examples
    dn_pv = (((2,), (1,)), ((0,), (0,)))     # probs @ values
    head_outs = []
    for h in range(NUM_HEADS):
        lo = h * dh
        q_h = Qs[:, :, lo:lo + dh]
        k_h = K3[:, :, lo:lo + dh]
        v_h = V3[:, :, lo:lo + dh]
        scores = jax.lax.dot_general(q_h, k_h, dn_qk, preferred_element_type=f32)
        p = jax.nn.softmax(scores, axis=-1)  # softmax over keys (dim=2)
        head_outs.append(
            jax.lax.dot_general(p, v_h, dn_pv, preferred_element_type=f32))
    f_mh = jnp.concatenate(head_outs, axis=-1)          # (Bt, S, D)

    # ---- AOAttention(Q=W_Q(B), K=V=f_mh) -------------------------------------
    qn = jnp.sqrt(jnp.sum(Q3 * Q3, axis=-1, keepdims=True))        # (Bt, S, 1)
    kn = jnp.sqrt(jnp.sum(f_mh * f_mh, axis=-1, keepdims=True))    # (Bt, S, 1)
    qk = jax.lax.dot_general(Q3, f_mh, dn_qk, preferred_element_type=f32)
    # Outer product qn * kn^T via a batched K=1 dot (avoids a lane transpose).
    qknorm = jax.lax.dot_general(qn, kn, dn_qk, preferred_element_type=f32)
    cos = qk / jnp.maximum(qknorm, 1e-8)                 # cosine_similarity eps
    # f_similarity: normalize each row by its sum (NOT a softmax). Keep f32.
    cos = cos / jnp.sum(cos, axis=-1, keepdims=True)
    alpha = jax.nn.softmax(cos, axis=-1)
    V_ = jax.lax.dot_general(alpha, f_mh, dn_pv, preferred_element_type=f32)

    # Fused AOA linears: sigmoid(s@W_v + b_v) * (s@W_q + b_q) with s=[V_, Q].
    # The concat is avoided by splitting along K (aoa_wt acts on V_, aoa_wb on
    # Q) and the two heads are fused along N (weights are (D, 2D)).
    V_flat = V_.reshape(R, D).astype(bf16)
    aoa = (jnp.dot(V_flat, aoa_wt_ref[...], preferred_element_type=f32)
           + jnp.dot(WQ_B.astype(bf16), aoa_wb_ref[...], preferred_element_type=f32)
           + aoa_b_ref[...])                             # (R, 2D)
    AOA = jax.nn.sigmoid(aoa[:, :D]) * aoa[:, D:]

    # ---- Z = LayerNorm(AOA + A) ----------------------------------------------
    x = AOA + Ax
    mu = jnp.mean(x, axis=-1, keepdims=True)
    xc = x - mu
    var = jnp.mean(xc * xc, axis=-1, keepdims=True)
    Z = xc * jax.lax.rsqrt(var + 1e-5) * ln_g_ref[...] + ln_b_ref[...]

    # ---- next_memory = B + Z;  next_memory += MLP(next_memory) ---------------
    nm = Bx + Z
    h1 = jnp.maximum(
        jnp.dot(nm.astype(bf16), mlp_w1_ref[...], preferred_element_type=f32)
        + mlp_b1_ref[...], 0.0)
    h2 = jnp.maximum(
        jnp.dot(h1.astype(bf16), mlp_w2_ref[...], preferred_element_type=f32)
        + mlp_b2_ref[...], 0.0)
    nm = nm + h2

    # ---- gates = W(B) + U(tanh(A))  (biases pre-summed on host) --------------
    gates = (jnp.dot(Bx_bf, w_ref[...], preferred_element_type=f32)
             + jnp.dot(jnp.tanh(Ax).astype(bf16), u_ref[...],
                       preferred_element_type=f32)
             + gate_b_ref[...])                          # (R, 2D)
    input_gate = jax.nn.sigmoid(gates[:, :D])
    forget_gate = jax.nn.sigmoid(gates[:, D:])

    out = input_gate * jnp.tanh(nm) + forget_gate * Bx
    out_ref[...] = out.reshape(Bt, S, D)


def _pick_block_batch(batch, seq, target_rows=256):
    """Fused-batch tile: divides batch, gives the MXU a tall M (~target rows),
    and keeps >= 2 grid steps when batch allows (v7x has 2 TensorCores)."""
    divisors = [d for d in range(1, batch + 1) if batch % d == 0]
    cands = [d for d in divisors if batch // d >= 2] or divisors
    for d in cands:
        if d * seq >= target_rows:
            return d
    return cands[-1]


def _prepare_weights(params, D):
    """Fuse AOA/gate parameters and cast matmul weights to bf16 (biases and
    LayerNorm affine parameters stay f32)."""
    bf16 = jnp.bfloat16
    aoa_wv, aoa_wq = params["aoa_wv"], params["aoa_wq"]            # (2D, D) each
    aoa_wt = jnp.concatenate([aoa_wv[:D], aoa_wq[:D]], axis=1)     # (D, 2D): acts on V_
    aoa_wb = jnp.concatenate([aoa_wv[D:], aoa_wq[D:]], axis=1)     # (D, 2D): acts on Q
    aoa_b = jnp.concatenate([params["aoa_bv"], params["aoa_bq"]], axis=1)  # (1, 2D)
    gate_b = params["w_bias"] + params["u_bias"]                   # (1, 2D)
    return [
        params["wq"].astype(bf16), params["bq"],
        params["wk"].astype(bf16), params["bk"],
        params["wv"].astype(bf16), params["bv"],
        aoa_wt.astype(bf16), aoa_wb.astype(bf16), aoa_b,
        params["ln_g"], params["ln_b"],
        params["mlp_w1"].astype(bf16), params["mlp_b1"],
        params["mlp_w2"].astype(bf16), params["mlp_b2"],
        params["w"].astype(bf16), params["u"].astype(bf16), gate_b,
    ]


def _forward(B, A, weights, block_batch, single_buffer_weights):
    batch, S, D = B.shape
    grid = (batch // block_batch,)

    io_spec = pl.BlockSpec((block_batch, S, D), lambda b: (b, 0, 0))

    def weight_spec(w):
        idx_map = lambda b: (0, 0)          # all weights/biases are 2-D
        if single_buffer_weights:
            # Constant block index -> weights never change across grid steps;
            # a single VMEM buffer suffices (halves weight VMEM vs. the default
            # double buffering; needed to fit D=1024 weights on v7x's 64 MiB).
            return pl.BlockSpec(w.shape, idx_map,
                                pipeline_mode=pl.Buffered(buffer_count=1))
        return pl.BlockSpec(w.shape, idx_map)

    return pl.pallas_call(
        relation_memory_kernel,
        out_shape=jax.ShapeDtypeStruct((batch, S, D), jnp.float32),
        grid=grid,
        in_specs=[io_spec, io_spec] + [weight_spec(w) for w in weights],
        out_specs=pl.BlockSpec((block_batch, S, D), lambda b: (b, 0, 0)),
        compiler_params=pltpu.CompilerParams(
            dimension_semantics=("parallel",),
            # Default scoped VMEM (16 MiB v5e / 32 MiB v6e,v7x) is too small for
            # resident bf16 weights at D=1024; 64 MiB fits every generation.
            vmem_limit_bytes=64 * 1024 * 1024,
        ),
    )(B, A, *weights)


def relation_memory(B, A, params, *, block_batch=None):
    batch, S, D = B.shape
    assert D % NUM_HEADS == 0
    weights = _prepare_weights(params, D)
    if block_batch is None:
        block_batch = _pick_block_batch(batch, S)
    assert batch % block_batch == 0

    try:
        out = _forward(B, A, weights, block_batch, single_buffer_weights=True)
    except Exception:
        # Fallback for JAX versions without BlockSpec(pipeline_mode=Buffered(1)):
        # default (double-buffered) weight specs, identical semantics.
        out = _forward(B, A, weights, block_batch, single_buffer_weights=False)

    # torch .squeeze(1): only drops the seq axis when it is 1.
    if out.shape[1] == 1:
        out = jnp.squeeze(out, axis=1)
    return out


# ---------------------------- pure-JAX reference ----------------------------
def relation_memory_ref(B, A, p):
    D = B.shape[-1]
    d = D // NUM_HEADS
    WQ_B = B @ p["wq"] + p["bq"]
    WK_A = A @ p["wk"] + p["bk"]
    WV_A = A @ p["wv"] + p["bv"]
    heads = []
    for h in range(NUM_HEADS):
        q = WQ_B[..., h * d:(h + 1) * d]
        k = WK_A[..., h * d:(h + 1) * d]
        v = WV_A[..., h * d:(h + 1) * d]
        pmat = jax.nn.softmax(jnp.einsum("bqd,bkd->bqk", q, k) / 8.0, axis=-1)
        heads.append(jnp.einsum("bqk,bkd->bqd", pmat, v))
    f_mh = jnp.concatenate(heads, axis=-1)
    Q, K, V = WQ_B, f_mh, f_mh
    qn = jnp.linalg.norm(Q, axis=-1, keepdims=True)
    kn = jnp.linalg.norm(K, axis=-1, keepdims=True)
    cos = jnp.einsum("bqd,bkd->bqk", Q, K) / jnp.maximum(
        qn * jnp.swapaxes(kn, -1, -2), 1e-8)
    cos = cos / jnp.sum(cos, axis=-1, keepdims=True)
    alpha = jax.nn.softmax(cos, axis=-1)
    V_ = jnp.einsum("bqk,bkd->bqd", alpha, V)
    s = jnp.concatenate([V_, Q], axis=-1)
    AOA = jax.nn.sigmoid(s @ p["aoa_wv"] + p["aoa_bv"]) * (s @ p["aoa_wq"] + p["aoa_bq"])
    x = AOA + A
    mu = jnp.mean(x, axis=-1, keepdims=True)
    var = jnp.mean((x - mu) ** 2, axis=-1, keepdims=True)
    Z = (x - mu) / jnp.sqrt(var + 1e-5) * p["ln_g"] + p["ln_b"]
    nm = B + Z
    h1 = jax.nn.relu(nm @ p["mlp_w1"] + p["mlp_b1"])
    h2 = jax.nn.relu(h1 @ p["mlp_w2"] + p["mlp_b2"])
    nm = nm + h2
    gates = B @ p["w"] + p["w_bias"] + jnp.tanh(A) @ p["u"] + p["u_bias"]
    ig = jax.nn.sigmoid(gates[..., :D])
    fg = jax.nn.sigmoid(gates[..., D:])
    out = ig * jnp.tanh(nm) + fg * B
    return jnp.squeeze(out, axis=1) if out.shape[1] == 1 else out


def init_params(key, D):
    ks = jax.random.split(key, 16)
    n = lambda k, shp: (0.05 * jax.random.normal(k, shp)).astype(jnp.float32)
    return {
        "wq": n(ks[0], (D, D)), "bq": n(ks[1], (1, D)),
        "wk": n(ks[2], (D, D)), "bk": n(ks[3], (1, D)),
        "wv": n(ks[4], (D, D)), "bv": n(ks[5], (1, D)),
        "aoa_wq": n(ks[6], (2 * D, D)), "aoa_bq": n(ks[7], (1, D)),
        "aoa_wv": n(ks[8], (2 * D, D)), "aoa_bv": n(ks[9], (1, D)),
        "ln_g": jnp.ones((1, D), jnp.float32), "ln_b": jnp.zeros((1, D), jnp.float32),
        "mlp_w1": n(ks[10], (D, D)), "mlp_b1": n(ks[11], (1, D)),
        "mlp_w2": n(ks[12], (D, D)), "mlp_b2": n(ks[13], (1, D)),
        "w": n(ks[14], (D, 2 * D)), "w_bias": jnp.zeros((1, 2 * D), jnp.float32),
        "u": n(ks[15], (D, 2 * D)), "u_bias": jnp.zeros((1, 2 * D), jnp.float32),
    }


if __name__ == "__main__":
    batch, seq, D = 2, 8, 64   # D divisible by 8 heads (the real module uses D=1024)
    key = jax.random.PRNGKey(0)
    kb, ka, kp = jax.random.split(key, 3)
    # Positive-ish offset keeps the cosine-sum normalization well conditioned.
    B = (0.5 + 0.1 * jax.random.normal(kb, (batch, seq, D))).astype(jnp.float32)
    A = (0.5 + 0.1 * jax.random.normal(ka, (batch, seq, D))).astype(jnp.float32)
    params = init_params(kp, D)

    out = jax.block_until_ready(relation_memory(B, A, params))
    ref = jax.block_until_ready(relation_memory_ref(B, A, params))
    assert out.shape == ref.shape
    # Kernel runs the big matmuls with bf16 operands (f32 accumulation), the
    # reference is all-f32 -> compare at bf16-appropriate tolerance.
    np.testing.assert_allclose(np.asarray(out), np.asarray(ref), rtol=2e-2, atol=2e-2)
    print("KERNEL_OK")
</pallas_src>

<mosaic_0001>
module attributes {stable_mosaic.version = 11 : i64} {
  func.func @relation_memory_kernel(%arg0: i32, %arg1: memref<1x8x64xf32, #tpu.memory_space<vmem>>, %arg2: memref<1x8x64xf32, #tpu.memory_space<vmem>>, %arg3: memref<64x64xbf16, #tpu.memory_space<vmem>>, %arg4: memref<1x64xf32, #tpu.memory_space<vmem>>, %arg5: memref<64x64xbf16, #tpu.memory_space<vmem>>, %arg6: memref<1x64xf32, #tpu.memory_space<vmem>>, %arg7: memref<64x64xbf16, #tpu.memory_space<vmem>>, %arg8: memref<1x64xf32, #tpu.memory_space<vmem>>, %arg9: memref<64x128xbf16, #tpu.memory_space<vmem>>, %arg10: memref<64x128xbf16, #tpu.memory_space<vmem>>, %arg11: memref<1x128xf32, #tpu.memory_space<vmem>>, %arg12: memref<1x64xf32, #tpu.memory_space<vmem>>, %arg13: memref<1x64xf32, #tpu.memory_space<vmem>>, %arg14: memref<64x64xbf16, #tpu.memory_space<vmem>>, %arg15: memref<1x64xf32, #tpu.memory_space<vmem>>, %arg16: memref<64x64xbf16, #tpu.memory_space<vmem>>, %arg17: memref<1x64xf32, #tpu.memory_space<vmem>>, %arg18: memref<64x128xbf16, #tpu.memory_space<vmem>>, %arg19: memref<64x128xbf16, #tpu.memory_space<vmem>>, %arg20: memref<1x128xf32, #tpu.memory_space<vmem>>, %arg21: memref<1x8x64xf32, #tpu.memory_space<vmem>>) attributes {dimension_semantics = [#tpu.dimension_semantics<parallel>], iteration_bounds = array<i64: 2>, scalar_prefetch = 0 : i64, scratch_operands = 0 : i64, tpu.core_type = #tpu.core_type<tc>, window_params = [{transform_indices = @transform_0, window_bounds = array<i64: 1, 8, 64>}, {transform_indices = @transform_1, window_bounds = array<i64: 1, 8, 64>}, {pipeline_mode = #tpu.pipeline_mode<synchronous>, transform_indices = @transform_2, window_bounds = array<i64: 64, 64>}, {pipeline_mode = #tpu.pipeline_mode<synchronous>, transform_indices = @transform_3, window_bounds = array<i64: 1, 64>}, {pipeline_mode = #tpu.pipeline_mode<synchronous>, transform_indices = @transform_4, window_bounds = array<i64: 64, 64>}, {pipeline_mode = #tpu.pipeline_mode<synchronous>, transform_indices = @transform_5, window_bounds = array<i64: 1, 64>}, {pipeline_mode = #tpu.pipeline_mode<synchronous>, transform_indices = @transform_6, window_bounds = array<i64: 64, 64>}, {pipeline_mode = #tpu.pipeline_mode<synchronous>, transform_indices = @transform_7, window_bounds = array<i64: 1, 64>}, {pipeline_mode = #tpu.pipeline_mode<synchronous>, transform_indices = @transform_8, window_bounds = array<i64: 64, 128>}, {pipeline_mode = #tpu.pipeline_mode<synchronous>, transform_indices = @transform_9, window_bounds = array<i64: 64, 128>}, {pipeline_mode = #tpu.pipeline_mode<synchronous>, transform_indices = @transform_10, window_bounds = array<i64: 1, 128>}, {pipeline_mode = #tpu.pipeline_mode<synchronous>, transform_indices = @transform_11, window_bounds = array<i64: 1, 64>}, {pipeline_mode = #tpu.pipeline_mode<synchronous>, transform_indices = @transform_12, window_bounds = array<i64: 1, 64>}, {pipeline_mode = #tpu.pipeline_mode<synchronous>, transform_indices = @transform_13, window_bounds = array<i64: 64, 64>}, {pipeline_mode = #tpu.pipeline_mode<synchronous>, transform_indices = @transform_14, window_bounds = array<i64: 1, 64>}, {pipeline_mode = #tpu.pipeline_mode<synchronous>, transform_indices = @transform_15, window_bounds = array<i64: 64, 64>}, {pipeline_mode = #tpu.pipeline_mode<synchronous>, transform_indices = @transform_16, window_bounds = array<i64: 1, 64>}, {pipeline_mode = #tpu.pipeline_mode<synchronous>, transform_indices = @transform_17, window_bounds = array<i64: 64, 128>}, {pipeline_mode = #tpu.pipeline_mode<synchronous>, transform_indices = @transform_18, window_bounds = array<i64: 64, 128>}, {pipeline_mode = #tpu.pipeline_mode<synchronous>, transform_indices = @transform_19, window_bounds = array<i64: 1, 128>}, {transform_indices = @transform_20, window_bounds = array<i64: 1, 8, 64>}]} {
    %c0 = arith.constant 0 : index
    %c0_0 = arith.constant 0 : index
    %c0_1 = arith.constant 0 : index
    %0 = vector.load %arg1[%c0, %c0_0, %c0_1] : memref<1x8x64xf32, #tpu.memory_space<vmem>>, vector<1x8x64xf32>
    %1 = vector.shape_cast %0 : vector<1x8x64xf32> to vector<8x64xf32>
    %c0_2 = arith.constant 0 : index
    %c0_3 = arith.constant 0 : index
    %c0_4 = arith.constant 0 : index
    %2 = vector.load %arg2[%c0_2, %c0_3, %c0_4] : memref<1x8x64xf32, #tpu.memory_space<vmem>>, vector<1x8x64xf32>
    %3 = vector.shape_cast %2 : vector<1x8x64xf32> to vector<8x64xf32>
    %4 = arith.truncf %1 : vector<8x64xf32> to vector<8x64xbf16>
    %5 = arith.truncf %3 : vector<8x64xf32> to vector<8x64xbf16>
    %c0_5 = arith.constant 0 : index
    %c0_6 = arith.constant 0 : index
    %6 = vector.load %arg3[%c0_5, %c0_6] : memref<64x64xbf16, #tpu.memory_space<vmem>>, vector<64x64xbf16>
    %cst = arith.constant dense<0.000000e+00> : vector<8x64xf32>
    %7 = tpu.matmul %4, %6, %cst {dimension_numbers = #tpu.dot_dimension_numbers<[1], [0], [0], [1], [0, 0, 1, 1], [], []>} : vector<8x64xbf16>, vector<64x64xbf16>, vector<8x64xf32> -> vector<8x64xf32>
    %c0_7 = arith.constant 0 : index
    %c0_8 = arith.constant 0 : index
    %8 = vector.load %arg4[%c0_7, %c0_8] : memref<1x64xf32, #tpu.memory_space<vmem>>, vector<1x64xf32>
    %9 = vector.broadcast %8 : vector<1x64xf32> to vector<8x64xf32>
    %10 = arith.addf %7, %9 : vector<8x64xf32>
    %c0_9 = arith.constant 0 : index
    %c0_10 = arith.constant 0 : index
    %11 = vector.load %arg5[%c0_9, %c0_10] : memref<64x64xbf16, #tpu.memory_space<vmem>>, vector<64x64xbf16>
    %cst_11 = arith.constant dense<0.000000e+00> : vector<8x64xf32>
    %12 = tpu.matmul %5, %11, %cst_11 {dimension_numbers = #tpu.dot_dimension_numbers<[1], [0], [0], [1], [0, 0, 1, 1], [], []>} : vector<8x64xbf16>, vector<64x64xbf16>, vector<8x64xf32> -> vector<8x64xf32>
    %c0_12 = arith.constant 0 : index
    %c0_13 = arith.constant 0 : index
    %13 = vector.load %arg6[%c0_12, %c0_13] : memref<1x64xf32, #tpu.memory_space<vmem>>, vector<1x64xf32>
    %14 = vector.broadcast %13 : vector<1x64xf32> to vector<8x64xf32>
    %15 = arith.addf %12, %14 : vector<8x64xf32>
    %c0_14 = arith.constant 0 : index
    %c0_15 = arith.constant 0 : index
    %16 = vector.load %arg7[%c0_14, %c0_15] : memref<64x64xbf16, #tpu.memory_space<vmem>>, vector<64x64xbf16>
    %cst_16 = arith.constant dense<0.000000e+00> : vector<8x64xf32>
    %17 = tpu.matmul %5, %16, %cst_16 {dimension_numbers = #tpu.dot_dimension_numbers<[1], [0], [0], [1], [0, 0, 1, 1], [], []>} : vector<8x64xbf16>, vector<64x64xbf16>, vector<8x64xf32> -> vector<8x64xf32>
    %c0_17 = arith.constant 0 : index
    %c0_18 = arith.constant 0 : index
    %18 = vector.load %arg8[%c0_17, %c0_18] : memref<1x64xf32, #tpu.memory_space<vmem>>, vector<1x64xf32>
    %19 = vector.broadcast %18 : vector<1x64xf32> to vector<8x64xf32>
    %20 = arith.addf %17, %19 : vector<8x64xf32>
    %21 = vector.shape_cast %10 : vector<8x64xf32> to vector<1x8x64xf32>
    %22 = vector.shape_cast %15 : vector<8x64xf32> to vector<1x8x64xf32>
    %23 = vector.shape_cast %20 : vector<8x64xf32> to vector<1x8x64xf32>
    %cst_19 = arith.constant 1.250000e-01 : f32
    %24 = vector.broadcast %cst_19 : f32 to vector<1x8x64xf32>
    %25 = arith.mulf %21, %24 : vector<1x8x64xf32>
    %26 = vector.extract_strided_slice %25 {offsets = [0, 0, 0], sizes = [1, 8, 8], strides = [1, 1, 1]} : vector<1x8x64xf32> to vector<1x8x8xf32>
    %27 = vector.extract_strided_slice %22 {offsets = [0, 0, 0], sizes = [1, 8, 8], strides = [1, 1, 1]} : vector<1x8x64xf32> to vector<1x8x8xf32>
    %28 = vector.extract_strided_slice %23 {offsets = [0, 0, 0], sizes = [1, 8, 8], strides = [1, 1, 1]} : vector<1x8x64xf32> to vector<1x8x8xf32>
    %cst_20 = arith.constant dense<0.000000e+00> : vector<1x8x8xf32>
    %29 = tpu.matmul %26, %27, %cst_20 {dimension_numbers = #tpu.dot_dimension_numbers<[2], [2], [1], [1], [0, 0, 0, 1, 1, 1], [0], [0]>} : vector<1x8x8xf32>, vector<1x8x8xf32>, vector<1x8x8xf32> -> vector<1x8x8xf32>
    %cst_21 = arith.constant dense<0xFF800000> : vector<1x8xf32>
    %30 = vector.multi_reduction <maximumf>, %29, %cst_21 [2] : vector<1x8x8xf32> to vector<1x8xf32>
    %cst_22 = arith.constant 0xFF800000 : f32
    %31 = vector.broadcast %cst_22 : f32 to vector<1x8xf32>
    %32 = arith.maximumf %31, %30 : vector<1x8xf32>
    %33 = vector.shape_cast %32 : vector<1x8xf32> to vector<1x8x1xf32>
    %34 = vector.broadcast %33 : vector<1x8x1xf32> to vector<1x8x8xf32>
    %35 = arith.subf %29, %34 : vector<1x8x8xf32>
    %36 = math.exp %35 : vector<1x8x8xf32>
    %cst_23 = arith.constant dense<0.000000e+00> : vector<1x8xf32>
    %37 = vector.multi_reduction <add>, %36, %cst_23 [2] : vector<1x8x8xf32> to vector<1x8xf32>
    %38 = vector.shape_cast %37 : vector<1x8xf32> to vector<1x8x1xf32>
    %39 = vector.broadcast %38 : vector<1x8x1xf32> to vector<1x8x8xf32>
    %40 = arith.divf %36, %39 : vector<1x8x8xf32>
    %cst_24 = arith.constant dense<0.000000e+00> : vector<1x8x8xf32>
    %41 = tpu.matmul %40, %28, %cst_24 {dimension_numbers = #tpu.dot_dimension_numbers<[2], [1], [1], [2], [0, 0, 0, 1, 1, 2], [0], [0]>} : vector<1x8x8xf32>, vector<1x8x8xf32>, vector<1x8x8xf32> -> vector<1x8x8xf32>
    %42 = vector.extract_strided_slice %25 {offsets = [0, 0, 8], sizes = [1, 8, 8], strides = [1, 1, 1]} : vector<1x8x64xf32> to vector<1x8x8xf32>
    %43 = vector.extract_strided_slice %22 {offsets = [0, 0, 8], sizes = [1, 8, 8], strides = [1, 1, 1]} : vector<1x8x64xf32> to vector<1x8x8xf32>
    %44 = vector.extract_strided_slice %23 {offsets = [0, 0, 8], sizes = [1, 8, 8], strides = [1, 1, 1]} : vector<1x8x64xf32> to vector<1x8x8xf32>
    %cst_25 = arith.constant dense<0.000000e+00> : vector<1x8x8xf32>
    %45 = tpu.matmul %42, %43, %cst_25 {dimension_numbers = #tpu.dot_dimension_numbers<[2], [2], [1], [1], [0, 0, 0, 1, 1, 1], [0], [0]>} : vector<1x8x8xf32>, vector<1x8x8xf32>, vector<1x8x8xf32> -> vector<1x8x8xf32>
    %cst_26 = arith.constant dense<0xFF800000> : vector<1x8xf32>
    %46 = vector.multi_reduction <maximumf>, %45, %cst_26 [2] : vector<1x8x8xf32> to vector<1x8xf32>
    %cst_27 = arith.constant 0xFF800000 : f32
    %47 = vector.broadcast %cst_27 : f32 to vector<1x8xf32>
    %48 = arith.maximumf %47, %46 : vector<1x8xf32>
    %49 = vector.shape_cast %48 : vector<1x8xf32> to vector<1x8x1xf32>
    %50 = vector.broadcast %49 : vector<1x8x1xf32> to vector<1x8x8xf32>
    %51 = arith.subf %45, %50 : vector<1x8x8xf32>
    %52 = math.exp %51 : vector<1x8x8xf32>
    %cst_28 = arith.constant dense<0.000000e+00> : vector<1x8xf32>
    %53 = vector.multi_reduction <add>, %52, %cst_28 [2] : vector<1x8x8xf32> to vector<1x8xf32>
    %54 = vector.shape_cast %53 : vector<1x8xf32> to vector<1x8x1xf32>
    %55 = vector.broadcast %54 : vector<1x8x1xf32> to vector<1x8x8xf32>
    %56 = arith.divf %52, %55 : vector<1x8x8xf32>
    %cst_29 = arith.constant dense<0.000000e+00> : vector<1x8x8xf32>
    %57 = tpu.matmul %56, %44, %cst_29 {dimension_numbers = #tpu.dot_dimension_numbers<[2], [1], [1], [2], [0, 0, 0, 1, 1, 2], [0], [0]>} : vector<1x8x8xf32>, vector<1x8x8xf32>, vector<1x8x8xf32> -> vector<1x8x8xf32>
    %58 = vector.extract_strided_slice %25 {offsets = [0, 0, 16], sizes = [1, 8, 8], strides = [1, 1, 1]} : vector<1x8x64xf32> to vector<1x8x8xf32>
    %59 = vector.extract_strided_slice %22 {offsets = [0, 0, 16], sizes = [1, 8, 8], strides = [1, 1, 1]} : vector<1x8x64xf32> to vector<1x8x8xf32>
    %60 = vector.extract_strided_slice %23 {offsets = [0, 0, 16], sizes = [1, 8, 8], strides = [1, 1, 1]} : vector<1x8x64xf32> to vector<1x8x8xf32>
    %cst_30 = arith.constant dense<0.000000e+00> : vector<1x8x8xf32>
    %61 = tpu.matmul %58, %59, %cst_30 {dimension_numbers = #tpu.dot_dimension_numbers<[2], [2], [1], [1], [0, 0, 0, 1, 1, 1], [0], [0]>} : vector<1x8x8xf32>, vector<1x8x8xf32>, vector<1x8x8xf32> -> vector<1x8x8xf32>
    %cst_31 = arith.constant dense<0xFF800000> : vector<1x8xf32>
    %62 = vector.multi_reduction <maximumf>, %61, %cst_31 [2] : vector<1x8x8xf32> to vector<1x8xf32>
    %cst_32 = arith.constant 0xFF800000 : f32
    %63 = vector.broadcast %cst_32 : f32 to vector<1x8xf32>
    %64 = arith.maximumf %63, %62 : vector<1x8xf32>
    %65 = vector.shape_cast %64 : vector<1x8xf32> to vector<1x8x1xf32>
    %66 = vector.broadcast %65 : vector<1x8x1xf32> to vector<1x8x8xf32>
    %67 = arith.subf %61, %66 : vector<1x8x8xf32>
    %68 = math.exp %67 : vector<1x8x8xf32>
    %cst_33 = arith.constant dense<0.000000e+00> : vector<1x8xf32>
    %69 = vector.multi_reduction <add>, %68, %cst_33 [2] : vector<1x8x8xf32> to vector<1x8xf32>
    %70 = vector.shape_cast %69 : vector<1x8xf32> to vector<1x8x1xf32>
    %71 = vector.broadcast %70 : vector<1x8x1xf32> to vector<1x8x8xf32>
    %72 = arith.divf %68, %71 : vector<1x8x8xf32>
    %cst_34 = arith.constant dense<0.000000e+00> : vector<1x8x8xf32>
    %73 = tpu.matmul %72, %60, %cst_34 {dimension_numbers = #tpu.dot_dimension_numbers<[2], [1], [1], [2], [0, 0, 0, 1, 1, 2], [0], [0]>} : vector<1x8x8xf32>, vector<1x8x8xf32>, vector<1x8x8xf32> -> vector<1x8x8xf32>
    %74 = vector.extract_strided_slice %25 {offsets = [0, 0, 24], sizes = [1, 8, 8], strides = [1, 1, 1]} : vector<1x8x64xf32> to vector<1x8x8xf32>
    %75 = vector.extract_strided_slice %22 {offsets = [0, 0, 24], sizes = [1, 8, 8], strides = [1, 1, 1]} : vector<1x8x64xf32> to vector<1x8x8xf32>
    %76 = vector.extract_strided_slice %23 {offsets = [0, 0, 24], sizes = [1, 8, 8], strides = [1, 1, 1]} : vector<1x8x64xf32> to vector<1x8x8xf32>
    %cst_35 = arith.constant dense<0.000000e+00> : vector<1x8x8xf32>
    %77 = tpu.matmul %74, %75, %cst_35 {dimension_numbers = #tpu.dot_dimension_numbers<[2], [2], [1], [1], [0, 0, 0, 1, 1, 1], [0], [0]>} : vector<1x8x8xf32>, vector<1x8x8xf32>, vector<1x8x8xf32> -> vector<1x8x8xf32>
    %cst_36 = arith.constant dense<0xFF800000> : vector<1x8xf32>
    %78 = vector.multi_reduction <maximumf>, %77, %cst_36 [2] : vector<1x8x8xf32> to vector<1x8xf32>
    %cst_37 = arith.constant 0xFF800000 : f32
    %79 = vector.broadcast %cst_37 : f32 to vector<1x8xf32>
    %80 = arith.maximumf %79, %78 : vector<1x8xf32>
    %81 = vector.shape_cast %80 : vector<1x8xf32> to vector<1x8x1xf32>
    %82 = vector.broadcast %81 : vector<1x8x1xf32> to vector<1x8x8xf32>
    %83 = arith.subf %77, %82 : vector<1x8x8xf32>
    %84 = math.exp %83 : vector<1x8x8xf32>
    %cst_38 = arith.constant dense<0.000000e+00> : vector<1x8xf32>
    %85 = vector.multi_reduction <add>, %84, %cst_38 [2] : vector<1x8x8xf32> to vector<1x8xf32>
    %86 = vector.shape_cast %85 : vector<1x8xf32> to vector<1x8x1xf32>
    %87 = vector.broadcast %86 : vector<1x8x1xf32> to vector<1x8x8xf32>
    %88 = arith.divf %84, %87 : vector<1x8x8xf32>
    %cst_39 = arith.constant dense<0.000000e+00> : vector<1x8x8xf32>
    %89 = tpu.matmul %88, %76, %cst_39 {dimension_numbers = #tpu.dot_dimension_numbers<[2], [1], [1], [2], [0, 0, 0, 1, 1, 2], [0], [0]>} : vector<1x8x8xf32>, vector<1x8x8xf32>, vector<1x8x8xf32> -> vector<1x8x8xf32>
    %90 = vector.extract_strided_slice %25 {offsets = [0, 0, 32], sizes = [1, 8, 8], strides = [1, 1, 1]} : vector<1x8x64xf32> to vector<1x8x8xf32>
    %91 = vector.extract_strided_slice %22 {offsets = [0, 0, 32], sizes = [1, 8, 8], strides = [1, 1, 1]} : vector<1x8x64xf32> to vector<1x8x8xf32>
    %92 = vector.extract_strided_slice %23 {offsets = [0, 0, 32], sizes = [1, 8, 8], strides = [1, 1, 1]} : vector<1x8x64xf32> to vector<1x8x8xf32>
    %cst_40 = arith.constant dense<0.000000e+00> : vector<1x8x8xf32>
    %93 = tpu.matmul %90, %91, %cst_40 {dimension_numbers = #tpu.dot_dimension_numbers<[2], [2], [1], [1], [0, 0, 0, 1, 1, 1], [0], [0]>} : vector<1x8x8xf32>, vector<1x8x8xf32>, vector<1x8x8xf32> -> vector<1x8x8xf32>
    %cst_41 = arith.constant dense<0xFF800000> : vector<1x8xf32>
    %94 = vector.multi_reduction <maximumf>, %93, %cst_41 [2] : vector<1x8x8xf32> to vector<1x8xf32>
    %cst_42 = arith.constant 0xFF800000 : f32
    %95 = vector.broadcast %cst_42 : f32 to vector<1x8xf32>
    %96 = arith.maximumf %95, %94 : vector<1x8xf32>
    %97 = vector.shape_cast %96 : vector<1x8xf32> to vector<1x8x1xf32>
    %98 = vector.broadcast %97 : vector<1x8x1xf32> to vector<1x8x8xf32>
    %99 = arith.subf %93, %98 : vector<1x8x8xf32>
    %100 = math.exp %99 : vector<1x8x8xf32>
    %cst_43 = arith.constant dense<0.000000e+00> : vector<1x8xf32>
    %101 = vector.multi_reduction <add>, %100, %cst_43 [2] : vector<1x8x8xf32> to vector<1x8xf32>
    %102 = vector.shape_cast %101 : vector<1x8xf32> to vector<1x8x1xf32>
    %103 = vector.broadcast %102 : vector<1x8x1xf32> to vector<1x8x8xf32>
    %104 = arith.divf %100, %103 : vector<1x8x8xf32>
    %cst_44 = arith.constant dense<0.000000e+00> : vector<1x8x8xf32>
    %105 = tpu.matmul %104, %92, %cst_44 {dimension_numbers = #tpu.dot_dimension_numbers<[2], [1], [1], [2], [0, 0, 0, 1, 1, 2], [0], [0]>} : vector<1x8x8xf32>, vector<1x8x8xf32>, vector<1x8x8xf32> -> vector<1x8x8xf32>
    %106 = vector.extract_strided_slice %25 {offsets = [0, 0, 40], sizes = [1, 8, 8], strides = [1, 1, 1]} : vector<1x8x64xf32> to vector<1x8x8xf32>
    %107 = vector.extract_strided_slice %22 {offsets = [0, 0, 40], sizes = [1, 8, 8], strides = [1, 1, 1]} : vector<1x8x64xf32> to vector<1x8x8xf32>
    %108 = vector.extract_strided_slice %23 {offsets = [0, 0, 40], sizes = [1, 8, 8], strides = [1, 1, 1]} : vector<1x8x64xf32> to vector<1x8x8xf32>
    %cst_45 = arith.constant dense<0.000000e+00> : vector<1x8x8xf32>
    %109 = tpu.matmul %106, %107, %cst_45 {dimension_numbers = #tpu.dot_dimension_numbers<[2], [2], [1], [1], [0, 0, 0, 1, 1, 1], [0], [0]>} : vector<1x8x8xf32>, vector<1x8x8xf32>, vector<1x8x8xf32> -> vector<1x8x8xf32>
    %cst_46 = arith.constant dense<0xFF800000> : vector<1x8xf32>
    %110 = vector.multi_reduction <maximumf>, %109, %cst_46 [2] : vector<1x8x8xf32> to vector<1x8xf32>
    %cst_47 = arith.constant 0xFF800000 : f32
    %111 = vector.broadcast %cst_47 : f32 to vector<1x8xf32>
    %112 = arith.maximumf %111, %110 : vector<1x8xf32>
    %113 = vector.shape_cast %112 : vector<1x8xf32> to vector<1x8x1xf32>
    %114 = vector.broadcast %113 : vector<1x8x1xf32> to vector<1x8x8xf32>
    %115 = arith.subf %109, %114 : vector<1x8x8xf32>
    %116 = math.exp %115 : vector<1x8x8xf32>
    %cst_48 = arith.constant dense<0.000000e+00> : vector<1x8xf32>
    %117 = vector.multi_reduction <add>, %116, %cst_48 [2] : vector<1x8x8xf32> to vector<1x8xf32>
    %118 = vector.shape_cast %117 : vector<1x8xf32> to vector<1x8x1xf32>
    %119 = vector.broadcast %118 : vector<1x8x1xf32> to vector<1x8x8xf32>
    %120 = arith.divf %116, %119 : vector<1x8x8xf32>
    %cst_49 = arith.constant dense<0.000000e+00> : vector<1x8x8xf32>
    %121 = tpu.matmul %120, %108, %cst_49 {dimension_numbers = #tpu.dot_dimension_numbers<[2], [1], [1], [2], [0, 0, 0, 1, 1, 2], [0], [0]>} : vector<1x8x8xf32>, vector<1x8x8xf32>, vector<1x8x8xf32> -> vector<1x8x8xf32>
    %122 = vector.extract_strided_slice %25 {offsets = [0, 0, 48], sizes = [1, 8, 8], strides = [1, 1, 1]} : vector<1x8x64xf32> to vector<1x8x8xf32>
    %123 = vector.extract_strided_slice %22 {offsets = [0, 0, 48], sizes = [1, 8, 8], strides = [1, 1, 1]} : vector<1x8x64xf32> to vector<1x8x8xf32>
    %124 = vector.extract_strided_slice %23 {offsets = [0, 0, 48], sizes = [1, 8, 8], strides = [1, 1, 1]} : vector<1x8x64xf32> to vector<1x8x8xf32>
    %cst_50 = arith.constant dense<0.000000e+00> : vector<1x8x8xf32>
    %125 = tpu.matmul %122, %123, %cst_50 {dimension_numbers = #tpu.dot_dimension_numbers<[2], [2], [1], [1], [0, 0, 0, 1, 1, 1], [0], [0]>} : vector<1x8x8xf32>, vector<1x8x8xf32>, vector<1x8x8xf32> -> vector<1x8x8xf32>
    %cst_51 = arith.constant dense<0xFF800000> : vector<1x8xf32>
    %126 = vector.multi_reduction <maximumf>, %125, %cst_51 [2] : vector<1x8x8xf32> to vector<1x8xf32>
    %cst_52 = arith.constant 0xFF800000 : f32
    %127 = vector.broadcast %cst_52 : f32 to vector<1x8xf32>
    %128 = arith.maximumf %127, %126 : vector<1x8xf32>
    %129 = vector.shape_cast %128 : vector<1x8xf32> to vector<1x8x1xf32>
    %130 = vector.broadcast %129 : vector<1x8x1xf32> to vector<1x8x8xf32>
    %131 = arith.subf %125, %130 : vector<1x8x8xf32>
    %132 = math.exp %131 : vector<1x8x8xf32>
    %cst_53 = arith.constant dense<0.000000e+00> : vector<1x8xf32>
    %133 = vector.multi_reduction <add>, %132, %cst_53 [2] : vector<1x8x8xf32> to vector<1x8xf32>
    %134 = vector.shape_cast %133 : vector<1x8xf32> to vector<1x8x1xf32>
    %135 = vector.broadcast %134 : vector<1x8x1xf32> to vector<1x8x8xf32>
    %136 = arith.divf %132, %135 : vector<1x8x8xf32>
    %cst_54 = arith.constant dense<0.000000e+00> : vector<1x8x8xf32>
    %137 = tpu.matmul %136, %124, %cst_54 {dimension_numbers = #tpu.dot_dimension_numbers<[2], [1], [1], [2], [0, 0, 0, 1, 1, 2], [0], [0]>} : vector<1x8x8xf32>, vector<1x8x8xf32>, vector<1x8x8xf32> -> vector<1x8x8xf32>
    %138 = vector.extract_strided_slice %25 {offsets = [0, 0, 56], sizes = [1, 8, 8], strides = [1, 1, 1]} : vector<1x8x64xf32> to vector<1x8x8xf32>
    %139 = vector.extract_strided_slice %22 {offsets = [0, 0, 56], sizes = [1, 8, 8], strides = [1, 1, 1]} : vector<1x8x64xf32> to vector<1x8x8xf32>
    %140 = vector.extract_strided_slice %23 {offsets = [0, 0, 56], sizes = [1, 8, 8], strides = [1, 1, 1]} : vector<1x8x64xf32> to vector<1x8x8xf32>
    %cst_55 = arith.constant dense<0.000000e+00> : vector<1x8x8xf32>
    %141 = tpu.matmul %138, %139, %cst_55 {dimension_numbers = #tpu.dot_dimension_numbers<[2], [2], [1], [1], [0, 0, 0, 1, 1, 1], [0], [0]>} : vector<1x8x8xf32>, vector<1x8x8xf32>, vector<1x8x8xf32> -> vector<1x8x8xf32>
    %cst_56 = arith.constant dense<0xFF800000> : vector<1x8xf32>
    %142 = vector.multi_reduction <maximumf>, %141, %cst_56 [2] : vector<1x8x8xf32> to vector<1x8xf32>
    %cst_57 = arith.constant 0xFF800000 : f32
    %143 = vector.broadcast %cst_57 : f32 to vector<1x8xf32>
    %144 = arith.maximumf %143, %142 : vector<1x8xf32>
    %145 = vector.shape_cast %144 : vector<1x8xf32> to vector<1x8x1xf32>
    %146 = vector.broadcast %145 : vector<1x8x1xf32> to vector<1x8x8xf32>
    %147 = arith.subf %141, %146 : vector<1x8x8xf32>
    %148 = math.exp %147 : vector<1x8x8xf32>
    %cst_58 = arith.constant dense<0.000000e+00> : vector<1x8xf32>
    %149 = vector.multi_reduction <add>, %148, %cst_58 [2] : vector<1x8x8xf32> to vector<1x8xf32>
    %150 = vector.shape_cast %149 : vector<1x8xf32> to vector<1x8x1xf32>
    %151 = vector.broadcast %150 : vector<1x8x1xf32> to vector<1x8x8xf32>
    %152 = arith.divf %148, %151 : vector<1x8x8xf32>
    %cst_59 = arith.constant dense<0.000000e+00> : vector<1x8x8xf32>
    %153 = tpu.matmul %152, %140, %cst_59 {dimension_numbers = #tpu.dot_dimension_numbers<[2], [1], [1], [2], [0, 0, 0, 1, 1, 2], [0], [0]>} : vector<1x8x8xf32>, vector<1x8x8xf32>, vector<1x8x8xf32> -> vector<1x8x8xf32>
    %154 = tpu.concatenate %41, %57, %73, %89, %105, %121, %137, %153 in 2 : vector<1x8x8xf32>, vector<1x8x8xf32>, vector<1x8x8xf32>, vector<1x8x8xf32>, vector<1x8x8xf32>, vector<1x8x8xf32>, vector<1x8x8xf32>, vector<1x8x8xf32> -> vector<1x8x64xf32>
    %155 = arith.mulf %21, %21 : vector<1x8x64xf32>
    %cst_60 = arith.constant dense<0.000000e+00> : vector<1x8xf32>
    %156 = vector.multi_reduction <add>, %155, %cst_60 [2] : vector<1x8x64xf32> to vector<1x8xf32>
    %157 = vector.shape_cast %156 : vector<1x8xf32> to vector<1x8x1xf32>
    %158 = math.sqrt %157 : vector<1x8x1xf32>
    %159 = arith.mulf %154, %154 : vector<1x8x64xf32>
    %cst_61 = arith.constant dense<0.000000e+00> : vector<1x8xf32>
    %160 = vector.multi_reduction <add>, %159, %cst_61 [2] : vector<1x8x64xf32> to vector<1x8xf32>
    %161 = vector.shape_cast %160 : vector<1x8xf32> to vector<1x8x1xf32>
    %162 = math.sqrt %161 : vector<1x8x1xf32>
    %cst_62 = arith.constant dense<0.000000e+00> : vector<1x8x8xf32>
    %163 = tpu.matmul %21, %154, %cst_62 {dimension_numbers = #tpu.dot_dimension_numbers<[2], [2], [1], [1], [0, 0, 0, 1, 1, 1], [0], [0]>} : vector<1x8x64xf32>, vector<1x8x64xf32>, vector<1x8x8xf32> -> vector<1x8x8xf32>
    %cst_63 = arith.constant dense<0.000000e+00> : vector<1x8x8xf32>
    %164 = tpu.matmul %158, %162, %cst_63 {dimension_numbers = #tpu.dot_dimension_numbers<[2], [2], [1], [1], [0, 0, 0, 1, 1, 1], [0], [0]>} : vector<1x8x1xf32>, vector<1x8x1xf32>, vector<1x8x8xf32> -> vector<1x8x8xf32>
    %cst_64 = arith.constant 9.99999993E-9 : f32
    %165 = vector.broadcast %cst_64 : f32 to vector<1x8x8xf32>
    %166 = arith.maximumf %164, %165 : vector<1x8x8xf32>
    %167 = arith.divf %163, %166 : vector<1x8x8xf32>
    %cst_65 = arith.constant dense<0.000000e+00> : vector<1x8xf32>
    %168 = vector.multi_reduction <add>, %167, %cst_65 [2] : vector<1x8x8xf32> to vector<1x8xf32>
    %169 = vector.shape_cast %168 : vector<1x8xf32> to vector<1x8x1xf32>
    %170 = vector.broadcast %169 : vector<1x8x1xf32> to vector<1x8x8xf32>
    %171 = arith.divf %167, %170 : vector<1x8x8xf32>
    %cst_66 = arith.constant dense<0xFF800000> : vector<1x8xf32>
    %172 = vector.multi_reduction <maximumf>, %171, %cst_66 [2] : vector<1x8x8xf32> to vector<1x8xf32>
    %cst_67 = arith.constant 0xFF800000 : f32
    %173 = vector.broadcast %cst_67 : f32 to vector<1x8xf32>
    %174 = arith.maximumf %173, %172 : vector<1x8xf32>
    %175 = vector.shape_cast %174 : vector<1x8xf32> to vector<1x8x1xf32>
    %176 = vector.broadcast %175 : vector<1x8x1xf32> to vector<1x8x8xf32>
    %177 = arith.subf %171, %176 : vector<1x8x8xf32>
    %178 = math.exp %177 : vector<1x8x8xf32>
    %cst_68 = arith.constant dense<0.000000e+00> : vector<1x8xf32>
    %179 = vector.multi_reduction <add>, %178, %cst_68 [2] : vector<1x8x8xf32> to vector<1x8xf32>
    %180 = vector.shape_cast %179 : vector<1x8xf32> to vector<1x8x1xf32>
    %181 = vector.broadcast %180 : vector<1x8x1xf32> to vector<1x8x8xf32>
    %182 = arith.divf %178, %181 : vector<1x8x8xf32>
    %cst_69 = arith.constant dense<0.000000e+00> : vector<1x8x64xf32>
    %183 = tpu.matmul %182, %154, %cst_69 {dimension_numbers = #tpu.dot_dimension_numbers<[2], [1], [1], [2], [0, 0, 0, 1, 1, 2], [0], [0]>} : vector<1x8x8xf32>, vector<1x8x64xf32>, vector<1x8x64xf32> -> vector<1x8x64xf32>
    %184 = vector.shape_cast %183 : vector<1x8x64xf32> to vector<8x64xf32>
    %185 = arith.truncf %184 : vector<8x64xf32> to vector<8x64xbf16>
    %c0_70 = arith.constant 0 : index
    %c0_71 = arith.constant 0 : index
    %186 = vector.load %arg9[%c0_70, %c0_71] : memref<64x128xbf16, #tpu.memory_space<vmem>>, vector<64x128xbf16>
    %cst_72 = arith.constant dense<0.000000e+00> : vector<8x128xf32>
    %187 = tpu.matmul %185, %186, %cst_72 {dimension_numbers = #tpu.dot_dimension_numbers<[1], [0], [0], [1], [0, 0, 1, 1], [], []>} : vector<8x64xbf16>, vector<64x128xbf16>, vector<8x128xf32> -> vector<8x128xf32>
    %188 = arith.truncf %10 : vector<8x64xf32> to vector<8x64xbf16>
    %c0_73 = arith.constant 0 : index
    %c0_74 = arith.constant 0 : index
    %189 = vector.load %arg10[%c0_73, %c0_74] : memref<64x128xbf16, #tpu.memory_space<vmem>>, vector<64x128xbf16>
    %cst_75 = arith.constant dense<0.000000e+00> : vector<8x128xf32>
    %190 = tpu.matmul %188, %189, %cst_75 {dimension_numbers = #tpu.dot_dimension_numbers<[1], [0], [0], [1], [0, 0, 1, 1], [], []>} : vector<8x64xbf16>, vector<64x128xbf16>, vector<8x128xf32> -> vector<8x128xf32>
    %191 = arith.addf %187, %190 : vector<8x128xf32>
    %c0_76 = arith.constant 0 : index
    %c0_77 = arith.constant 0 : index
    %192 = vector.load %arg11[%c0_76, %c0_77] : memref<1x128xf32, #tpu.memory_space<vmem>>, vector<1x128xf32>
    %193 = vector.broadcast %192 : vector<1x128xf32> to vector<8x128xf32>
    %194 = arith.addf %191, %193 : vector<8x128xf32>
    %195 = vector.extract_strided_slice %194 {offsets = [0, 0], sizes = [8, 64], strides = [1, 1]} : vector<8x128xf32> to vector<8x64xf32>
    %196 = arith.negf %195 : vector<8x64xf32>
    %197 = math.exp %196 : vector<8x64xf32>
    %cst_78 = arith.constant 1.000000e+00 : f32
    %198 = vector.broadcast %cst_78 : f32 to vector<8x64xf32>
    %199 = arith.addf %198, %197 : vector<8x64xf32>
    %200 = arith.divf %198, %199 : vector<8x64xf32>
    %201 = vector.extract_strided_slice %194 {offsets = [0, 64], sizes = [8, 64], strides = [1, 1]} : vector<8x128xf32> to vector<8x64xf32>
    %202 = arith.mulf %200, %201 : vector<8x64xf32>
    %203 = arith.addf %202, %3 : vector<8x64xf32>
    %cst_79 = arith.constant dense<0.000000e+00> : vector<8xf32>
    %204 = vector.multi_reduction <add>, %203, %cst_79 [1] : vector<8x64xf32> to vector<8xf32>
    %205 = vector.shape_cast %204 : vector<8xf32> to vector<8x1xf32>
    %cst_80 = arith.constant 6.400000e+01 : f32
    %206 = vector.broadcast %cst_80 : f32 to vector<8x1xf32>
    %207 = arith.divf %205, %206 : vector<8x1xf32>
    %208 = vector.broadcast %207 : vector<8x1xf32> to vector<8x64xf32>
    %209 = arith.subf %203, %208 : vector<8x64xf32>
    %210 = arith.mulf %209, %209 : vector<8x64xf32>
    %cst_81 = arith.constant dense<0.000000e+00> : vector<8xf32>
    %211 = vector.multi_reduction <add>, %210, %cst_81 [1] : vector<8x64xf32> to vector<8xf32>
    %212 = vector.shape_cast %211 : vector<8xf32> to vector<8x1xf32>
    %cst_82 = arith.constant 6.400000e+01 : f32
    %213 = vector.broadcast %cst_82 : f32 to vector<8x1xf32>
    %214 = arith.divf %212, %213 : vector<8x1xf32>
    %cst_83 = arith.constant 9.99999974E-6 : f32
    %215 = vector.broadcast %cst_83 : f32 to vector<8x1xf32>
    %216 = arith.addf %214, %215 : vector<8x1xf32>
    %217 = math.rsqrt %216 : vector<8x1xf32>
    %218 = vector.broadcast %217 : vector<8x1xf32> to vector<8x64xf32>
    %219 = arith.mulf %209, %218 : vector<8x64xf32>
    %c0_84 = arith.constant 0 : index
    %c0_85 = arith.constant 0 : index
    %220 = vector.load %arg12[%c0_84, %c0_85] : memref<1x64xf32, #tpu.memory_space<vmem>>, vector<1x64xf32>
    %221 = vector.broadcast %220 : vector<1x64xf32> to vector<8x64xf32>
    %222 = arith.mulf %219, %221 : vector<8x64xf32>
    %c0_86 = arith.constant 0 : index
    %c0_87 = arith.constant 0 : index
    %223 = vector.load %arg13[%c0_86, %c0_87] : memref<1x64xf32, #tpu.memory_space<vmem>>, vector<1x64xf32>
    %224 = vector.broadcast %223 : vector<1x64xf32> to vector<8x64xf32>
    %225 = arith.addf %222, %224 : vector<8x64xf32>
    %226 = arith.addf %1, %225 : vector<8x64xf32>
    %227 = arith.truncf %226 : vector<8x64xf32> to vector<8x64xbf16>
    %c0_88 = arith.constant 0 : index
    %c0_89 = arith.constant 0 : index
    %228 = vector.load %arg14[%c0_88, %c0_89] : memref<64x64xbf16, #tpu.memory_space<vmem>>, vector<64x64xbf16>
    %cst_90 = arith.constant dense<0.000000e+00> : vector<8x64xf32>
    %229 = tpu.matmul %227, %228, %cst_90 {dimension_numbers = #tpu.dot_dimension_numbers<[1], [0], [0], [1], [0, 0, 1, 1], [], []>} : vector<8x64xbf16>, vector<64x64xbf16>, vector<8x64xf32> -> vector<8x64xf32>
    %c0_91 = arith.constant 0 : index
    %c0_92 = arith.constant 0 : index
    %230 = vector.load %arg15[%c0_91, %c0_92] : memref<1x64xf32, #tpu.memory_space<vmem>>, vector<1x64xf32>
    %231 = vector.broadcast %230 : vector<1x64xf32> to vector<8x64xf32>
    %232 = arith.addf %229, %231 : vector<8x64xf32>
    %cst_93 = arith.constant 0.000000e+00 : f32
    %233 = vector.broadcast %cst_93 : f32 to vector<8x64xf32>
    %234 = arith.maximumf %232, %233 : vector<8x64xf32>
    %235 = arith.truncf %234 : vector<8x64xf32> to vector<8x64xbf16>
    %c0_94 = arith.constant 0 : index
    %c0_95 = arith.constant 0 : index
    %236 = vector.load %arg16[%c0_94, %c0_95] : memref<64x64xbf16, #tpu.memory_space<vmem>>, vector<64x64xbf16>
    %cst_96 = arith.constant dense<0.000000e+00> : vector<8x64xf32>
    %237 = tpu.matmul %235, %236, %cst_96 {dimension_numbers = #tpu.dot_dimension_numbers<[1], [0], [0], [1], [0, 0, 1, 1], [], []>} : vector<8x64xbf16>, vector<64x64xbf16>, vector<8x64xf32> -> vector<8x64xf32>
    %c0_97 = arith.constant 0 : index
    %c0_98 = arith.constant 0 : index
    %238 = vector.load %arg17[%c0_97, %c0_98] : memref<1x64xf32, #tpu.memory_space<vmem>>, vector<1x64xf32>
    %239 = vector.broadcast %238 : vector<1x64xf32> to vector<8x64xf32>
    %240 = arith.addf %237, %239 : vector<8x64xf32>
    %cst_99 = arith.constant 0.000000e+00 : f32
    %241 = vector.broadcast %cst_99 : f32 to vector<8x64xf32>
    %242 = arith.maximumf %240, %241 : vector<8x64xf32>
    %243 = arith.addf %226, %242 : vector<8x64xf32>
    %c0_100 = arith.constant 0 : index
    %c0_101 = arith.constant 0 : index
    %244 = vector.load %arg18[%c0_100, %c0_101] : memref<64x128xbf16, #tpu.memory_space<vmem>>, vector<64x128xbf16>
    %cst_102 = arith.constant dense<0.000000e+00> : vector<8x128xf32>
    %245 = tpu.matmul %4, %244, %cst_102 {dimension_numbers = #tpu.dot_dimension_numbers<[1], [0], [0], [1], [0, 0, 1, 1], [], []>} : vector<8x64xbf16>, vector<64x128xbf16>, vector<8x128xf32> -> vector<8x128xf32>
    %246 = math.tanh %3 : vector<8x64xf32>
    %247 = arith.truncf %246 : vector<8x64xf32> to vector<8x64xbf16>
    %c0_103 = arith.constant 0 : index
    %c0_104 = arith.constant 0 : index
    %248 = vector.load %arg19[%c0_103, %c0_104] : memref<64x128xbf16, #tpu.memory_space<vmem>>, vector<64x128xbf16>
    %cst_105 = arith.constant dense<0.000000e+00> : vector<8x128xf32>
    %249 = tpu.matmul %247, %248, %cst_105 {dimension_numbers = #tpu.dot_dimension_numbers<[1], [0], [0], [1], [0, 0, 1, 1], [], []>} : vector<8x64xbf16>, vector<64x128xbf16>, vector<8x128xf32> -> vector<8x128xf32>
    %250 = arith.addf %245, %249 : vector<8x128xf32>
    %c0_106 = arith.constant 0 : index
    %c0_107 = arith.constant 0 : index
    %251 = vector.load %arg20[%c0_106, %c0_107] : memref<1x128xf32, #tpu.memory_space<vmem>>, vector<1x128xf32>
    %252 = vector.broadcast %251 : vector<1x128xf32> to vector<8x128xf32>
    %253 = arith.addf %250, %252 : vector<8x128xf32>
    %254 = vector.extract_strided_slice %253 {offsets = [0, 0], sizes = [8, 64], strides = [1, 1]} : vector<8x128xf32> to vector<8x64xf32>
    %255 = arith.negf %254 : vector<8x64xf32>
    %256 = math.exp %255 : vector<8x64xf32>
    %cst_108 = arith.constant 1.000000e+00 : f32
    %257 = vector.broadcast %cst_108 : f32 to vector<8x64xf32>
    %258 = arith.addf %257, %256 : vector<8x64xf32>
    %259 = arith.divf %257, %258 : vector<8x64xf32>
    %260 = vector.extract_strided_slice %253 {offsets = [0, 64], sizes = [8, 64], strides = [1, 1]} : vector<8x128xf32> to vector<8x64xf32>
    %261 = arith.negf %260 : vector<8x64xf32>
    %262 = math.exp %261 : vector<8x64xf32>
    %cst_109 = arith.constant 1.000000e+00 : f32
    %263 = vector.broadcast %cst_109 : f32 to vector<8x64xf32>
    %264 = arith.addf %263, %262 : vector<8x64xf32>
    %265 = arith.divf %263, %264 : vector<8x64xf32>
    %266 = math.tanh %243 : vector<8x64xf32>
    %267 = arith.mulf %259, %266 : vector<8x64xf32>
    %268 = arith.mulf %265, %1 : vector<8x64xf32>
    %269 = arith.addf %267, %268 : vector<8x64xf32>
    %270 = vector.shape_cast %269 : vector<8x64xf32> to vector<1x8x64xf32>
    %c0_110 = arith.constant 0 : index
    %c0_111 = arith.constant 0 : index
    %c0_112 = arith.constant 0 : index
    %271 = vector.load %arg21[%c0_110, %c0_111, %c0_112] : memref<1x8x64xf32, #tpu.memory_space<vmem>>, vector<1x8x64xf32>
    tpu.vector_store %arg21[%c0_110, %c0_111, %c0_112], %270 {strides = array<i32>} : memref<1x8x64xf32, #tpu.memory_space<vmem>>, vector<1x8x64xf32>,
    return
  }
  func.func @transform_0(%arg0: i32) -> (i32, i32, i32) {
    %c0_i32 = arith.constant 0 : i32
    %c0_i32_0 = arith.constant 0 : i32
    %c0_i32_1 = arith.constant 0 : i32
    return %arg0, %c0_i32, %c0_i32_0 : i32, i32, i32
  }
  func.func @transform_1(%arg0: i32) -> (i32, i32, i32) {
    %c0_i32 = arith.constant 0 : i32
    %c0_i32_0 = arith.constant 0 : i32
    %c0_i32_1 = arith.constant 0 : i32
    return %arg0, %c0_i32, %c0_i32_0 : i32, i32, i32
  }
  func.func @transform_2(%arg0: i32) -> (i32, i32) {
    %c0_i32 = arith.constant 0 : i32
    %c0_i32_0 = arith.constant 0 : i32
    %c0_i32_1 = arith.constant 0 : i32
    return %c0_i32, %c0_i32_0 : i32, i32
  }
  func.func @transform_3(%arg0: i32) -> (i32, i32) {
    %c0_i32 = arith.constant 0 : i32
    %c0_i32_0 = arith.constant 0 : i32
    %c0_i32_1 = arith.constant 0 : i32
    return %c0_i32, %c0_i32_0 : i32, i32
  }
  func.func @transform_4(%arg0: i32) -> (i32, i32) {
    %c0_i32 = arith.constant 0 : i32
    %c0_i32_0 = arith.constant 0 : i32
    %c0_i32_1 = arith.constant 0 : i32
    return %c0_i32, %c0_i32_0 : i32, i32
  }
  func.func @transform_5(%arg0: i32) -> (i32, i32) {
    %c0_i32 = arith.constant 0 : i32
    %c0_i32_0 = arith.constant 0 : i32
    %c0_i32_1 = arith.constant 0 : i32
    return %c0_i32, %c0_i32_0 : i32, i32
  }
  func.func @transform_6(%arg0: i32) -> (i32, i32) {
    %c0_i32 = arith.constant 0 : i32
    %c0_i32_0 = arith.constant 0 : i32
    %c0_i32_1 = arith.constant 0 : i32
    return %c0_i32, %c0_i32_0 : i32, i32
  }
  func.func @transform_7(%arg0: i32) -> (i32, i32) {
    %c0_i32 = arith.constant 0 : i32
    %c0_i32_0 = arith.constant 0 : i32
    %c0_i32_1 = arith.constant 0 : i32
    return %c0_i32, %c0_i32_0 : i32, i32
  }
  func.func @transform_8(%arg0: i32) -> (i32, i32) {
    %c0_i32 = arith.constant 0 : i32
    %c0_i32_0 = arith.constant 0 : i32
    %c0_i32_1 = arith.constant 0 : i32
    return %c0_i32, %c0_i32_0 : i32, i32
  }
  func.func @transform_9(%arg0: i32) -> (i32, i32) {
    %c0_i32 = arith.constant 0 : i32
    %c0_i32_0 = arith.constant 0 : i32
    %c0_i32_1 = arith.constant 0 : i32
    return %c0_i32, %c0_i32_0 : i32, i32
  }
  func.func @transform_10(%arg0: i32) -> (i32, i32) {
    %c0_i32 = arith.constant 0 : i32
    %c0_i32_0 = arith.constant 0 : i32
    %c0_i32_1 = arith.constant 0 : i32
    return %c0_i32, %c0_i32_0 : i32, i32
  }
  func.func @transform_11(%arg0: i32) -> (i32, i32) {
    %c0_i32 = arith.constant 0 : i32
    %c0_i32_0 = arith.constant 0 : i32
    %c0_i32_1 = arith.constant 0 : i32
    return %c0_i32, %c0_i32_0 : i32, i32
  }
  func.func @transform_12(%arg0: i32) -> (i32, i32) {
    %c0_i32 = arith.constant 0 : i32
    %c0_i32_0 = arith.constant 0 : i32
    %c0_i32_1 = arith.constant 0 : i32
    return %c0_i32, %c0_i32_0 : i32, i32
  }
  func.func @transform_13(%arg0: i32) -> (i32, i32) {
    %c0_i32 = arith.constant 0 : i32
    %c0_i32_0 = arith.constant 0 : i32
    %c0_i32_1 = arith.constant 0 : i32
    return %c0_i32, %c0_i32_0 : i32, i32
  }
  func.func @transform_14(%arg0: i32) -> (i32, i32) {
    %c0_i32 = arith.constant 0 : i32
    %c0_i32_0 = arith.constant 0 : i32
    %c0_i32_1 = arith.constant 0 : i32
    return %c0_i32, %c0_i32_0 : i32, i32
  }
  func.func @transform_15(%arg0: i32) -> (i32, i32) {
    %c0_i32 = arith.constant 0 : i32
    %c0_i32_0 = arith.constant 0 : i32
    %c0_i32_1 = arith.constant 0 : i32
    return %c0_i32, %c0_i32_0 : i32, i32
  }
  func.func @transform_16(%arg0: i32) -> (i32, i32) {
    %c0_i32 = arith.constant 0 : i32
    %c0_i32_0 = arith.constant 0 : i32
    %c0_i32_1 = arith.constant 0 : i32
    return %c0_i32, %c0_i32_0 : i32, i32
  }
  func.func @transform_17(%arg0: i32) -> (i32, i32) {
    %c0_i32 = arith.constant 0 : i32
    %c0_i32_0 = arith.constant 0 : i32
    %c0_i32_1 = arith.constant 0 : i32
    return %c0_i32, %c0_i32_0 : i32, i32
  }
  func.func @transform_18(%arg0: i32) -> (i32, i32) {
    %c0_i32 = arith.constant 0 : i32
    %c0_i32_0 = arith.constant 0 : i32
    %c0_i32_1 = arith.constant 0 : i32
    return %c0_i32, %c0_i32_0 : i32, i32
  }
  func.func @transform_19(%arg0: i32) -> (i32, i32) {
    %c0_i32 = arith.constant 0 : i32
    %c0_i32_0 = arith.constant 0 : i32
    %c0_i32_1 = arith.constant 0 : i32
    return %c0_i32, %c0_i32_0 : i32, i32
  }
  func.func @transform_20(%arg0: i32) -> (i32, i32, i32) {
    %c0_i32 = arith.constant 0 : i32
    %c0_i32_0 = arith.constant 0 : i32
    %c0_i32_1 = arith.constant 0 : i32
    return %arg0, %c0_i32, %c0_i32_0 : i32, i32, i32
  }
}

module attributes {stable_mosaic.version = 11 : i64} {
  func.func @relation_memory_kernel(%arg0: i32, %arg1: memref<1x8x64xf32, #tpu.memory_space<vmem>>, %arg2: memref<1x8x64xf32, #tpu.memory_space<vmem>>, %arg3: memref<64x64xbf16, #tpu.memory_space<vmem>>, %arg4: memref<1x64xf32, #tpu.memory_space<vmem>>, %arg5: memref<64x64xbf16, #tpu.memory_space<vmem>>, %arg6: memref<1x64xf32, #tpu.memory_space<vmem>>, %arg7: memref<64x64xbf16, #tpu.memory_space<vmem>>, %arg8: memref<1x64xf32, #tpu.memory_space<vmem>>, %arg9: memref<64x128xbf16, #tpu.memory_space<vmem>>, %arg10: memref<64x128xbf16, #tpu.memory_space<vmem>>, %arg11: memref<1x128xf32, #tpu.memory_space<vmem>>, %arg12: memref<1x64xf32, #tpu.memory_space<vmem>>, %arg13: memref<1x64xf32, #tpu.memory_space<vmem>>, %arg14: memref<64x64xbf16, #tpu.memory_space<vmem>>, %arg15: memref<1x64xf32, #tpu.memory_space<vmem>>, %arg16: memref<64x64xbf16, #tpu.memory_space<vmem>>, %arg17: memref<1x64xf32, #tpu.memory_space<vmem>>, %arg18: memref<64x128xbf16, #tpu.memory_space<vmem>>, %arg19: memref<64x128xbf16, #tpu.memory_space<vmem>>, %arg20: memref<1x128xf32, #tpu.memory_space<vmem>>, %arg21: memref<1x8x64xf32, #tpu.memory_space<vmem>>) attributes {dimension_semantics = [#tpu.dimension_semantics<parallel>], iteration_bounds = array<i64: 2>, scalar_prefetch = 0 : i64, scratch_operands = 0 : i64, tpu.core_type = #tpu.core_type<tc>, window_params = [{transform_indices = @transform_0, window_bounds = array<i64: 1, 8, 64>}, {transform_indices = @transform_1, window_bounds = array<i64: 1, 8, 64>}, {pipeline_mode = #tpu.pipeline_mode<synchronous>, transform_indices = @transform_2, window_bounds = array<i64: 64, 64>}, {pipeline_mode = #tpu.pipeline_mode<synchronous>, transform_indices = @transform_3, window_bounds = array<i64: 1, 64>}, {pipeline_mode = #tpu.pipeline_mode<synchronous>, transform_indices = @transform_4, window_bounds = array<i64: 64, 64>}, {pipeline_mode = #tpu.pipeline_mode<synchronous>, transform_indices = @transform_5, window_bounds = array<i64: 1, 64>}, {pipeline_mode = #tpu.pipeline_mode<synchronous>, transform_indices = @transform_6, window_bounds = array<i64: 64, 64>}, {pipeline_mode = #tpu.pipeline_mode<synchronous>, transform_indices = @transform_7, window_bounds = array<i64: 1, 64>}, {pipeline_mode = #tpu.pipeline_mode<synchronous>, transform_indices = @transform_8, window_bounds = array<i64: 64, 128>}, {pipeline_mode = #tpu.pipeline_mode<synchronous>, transform_indices = @transform_9, window_bounds = array<i64: 64, 128>}, {pipeline_mode = #tpu.pipeline_mode<synchronous>, transform_indices = @transform_10, window_bounds = array<i64: 1, 128>}, {pipeline_mode = #tpu.pipeline_mode<synchronous>, transform_indices = @transform_11, window_bounds = array<i64: 1, 64>}, {pipeline_mode = #tpu.pipeline_mode<synchronous>, transform_indices = @transform_12, window_bounds = array<i64: 1, 64>}, {pipeline_mode = #tpu.pipeline_mode<synchronous>, transform_indices = @transform_13, window_bounds = array<i64: 64, 64>}, {pipeline_mode = #tpu.pipeline_mode<synchronous>, transform_indices = @transform_14, window_bounds = array<i64: 1, 64>}, {pipeline_mode = #tpu.pipeline_mode<synchronous>, transform_indices = @transform_15, window_bounds = array<i64: 64, 64>}, {pipeline_mode = #tpu.pipeline_mode<synchronous>, transform_indices = @transform_16, window_bounds = array<i64: 1, 64>}, {pipeline_mode = #tpu.pipeline_mode<synchronous>, transform_indices = @transform_17, window_bounds = array<i64: 64, 128>}, {pipeline_mode = #tpu.pipeline_mode<synchronous>, transform_indices = @transform_18, window_bounds = array<i64: 64, 128>}, {pipeline_mode = #tpu.pipeline_mode<synchronous>, transform_indices = @transform_19, window_bounds = array<i64: 1, 128>}, {transform_indices = @transform_20, window_bounds = array<i64: 1, 8, 64>}]} {
    %c0 = arith.constant 0 : index
    %c0_0 = arith.constant 0 : index
    %c0_1 = arith.constant 0 : index
    %0 = vector.load %arg1[%c0, %c0_0, %c0_1] : memref<1x8x64xf32, #tpu.memory_space<vmem>>, vector<1x8x64xf32>
    %1 = vector.shape_cast %0 : vector<1x8x64xf32> to vector<8x64xf32>
    %c0_2 = arith.constant 0 : index
    %c0_3 = arith.constant 0 : index
    %c0_4 = arith.constant 0 : index
    %2 = vector.load %arg2[%c0_2, %c0_3, %c0_4] : memref<1x8x64xf32, #tpu.memory_space<vmem>>, vector<1x8x64xf32>
    %3 = vector.shape_cast %2 : vector<1x8x64xf32> to vector<8x64xf32>
    %4 = arith.truncf %1 : vector<8x64xf32> to vector<8x64xbf16>
    %5 = arith.truncf %3 : vector<8x64xf32> to vector<8x64xbf16>
    %c0_5 = arith.constant 0 : index
    %c0_6 = arith.constant 0 : index
    %6 = vector.load %arg3[%c0_5, %c0_6] : memref<64x64xbf16, #tpu.memory_space<vmem>>, vector<64x64xbf16>
    %cst = arith.constant dense<0.000000e+00> : vector<8x64xf32>
    %7 = tpu.matmul %4, %6, %cst {dimension_numbers = #tpu.dot_dimension_numbers<[1], [0], [0], [1], [0, 0, 1, 1], [], []>} : vector<8x64xbf16>, vector<64x64xbf16>, vector<8x64xf32> -> vector<8x64xf32>
    %c0_7 = arith.constant 0 : index
    %c0_8 = arith.constant 0 : index
    %8 = vector.load %arg4[%c0_7, %c0_8] : memref<1x64xf32, #tpu.memory_space<vmem>>, vector<1x64xf32>
    %9 = vector.broadcast %8 : vector<1x64xf32> to vector<8x64xf32>
    %10 = arith.addf %7, %9 : vector<8x64xf32>
    %c0_9 = arith.constant 0 : index
    %c0_10 = arith.constant 0 : index
    %11 = vector.load %arg5[%c0_9, %c0_10] : memref<64x64xbf16, #tpu.memory_space<vmem>>, vector<64x64xbf16>
    %cst_11 = arith.constant dense<0.000000e+00> : vector<8x64xf32>
    %12 = tpu.matmul %5, %11, %cst_11 {dimension_numbers = #tpu.dot_dimension_numbers<[1], [0], [0], [1], [0, 0, 1, 1], [], []>} : vector<8x64xbf16>, vector<64x64xbf16>, vector<8x64xf32> -> vector<8x64xf32>
    %c0_12 = arith.constant 0 : index
    %c0_13 = arith.constant 0 : index
    %13 = vector.load %arg6[%c0_12, %c0_13] : memref<1x64xf32, #tpu.memory_space<vmem>>, vector<1x64xf32>
    %14 = vector.broadcast %13 : vector<1x64xf32> to vector<8x64xf32>
    %15 = arith.addf %12, %14 : vector<8x64xf32>
    %c0_14 = arith.constant 0 : index
    %c0_15 = arith.constant 0 : index
    %16 = vector.load %arg7[%c0_14, %c0_15] : memref<64x64xbf16, #tpu.memory_space<vmem>>, vector<64x64xbf16>
    %cst_16 = arith.constant dense<0.000000e+00> : vector<8x64xf32>
    %17 = tpu.matmul %5, %16, %cst_16 {dimension_numbers = #tpu.dot_dimension_numbers<[1], [0], [0], [1], [0, 0, 1, 1], [], []>} : vector<8x64xbf16>, vector<64x64xbf16>, vector<8x64xf32> -> vector<8x64xf32>
    %c0_17 = arith.constant 0 : index
    %c0_18 = arith.constant 0 : index
    %18 = vector.load %arg8[%c0_17, %c0_18] : memref<1x64xf32, #tpu.memory_space<vmem>>, vector<1x64xf32>
    %19 = vector.broadcast %18 : vector<1x64xf32> to vector<8x64xf32>
    %20 = arith.addf %17, %19 : vector<8x64xf32>
    %21 = vector.shape_cast %10 : vector<8x64xf32> to vector<1x8x64xf32>
    %22 = vector.shape_cast %15 : vector<8x64xf32> to vector<1x8x64xf32>
    %23 = vector.shape_cast %20 : vector<8x64xf32> to vector<1x8x64xf32>
    %cst_19 = arith.constant 1.250000e-01 : f32
    %24 = vector.broadcast %cst_19 : f32 to vector<1x8x64xf32>
    %25 = arith.mulf %21, %24 : vector<1x8x64xf32>
    %26 = vector.extract_strided_slice %25 {offsets = [0, 0, 0], sizes = [1, 8, 8], strides = [1, 1, 1]} : vector<1x8x64xf32> to vector<1x8x8xf32>
    %27 = vector.extract_strided_slice %22 {offsets = [0, 0, 0], sizes = [1, 8, 8], strides = [1, 1, 1]} : vector<1x8x64xf32> to vector<1x8x8xf32>
    %28 = vector.extract_strided_slice %23 {offsets = [0, 0, 0], sizes = [1, 8, 8], strides = [1, 1, 1]} : vector<1x8x64xf32> to vector<1x8x8xf32>
    %cst_20 = arith.constant dense<0.000000e+00> : vector<1x8x8xf32>
    %29 = tpu.matmul %26, %27, %cst_20 {dimension_numbers = #tpu.dot_dimension_numbers<[2], [2], [1], [1], [0, 0, 0, 1, 1, 1], [0], [0]>} : vector<1x8x8xf32>, vector<1x8x8xf32>, vector<1x8x8xf32> -> vector<1x8x8xf32>
    %cst_21 = arith.constant dense<0xFF800000> : vector<1x8xf32>
    %30 = vector.multi_reduction <maximumf>, %29, %cst_21 [2] : vector<1x8x8xf32> to vector<1x8xf32>
    %cst_22 = arith.constant 0xFF800000 : f32
    %31 = vector.broadcast %cst_22 : f32 to vector<1x8xf32>
    %32 = arith.maximumf %31, %30 : vector<1x8xf32>
    %33 = vector.shape_cast %32 : vector<1x8xf32> to vector<1x8x1xf32>
    %34 = vector.broadcast %33 : vector<1x8x1xf32> to vector<1x8x8xf32>
    %35 = arith.subf %29, %34 : vector<1x8x8xf32>
    %36 = math.exp %35 : vector<1x8x8xf32>
    %cst_23 = arith.constant dense<0.000000e+00> : vector<1x8xf32>
    %37 = vector.multi_reduction <add>, %36, %cst_23 [2] : vector<1x8x8xf32> to vector<1x8xf32>
    %38 = vector.shape_cast %37 : vector<1x8xf32> to vector<1x8x1xf32>
    %39 = vector.broadcast %38 : vector<1x8x1xf32> to vector<1x8x8xf32>
    %40 = arith.divf %36, %39 : vector<1x8x8xf32>
    %cst_24 = arith.constant dense<0.000000e+00> : vector<1x8x8xf32>
    %41 = tpu.matmul %40, %28, %cst_24 {dimension_numbers = #tpu.dot_dimension_numbers<[2], [1], [1], [2], [0, 0, 0, 1, 1, 2], [0], [0]>} : vector<1x8x8xf32>, vector<1x8x8xf32>, vector<1x8x8xf32> -> vector<1x8x8xf32>
    %42 = vector.extract_strided_slice %25 {offsets = [0, 0, 8], sizes = [1, 8, 8], strides = [1, 1, 1]} : vector<1x8x64xf32> to vector<1x8x8xf32>
    %43 = vector.extract_strided_slice %22 {offsets = [0, 0, 8], sizes = [1, 8, 8], strides = [1, 1, 1]} : vector<1x8x64xf32> to vector<1x8x8xf32>
    %44 = vector.extract_strided_slice %23 {offsets = [0, 0, 8], sizes = [1, 8, 8], strides = [1, 1, 1]} : vector<1x8x64xf32> to vector<1x8x8xf32>
    %cst_25 = arith.constant dense<0.000000e+00> : vector<1x8x8xf32>
    %45 = tpu.matmul %42, %43, %cst_25 {dimension_numbers = #tpu.dot_dimension_numbers<[2], [2], [1], [1], [0, 0, 0, 1, 1, 1], [0], [0]>} : vector<1x8x8xf32>, vector<1x8x8xf32>, vector<1x8x8xf32> -> vector<1x8x8xf32>
    %cst_26 = arith.constant dense<0xFF800000> : vector<1x8xf32>
    %46 = vector.multi_reduction <maximumf>, %45, %cst_26 [2] : vector<1x8x8xf32> to vector<1x8xf32>
    %cst_27 = arith.constant 0xFF800000 : f32
    %47 = vector.broadcast %cst_27 : f32 to vector<1x8xf32>
    %48 = arith.maximumf %47, %46 : vector<1x8xf32>
    %49 = vector.shape_cast %48 : vector<1x8xf32> to vector<1x8x1xf32>
    %50 = vector.broadcast %49 : vector<1x8x1xf32> to vector<1x8x8xf32>
    %51 = arith.subf %45, %50 : vector<1x8x8xf32>
    %52 = math.exp %51 : vector<1x8x8xf32>
    %cst_28 = arith.constant dense<0.000000e+00> : vector<1x8xf32>
    %53 = vector.multi_reduction <add>, %52, %cst_28 [2] : vector<1x8x8xf32> to vector<1x8xf32>
    %54 = vector.shape_cast %53 : vector<1x8xf32> to vector<1x8x1xf32>
    %55 = vector.broadcast %54 : vector<1x8x1xf32> to vector<1x8x8xf32>
    %56 = arith.divf %52, %55 : vector<1x8x8xf32>
    %cst_29 = arith.constant dense<0.000000e+00> : vector<1x8x8xf32>
    %57 = tpu.matmul %56, %44, %cst_29 {dimension_numbers = #tpu.dot_dimension_numbers<[2], [1], [1], [2], [0, 0, 0, 1, 1, 2], [0], [0]>} : vector<1x8x8xf32>, vector<1x8x8xf32>, vector<1x8x8xf32> -> vector<1x8x8xf32>
    %58 = vector.extract_strided_slice %25 {offsets = [0, 0, 16], sizes = [1, 8, 8], strides = [1, 1, 1]} : vector<1x8x64xf32> to vector<1x8x8xf32>
    %59 = vector.extract_strided_slice %22 {offsets = [0, 0, 16], sizes = [1, 8, 8], strides = [1, 1, 1]} : vector<1x8x64xf32> to vector<1x8x8xf32>
    %60 = vector.extract_strided_slice %23 {offsets = [0, 0, 16], sizes = [1, 8, 8], strides = [1, 1, 1]} : vector<1x8x64xf32> to vector<1x8x8xf32>
    %cst_30 = arith.constant dense<0.000000e+00> : vector<1x8x8xf32>
    %61 = tpu.matmul %58, %59, %cst_30 {dimension_numbers = #tpu.dot_dimension_numbers<[2], [2], [1], [1], [0, 0, 0, 1, 1, 1], [0], [0]>} : vector<1x8x8xf32>, vector<1x8x8xf32>, vector<1x8x8xf32> -> vector<1x8x8xf32>
    %cst_31 = arith.constant dense<0xFF800000> : vector<1x8xf32>
    %62 = vector.multi_reduction <maximumf>, %61, %cst_31 [2] : vector<1x8x8xf32> to vector<1x8xf32>
    %cst_32 = arith.constant 0xFF800000 : f32
    %63 = vector.broadcast %cst_32 : f32 to vector<1x8xf32>
    %64 = arith.maximumf %63, %62 : vector<1x8xf32>
    %65 = vector.shape_cast %64 : vector<1x8xf32> to vector<1x8x1xf32>
    %66 = vector.broadcast %65 : vector<1x8x1xf32> to vector<1x8x8xf32>
    %67 = arith.subf %61, %66 : vector<1x8x8xf32>
    %68 = math.exp %67 : vector<1x8x8xf32>
    %cst_33 = arith.constant dense<0.000000e+00> : vector<1x8xf32>
    %69 = vector.multi_reduction <add>, %68, %cst_33 [2] : vector<1x8x8xf32> to vector<1x8xf32>
    %70 = vector.shape_cast %69 : vector<1x8xf32> to vector<1x8x1xf32>
    %71 = vector.broadcast %70 : vector<1x8x1xf32> to vector<1x8x8xf32>
    %72 = arith.divf %68, %71 : vector<1x8x8xf32>
    %cst_34 = arith.constant dense<0.000000e+00> : vector<1x8x8xf32>
    %73 = tpu.matmul %72, %60, %cst_34 {dimension_numbers = #tpu.dot_dimension_numbers<[2], [1], [1], [2], [0, 0, 0, 1, 1, 2], [0], [0]>} : vector<1x8x8xf32>, vector<1x8x8xf32>, vector<1x8x8xf32> -> vector<1x8x8xf32>
    %74 = vector.extract_strided_slice %25 {offsets = [0, 0, 24], sizes = [1, 8, 8], strides = [1, 1, 1]} : vector<1x8x64xf32> to vector<1x8x8xf32>
    %75 = vector.extract_strided_slice %22 {offsets = [0, 0, 24], sizes = [1, 8, 8], strides = [1, 1, 1]} : vector<1x8x64xf32> to vector<1x8x8xf32>
    %76 = vector.extract_strided_slice %23 {offsets = [0, 0, 24], sizes = [1, 8, 8], strides = [1, 1, 1]} : vector<1x8x64xf32> to vector<1x8x8xf32>
    %cst_35 = arith.constant dense<0.000000e+00> : vector<1x8x8xf32>
    %77 = tpu.matmul %74, %75, %cst_35 {dimension_numbers = #tpu.dot_dimension_numbers<[2], [2], [1], [1], [0, 0, 0, 1, 1, 1], [0], [0]>} : vector<1x8x8xf32>, vector<1x8x8xf32>, vector<1x8x8xf32> -> vector<1x8x8xf32>
    %cst_36 = arith.constant dense<0xFF800000> : vector<1x8xf32>
    %78 = vector.multi_reduction <maximumf>, %77, %cst_36 [2] : vector<1x8x8xf32> to vector<1x8xf32>
    %cst_37 = arith.constant 0xFF800000 : f32
    %79 = vector.broadcast %cst_37 : f32 to vector<1x8xf32>
    %80 = arith.maximumf %79, %78 : vector<1x8xf32>
    %81 = vector.shape_cast %80 : vector<1x8xf32> to vector<1x8x1xf32>
    %82 = vector.broadcast %81 : vector<1x8x1xf32> to vector<1x8x8xf32>
    %83 = arith.subf %77, %82 : vector<1x8x8xf32>
    %84 = math.exp %83 : vector<1x8x8xf32>
    %cst_38 = arith.constant dense<0.000000e+00> : vector<1x8xf32>
    %85 = vector.multi_reduction <add>, %84, %cst_38 [2] : vector<1x8x8xf32> to vector<1x8xf32>
    %86 = vector.shape_cast %85 : vector<1x8xf32> to vector<1x8x1xf32>
    %87 = vector.broadcast %86 : vector<1x8x1xf32> to vector<1x8x8xf32>
    %88 = arith.divf %84, %87 : vector<1x8x8xf32>
    %cst_39 = arith.constant dense<0.000000e+00> : vector<1x8x8xf32>
    %89 = tpu.matmul %88, %76, %cst_39 {dimension_numbers = #tpu.dot_dimension_numbers<[2], [1], [1], [2], [0, 0, 0, 1, 1, 2], [0], [0]>} : vector<1x8x8xf32>, vector<1x8x8xf32>, vector<1x8x8xf32> -> vector<1x8x8xf32>
    %90 = vector.extract_strided_slice %25 {offsets = [0, 0, 32], sizes = [1, 8, 8], strides = [1, 1, 1]} : vector<1x8x64xf32> to vector<1x8x8xf32>
    %91 = vector.extract_strided_slice %22 {offsets = [0, 0, 32], sizes = [1, 8, 8], strides = [1, 1, 1]} : vector<1x8x64xf32> to vector<1x8x8xf32>
    %92 = vector.extract_strided_slice %23 {offsets = [0, 0, 32], sizes = [1, 8, 8], strides = [1, 1, 1]} : vector<1x8x64xf32> to vector<1x8x8xf32>
    %cst_40 = arith.constant dense<0.000000e+00> : vector<1x8x8xf32>
    %93 = tpu.matmul %90, %91, %cst_40 {dimension_numbers = #tpu.dot_dimension_numbers<[2], [2], [1], [1], [0, 0, 0, 1, 1, 1], [0], [0]>} : vector<1x8x8xf32>, vector<1x8x8xf32>, vector<1x8x8xf32> -> vector<1x8x8xf32>
    %cst_41 = arith.constant dense<0xFF800000> : vector<1x8xf32>
    %94 = vector.multi_reduction <maximumf>, %93, %cst_41 [2] : vector<1x8x8xf32> to vector<1x8xf32>
    %cst_42 = arith.constant 0xFF800000 : f32
    %95 = vector.broadcast %cst_42 : f32 to vector<1x8xf32>
    %96 = arith.maximumf %95, %94 : vector<1x8xf32>
    %97 = vector.shape_cast %96 : vector<1x8xf32> to vector<1x8x1xf32>
    %98 = vector.broadcast %97 : vector<1x8x1xf32> to vector<1x8x8xf32>
    %99 = arith.subf %93, %98 : vector<1x8x8xf32>
    %100 = math.exp %99 : vector<1x8x8xf32>
    %cst_43 = arith.constant dense<0.000000e+00> : vector<1x8xf32>
    %101 = vector.multi_reduction <add>, %100, %cst_43 [2] : vector<1x8x8xf32> to vector<1x8xf32>
    %102 = vector.shape_cast %101 : vector<1x8xf32> to vector<1x8x1xf32>
    %103 = vector.broadcast %102 : vector<1x8x1xf32> to vector<1x8x8xf32>
    %104 = arith.divf %100, %103 : vector<1x8x8xf32>
    %cst_44 = arith.constant dense<0.000000e+00> : vector<1x8x8xf32>
    %105 = tpu.matmul %104, %92, %cst_44 {dimension_numbers = #tpu.dot_dimension_numbers<[2], [1], [1], [2], [0, 0, 0, 1, 1, 2], [0], [0]>} : vector<1x8x8xf32>, vector<1x8x8xf32>, vector<1x8x8xf32> -> vector<1x8x8xf32>
    %106 = vector.extract_strided_slice %25 {offsets = [0, 0, 40], sizes = [1, 8, 8], strides = [1, 1, 1]} : vector<1x8x64xf32> to vector<1x8x8xf32>
    %107 = vector.extract_strided_slice %22 {offsets = [0, 0, 40], sizes = [1, 8, 8], strides = [1, 1, 1]} : vector<1x8x64xf32> to vector<1x8x8xf32>
    %108 = vector.extract_strided_slice %23 {offsets = [0, 0, 40], sizes = [1, 8, 8], strides = [1, 1, 1]} : vector<1x8x64xf32> to vector<1x8x8xf32>
    %cst_45 = arith.constant dense<0.000000e+00> : vector<1x8x8xf32>
    %109 = tpu.matmul %106, %107, %cst_45 {dimension_numbers = #tpu.dot_dimension_numbers<[2], [2], [1], [1], [0, 0, 0, 1, 1, 1], [0], [0]>} : vector<1x8x8xf32>, vector<1x8x8xf32>, vector<1x8x8xf32> -> vector<1x8x8xf32>
    %cst_46 = arith.constant dense<0xFF800000> : vector<1x8xf32>
    %110 = vector.multi_reduction <maximumf>, %109, %cst_46 [2] : vector<1x8x8xf32> to vector<1x8xf32>
    %cst_47 = arith.constant 0xFF800000 : f32
    %111 = vector.broadcast %cst_47 : f32 to vector<1x8xf32>
    %112 = arith.maximumf %111, %110 : vector<1x8xf32>
    %113 = vector.shape_cast %112 : vector<1x8xf32> to vector<1x8x1xf32>
    %114 = vector.broadcast %113 : vector<1x8x1xf32> to vector<1x8x8xf32>
    %115 = arith.subf %109, %114 : vector<1x8x8xf32>
    %116 = math.exp %115 : vector<1x8x8xf32>
    %cst_48 = arith.constant dense<0.000000e+00> : vector<1x8xf32>
    %117 = vector.multi_reduction <add>, %116, %cst_48 [2] : vector<1x8x8xf32> to vector<1x8xf32>
    %118 = vector.shape_cast %117 : vector<1x8xf32> to vector<1x8x1xf32>
    %119 = vector.broadcast %118 : vector<1x8x1xf32> to vector<1x8x8xf32>
    %120 = arith.divf %116, %119 : vector<1x8x8xf32>
    %cst_49 = arith.constant dense<0.000000e+00> : vector<1x8x8xf32>
    %121 = tpu.matmul %120, %108, %cst_49 {dimension_numbers = #tpu.dot_dimension_numbers<[2], [1], [1], [2], [0, 0, 0, 1, 1, 2], [0], [0]>} : vector<1x8x8xf32>, vector<1x8x8xf32>, vector<1x8x8xf32> -> vector<1x8x8xf32>
    %122 = vector.extract_strided_slice %25 {offsets = [0, 0, 48], sizes = [1, 8, 8], strides = [1, 1, 1]} : vector<1x8x64xf32> to vector<1x8x8xf32>
    %123 = vector.extract_strided_slice %22 {offsets = [0, 0, 48], sizes = [1, 8, 8], strides = [1, 1, 1]} : vector<1x8x64xf32> to vector<1x8x8xf32>
    %124 = vector.extract_strided_slice %23 {offsets = [0, 0, 48], sizes = [1, 8, 8], strides = [1, 1, 1]} : vector<1x8x64xf32> to vector<1x8x8xf32>
    %cst_50 = arith.constant dense<0.000000e+00> : vector<1x8x8xf32>
    %125 = tpu.matmul %122, %123, %cst_50 {dimension_numbers = #tpu.dot_dimension_numbers<[2], [2], [1], [1], [0, 0, 0, 1, 1, 1], [0], [0]>} : vector<1x8x8xf32>, vector<1x8x8xf32>, vector<1x8x8xf32> -> vector<1x8x8xf32>
    %cst_51 = arith.constant dense<0xFF800000> : vector<1x8xf32>
    %126 = vector.multi_reduction <maximumf>, %125, %cst_51 [2] : vector<1x8x8xf32> to vector<1x8xf32>
    %cst_52 = arith.constant 0xFF800000 : f32
    %127 = vector.broadcast %cst_52 : f32 to vector<1x8xf32>
    %128 = arith.maximumf %127, %126 : vector<1x8xf32>
    %129 = vector.shape_cast %128 : vector<1x8xf32> to vector<1x8x1xf32>
    %130 = vector.broadcast %129 : vector<1x8x1xf32> to vector<1x8x8xf32>
    %131 = arith.subf %125, %130 : vector<1x8x8xf32>
    %132 = math.exp %131 : vector<1x8x8xf32>
    %cst_53 = arith.constant dense<0.000000e+00> : vector<1x8xf32>
    %133 = vector.multi_reduction <add>, %132, %cst_53 [2] : vector<1x8x8xf32> to vector<1x8xf32>
    %134 = vector.shape_cast %133 : vector<1x8xf32> to vector<1x8x1xf32>
    %135 = vector.broadcast %134 : vector<1x8x1xf32> to vector<1x8x8xf32>
    %136 = arith.divf %132, %135 : vector<1x8x8xf32>
    %cst_54 = arith.constant dense<0.000000e+00> : vector<1x8x8xf32>
    %137 = tpu.matmul %136, %124, %cst_54 {dimension_numbers = #tpu.dot_dimension_numbers<[2], [1], [1], [2], [0, 0, 0, 1, 1, 2], [0], [0]>} : vector<1x8x8xf32>, vector<1x8x8xf32>, vector<1x8x8xf32> -> vector<1x8x8xf32>
    %138 = vector.extract_strided_slice %25 {offsets = [0, 0, 56], sizes = [1, 8, 8], strides = [1, 1, 1]} : vector<1x8x64xf32> to vector<1x8x8xf32>
    %139 = vector.extract_strided_slice %22 {offsets = [0, 0, 56], sizes = [1, 8, 8], strides = [1, 1, 1]} : vector<1x8x64xf32> to vector<1x8x8xf32>
    %140 = vector.extract_strided_slice %23 {offsets = [0, 0, 56], sizes = [1, 8, 8], strides = [1, 1, 1]} : vector<1x8x64xf32> to vector<1x8x8xf32>
    %cst_55 = arith.constant dense<0.000000e+00> : vector<1x8x8xf32>
    %141 = tpu.matmul %138, %139, %cst_55 {dimension_numbers = #tpu.dot_dimension_numbers<[2], [2], [1], [1], [0, 0, 0, 1, 1, 1], [0], [0]>} : vector<1x8x8xf32>, vector<1x8x8xf32>, vector<1x8x8xf32> -> vector<1x8x8xf32>
    %cst_56 = arith.constant dense<0xFF800000> : vector<1x8xf32>
    %142 = vector.multi_reduction <maximumf>, %141, %cst_56 [2] : vector<1x8x8xf32> to vector<1x8xf32>
    %cst_57 = arith.constant 0xFF800000 : f32
    %143 = vector.broadcast %cst_57 : f32 to vector<1x8xf32>
    %144 = arith.maximumf %143, %142 : vector<1x8xf32>
    %145 = vector.shape_cast %144 : vector<1x8xf32> to vector<1x8x1xf32>
    %146 = vector.broadcast %145 : vector<1x8x1xf32> to vector<1x8x8xf32>
    %147 = arith.subf %141, %146 : vector<1x8x8xf32>
    %148 = math.exp %147 : vector<1x8x8xf32>
    %cst_58 = arith.constant dense<0.000000e+00> : vector<1x8xf32>
    %149 = vector.multi_reduction <add>, %148, %cst_58 [2] : vector<1x8x8xf32> to vector<1x8xf32>
    %150 = vector.shape_cast %149 : vector<1x8xf32> to vector<1x8x1xf32>
    %151 = vector.broadcast %150 : vector<1x8x1xf32> to vector<1x8x8xf32>
    %152 = arith.divf %148, %151 : vector<1x8x8xf32>
    %cst_59 = arith.constant dense<0.000000e+00> : vector<1x8x8xf32>
    %153 = tpu.matmul %152, %140, %cst_59 {dimension_numbers = #tpu.dot_dimension_numbers<[2], [1], [1], [2], [0, 0, 0, 1, 1, 2], [0], [0]>} : vector<1x8x8xf32>, vector<1x8x8xf32>, vector<1x8x8xf32> -> vector<1x8x8xf32>
    %154 = tpu.concatenate %41, %57, %73, %89, %105, %121, %137, %153 in 2 : vector<1x8x8xf32>, vector<1x8x8xf32>, vector<1x8x8xf32>, vector<1x8x8xf32>, vector<1x8x8xf32>, vector<1x8x8xf32>, vector<1x8x8xf32>, vector<1x8x8xf32> -> vector<1x8x64xf32>
    %155 = arith.mulf %21, %21 : vector<1x8x64xf32>
    %cst_60 = arith.constant dense<0.000000e+00> : vector<1x8xf32>
    %156 = vector.multi_reduction <add>, %155, %cst_60 [2] : vector<1x8x64xf32> to vector<1x8xf32>
    %157 = vector.shape_cast %156 : vector<1x8xf32> to vector<1x8x1xf32>
    %158 = math.sqrt %157 : vector<1x8x1xf32>
    %159 = arith.mulf %154, %154 : vector<1x8x64xf32>
    %cst_61 = arith.constant dense<0.000000e+00> : vector<1x8xf32>
    %160 = vector.multi_reduction <add>, %159, %cst_61 [2] : vector<1x8x64xf32> to vector<1x8xf32>
    %161 = vector.shape_cast %160 : vector<1x8xf32> to vector<1x8x1xf32>
    %162 = math.sqrt %161 : vector<1x8x1xf32>
    %cst_62 = arith.constant dense<0.000000e+00> : vector<1x8x8xf32>
    %163 = tpu.matmul %21, %154, %cst_62 {dimension_numbers = #tpu.dot_dimension_numbers<[2], [2], [1], [1], [0, 0, 0, 1, 1, 1], [0], [0]>} : vector<1x8x64xf32>, vector<1x8x64xf32>, vector<1x8x8xf32> -> vector<1x8x8xf32>
    %cst_63 = arith.constant dense<0.000000e+00> : vector<1x8x8xf32>
    %164 = tpu.matmul %158, %162, %cst_63 {dimension_numbers = #tpu.dot_dimension_numbers<[2], [2], [1], [1], [0, 0, 0, 1, 1, 1], [0], [0]>} : vector<1x8x1xf32>, vector<1x8x1xf32>, vector<1x8x8xf32> -> vector<1x8x8xf32>
    %cst_64 = arith.constant 9.99999993E-9 : f32
    %165 = vector.broadcast %cst_64 : f32 to vector<1x8x8xf32>
    %166 = arith.maximumf %164, %165 : vector<1x8x8xf32>
    %167 = arith.divf %163, %166 : vector<1x8x8xf32>
    %cst_65 = arith.constant dense<0.000000e+00> : vector<1x8xf32>
    %168 = vector.multi_reduction <add>, %167, %cst_65 [2] : vector<1x8x8xf32> to vector<1x8xf32>
    %169 = vector.shape_cast %168 : vector<1x8xf32> to vector<1x8x1xf32>
    %170 = vector.broadcast %169 : vector<1x8x1xf32> to vector<1x8x8xf32>
    %171 = arith.divf %167, %170 : vector<1x8x8xf32>
    %cst_66 = arith.constant dense<0xFF800000> : vector<1x8xf32>
    %172 = vector.multi_reduction <maximumf>, %171, %cst_66 [2] : vector<1x8x8xf32> to vector<1x8xf32>
    %cst_67 = arith.constant 0xFF800000 : f32
    %173 = vector.broadcast %cst_67 : f32 to vector<1x8xf32>
    %174 = arith.maximumf %173, %172 : vector<1x8xf32>
    %175 = vector.shape_cast %174 : vector<1x8xf32> to vector<1x8x1xf32>
    %176 = vector.broadcast %175 : vector<1x8x1xf32> to vector<1x8x8xf32>
    %177 = arith.subf %171, %176 : vector<1x8x8xf32>
    %178 = math.exp %177 : vector<1x8x8xf32>
    %cst_68 = arith.constant dense<0.000000e+00> : vector<1x8xf32>
    %179 = vector.multi_reduction <add>, %178, %cst_68 [2] : vector<1x8x8xf32> to vector<1x8xf32>
    %180 = vector.shape_cast %179 : vector<1x8xf32> to vector<1x8x1xf32>
    %181 = vector.broadcast %180 : vector<1x8x1xf32> to vector<1x8x8xf32>
    %182 = arith.divf %178, %181 : vector<1x8x8xf32>
    %cst_69 = arith.constant dense<0.000000e+00> : vector<1x8x64xf32>
    %183 = tpu.matmul %182, %154, %cst_69 {dimension_numbers = #tpu.dot_dimension_numbers<[2], [1], [1], [2], [0, 0, 0, 1, 1, 2], [0], [0]>} : vector<1x8x8xf32>, vector<1x8x64xf32>, vector<1x8x64xf32> -> vector<1x8x64xf32>
    %184 = vector.shape_cast %183 : vector<1x8x64xf32> to vector<8x64xf32>
    %185 = arith.truncf %184 : vector<8x64xf32> to vector<8x64xbf16>
    %c0_70 = arith.constant 0 : index
    %c0_71 = arith.constant 0 : index
    %186 = vector.load %arg9[%c0_70, %c0_71] : memref<64x128xbf16, #tpu.memory_space<vmem>>, vector<64x128xbf16>
    %cst_72 = arith.constant dense<0.000000e+00> : vector<8x128xf32>
    %187 = tpu.matmul %185, %186, %cst_72 {dimension_numbers = #tpu.dot_dimension_numbers<[1], [0], [0], [1], [0, 0, 1, 1], [], []>} : vector<8x64xbf16>, vector<64x128xbf16>, vector<8x128xf32> -> vector<8x128xf32>
    %188 = arith.truncf %10 : vector<8x64xf32> to vector<8x64xbf16>
    %c0_73 = arith.constant 0 : index
    %c0_74 = arith.constant 0 : index
    %189 = vector.load %arg10[%c0_73, %c0_74] : memref<64x128xbf16, #tpu.memory_space<vmem>>, vector<64x128xbf16>
    %cst_75 = arith.constant dense<0.000000e+00> : vector<8x128xf32>
    %190 = tpu.matmul %188, %189, %cst_75 {dimension_numbers = #tpu.dot_dimension_numbers<[1], [0], [0], [1], [0, 0, 1, 1], [], []>} : vector<8x64xbf16>, vector<64x128xbf16>, vector<8x128xf32> -> vector<8x128xf32>
    %191 = arith.addf %187, %190 : vector<8x128xf32>
    %c0_76 = arith.constant 0 : index
    %c0_77 = arith.constant 0 : index
    %192 = vector.load %arg11[%c0_76, %c0_77] : memref<1x128xf32, #tpu.memory_space<vmem>>, vector<1x128xf32>
    %193 = vector.broadcast %192 : vector<1x128xf32> to vector<8x128xf32>
    %194 = arith.addf %191, %193 : vector<8x128xf32>
    %195 = vector.extract_strided_slice %194 {offsets = [0, 0], sizes = [8, 64], strides = [1, 1]} : vector<8x128xf32> to vector<8x64xf32>
    %196 = arith.negf %195 : vector<8x64xf32>
    %197 = math.exp %196 : vector<8x64xf32>
    %cst_78 = arith.constant 1.000000e+00 : f32
    %198 = vector.broadcast %cst_78 : f32 to vector<8x64xf32>
    %199 = arith.addf %198, %197 : vector<8x64xf32>
    %200 = arith.divf %198, %199 : vector<8x64xf32>
    %201 = vector.extract_strided_slice %194 {offsets = [0, 64], sizes = [8, 64], strides = [1, 1]} : vector<8x128xf32> to vector<8x64xf32>
    %202 = arith.mulf %200, %201 : vector<8x64xf32>
    %203 = arith.addf %202, %3 : vector<8x64xf32>
    %cst_79 = arith.constant dense<0.000000e+00> : vector<8xf32>
    %204 = vector.multi_reduction <add>, %203, %cst_79 [1] : vector<8x64xf32> to vector<8xf32>
    %205 = vector.shape_cast %204 : vector<8xf32> to vector<8x1xf32>
    %cst_80 = arith.constant 6.400000e+01 : f32
    %206 = vector.broadcast %cst_80 : f32 to vector<8x1xf32>
    %207 = arith.divf %205, %206 : vector<8x1xf32>
    %208 = vector.broadcast %207 : vector<8x1xf32> to vector<8x64xf32>
    %209 = arith.subf %203, %208 : vector<8x64xf32>
    %210 = arith.mulf %209, %209 : vector<8x64xf32>
    %cst_81 = arith.constant dense<0.000000e+00> : vector<8xf32>
    %211 = vector.multi_reduction <add>, %210, %cst_81 [1] : vector<8x64xf32> to vector<8xf32>
    %212 = vector.shape_cast %211 : vector<8xf32> to vector<8x1xf32>
    %cst_82 = arith.constant 6.400000e+01 : f32
    %213 = vector.broadcast %cst_82 : f32 to vector<8x1xf32>
    %214 = arith.divf %212, %213 : vector<8x1xf32>
    %cst_83 = arith.constant 9.99999974E-6 : f32
    %215 = vector.broadcast %cst_83 : f32 to vector<8x1xf32>
    %216 = arith.addf %214, %215 : vector<8x1xf32>
    %217 = math.rsqrt %216 : vector<8x1xf32>
    %218 = vector.broadcast %217 : vector<8x1xf32> to vector<8x64xf32>
    %219 = arith.mulf %209, %218 : vector<8x64xf32>
    %c0_84 = arith.constant 0 : index
    %c0_85 = arith.constant 0 : index
    %220 = vector.load %arg12[%c0_84, %c0_85] : memref<1x64xf32, #tpu.memory_space<vmem>>, vector<1x64xf32>
    %221 = vector.broadcast %220 : vector<1x64xf32> to vector<8x64xf32>
    %222 = arith.mulf %219, %221 : vector<8x64xf32>
    %c0_86 = arith.constant 0 : index
    %c0_87 = arith.constant 0 : index
    %223 = vector.load %arg13[%c0_86, %c0_87] : memref<1x64xf32, #tpu.memory_space<vmem>>, vector<1x64xf32>
    %224 = vector.broadcast %223 : vector<1x64xf32> to vector<8x64xf32>
    %225 = arith.addf %222, %224 : vector<8x64xf32>
    %226 = arith.addf %1, %225 : vector<8x64xf32>
    %227 = arith.truncf %226 : vector<8x64xf32> to vector<8x64xbf16>
    %c0_88 = arith.constant 0 : index
    %c0_89 = arith.constant 0 : index
    %228 = vector.load %arg14[%c0_88, %c0_89] : memref<64x64xbf16, #tpu.memory_space<vmem>>, vector<64x64xbf16>
    %cst_90 = arith.constant dense<0.000000e+00> : vector<8x64xf32>
    %229 = tpu.matmul %227, %228, %cst_90 {dimension_numbers = #tpu.dot_dimension_numbers<[1], [0], [0], [1], [0, 0, 1, 1], [], []>} : vector<8x64xbf16>, vector<64x64xbf16>, vector<8x64xf32> -> vector<8x64xf32>
    %c0_91 = arith.constant 0 : index
    %c0_92 = arith.constant 0 : index
    %230 = vector.load %arg15[%c0_91, %c0_92] : memref<1x64xf32, #tpu.memory_space<vmem>>, vector<1x64xf32>
    %231 = vector.broadcast %230 : vector<1x64xf32> to vector<8x64xf32>
    %232 = arith.addf %229, %231 : vector<8x64xf32>
    %cst_93 = arith.constant 0.000000e+00 : f32
    %233 = vector.broadcast %cst_93 : f32 to vector<8x64xf32>
    %234 = arith.maximumf %232, %233 : vector<8x64xf32>
    %235 = arith.truncf %234 : vector<8x64xf32> to vector<8x64xbf16>
    %c0_94 = arith.constant 0 : index
    %c0_95 = arith.constant 0 : index
    %236 = vector.load %arg16[%c0_94, %c0_95] : memref<64x64xbf16, #tpu.memory_space<vmem>>, vector<64x64xbf16>
    %cst_96 = arith.constant dense<0.000000e+00> : vector<8x64xf32>
    %237 = tpu.matmul %235, %236, %cst_96 {dimension_numbers = #tpu.dot_dimension_numbers<[1], [0], [0], [1], [0, 0, 1, 1], [], []>} : vector<8x64xbf16>, vector<64x64xbf16>, vector<8x64xf32> -> vector<8x64xf32>
    %c0_97 = arith.constant 0 : index
    %c0_98 = arith.constant 0 : index
    %238 = vector.load %arg17[%c0_97, %c0_98] : memref<1x64xf32, #tpu.memory_space<vmem>>, vector<1x64xf32>
    %239 = vector.broadcast %238 : vector<1x64xf32> to vector<8x64xf32>
    %240 = arith.addf %237, %239 : vector<8x64xf32>
    %cst_99 = arith.constant 0.000000e+00 : f32
    %241 = vector.broadcast %cst_99 : f32 to vector<8x64xf32>
    %242 = arith.maximumf %240, %241 : vector<8x64xf32>
    %243 = arith.addf %226, %242 : vector<8x64xf32>
    %c0_100 = arith.constant 0 : index
    %c0_101 = arith.constant 0 : index
    %244 = vector.load %arg18[%c0_100, %c0_101] : memref<64x128xbf16, #tpu.memory_space<vmem>>, vector<64x128xbf16>
    %cst_102 = arith.constant dense<0.000000e+00> : vector<8x128xf32>
    %245 = tpu.matmul %4, %244, %cst_102 {dimension_numbers = #tpu.dot_dimension_numbers<[1], [0], [0], [1], [0, 0, 1, 1], [], []>} : vector<8x64xbf16>, vector<64x128xbf16>, vector<8x128xf32> -> vector<8x128xf32>
    %246 = math.tanh %3 : vector<8x64xf32>
    %247 = arith.truncf %246 : vector<8x64xf32> to vector<8x64xbf16>
    %c0_103 = arith.constant 0 : index
    %c0_104 = arith.constant 0 : index
    %248 = vector.load %arg19[%c0_103, %c0_104] : memref<64x128xbf16, #tpu.memory_space<vmem>>, vector<64x128xbf16>
    %cst_105 = arith.constant dense<0.000000e+00> : vector<8x128xf32>
    %249 = tpu.matmul %247, %248, %cst_105 {dimension_numbers = #tpu.dot_dimension_numbers<[1], [0], [0], [1], [0, 0, 1, 1], [], []>} : vector<8x64xbf16>, vector<64x128xbf16>, vector<8x128xf32> -> vector<8x128xf32>
    %250 = arith.addf %245, %249 : vector<8x128xf32>
    %c0_106 = arith.constant 0 : index
    %c0_107 = arith.constant 0 : index
    %251 = vector.load %arg20[%c0_106, %c0_107] : memref<1x128xf32, #tpu.memory_space<vmem>>, vector<1x128xf32>
    %252 = vector.broadcast %251 : vector<1x128xf32> to vector<8x128xf32>
    %253 = arith.addf %250, %252 : vector<8x128xf32>
    %254 = vector.extract_strided_slice %253 {offsets = [0, 0], sizes = [8, 64], strides = [1, 1]} : vector<8x128xf32> to vector<8x64xf32>
    %255 = arith.negf %254 : vector<8x64xf32>
    %256 = math.exp %255 : vector<8x64xf32>
    %cst_108 = arith.constant 1.000000e+00 : f32
    %257 = vector.broadcast %cst_108 : f32 to vector<8x64xf32>
    %258 = arith.addf %257, %256 : vector<8x64xf32>
    %259 = arith.divf %257, %258 : vector<8x64xf32>
    %260 = vector.extract_strided_slice %253 {offsets = [0, 64], sizes = [8, 64], strides = [1, 1]} : vector<8x128xf32> to vector<8x64xf32>
    %261 = arith.negf %260 : vector<8x64xf32>
    %262 = math.exp %261 : vector<8x64xf32>
    %cst_109 = arith.constant 1.000000e+00 : f32
    %263 = vector.broadcast %cst_109 : f32 to vector<8x64xf32>
    %264 = arith.addf %263, %262 : vector<8x64xf32>
    %265 = arith.divf %263, %264 : vector<8x64xf32>
    %266 = math.tanh %243 : vector<8x64xf32>
    %267 = arith.mulf %259, %266 : vector<8x64xf32>
    %268 = arith.mulf %265, %1 : vector<8x64xf32>
    %269 = arith.addf %267, %268 : vector<8x64xf32>
    %270 = vector.shape_cast %269 : vector<8x64xf32> to vector<1x8x64xf32>
    %c0_110 = arith.constant 0 : index
    %c0_111 = arith.constant 0 : index
    %c0_112 = arith.constant 0 : index
    %271 = vector.load %arg21[%c0_110, %c0_111, %c0_112] : memref<1x8x64xf32, #tpu.memory_space<vmem>>, vector<1x8x64xf32>
    tpu.vector_store %arg21[%c0_110, %c0_111, %c0_112], %270 {strides = array<i32>} : memref<1x8x64xf32, #tpu.memory_space<vmem>>, vector<1x8x64xf32>,
    return
  }
  func.func @transform_0(%arg0: i32) -> (i32, i32, i32) {
    %c0_i32 = arith.constant 0 : i32
    %c0_i32_0 = arith.constant 0 : i32
    %c0_i32_1 = arith.constant 0 : i32
    return %arg0, %c0_i32, %c0_i32_0 : i32, i32, i32
  }
  func.func @transform_1(%arg0: i32) -> (i32, i32, i32) {
    %c0_i32 = arith.constant 0 : i32
    %c0_i32_0 = arith.constant 0 : i32
    %c0_i32_1 = arith.constant 0 : i32
    return %arg0, %c0_i32, %c0_i32_0 : i32, i32, i32
  }
  func.func @transform_2(%arg0: i32) -> (i32, i32) {
    %c0_i32 = arith.constant 0 : i32
    %c0_i32_0 = arith.constant 0 : i32
    %c0_i32_1 = arith.constant 0 : i32
    return %c0_i32, %c0_i32_0 : i32, i32
  }
  func.func @transform_3(%arg0: i32) -> (i32, i32) {
    %c0_i32 = arith.constant 0 : i32
    %c0_i32_0 = arith.constant 0 : i32
    %c0_i32_1 = arith.constant 0 : i32
    return %c0_i32, %c0_i32_0 : i32, i32
  }
  func.func @transform_4(%arg0: i32) -> (i32, i32) {
    %c0_i32 = arith.constant 0 : i32
    %c0_i32_0 = arith.constant 0 : i32
    %c0_i32_1 = arith.constant 0 : i32
    return %c0_i32, %c0_i32_0 : i32, i32
  }
  func.func @transform_5(%arg0: i32) -> (i32, i32) {
    %c0_i32 = arith.constant 0 : i32
    %c0_i32_0 = arith.constant 0 : i32
    %c0_i32_1 = arith.constant 0 : i32
    return %c0_i32, %c0_i32_0 : i32, i32
  }
  func.func @transform_6(%arg0: i32) -> (i32, i32) {
    %c0_i32 = arith.constant 0 : i32
    %c0_i32_0 = arith.constant 0 : i32
    %c0_i32_1 = arith.constant 0 : i32
    return %c0_i32, %c0_i32_0 : i32, i32
  }
  func.func @transform_7(%arg0: i32) -> (i32, i32) {
    %c0_i32 = arith.constant 0 : i32
    %c0_i32_0 = arith.constant 0 : i32
    %c0_i32_1 = arith.constant 0 : i32
    return %c0_i32, %c0_i32_0 : i32, i32
  }
  func.func @transform_8(%arg0: i32) -> (i32, i32) {
    %c0_i32 = arith.constant 0 : i32
    %c0_i32_0 = arith.constant 0 : i32
    %c0_i32_1 = arith.constant 0 : i32
    return %c0_i32, %c0_i32_0 : i32, i32
  }
  func.func @transform_9(%arg0: i32) -> (i32, i32) {
    %c0_i32 = arith.constant 0 : i32
    %c0_i32_0 = arith.constant 0 : i32
    %c0_i32_1 = arith.constant 0 : i32
    return %c0_i32, %c0_i32_0 : i32, i32
  }
  func.func @transform_10(%arg0: i32) -> (i32, i32) {
    %c0_i32 = arith.constant 0 : i32
    %c0_i32_0 = arith.constant 0 : i32
    %c0_i32_1 = arith.constant 0 : i32
    return %c0_i32, %c0_i32_0 : i32, i32
  }
  func.func @transform_11(%arg0: i32) -> (i32, i32) {
    %c0_i32 = arith.constant 0 : i32
    %c0_i32_0 = arith.constant 0 : i32
    %c0_i32_1 = arith.constant 0 : i32
    return %c0_i32, %c0_i32_0 : i32, i32
  }
  func.func @transform_12(%arg0: i32) -> (i32, i32) {
    %c0_i32 = arith.constant 0 : i32
    %c0_i32_0 = arith.constant 0 : i32
    %c0_i32_1 = arith.constant 0 : i32
    return %c0_i32, %c0_i32_0 : i32, i32
  }
  func.func @transform_13(%arg0: i32) -> (i32, i32) {
    %c0_i32 = arith.constant 0 : i32
    %c0_i32_0 = arith.constant 0 : i32
    %c0_i32_1 = arith.constant 0 : i32
    return %c0_i32, %c0_i32_0 : i32, i32
  }
  func.func @transform_14(%arg0: i32) -> (i32, i32) {
    %c0_i32 = arith.constant 0 : i32
    %c0_i32_0 = arith.constant 0 : i32
    %c0_i32_1 = arith.constant 0 : i32
    return %c0_i32, %c0_i32_0 : i32, i32
  }
  func.func @transform_15(%arg0: i32) -> (i32, i32) {
    %c0_i32 = arith.constant 0 : i32
    %c0_i32_0 = arith.constant 0 : i32
    %c0_i32_1 = arith.constant 0 : i32
    return %c0_i32, %c0_i32_0 : i32, i32
  }
  func.func @transform_16(%arg0: i32) -> (i32, i32) {
    %c0_i32 = arith.constant 0 : i32
    %c0_i32_0 = arith.constant 0 : i32
    %c0_i32_1 = arith.constant 0 : i32
    return %c0_i32, %c0_i32_0 : i32, i32
  }
  func.func @transform_17(%arg0: i32) -> (i32, i32) {
    %c0_i32 = arith.constant 0 : i32
    %c0_i32_0 = arith.constant 0 : i32
    %c0_i32_1 = arith.constant 0 : i32
    return %c0_i32, %c0_i32_0 : i32, i32
  }
  func.func @transform_18(%arg0: i32) -> (i32, i32) {
    %c0_i32 = arith.constant 0 : i32
    %c0_i32_0 = arith.constant 0 : i32
    %c0_i32_1 = arith.constant 0 : i32
    return %c0_i32, %c0_i32_0 : i32, i32
  }
  func.func @transform_19(%arg0: i32) -> (i32, i32) {
    %c0_i32 = arith.constant 0 : i32
    %c0_i32_0 = arith.constant 0 : i32
    %c0_i32_1 = arith.constant 0 : i32
    return %c0_i32, %c0_i32_0 : i32, i32
  }
  func.func @transform_20(%arg0: i32) -> (i32, i32, i32) {
    %c0_i32 = arith.constant 0 : i32
    %c0_i32_0 = arith.constant 0 : i32
    %c0_i32_1 = arith.constant 0 : i32
    return %arg0, %c0_i32, %c0_i32_0 : i32, i32, i32
  }
}

</mosaic_0001>

<llo_original>
// kernel: tpu_custom_call.1
$region0: #{tpu_custom_call.1}
  #allocation0 [shape = 'u32[]', space=smem, size = 0x4, offset = 0x4, fixed_abs, tag = 'smem constant byte address 0x4 - core index']
  #allocation1 [shape = 'u32[144,128]{1,0:T(1,128)}', space=vmem, size = 0x12000, scoped, tag = 'internal scratch']
  %s0 = inlined_call_operand.hbm [shape: f32[2,8,64], index: 0, kind: input, shape index: {}]
  %s1 = inlined_call_operand.hbm [shape: f32[2,8,64], index: 1, kind: input, shape index: {}]
  %s2 = inlined_call_operand.hbm [shape: bf16[64,64], index: 2, kind: input, shape index: {}]
  %s3 = inlined_call_operand.hbm [shape: f32[1,64], index: 3, kind: input, shape index: {}]
  %s4 = inlined_call_operand.hbm [shape: bf16[64,64], index: 4, kind: input, shape index: {}]
  %s5 = inlined_call_operand.hbm [shape: f32[1,64], index: 5, kind: input, shape index: {}]
  %s6 = inlined_call_operand.hbm [shape: bf16[64,64], index: 6, kind: input, shape index: {}]
  %s7 = inlined_call_operand.hbm [shape: f32[1,64], index: 7, kind: input, shape index: {}]
  %s8 = inlined_call_operand.hbm [shape: bf16[64,128], index: 8, kind: input, shape index: {}]
  %s9 = inlined_call_operand.hbm [shape: bf16[64,128], index: 9, kind: input, shape index: {}]
  %s10 = inlined_call_operand.hbm [shape: f32[1,128], index: 10, kind: input, shape index: {}]
  %s11 = inlined_call_operand.hbm [shape: f32[1,64], index: 11, kind: input, shape index: {}]
  %s12 = inlined_call_operand.hbm [shape: f32[1,64], index: 12, kind: input, shape index: {}]
  %s13 = inlined_call_operand.hbm [shape: bf16[64,64], index: 13, kind: input, shape index: {}]
  %s14 = inlined_call_operand.hbm [shape: f32[1,64], index: 14, kind: input, shape index: {}]
  %s15 = inlined_call_operand.hbm [shape: bf16[64,64], index: 15, kind: input, shape index: {}]
  %s16 = inlined_call_operand.hbm [shape: f32[1,64], index: 16, kind: input, shape index: {}]
  %s17 = inlined_call_operand.hbm [shape: bf16[64,128], index: 17, kind: input, shape index: {}]
  %s18 = inlined_call_operand.hbm [shape: bf16[64,128], index: 18, kind: input, shape index: {}]
  %s19 = inlined_call_operand.hbm [shape: f32[1,128], index: 19, kind: input, shape index: {}]
  %s20 = inlined_call_operand.hbm [shape: f32[2,8,64], index: 20, kind: output, shape index: {}]
  %s21 = sld [smem:[#allocation0]]
  $region193: #{tpu_custom_call.1} parent=0
    _
  %s23 = ssub.s32 1, %s21
  %s24 = scalar_select 0, %s23, %s21
  $region1: #{tpu_custom_call.1} parent=0
    #allocation2 [shape = 'u8[8192]{0}', space=vmem, size = 0x2000, scoped, tag = 'input window, operand 0']
    #allocation3 [shape = 's32[2]{0}', space=sflag, size = 0x8, scoped, tag = 'scoped memory for tpu_custom_call.1']
    #allocation4 [shape = 's32[2]{0}', space=sflag, size = 0x8, scoped, tag = 'scoped memory for tpu_custom_call.1']
    #allocation5 [shape = 'u8[8192]{0}', space=vmem, size = 0x2000, scoped, tag = 'input window, operand 1']
    #allocation6 [shape = 's32[2]{0}', space=sflag, size = 0x8, scoped, tag = 'scoped memory for tpu_custom_call.1']
    #allocation7 [shape = 'u8[16384]{0}', space=vmem, size = 0x4000, scoped, tag = 'input window, operand 2, single buffered']
    #allocation8 [shape = 'u8[512]{0}', space=vmem, size = 0x400, scoped, tag = 'input window, operand 3, single buffered']
    #allocation9 [shape = 's32[1]{0}', space=sflag, size = 0x4, scoped, tag = 'scoped memory for tpu_custom_call.1']
    #allocation10 [shape = 'u8[16384]{0}', space=vmem, size = 0x4000, scoped, tag = 'input window, operand 4, single buffered']
    #allocation11 [shape = 'u8[512]{0}', space=vmem, size = 0x400, scoped, tag = 'input window, operand 5, single buffered']
    #allocation12 [shape = 's32[1]{0}', space=sflag, size = 0x4, scoped, tag = 'scoped memory for tpu_custom_call.1']
    #allocation13 [shape = 'u8[16384]{0}', space=vmem, size = 0x4000, scoped, tag = 'input window, operand 6, single buffered']
    #allocation14 [shape = 'u8[512]{0}', space=vmem, size = 0x400, scoped, tag = 'input window, operand 7, single buffered']
    #allocation15 [shape = 's32[1]{0}', space=sflag, size = 0x4, scoped, tag = 'scoped memory for tpu_custom_call.1']
    #allocation16 [shape = 'u8[16384]{0}', space=vmem, size = 0x4000, scoped, tag = 'input window, operand 8, single buffered']
    #allocation17 [shape = 'u8[16384]{0}', space=vmem, size = 0x4000, scoped, tag = 'input window, operand 9, single buffered']
    #allocation18 [shape = 's32[1]{0}', space=sflag, size = 0x4, scoped, tag = 'scoped memory for tpu_custom_call.1']
    #allocation19 [shape = 'u8[512]{0}', space=vmem, size = 0x400, scoped, tag = 'input window, operand 10, single buffered']
    #allocation20 [shape = 'u8[512]{0}', space=vmem, size = 0x400, scoped, tag = 'input window, operand 11, single buffered']
    #allocation21 [shape = 's32[1]{0}', space=sflag, size = 0x4, scoped, tag = 'scoped memory for tpu_custom_call.1']
    #allocation22 [shape = 'u8[512]{0}', space=vmem, size = 0x400, scoped, tag = 'input window, operand 12, single buffered']
    #allocation23 [shape = 'u8[16384]{0}', space=vmem, size = 0x4000, scoped, tag = 'input window, operand 13, single buffered']
    #allocation24 [shape = 's32[1]{0}', space=sflag, size = 0x4, scoped, tag = 'scoped memory for tpu_custom_call.1']
    #allocation25 [shape = 'u8[512]{0}', space=vmem, size = 0x400, scoped, tag = 'input window, operand 14, single buffered']
    #allocation26 [shape = 'u8[16384]{0}', space=vmem, size = 0x4000, scoped, tag = 'input window, operand 15, single buffered']
    #allocation27 [shape = 's32[1]{0}', space=sflag, size = 0x4, scoped, tag = 'scoped memory for tpu_custom_call.1']
    #allocation28 [shape = 'u8[512]{0}', space=vmem, size = 0x400, scoped, tag = 'input window, operand 16, single buffered']
    #allocation29 [shape = 'u8[16384]{0}', space=vmem, size = 0x4000, scoped, tag = 'input window, operand 17, single buffered']
    #allocation30 [shape = 's32[1]{0}', space=sflag, size = 0x4, scoped, tag = 'scoped memory for tpu_custom_call.1']
    #allocation31 [shape = 'u8[16384]{0}', space=vmem, size = 0x4000, scoped, tag = 'input window, operand 18, single buffered']
    #allocation32 [shape = 'u8[512]{0}', space=vmem, size = 0x400, scoped, tag = 'input window, operand 19, single buffered']
    #allocation33 [shape = 's32[1]{0}', space=sflag, size = 0x4, scoped, tag = 'scoped memory for tpu_custom_call.1']
    #allocation34 [shape = 'u8[8192]{0}', space=vmem, size = 0x2000, scoped, tag = 'output window, operand 0']
    %25 = vsyncpa [#allocation3], 0
    %s26 = scalar_lea.sflag [#allocation3], 1
    %27 = vsyncpa %s26, 0
    %28 = vsyncpa [#allocation6], 0
    %s29 = scalar_lea.sflag [#allocation6], 1
    %30 = vsyncpa %s29, 0
    %31 = vsyncpa [#allocation9], 0
    %32 = vsyncpa [#allocation12], 0
    %33 = vsyncpa [#allocation15], 0
    %34 = vsyncpa [#allocation18], 0
    %35 = vsyncpa [#allocation21], 0
    %36 = vsyncpa [#allocation24], 0
    %37 = vsyncpa [#allocation27], 0
    %38 = vsyncpa [#allocation30], 0
    %39 = vsyncpa [#allocation33], 0
    %40 = vsyncpa [#allocation4], 0
    %s41 = scalar_lea.sflag [#allocation4], 1
    %42 = vsyncpa %s41, 0
    loop: start=0, step=1, limit=4
    $region2: #{tpu_custom_call.1} parent=1 // loop_pre_header
      _
    $region3: #{tpu_custom_call.1} parent=1 // loop_header
      %s44 = sphi 0, %s48
      %p45 = scmp.ge.s32.totalorder %s44, 4
      %s54 = sphi 0, %s56
      %s57 = sphi 0, %s54
      %s58 = sphi 0, %s57
      %s74 = sphi 0, %s58
      %s80 = sphi 0, %s82
      %s83 = sphi 0, %s80
      %s84 = sphi 0, %s83
      %s100 = sphi 0, %s84
      %s104 = sphi 0, %s104
      %s106 = sphi 0, %s104
      %s107 = sphi 0, %s106
      %s121 = sphi 0, %s107
      %s125 = sphi 0, %s125
      %s127 = sphi 0, %s125
      %s128 = sphi 0, %s127
      %s142 = sphi 0, %s128
      %s146 = sphi 0, %s146
      %s148 = sphi 0, %s146
      %s149 = sphi 0, %s148
      %s163 = sphi 0, %s149
      %s167 = sphi 0, %s167
      %s169 = sphi 0, %s167
      %s170 = sphi 0, %s169
      %s184 = sphi 0, %s170
      %s188 = sphi 0, %s188
      %s190 = sphi 0, %s188
      %s191 = sphi 0, %s190
      %s205 = sphi 0, %s191
      %s209 = sphi 0, %s209
      %s211 = sphi 0, %s209
      %s212 = sphi 0, %s211
      %s226 = sphi 0, %s212
      %s230 = sphi 0, %s230
      %s232 = sphi 0, %s230
      %s233 = sphi 0, %s232
      %s247 = sphi 0, %s233
      %s251 = sphi 0, %s251
      %s253 = sphi 0, %s251
      %s254 = sphi 0, %s253
      %s268 = sphi 0, %s254
      %s272 = sphi 0, %s272
      %s274 = sphi 0, %s272
      %s275 = sphi 0, %s274
      %s289 = sphi 0, %s275
      %s293 = sphi 0, %s293
      %s295 = sphi 0, %s293
      %s296 = sphi 0, %s295
      %s310 = sphi 0, %s296
      %s314 = sphi 0, %s314
      %s316 = sphi 0, %s314
      %s317 = sphi 0, %s316
      %s331 = sphi 0, %s317
      %s335 = sphi 0, %s335
      %s337 = sphi 0, %s335
      %s338 = sphi 0, %s337
      %s352 = sphi 0, %s338
      %s356 = sphi 0, %s356
      %s358 = sphi 0, %s356
      %s359 = sphi 0, %s358
      %s373 = sphi 0, %s359
      %s377 = sphi 0, %s377
      %s379 = sphi 0, %s377
      %s380 = sphi 0, %s379
      %s394 = sphi 0, %s380
      %s398 = sphi 0, %s398
      %s400 = sphi 0, %s398
      %s401 = sphi 0, %s400
      %s415 = sphi 0, %s401
      %s419 = sphi 0, %s419
      %s421 = sphi 0, %s419
      %s422 = sphi 0, %s421
      %s436 = sphi 0, %s422
      %s440 = sphi 0, %s440
      %s442 = sphi 0, %s440
      %s443 = sphi 0, %s442
      %s457 = sphi 0, %s443
      %s461 = sphi 0, %s461
      %s463 = sphi 0, %s461
      %s464 = sphi 0, %s463
      %s478 = sphi 0, %s464
      %s484 = sphi 0, %s486
      %s487 = sphi 0, %s484
      %s488 = sphi 0, %s487
      %s504 = sphi 0, %s488
    $region4: #{tpu_custom_call.1} parent=1 // loop_header_branch
      %47 = sbr.rel (%p45) target = $region8
    $region5: #{tpu_custom_call.1} parent=1 // loop_body
      %s49 = ssub.s32 %s44, 1
      %s50 = ssub.s32 %s44, 2
      %s51 = sadd.s32 %s44, 1
      %s52 = ssub.s32 %s44, %s51
      %p53 = scmp.eq.s32.totalorder %s52, 0
      %s55 = sadd.s32 %s54, 1
      %s56 = scalar_select %p53, %s54, %s55
      %p59 = pneg %p53
      %p60 = scmp.eq.s32.totalorder %s44, 1
      %p61 = por %p59, %p60
      %p62 = scmp.ne.s32.totalorder %s54, %s57
      %p63 = scmp.eq.s32.totalorder %s44, 0
      %p64 = por %p62, %p63
      %p65 = scmp.ne.s32.totalorder %s54, %s57
      %p66 = scmp.eq.s32.totalorder %s49, 1
      %p67 = por %p65, %p66
      %p68 = scmp.ne.s32.totalorder %s57, %s58
      %p69 = scmp.eq.s32.totalorder %s49, 0
      %p70 = por %p68, %p69
      %p71 = scmp.ne.s32.totalorder %s57, %s58
      %p72 = scmp.eq.s32.totalorder %s50, 1
      %p73 = por %p71, %p72
      %p75 = scmp.ne.s32.totalorder %s58, %s74
      %p76 = scmp.eq.s32.totalorder %s50, 0
      %p77 = por %p75, %p76
      %s78 = ssub.s32 %s44, %s51
      %p79 = scmp.eq.s32.totalorder %s78, 0
      %s81 = sadd.s32 %s80, 1
      %s82 = scalar_select %p79, %s80, %s81
      %p85 = pneg %p79
      %p86 = scmp.eq.s32.totalorder %s44, 1
      %p87 = por %p85, %p86
      %p88 = scmp.ne.s32.totalorder %s80, %s83
      %p89 = scmp.eq.s32.totalorder %s44, 0
      %p90 = por %p88, %p89
      %p91 = scmp.ne.s32.totalorder %s80, %s83
      %p92 = scmp.eq.s32.totalorder %s49, 1
      %p93 = por %p91, %p92
      %p94 = scmp.ne.s32.totalorder %s83, %s84
      %p95 = scmp.eq.s32.totalorder %s49, 0
      %p96 = por %p94, %p95
      %p97 = scmp.ne.s32.totalorder %s83, %s84
      %p98 = scmp.eq.s32.totalorder %s50, 1
      %p99 = por %p97, %p98
      %p101 = scmp.ne.s32.totalorder %s84, %s100
      %p102 = scmp.eq.s32.totalorder %s50, 0
      %p103 = por %p101, %p102
      %s105 = sadd.s32 %s104, 1
      %p108 = scmp.eq.s32.totalorder %s44, 1
      %p109 = scmp.ne.s32.totalorder %s104, %s106
      %p110 = scmp.eq.s32.totalorder %s44, 0
      %p111 = por %p109, %p110
      %p112 = scmp.ne.s32.totalorder %s104, %s106
      %p113 = scmp.eq.s32.totalorder %s49, 1
      %p114 = por %p112, %p113
      %p115 = scmp.ne.s32.totalorder %s106, %s107
      %p116 = scmp.eq.s32.totalorder %s49, 0
      %p117 = por %p115, %p116
      %p118 = scmp.ne.s32.totalorder %s106, %s107
      %p119 = scmp.eq.s32.totalorder %s50, 1
      %p120 = por %p118, %p119
      %p122 = scmp.ne.s32.totalorder %s107, %s121
      %p123 = scmp.eq.s32.totalorder %s50, 0
      %p124 = por %p122, %p123
      %s126 = sadd.s32 %s125, 1
      %p129 = scmp.eq.s32.totalorder %s44, 1
      %p130 = scmp.ne.s32.totalorder %s125, %s127
      %p131 = scmp.eq.s32.totalorder %s44, 0
      %p132 = por %p130, %p131
      %p133 = scmp.ne.s32.totalorder %s125, %s127
      %p134 = scmp.eq.s32.totalorder %s49, 1
      %p135 = por %p133, %p134
      %p136 = scmp.ne.s32.totalorder %s127, %s128
      %p137 = scmp.eq.s32.totalorder %s49, 0
      %p138 = por %p136, %p137
      %p139 = scmp.ne.s32.totalorder %s127, %s128
      %p140 = scmp.eq.s32.totalorder %s50, 1
      %p141 = por %p139, %p140
      %p143 = scmp.ne.s32.totalorder %s128, %s142
      %p144 = scmp.eq.s32.totalorder %s50, 0
      %p145 = por %p143, %p144
      %s147 = sadd.s32 %s146, 1
      %p150 = scmp.eq.s32.totalorder %s44, 1
      %p151 = scmp.ne.s32.totalorder %s146, %s148
      %p152 = scmp.eq.s32.totalorder %s44, 0
      %p153 = por %p151, %p152
      %p154 = scmp.ne.s32.totalorder %s146, %s148
      %p155 = scmp.eq.s32.totalorder %s49, 1
      %p156 = por %p154, %p155
      %p157 = scmp.ne.s32.totalorder %s148, %s149
      %p158 = scmp.eq.s32.totalorder %s49, 0
      %p159 = por %p157, %p158
      %p160 = scmp.ne.s32.totalorder %s148, %s149
      %p161 = scmp.eq.s32.totalorder %s50, 1
      %p162 = por %p160, %p161
      %p164 = scmp.ne.s32.totalorder %s149, %s163
      %p165 = scmp.eq.s32.totalorder %s50, 0
      %p166 = por %p164, %p165
      %s168 = sadd.s32 %s167, 1
      %p171 = scmp.eq.s32.totalorder %s44, 1
      %p172 = scmp.ne.s32.totalorder %s167, %s169
      %p173 = scmp.eq.s32.totalorder %s44, 0
      %p174 = por %p172, %p173
      %p175 = scmp.ne.s32.totalorder %s167, %s169
      %p176 = scmp.eq.s32.totalorder %s49, 1
      %p177 = por %p175, %p176
      %p178 = scmp.ne.s32.totalorder %s169, %s170
      %p179 = scmp.eq.s32.totalorder %s49, 0
      %p180 = por %p178, %p179
      %p181 = scmp.ne.s32.totalorder %s169, %s170
      %p182 = scmp.eq.s32.totalorder %s50, 1
      %p183 = por %p181, %p182
      %p185 = scmp.ne.s32.totalorder %s170, %s184
      %p186 = scmp.eq.s32.totalorder %s50, 0
      %p187 = por %p185, %p186
      %s189 = sadd.s32 %s188, 1
      %p192 = scmp.eq.s32.totalorder %s44, 1
      %p193 = scmp.ne.s32.totalorder %s188, %s190
      %p194 = scmp.eq.s32.totalorder %s44, 0
      %p195 = por %p193, %p194
      %p196 = scmp.ne.s32.totalorder %s188, %s190
      %p197 = scmp.eq.s32.totalorder %s49, 1
      %p198 = por %p196, %p197
      %p199 = scmp.ne.s32.totalorder %s190, %s191
      %p200 = scmp.eq.s32.totalorder %s49, 0
      %p201 = por %p199, %p200
      %p202 = scmp.ne.s32.totalorder %s190, %s191
      %p203 = scmp.eq.s32.totalorder %s50, 1
      %p204 = por %p202, %p203
      %p206 = scmp.ne.s32.totalorder %s191, %s205
      %p207 = scmp.eq.s32.totalorder %s50, 0
      %p208 = por %p206, %p207
      %s210 = sadd.s32 %s209, 1
      %p213 = scmp.eq.s32.totalorder %s44, 1
      %p214 = scmp.ne.s32.totalorder %s209, %s211
      %p215 = scmp.eq.s32.totalorder %s44, 0
      %p216 = por %p214, %p215
      %p217 = scmp.ne.s32.totalorder %s209, %s211
      %p218 = scmp.eq.s32.totalorder %s49, 1
      %p219 = por %p217, %p218
      %p220 = scmp.ne.s32.totalorder %s211, %s212
      %p221 = scmp.eq.s32.totalorder %s49, 0
      %p222 = por %p220, %p221
      %p223 = scmp.ne.s32.totalorder %s211, %s212
      %p224 = scmp.eq.s32.totalorder %s50, 1
      %p225 = por %p223, %p224
      %p227 = scmp.ne.s32.totalorder %s212, %s226
      %p228 = scmp.eq.s32.totalorder %s50, 0
      %p229 = por %p227, %p228
      %s231 = sadd.s32 %s230, 1
      %p234 = scmp.eq.s32.totalorder %s44, 1
      %p235 = scmp.ne.s32.totalorder %s230, %s232
      %p236 = scmp.eq.s32.totalorder %s44, 0
      %p237 = por %p235, %p236
      %p238 = scmp.ne.s32.totalorder %s230, %s232
      %p239 = scmp.eq.s32.totalorder %s49, 1
      %p240 = por %p238, %p239
      %p241 = scmp.ne.s32.totalorder %s232, %s233
      %p242 = scmp.eq.s32.totalorder %s49, 0
      %p243 = por %p241, %p242
      %p244 = scmp.ne.s32.totalorder %s232, %s233
      %p245 = scmp.eq.s32.totalorder %s50, 1
      %p246 = por %p244, %p245
      %p248 = scmp.ne.s32.totalorder %s233, %s247
      %p249 = scmp.eq.s32.totalorder %s50, 0
      %p250 = por %p248, %p249
      %s252 = sadd.s32 %s251, 1
      %p255 = scmp.eq.s32.totalorder %s44, 1
      %p256 = scmp.ne.s32.totalorder %s251, %s253
      %p257 = scmp.eq.s32.totalorder %s44, 0
      %p258 = por %p256, %p257
      %p259 = scmp.ne.s32.totalorder %s251, %s253
      %p260 = scmp.eq.s32.totalorder %s49, 1
      %p261 = por %p259, %p260
      %p262 = scmp.ne.s32.totalorder %s253, %s254
      %p263 = scmp.eq.s32.totalorder %s49, 0
      %p264 = por %p262, %p263
      %p265 = scmp.ne.s32.totalorder %s253, %s254
      %p266 = scmp.eq.s32.totalorder %s50, 1
      %p267 = por %p265, %p266
      %p269 = scmp.ne.s32.totalorder %s254, %s268
      %p270 = scmp.eq.s32.totalorder %s50, 0
      %p271 = por %p269, %p270
      %s273 = sadd.s32 %s272, 1
      %p276 = scmp.eq.s32.totalorder %s44, 1
      %p277 = scmp.ne.s32.totalorder %s272, %s274
      %p278 = scmp.eq.s32.totalorder %s44, 0
      %p279 = por %p277, %p278
      %p280 = scmp.ne.s32.totalorder %s272, %s274
      %p281 = scmp.eq.s32.totalorder %s49, 1
      %p282 = por %p280, %p281
      %p283 = scmp.ne.s32.totalorder %s274, %s275
      %p284 = scmp.eq.s32.totalorder %s49, 0
      %p285 = por %p283, %p284
      %p286 = scmp.ne.s32.totalorder %s274, %s275
      %p287 = scmp.eq.s32.totalorder %s50, 1
      %p288 = por %p286, %p287
      %p290 = scmp.ne.s32.totalorder %s275, %s289
      %p291 = scmp.eq.s32.totalorder %s50, 0
      %p292 = por %p290, %p291
      %s294 = sadd.s32 %s293, 1
      %p297 = scmp.eq.s32.totalorder %s44, 1
      %p298 = scmp.ne.s32.totalorder %s293, %s295
      %p299 = scmp.eq.s32.totalorder %s44, 0
      %p300 = por %p298, %p299
      %p301 = scmp.ne.s32.totalorder %s293, %s295
      %p302 = scmp.eq.s32.totalorder %s49, 1
      %p303 = por %p301, %p302
      %p304 = scmp.ne.s32.totalorder %s295, %s296
      %p305 = scmp.eq.s32.totalorder %s49, 0
      %p306 = por %p304, %p305
      %p307 = scmp.ne.s32.totalorder %s295, %s296
      %p308 = scmp.eq.s32.totalorder %s50, 1
      %p309 = por %p307, %p308
      %p311 = scmp.ne.s32.totalorder %s296, %s310
      %p312 = scmp.eq.s32.totalorder %s50, 0
      %p313 = por %p311, %p312
      %s315 = sadd.s32 %s314, 1
      %p318 = scmp.eq.s32.totalorder %s44, 1
      %p319 = scmp.ne.s32.totalorder %s314, %s316
      %p320 = scmp.eq.s32.totalorder %s44, 0
      %p321 = por %p319, %p320
      %p322 = scmp.ne.s32.totalorder %s314, %s316
      %p323 = scmp.eq.s32.totalorder %s49, 1
      %p324 = por %p322, %p323
      %p325 = scmp.ne.s32.totalorder %s316, %s317
      %p326 = scmp.eq.s32.totalorder %s49, 0
      %p327 = por %p325, %p326
      %p328 = scmp.ne.s32.totalorder %s316, %s317
      %p329 = scmp.eq.s32.totalorder %s50, 1
      %p330 = por %p328, %p329
      %p332 = scmp.ne.s32.totalorder %s317, %s331
      %p333 = scmp.eq.s32.totalorder %s50, 0
      %p334 = por %p332, %p333
      %s336 = sadd.s32 %s335, 1
      %p339 = scmp.eq.s32.totalorder %s44, 1
      %p340 = scmp.ne.s32.totalorder %s335, %s337
      %p341 = scmp.eq.s32.totalorder %s44, 0
      %p342 = por %p340, %p341
      %p343 = scmp.ne.s32.totalorder %s335, %s337
      %p344 = scmp.eq.s32.totalorder %s49, 1
      %p345 = por %p343, %p344
      %p346 = scmp.ne.s32.totalorder %s337, %s338
      %p347 = scmp.eq.s32.totalorder %s49, 0
      %p348 = por %p346, %p347
      %p349 = scmp.ne.s32.totalorder %s337, %s338
      %p350 = scmp.eq.s32.totalorder %s50, 1
      %p351 = por %p349, %p350
      %p353 = scmp.ne.s32.totalorder %s338, %s352
      %p354 = scmp.eq.s32.totalorder %s50, 0
      %p355 = por %p353, %p354
      %s357 = sadd.s32 %s356, 1
      %p360 = scmp.eq.s32.totalorder %s44, 1
      %p361 = scmp.ne.s32.totalorder %s356, %s358
      %p362 = scmp.eq.s32.totalorder %s44, 0
      %p363 = por %p361, %p362
      %p364 = scmp.ne.s32.totalorder %s356, %s358
      %p365 = scmp.eq.s32.totalorder %s49, 1
      %p366 = por %p364, %p365
      %p367 = scmp.ne.s32.totalorder %s358, %s359
      %p368 = scmp.eq.s32.totalorder %s49, 0
      %p369 = por %p367, %p368
      %p370 = scmp.ne.s32.totalorder %s358, %s359
      %p371 = scmp.eq.s32.totalorder %s50, 1
      %p372 = por %p370, %p371
      %p374 = scmp.ne.s32.totalorder %s359, %s373
      %p375 = scmp.eq.s32.totalorder %s50, 0
      %p376 = por %p374, %p375
      %s378 = sadd.s32 %s377, 1
      %p381 = scmp.eq.s32.totalorder %s44, 1
      %p382 = scmp.ne.s32.totalorder %s377, %s379
      %p383 = scmp.eq.s32.totalorder %s44, 0
      %p384 = por %p382, %p383
      %p385 = scmp.ne.s32.totalorder %s377, %s379
      %p386 = scmp.eq.s32.totalorder %s49, 1
      %p387 = por %p385, %p386
      %p388 = scmp.ne.s32.totalorder %s379, %s380
      %p389 = scmp.eq.s32.totalorder %s49, 0
      %p390 = por %p388, %p389
      %p391 = scmp.ne.s32.totalorder %s379, %s380
      %p392 = scmp.eq.s32.totalorder %s50, 1
      %p393 = por %p391, %p392
      %p395 = scmp.ne.s32.totalorder %s380, %s394
      %p396 = scmp.eq.s32.totalorder %s50, 0
      %p397 = por %p395, %p396
      %s399 = sadd.s32 %s398, 1
      %p402 = scmp.eq.s32.totalorder %s44, 1
      %p403 = scmp.ne.s32.totalorder %s398, %s400
      %p404 = scmp.eq.s32.totalorder %s44, 0
      %p405 = por %p403, %p404
      %p406 = scmp.ne.s32.totalorder %s398, %s400
      %p407 = scmp.eq.s32.totalorder %s49, 1
      %p408 = por %p406, %p407
      %p409 = scmp.ne.s32.totalorder %s400, %s401
      %p410 = scmp.eq.s32.totalorder %s49, 0
      %p411 = por %p409, %p410
      %p412 = scmp.ne.s32.totalorder %s400, %s401
      %p413 = scmp.eq.s32.totalorder %s50, 1
      %p414 = por %p412, %p413
      %p416 = scmp.ne.s32.totalorder %s401, %s415
      %p417 = scmp.eq.s32.totalorder %s50, 0
      %p418 = por %p416, %p417
      %s420 = sadd.s32 %s419, 1
      %p423 = scmp.eq.s32.totalorder %s44, 1
      %p424 = scmp.ne.s32.totalorder %s419, %s421
      %p425 = scmp.eq.s32.totalorder %s44, 0
      %p426 = por %p424, %p425
      %p427 = scmp.ne.s32.totalorder %s419, %s421
      %p428 = scmp.eq.s32.totalorder %s49, 1
      %p429 = por %p427, %p428
      %p430 = scmp.ne.s32.totalorder %s421, %s422
      %p431 = scmp.eq.s32.totalorder %s49, 0
      %p432 = por %p430, %p431
      %p433 = scmp.ne.s32.totalorder %s421, %s422
      %p434 = scmp.eq.s32.totalorder %s50, 1
      %p435 = por %p433, %p434
      %p437 = scmp.ne.s32.totalorder %s422, %s436
      %p438 = scmp.eq.s32.totalorder %s50, 0
      %p439 = por %p437, %p438
      %s441 = sadd.s32 %s440, 1
      %p444 = scmp.eq.s32.totalorder %s44, 1
      %p445 = scmp.ne.s32.totalorder %s440, %s442
      %p446 = scmp.eq.s32.totalorder %s44, 0
      %p447 = por %p445, %p446
      %p448 = scmp.ne.s32.totalorder %s440, %s442
      %p449 = scmp.eq.s32.totalorder %s49, 1
      %p450 = por %p448, %p449
      %p451 = scmp.ne.s32.totalorder %s442, %s443
      %p452 = scmp.eq.s32.totalorder %s49, 0
      %p453 = por %p451, %p452
      %p454 = scmp.ne.s32.totalorder %s442, %s443
      %p455 = scmp.eq.s32.totalorder %s50, 1
      %p456 = por %p454, %p455
      %p458 = scmp.ne.s32.totalorder %s443, %s457
      %p459 = scmp.eq.s32.totalorder %s50, 0
      %p460 = por %p458, %p459
      %s462 = sadd.s32 %s461, 1
      %p465 = scmp.eq.s32.totalorder %s44, 1
      %p466 = scmp.ne.s32.totalorder %s461, %s463
      %p467 = scmp.eq.s32.totalorder %s44, 0
      %p468 = por %p466, %p467
      %p469 = scmp.ne.s32.totalorder %s461, %s463
      %p470 = scmp.eq.s32.totalorder %s49, 1
      %p471 = por %p469, %p470
      %p472 = scmp.ne.s32.totalorder %s463, %s464
      %p473 = scmp.eq.s32.totalorder %s49, 0
      %p474 = por %p472, %p473
      %p475 = scmp.ne.s32.totalorder %s463, %s464
      %p476 = scmp.eq.s32.totalorder %s50, 1
      %p477 = por %p475, %p476
      %p479 = scmp.ne.s32.totalorder %s464, %s478
      %p480 = scmp.eq.s32.totalorder %s50, 0
      %p481 = por %p479, %p480
      %s482 = ssub.s32 %s44, %s51
      %p483 = scmp.eq.s32.totalorder %s482, 0
      %s485 = sadd.s32 %s484, 1
      %s486 = scalar_select %p483, %s484, %s485
      %p489 = pneg %p483
      %p490 = scmp.eq.s32.totalorder %s44, 1
      %p491 = por %p489, %p490
      %p492 = scmp.ne.s32.totalorder %s484, %s487
      %p493 = scmp.eq.s32.totalorder %s44, 0
      %p494 = por %p492, %p493
      %p495 = scmp.ne.s32.totalorder %s484, %s487
      %p496 = scmp.eq.s32.totalorder %s49, 1
      %p497 = por %p495, %p496
      %p498 = scmp.ne.s32.totalorder %s487, %s488
      %p499 = scmp.eq.s32.totalorder %s49, 0
      %p500 = por %p498, %p499
      %p501 = scmp.ne.s32.totalorder %s487, %s488
      %p502 = scmp.eq.s32.totalorder %s50, 1
      %p503 = por %p501, %p502
      %p505 = scmp.ne.s32.totalorder %s488, %s504
      %p506 = scmp.eq.s32.totalorder %s50, 0
      %p507 = por %p505, %p506
      %p508 = scmp.le.s32.totalorder 1, %s44
      %p509 = scmp.lt.s32.totalorder %s44, 3
      %p510 = pnand %p508, %p509
      %p511 = pneg %p510
      // Predicated region
      $region9: #{tpu_custom_call.1} parent=5 // pred_check
        _
      $region10: #{tpu_custom_call.1} parent=5 // pred_check_branch
        %513 = sbr.rel (%p510) target = $region12
      $region11: #{tpu_custom_call.1} parent=5 // pred_region
        %s514 = ssub.s32 %s44, 1
        // Predicated region
        $region13: #{tpu_custom_call.1} parent=11 // pred_check
          %p515 = pneg %p117
        $region14: #{tpu_custom_call.1} parent=11 // pred_check_branch
          %517 = sbr.rel (%p515) target = $region16
        $region15: #{tpu_custom_call.1} parent=11 // pred_region
          %s519 = ssub.s32 512, 512
          %520 = vsyncadd [#allocation6], %s519
          %s521 = sshll.u32 [#allocation7], 4
          %s522 = int_to_ptr.vmem [resolvable:$true] %s521
          %527 = dma.hbm_to_vmem [thread:$0]  %s2, 512, %s522, [#allocation6], 64, 64, 4
        $region16: #{tpu_custom_call.1} parent=11 // pred_fallthru
          _
        // Predicated region
        $region17: #{tpu_custom_call.1} parent=11 // pred_check
          %p528 = pneg %p138
        $region18: #{tpu_custom_call.1} parent=11 // pred_check_branch
          %530 = sbr.rel (%p528) target = $region20
        $region19: #{tpu_custom_call.1} parent=11 // pred_region
          %s532 = ssub.s32 16, 16
          %533 = vsyncadd [#allocation9], %s532
          %s535 = sshll.u32 [#allocation8], 4
          %s536 = int_to_ptr.vmem [resolvable:$true] %s535
          %538 = dma.hbm_to_vmem [thread:$0]  %s3, 16, %s536, [#allocation9]
        $region20: #{tpu_custom_call.1} parent=11 // pred_fallthru
          _
        // Predicated region
        $region21: #{tpu_custom_call.1} parent=11 // pred_check
          %p539 = pneg %p159
        $region22: #{tpu_custom_call.1} parent=11 // pred_check_branch
          %541 = sbr.rel (%p539) target = $region24
        $region23: #{tpu_custom_call.1} parent=11 // pred_region
          %s543 = ssub.s32 512, 512
          %544 = vsyncadd [#allocation9], %s543
          %s545 = sshll.u32 [#allocation10], 4
          %s546 = int_to_ptr.vmem [resolvable:$true] %s545
          %551 = dma.hbm_to_vmem [thread:$0]  %s4, 512, %s546, [#allocation9], 64, 64, 4
        $region24: #{tpu_custom_call.1} parent=11 // pred_fallthru
          _
        // Predicated region
        $region25: #{tpu_custom_call.1} parent=11 // pred_check
          %p552 = pneg %p180
        $region26: #{tpu_custom_call.1} parent=11 // pred_check_branch
          %554 = sbr.rel (%p552) target = $region28
        $region27: #{tpu_custom_call.1} parent=11 // pred_region
          %s556 = ssub.s32 16, 16
          %557 = vsyncadd [#allocation12], %s556
          %s559 = sshll.u32 [#allocation11], 4
          %s560 = int_to_ptr.vmem [resolvable:$true] %s559
          %562 = dma.hbm_to_vmem [thread:$0]  %s5, 16, %s560, [#allocation12]
        $region28: #{tpu_custom_call.1} parent=11 // pred_fallthru
          _
        // Predicated region
        $region29: #{tpu_custom_call.1} parent=11 // pred_check
          %p563 = pneg %p201
        $region30: #{tpu_custom_call.1} parent=11 // pred_check_branch
          %565 = sbr.rel (%p563) target = $region32
        $region31: #{tpu_custom_call.1} parent=11 // pred_region
          %s567 = ssub.s32 512, 512
          %568 = vsyncadd [#allocation12], %s567
          %s569 = sshll.u32 [#allocation13], 4
          %s570 = int_to_ptr.vmem [resolvable:$true] %s569
          %575 = dma.hbm_to_vmem [thread:$0]  %s6, 512, %s570, [#allocation12], 64, 64, 4
        $region32: #{tpu_custom_call.1} parent=11 // pred_fallthru
          _
        // Predicated region
        $region33: #{tpu_custom_call.1} parent=11 // pred_check
          %p576 = pneg %p222
        $region34: #{tpu_custom_call.1} parent=11 // pred_check_branch
          %578 = sbr.rel (%p576) target = $region36
        $region35: #{tpu_custom_call.1} parent=11 // pred_region
          %s580 = ssub.s32 16, 16
          %581 = vsyncadd [#allocation15], %s580
          %s583 = sshll.u32 [#allocation14], 4
          %s584 = int_to_ptr.vmem [resolvable:$true] %s583
          %586 = dma.hbm_to_vmem [thread:$0]  %s7, 16, %s584, [#allocation15]
        $region36: #{tpu_custom_call.1} parent=11 // pred_fallthru
          _
        // Predicated region
        $region37: #{tpu_custom_call.1} parent=11 // pred_check
          %p587 = pneg %p243
        $region38: #{tpu_custom_call.1} parent=11 // pred_check_branch
          %589 = sbr.rel (%p587) target = $region40
        $region39: #{tpu_custom_call.1} parent=11 // pred_region
          %s591 = ssub.s32 512, 512
          %592 = vsyncadd [#allocation15], %s591
          %s593 = sshll.u32 [#allocation16], 4
          %s594 = int_to_ptr.vmem [resolvable:$true] %s593
          %599 = dma.hbm_to_vmem [thread:$0]  %s8, 512, %s594, [#allocation15], 64, 64, 4
        $region40: #{tpu_custom_call.1} parent=11 // pred_fallthru
          _
        // Predicated region
        $region41: #{tpu_custom_call.1} parent=11 // pred_check
          %p600 = pneg %p264
        $region42: #{tpu_custom_call.1} parent=11 // pred_check_branch
          %602 = sbr.rel (%p600) target = $region44
        $region43: #{tpu_custom_call.1} parent=11 // pred_region
          %s604 = ssub.s32 512, 512
          %605 = vsyncadd [#allocation18], %s604
          %s606 = sshll.u32 [#allocation17], 4
          %s607 = int_to_ptr.vmem [resolvable:$true] %s606
          %612 = dma.hbm_to_vmem [thread:$0]  %s9, 512, %s607, [#allocation18], 64, 64, 4
        $region44: #{tpu_custom_call.1} parent=11 // pred_fallthru
          _
        // Predicated region
        $region45: #{tpu_custom_call.1} parent=11 // pred_check
          %p613 = pneg %p285
        $region46: #{tpu_custom_call.1} parent=11 // pred_check_branch
          %615 = sbr.rel (%p613) target = $region48
        $region47: #{tpu_custom_call.1} parent=11 // pred_region
          %s617 = ssub.s32 16, 16
          %618 = vsyncadd [#allocation18], %s617
          %s620 = sshll.u32 [#allocation19], 4
          %s621 = int_to_ptr.vmem [resolvable:$true] %s620
          %623 = dma.hbm_to_vmem [thread:$0]  %s10, 16, %s621, [#allocation18]
        $region48: #{tpu_custom_call.1} parent=11 // pred_fallthru
          _
        // Predicated region
        $region49: #{tpu_custom_call.1} parent=11 // pred_check
          %p624 = pneg %p306
        $region50: #{tpu_custom_call.1} parent=11 // pred_check_branch
          %626 = sbr.rel (%p624) target = $region52
        $region51: #{tpu_custom_call.1} parent=11 // pred_region
          %s628 = ssub.s32 16, 16
          %629 = vsyncadd [#allocation21], %s628
          %s631 = sshll.u32 [#allocation20], 4
          %s632 = int_to_ptr.vmem [resolvable:$true] %s631
          %634 = dma.hbm_to_vmem [thread:$0]  %s11, 16, %s632, [#allocation21]
        $region52: #{tpu_custom_call.1} parent=11 // pred_fallthru
          _
        // Predicated region
        $region53: #{tpu_custom_call.1} parent=11 // pred_check
          %p635 = pneg %p327
        $region54: #{tpu_custom_call.1} parent=11 // pred_check_branch
          %637 = sbr.rel (%p635) target = $region56
        $region55: #{tpu_custom_call.1} parent=11 // pred_region
          %s639 = ssub.s32 16, 16
          %640 = vsyncadd [#allocation21], %s639
          %s642 = sshll.u32 [#allocation22], 4
          %s643 = int_to_ptr.vmem [resolvable:$true] %s642
          %645 = dma.hbm_to_vmem [thread:$0]  %s12, 16, %s643, [#allocation21]
        $region56: #{tpu_custom_call.1} parent=11 // pred_fallthru
          _
        // Predicated region
        $region57: #{tpu_custom_call.1} parent=11 // pred_check
          %p646 = pneg %p348
        $region58: #{tpu_custom_call.1} parent=11 // pred_check_branch
          %648 = sbr.rel (%p646) target = $region60
        $region59: #{tpu_custom_call.1} parent=11 // pred_region
          %s650 = ssub.s32 512, 512
          %651 = vsyncadd [#allocation24], %s650
          %s652 = sshll.u32 [#allocation23], 4
          %s653 = int_to_ptr.vmem [resolvable:$true] %s652
          %658 = dma.hbm_to_vmem [thread:$0]  %s13, 512, %s653, [#allocation24], 64, 64, 4
        $region60: #{tpu_custom_call.1} parent=11 // pred_fallthru
          _
        // Predicated region
        $region61: #{tpu_custom_call.1} parent=11 // pred_check
          %p659 = pneg %p369
        $region62: #{tpu_custom_call.1} parent=11 // pred_check_branch
          %661 = sbr.rel (%p659) target = $region64
        $region63: #{tpu_custom_call.1} parent=11 // pred_region
          %s663 = ssub.s32 16, 16
          %664 = vsyncadd [#allocation24], %s663
          %s666 = sshll.u32 [#allocation25], 4
          %s667 = int_to_ptr.vmem [resolvable:$true] %s666
          %669 = dma.hbm_to_vmem [thread:$0]  %s14, 16, %s667, [#allocation24]
        $region64: #{tpu_custom_call.1} parent=11 // pred_fallthru
          _
        // Predicated region
        $region65: #{tpu_custom_call.1} parent=11 // pred_check
          %p670 = pneg %p390
        $region66: #{tpu_custom_call.1} parent=11 // pred_check_branch
          %672 = sbr.rel (%p670) target = $region68
        $region67: #{tpu_custom_call.1} parent=11 // pred_region
          %s674 = ssub.s32 512, 512
          %675 = vsyncadd [#allocation27], %s674
          %s676 = sshll.u32 [#allocation26], 4
          %s677 = int_to_ptr.vmem [resolvable:$true] %s676
          %682 = dma.hbm_to_vmem [thread:$0]  %s15, 512, %s677, [#allocation27], 64, 64, 4
        $region68: #{tpu_custom_call.1} parent=11 // pred_fallthru
          _
        // Predicated region
        $region69: #{tpu_custom_call.1} parent=11 // pred_check
          %p683 = pneg %p411
        $region70: #{tpu_custom_call.1} parent=11 // pred_check_branch
          %685 = sbr.rel (%p683) target = $region72
        $region71: #{tpu_custom_call.1} parent=11 // pred_region
          %s687 = ssub.s32 16, 16
          %688 = vsyncadd [#allocation27], %s687
          %s690 = sshll.u32 [#allocation28], 4
          %s691 = int_to_ptr.vmem [resolvable:$true] %s690
          %693 = dma.hbm_to_vmem [thread:$0]  %s16, 16, %s691, [#allocation27]
        $region72: #{tpu_custom_call.1} parent=11 // pred_fallthru
          _
        // Predicated region
        $region73: #{tpu_custom_call.1} parent=11 // pred_check
          %p694 = pneg %p432
        $region74: #{tpu_custom_call.1} parent=11 // pred_check_branch
          %696 = sbr.rel (%p694) target = $region76
        $region75: #{tpu_custom_call.1} parent=11 // pred_region
          %s698 = ssub.s32 512, 512
          %699 = vsyncadd [#allocation30], %s698
          %s700 = sshll.u32 [#allocation29], 4
          %s701 = int_to_ptr.vmem [resolvable:$true] %s700
          %706 = dma.hbm_to_vmem [thread:$0]  %s17, 512, %s701, [#allocation30], 64, 64, 4
        $region76: #{tpu_custom_call.1} parent=11 // pred_fallthru
          _
        // Predicated region
        $region77: #{tpu_custom_call.1} parent=11 // pred_check
          %p707 = pneg %p453
        $region78: #{tpu_custom_call.1} parent=11 // pred_check_branch
          %709 = sbr.rel (%p707) target = $region80
        $region79: #{tpu_custom_call.1} parent=11 // pred_region
          %s711 = ssub.s32 512, 512
          %712 = vsyncadd [#allocation30], %s711
          %s713 = sshll.u32 [#allocation31], 4
          %s714 = int_to_ptr.vmem [resolvable:$true] %s713
          %719 = dma.hbm_to_vmem [thread:$0]  %s18, 512, %s714, [#allocation30], 64, 64, 4
        $region80: #{tpu_custom_call.1} parent=11 // pred_fallthru
          _
        // Predicated region
        $region81: #{tpu_custom_call.1} parent=11 // pred_check
          %p720 = pneg %p474
        $region82: #{tpu_custom_call.1} parent=11 // pred_check_branch
          %722 = sbr.rel (%p720) target = $region84
        $region83: #{tpu_custom_call.1} parent=11 // pred_region
          %s724 = ssub.s32 16, 16
          %725 = vsyncadd [#allocation33], %s724
          %s727 = sshll.u32 [#allocation32], 4
          %s728 = int_to_ptr.vmem [resolvable:$true] %s727
          %730 = dma.hbm_to_vmem [thread:$0]  %s19, 16, %s728, [#allocation33]
        $region84: #{tpu_custom_call.1} parent=11 // pred_fallthru
          _
      $region12: #{tpu_custom_call.1} parent=5 // pred_fallthru
        _
      %p731 = scmp.lt.s32.totalorder %s44, 2
      // Predicated region
      $region85: #{tpu_custom_call.1} parent=5 // pred_check
        %p732 = pneg %p731
      $region86: #{tpu_custom_call.1} parent=5 // pred_check_branch
        %734 = sbr.rel (%p732) target = $region88
      $region87: #{tpu_custom_call.1} parent=5 // pred_region
        // Predicated region
        $region89: #{tpu_custom_call.1} parent=87 // pred_check
          %p735 = pneg %p64
        $region90: #{tpu_custom_call.1} parent=87 // pred_check_branch
          %737 = sbr.rel (%p735) target = $region92
        $region91: #{tpu_custom_call.1} parent=87 // pred_region
          %s738 = sand.u32 %s54, 1
          %s739 = scalar_lea.sflag [#allocation3], %s738
          %s740 = sand.u32 %s54, 1
          %s741 = smul.addr %s740, 8
          %s742 = scalar_lea.vmem [#allocation2], %s741
          %s744 = ssub.s32 128, 128
          %745 = vsyncadd %s739, %s744
          %s746 = smul.addr %s44, 128
          %s747 = scalar_lea.hbm %s0, %s746
          %s749 = sshll.u32 %s742, 4
          %s750 = int_to_ptr.vmem [resolvable:$true] %s749
          %752 = dma.hbm_to_vmem [thread:$0]  %s747, 128, %s750, %s739
        $region92: #{tpu_custom_call.1} parent=87 // pred_fallthru
          _
        // Predicated region
        $region93: #{tpu_custom_call.1} parent=87 // pred_check
          %p753 = pneg %p90
        $region94: #{tpu_custom_call.1} parent=87 // pred_check_branch
          %755 = sbr.rel (%p753) target = $region96
        $region95: #{tpu_custom_call.1} parent=87 // pred_region
          %s756 = sand.u32 %s44, 1
          %s757 = scalar_lea.sflag [#allocation6], %s756
          %s758 = sand.u32 %s80, 1
          %s759 = smul.addr %s758, 8
          %s760 = scalar_lea.vmem [#allocation5], %s759
          %s762 = ssub.s32 128, 128
          %763 = vsyncadd %s757, %s762
          %s764 = smul.addr %s44, 128
          %s765 = scalar_lea.hbm %s1, %s764
          %s767 = sshll.u32 %s760, 4
          %s768 = int_to_ptr.vmem [resolvable:$true] %s767
          %770 = dma.hbm_to_vmem [thread:$0]  %s765, 128, %s768, %s757
        $region96: #{tpu_custom_call.1} parent=87 // pred_fallthru
          _
      $region88: #{tpu_custom_call.1} parent=5 // pred_fallthru
        _
      %p771 = scmp.le.s32.totalorder 1, %s44
      %p772 = scmp.lt.s32.totalorder %s44, 3
      %p773 = pnand %p771, %p772
      %p774 = pneg %p773
      // Predicated region
      $region97: #{tpu_custom_call.1} parent=5 // pred_check
        _
      $region98: #{tpu_custom_call.1} parent=5 // pred_check_branch
        %776 = sbr.rel (%p773) target = $region100
      $region99: #{tpu_custom_call.1} parent=5 // pred_region
        %s777 = ssub.s32 %s44, 1
        %s778 = sand.u32 %s57, 1
        %s779 = scalar_lea.sflag [#allocation3], %s778
        %s780 = sand.u32 %s57, 1
        %s781 = smul.addr %s780, 8
        %s782 = scalar_lea.vmem [#allocation2], %s781
        // Predicated region
        $region101: #{tpu_custom_call.1} parent=99 // pred_check
          %p783 = pneg %p70
        $region102: #{tpu_custom_call.1} parent=99 // pred_check_branch
          %785 = sbr.rel (%p783) target = $region104
        $region103: #{tpu_custom_call.1} parent=99 // pred_region
          %786 = dma.done %s779, 128
        $region104: #{tpu_custom_call.1} parent=99 // pred_fallthru
          _
        %s787 = sand.u32 %s49, 1
        %s788 = scalar_lea.sflag [#allocation6], %s787
        %s789 = sand.u32 %s83, 1
        %s790 = smul.addr %s789, 8
        %s791 = scalar_lea.vmem [#allocation5], %s790
        // Predicated region
        $region105: #{tpu_custom_call.1} parent=99 // pred_check
          %p792 = pneg %p96
        $region106: #{tpu_custom_call.1} parent=99 // pred_check_branch
          %794 = sbr.rel (%p792) target = $region108
        $region107: #{tpu_custom_call.1} parent=99 // pred_region
          %795 = dma.done %s788, 128
        $region108: #{tpu_custom_call.1} parent=99 // pred_fallthru
          _
        // Predicated region
        $region109: #{tpu_custom_call.1} parent=99 // pred_check
          %p796 = pneg %p117
        $region110: #{tpu_custom_call.1} parent=99 // pred_check_branch
          %798 = sbr.rel (%p796) target = $region112
        $region111: #{tpu_custom_call.1} parent=99 // pred_region
          %799 = dma.done [#allocation6], 512
        $region112: #{tpu_custom_call.1} parent=99 // pred_fallthru
          _
        // Predicated region
        $region113: #{tpu_custom_call.1} parent=99 // pred_check
          %p800 = pneg %p138
        $region114: #{tpu_custom_call.1} parent=99 // pred_check_branch
          %802 = sbr.rel (%p800) target = $region116
        $region115: #{tpu_custom_call.1} parent=99 // pred_region
          %803 = dma.done [#allocation9], 16
        $region116: #{tpu_custom_call.1} parent=99 // pred_fallthru
          _
        // Predicated region
        $region117: #{tpu_custom_call.1} parent=99 // pred_check
          %p804 = pneg %p159
        $region118: #{tpu_custom_call.1} parent=99 // pred_check_branch
          %806 = sbr.rel (%p804) target = $region120
        $region119: #{tpu_custom_call.1} parent=99 // pred_region
          %807 = dma.done [#allocation9], 512
        $region120: #{tpu_custom_call.1} parent=99 // pred_fallthru
          _
        // Predicated region
        $region121: #{tpu_custom_call.1} parent=99 // pred_check
          %p808 = pneg %p180
        $region122: #{tpu_custom_call.1} parent=99 // pred_check_branch
          %810 = sbr.rel (%p808) target = $region124
        $region123: #{tpu_custom_call.1} parent=99 // pred_region
          %811 = dma.done [#allocation12], 16
        $region124: #{tpu_custom_call.1} parent=99 // pred_fallthru
          _
        // Predicated region
        $region125: #{tpu_custom_call.1} parent=99 // pred_check
          %p812 = pneg %p201
        $region126: #{tpu_custom_call.1} parent=99 // pred_check_branch
          %814 = sbr.rel (%p812) target = $region128
        $region127: #{tpu_custom_call.1} parent=99 // pred_region
          %815 = dma.done [#allocation12], 512
        $region128: #{tpu_custom_call.1} parent=99 // pred_fallthru
          _
        // Predicated region
        $region129: #{tpu_custom_call.1} parent=99 // pred_check
          %p816 = pneg %p222
        $region130: #{tpu_custom_call.1} parent=99 // pred_check_branch
          %818 = sbr.rel (%p816) target = $region132
        $region131: #{tpu_custom_call.1} parent=99 // pred_region
          %819 = dma.done [#allocation15], 16
        $region132: #{tpu_custom_call.1} parent=99 // pred_fallthru
          _
        // Predicated region
        $region133: #{tpu_custom_call.1} parent=99 // pred_check
          %p820 = pneg %p243
        $region134: #{tpu_custom_call.1} parent=99 // pred_check_branch
          %822 = sbr.rel (%p820) target = $region136
        $region135: #{tpu_custom_call.1} parent=99 // pred_region
          %823 = dma.done [#allocation15], 512
        $region136: #{tpu_custom_call.1} parent=99 // pred_fallthru
          _
        // Predicated region
        $region137: #{tpu_custom_call.1} parent=99 // pred_check
          %p824 = pneg %p264
        $region138: #{tpu_custom_call.1} parent=99 // pred_check_branch
          %826 = sbr.rel (%p824) target = $region140
        $region139: #{tpu_custom_call.1} parent=99 // pred_region
          %827 = dma.done [#allocation18], 512
        $region140: #{tpu_custom_call.1} parent=99 // pred_fallthru
          _
        // Predicated region
        $region141: #{tpu_custom_call.1} parent=99 // pred_check
          %p828 = pneg %p285
        $region142: #{tpu_custom_call.1} parent=99 // pred_check_branch
          %830 = sbr.rel (%p828) target = $region144
        $region143: #{tpu_custom_call.1} parent=99 // pred_region
          %831 = dma.done [#allocation18], 16
        $region144: #{tpu_custom_call.1} parent=99 // pred_fallthru
          _
        // Predicated region
        $region145: #{tpu_custom_call.1} parent=99 // pred_check
          %p832 = pneg %p306
        $region146: #{tpu_custom_call.1} parent=99 // pred_check_branch
          %834 = sbr.rel (%p832) target = $region148
        $region147: #{tpu_custom_call.1} parent=99 // pred_region
          %835 = dma.done [#allocation21], 16
        $region148: #{tpu_custom_call.1} parent=99 // pred_fallthru
          _
        // Predicated region
        $region149: #{tpu_custom_call.1} parent=99 // pred_check
          %p836 = pneg %p327
        $region150: #{tpu_custom_call.1} parent=99 // pred_check_branch
          %838 = sbr.rel (%p836) target = $region152
        $region151: #{tpu_custom_call.1} parent=99 // pred_region
          %839 = dma.done [#allocation21], 16
        $region152: #{tpu_custom_call.1} parent=99 // pred_fallthru
          _
        // Predicated region
        $region153: #{tpu_custom_call.1} parent=99 // pred_check
          %p840 = pneg %p348
        $region154: #{tpu_custom_call.1} parent=99 // pred_check_branch
          %842 = sbr.rel (%p840) target = $region156
        $region155: #{tpu_custom_call.1} parent=99 // pred_region
          %843 = dma.done [#allocation24], 512
        $region156: #{tpu_custom_call.1} parent=99 // pred_fallthru
          _
        // Predicated region
        $region157: #{tpu_custom_call.1} parent=99 // pred_check
          %p844 = pneg %p369
        $region158: #{tpu_custom_call.1} parent=99 // pred_check_branch
          %846 = sbr.rel (%p844) target = $region160
        $region159: #{tpu_custom_call.1} parent=99 // pred_region
          %847 = dma.done [#allocation24], 16
        $region160: #{tpu_custom_call.1} parent=99 // pred_fallthru
          _
        // Predicated region
        $region161: #{tpu_custom_call.1} parent=99 // pred_check
          %p848 = pneg %p390
        $region162: #{tpu_custom_call.1} parent=99 // pred_check_branch
          %850 = sbr.rel (%p848) target = $region164
        $region163: #{tpu_custom_call.1} parent=99 // pred_region
          %851 = dma.done [#allocation27], 512
        $region164: #{tpu_custom_call.1} parent=99 // pred_fallthru
          _
        // Predicated region
        $region165: #{tpu_custom_call.1} parent=99 // pred_check
          %p852 = pneg %p411
        $region166: #{tpu_custom_call.1} parent=99 // pred_check_branch
          %854 = sbr.rel (%p852) target = $region168
        $region167: #{tpu_custom_call.1} parent=99 // pred_region
          %855 = dma.done [#allocation27], 16
        $region168: #{tpu_custom_call.1} parent=99 // pred_fallthru
          _
        // Predicated region
        $region169: #{tpu_custom_call.1} parent=99 // pred_check
          %p856 = pneg %p432
        $region170: #{tpu_custom_call.1} parent=99 // pred_check_branch
          %858 = sbr.rel (%p856) target = $region172
        $region171: #{tpu_custom_call.1} parent=99 // pred_region
          %859 = dma.done [#allocation30], 512
        $region172: #{tpu_custom_call.1} parent=99 // pred_fallthru
          _
        // Predicated region
        $region173: #{tpu_custom_call.1} parent=99 // pred_check
          %p860 = pneg %p453
        $region174: #{tpu_custom_call.1} parent=99 // pred_check_branch
          %862 = sbr.rel (%p860) target = $region176
        $region175: #{tpu_custom_call.1} parent=99 // pred_region
          %863 = dma.done [#allocation30], 512
        $region176: #{tpu_custom_call.1} parent=99 // pred_fallthru
          _
        // Predicated region
        $region177: #{tpu_custom_call.1} parent=99 // pred_check
          %p864 = pneg %p474
        $region178: #{tpu_custom_call.1} parent=99 // pred_check_branch
          %866 = sbr.rel (%p864) target = $region180
        $region179: #{tpu_custom_call.1} parent=99 // pred_region
          %867 = dma.done [#allocation33], 16
        $region180: #{tpu_custom_call.1} parent=99 // pred_fallthru
          _
        %s868 = sand.u32 %s57, 1
        %s869 = scalar_lea.sflag [#allocation3], %s868
        %s870 = sand.u32 %s57, 1
        %s871 = smul.addr %s870, 8
        %s872 = scalar_lea.vmem [#allocation2], %s871
        %p873 = pneg %p70
        %p874 = pneg %p67
        %s875 = sand.u32 %s49, 1
        %s876 = scalar_lea.sflag [#allocation6], %s875
        %s877 = sand.u32 %s83, 1
        %s878 = smul.addr %s877, 8
        %s879 = scalar_lea.vmem [#allocation5], %s878
        %p880 = pneg %p96
        %p881 = pneg %p93
        %p882 = pneg %p117
        %p883 = pneg %p114
        %p884 = pneg %p138
        %p885 = pneg %p135
        %p886 = pneg %p159
        %p887 = pneg %p156
        %p888 = pneg %p180
        %p889 = pneg %p177
        %p890 = pneg %p201
        %p891 = pneg %p198
        %p892 = pneg %p222
        %p893 = pneg %p219
        %p894 = pneg %p243
        %p895 = pneg %p240
        %p896 = pneg %p264
        %p897 = pneg %p261
        %p898 = pneg %p285
        %p899 = pneg %p282
        %p900 = pneg %p306
        %p901 = pneg %p303
        %p902 = pneg %p327
        %p903 = pneg %p324
        %p904 = pneg %p348
        %p905 = pneg %p345
        %p906 = pneg %p369
        %p907 = pneg %p366
        %p908 = pneg %p390
        %p909 = pneg %p387
        %p910 = pneg %p411
        %p911 = pneg %p408
        %p912 = pneg %p432
        %p913 = pneg %p429
        %p914 = pneg %p453
        %p915 = pneg %p450
        %p916 = pneg %p474
        %p917 = pneg %p471
        %p918 = pneg %p500
        %p919 = pneg %p497
        %s920 = sand.u32 %s487, 1
        %s921 = scalar_lea.sflag [#allocation4], %s920
        %s922 = sand.u32 %s487, 1
        %s923 = smul.addr %s922, 8
        %s924 = scalar_lea.vmem [#allocation34], %s923
        %v926 = vld [vmem:[%s782] sm:$0xff]
        %v927 = vld [vmem:[%s791] sm:$0xff]
        %v928 = vpack.c.bf16 %v926, %v926
        %v929 = vpack.c.bf16 %v927, %v927
        %v930 = vld [vmem:[#allocation7] sm:$0xf]
        %v931 = vld [vmem:[#allocation7 + $0x4] sm:$0xf]
        %v932 = vld [vmem:[#allocation7 + $0x8] sm:$0xf]
        %v933 = vld [vmem:[#allocation7 + $0xc] sm:$0xf]
        %v934 = vld [vmem:[#allocation7 + $0x10] sm:$0xf]
        %v935 = vld [vmem:[#allocation7 + $0x14] sm:$0xf]
        %v936 = vld [vmem:[#allocation7 + $0x18] sm:$0xf]
        %v937 = vld [vmem:[#allocation7 + $0x1c] sm:$0xf]
        %v938 = vld [vmem:[#allocation8] sm:$0x1]
        %v940 = vlaneseq
        %v941 = vshrl.u32 %v940, 7
        %v942 = vsub.s32 0, %v941
        %v943 = vrot.slane %v938, %v942
        %v953 = vunpack.c.l.b16 %v930
        %v954 = vunpack.c.l.b16 %v931
        %v955 = vunpack.c.l.b16 %v932
        %v956 = vunpack.c.l.b16 %v933
        %v957 = vunpack.c.l.b16 %v934
        %v958 = vunpack.c.l.b16 %v935
        %v959 = vunpack.c.l.b16 %v936
        %v960 = vunpack.c.l.b16 %v937
        %v961 = vpack.c.b16 %v954, %v953
        %v962 = vpack.c.b16 %v956, %v955
        %v963 = vpack.c.b16 %v958, %v957
        %v964 = vpack.c.b16 %v960, %v959
        %vm969 = vcmask 523264
        %v971 = vsel %vm969, %v928, 0
        %973 = vmatprep.subr.bf16.mxu0 0
        %974 = vmatpush1.bf16.msra.mxu0 %v961
        %975 = vmatprep.subr.bf16.mxu0 0
        %976 = vmatpush1.bf16.msra.mxu0 %v962
        %977 = vmatprep.subr.bf16.mxu0 0
        %978 = vmatpush1.bf16.msra.mxu0 %v963
        %979 = vmatprep.subr.bf16.mxu0 0
        %980 = vmatpush1.bf16.msra.mxu0 %v964
        %981 = vmatprep.subr.bf16.mxu0 0
        %982 = vmatpush1.bf16.msra.mxu0 0
        %983 = vmatprep.subr.bf16.mxu0 0
        %984 = vmatpush1.bf16.msra.mxu0 0
        %985 = vmatprep.subr.bf16.mxu0 0
        %986 = vmatpush1.bf16.msra.mxu0 0
        %987 = vmatprep.subr.bf16.mxu0 0
        %988 = vmatpush1.bf16.msra.mxu0 0
        %989 = vmatprep.subr.bf16.mxu0 0
        %990 = vmatpush1.bf16.msra.mxu0 0
        %991 = vmatprep.subr.bf16.mxu0 0
        %992 = vmatpush1.bf16.msra.mxu0 0
        %993 = vmatprep.subr.bf16.mxu0 0
        %994 = vmatpush1.bf16.msra.mxu0 0
        %995 = vmatprep.subr.bf16.mxu0 0
        %996 = vmatpush1.bf16.msra.mxu0 0
        %997 = vmatprep.subr.bf16.mxu0 0
        %998 = vmatpush1.bf16.msra.mxu0 0
        %999 = vmatprep.subr.bf16.mxu0 0
        %1000 = vmatpush1.bf16.msra.mxu0 0
        %1001 = vmatprep.subr.bf16.mxu0 0
        %1002 = vmatpush1.bf16.msra.mxu0 0
        %1003 = vmatprep.subr.bf16.mxu0 0
        %1004 = vmatpush1.bf16.msra.mxu0 0
        %1005 = vmatprep.mubr.bf16.mxu0 0
        %1006 = vmatmul.mubr.bf16.gmra.mrb[0].mxu0 %v971
        %v1007 = vpop.f32.mrb[0].mxu0
        %v1008 = vadd.f32 %v943, %v1007
        %v1009 = vpop.f32.mrb[0].mxu0
        %v1010 = vpop.f32.mrb[0].mxu0
        %v1011 = vpop.f32.mrb[0].mxu0
        %1012 = vdwg.mxu0
        %v1013 = vld [vmem:[#allocation10] sm:$0xf]
        %v1014 = vld [vmem:[#allocation10 + $0x4] sm:$0xf]
        %v1015 = vld [vmem:[#allocation10 + $0x8] sm:$0xf]
        %v1016 = vld [vmem:[#allocation10 + $0xc] sm:$0xf]
        %v1017 = vld [vmem:[#allocation10 + $0x10] sm:$0xf]
        %v1018 = vld [vmem:[#allocation10 + $0x14] sm:$0xf]
        %v1019 = vld [vmem:[#allocation10 + $0x18] sm:$0xf]
        %v1020 = vld [vmem:[#allocation10 + $0x1c] sm:$0xf]
        %v1021 = vld [vmem:[#allocation11] sm:$0x1]
        %v1023 = vlaneseq
        %v1024 = vshrl.u32 %v1023, 7
        %v1025 = vsub.s32 0, %v1024
        %v1026 = vrot.slane %v1021, %v1025
        %v1036 = vunpack.c.l.b16 %v1013
        %v1037 = vunpack.c.l.b16 %v1014
        %v1038 = vunpack.c.l.b16 %v1015
        %v1039 = vunpack.c.l.b16 %v1016
        %v1040 = vunpack.c.l.b16 %v1017
        %v1041 = vunpack.c.l.b16 %v1018
        %v1042 = vunpack.c.l.b16 %v1019
        %v1043 = vunpack.c.l.b16 %v1020
        %v1044 = vpack.c.b16 %v1037, %v1036
        %v1045 = vpack.c.b16 %v1039, %v1038
        %v1046 = vpack.c.b16 %v1041, %v1040
        %v1047 = vpack.c.b16 %v1043, %v1042
        %v1053 = vsel %vm969, %v929, 0
        %1055 = vmatprep.subr.bf16.mxu0 0
        %1056 = vmatpush1.bf16.msra.mxu0 %v1044
        %1057 = vmatprep.subr.bf16.mxu0 0
        %1058 = vmatpush1.bf16.msra.mxu0 %v1045
        %1059 = vmatprep.subr.bf16.mxu0 0
        %1060 = vmatpush1.bf16.msra.mxu0 %v1046
        %1061 = vmatprep.subr.bf16.mxu0 0
        %1062 = vmatpush1.bf16.msra.mxu0 %v1047
        %1063 = vmatprep.subr.bf16.mxu0 0
        %1064 = vmatpush1.bf16.msra.mxu0 0
        %1065 = vmatprep.subr.bf16.mxu0 0
        %1066 = vmatpush1.bf16.msra.mxu0 0
        %1067 = vmatprep.subr.bf16.mxu0 0
        %1068 = vmatpush1.bf16.msra.mxu0 0
        %1069 = vmatprep.subr.bf16.mxu0 0
        %1070 = vmatpush1.bf16.msra.mxu0 0
        %1071 = vmatprep.subr.bf16.mxu0 0
        %1072 = vmatpush1.bf16.msra.mxu0 0
        %1073 = vmatprep.subr.bf16.mxu0 0
        %1074 = vmatpush1.bf16.msra.mxu0 0
        %1075 = vmatprep.subr.bf16.mxu0 0
        %1076 = vmatpush1.bf16.msra.mxu0 0
        %1077 = vmatprep.subr.bf16.mxu0 0
        %1078 = vmatpush1.bf16.msra.mxu0 0
        %1079 = vmatprep.subr.bf16.mxu0 0
        %1080 = vmatpush1.bf16.msra.mxu0 0
        %1081 = vmatprep.subr.bf16.mxu0 0
        %1082 = vmatpush1.bf16.msra.mxu0 0
        %1083 = vmatprep.subr.bf16.mxu0 0
        %1084 = vmatpush1.bf16.msra.mxu0 0
        %1085 = vmatprep.subr.bf16.mxu0 0
        %1086 = vmatpush1.bf16.msra.mxu0 0
        %1087 = vmatprep.mubr.bf16.mxu0 0
        %1088 = vmatmul.mubr.bf16.gmra.mrb[0].mxu0 %v1053
        %v1089 = vpop.f32.mrb[0].mxu0
        %v1090 = vadd.f32 %v1026, %v1089
        %v1091 = vpop.f32.mrb[0].mxu0
        %v1092 = vpop.f32.mrb[0].mxu0
        %v1093 = vpop.f32.mrb[0].mxu0
        %1094 = vdwg.mxu0
        %v1095 = vld [vmem:[#allocation13] sm:$0xf]
        %v1096 = vld [vmem:[#allocation13 + $0x4] sm:$0xf]
        %v1097 = vld [vmem:[#allocation13 + $0x8] sm:$0xf]
        %v1098 = vld [vmem:[#allocation13 + $0xc] sm:$0xf]
        %v1099 = vld [vmem:[#allocation13 + $0x10] sm:$0xf]
        %v1100 = vld [vmem:[#allocation13 + $0x14] sm:$0xf]
        %v1101 = vld [vmem:[#allocation13 + $0x18] sm:$0xf]
        %v1102 = vld [vmem:[#allocation13 + $0x1c] sm:$0xf]
        %v1103 = vld [vmem:[#allocation14] sm:$0x1]
        %v1105 = vlaneseq
        %v1106 = vshrl.u32 %v1105, 7
        %v1107 = vsub.s32 0, %v1106
        %v1108 = vrot.slane %v1103, %v1107
        %v1118 = vunpack.c.l.b16 %v1095
        %v1119 = vunpack.c.l.b16 %v1096
        %v1120 = vunpack.c.l.b16 %v1097
        %v1121 = vunpack.c.l.b16 %v1098
        %v1122 = vunpack.c.l.b16 %v1099
        %v1123 = vunpack.c.l.b16 %v1100
        %v1124 = vunpack.c.l.b16 %v1101
        %v1125 = vunpack.c.l.b16 %v1102
        %v1126 = vpack.c.b16 %v1119, %v1118
        %v1127 = vpack.c.b16 %v1121, %v1120
        %v1128 = vpack.c.b16 %v1123, %v1122
        %v1129 = vpack.c.b16 %v1125, %v1124
        %1134 = vmatprep.subr.bf16.mxu0 0
        %1135 = vmatpush1.bf16.msra.mxu0 %v1126
        %1136 = vmatprep.subr.bf16.mxu0 0
        %1137 = vmatpush1.bf16.msra.mxu0 %v1127
        %1138 = vmatprep.subr.bf16.mxu0 0
        %1139 = vmatpush1.bf16.msra.mxu0 %v1128
        %1140 = vmatprep.subr.bf16.mxu0 0
        %1141 = vmatpush1.bf16.msra.mxu0 %v1129
        %1142 = vmatprep.subr.bf16.mxu0 0
        %1143 = vmatpush1.bf16.msra.mxu0 0
        %1144 = vmatprep.subr.bf16.mxu0 0
        %1145 = vmatpush1.bf16.msra.mxu0 0
        %1146 = vmatprep.subr.bf16.mxu0 0
        %1147 = vmatpush1.bf16.msra.mxu0 0
        %1148 = vmatprep.subr.bf16.mxu0 0
        %1149 = vmatpush1.bf16.msra.mxu0 0
        %1150 = vmatprep.subr.bf16.mxu0 0
        %1151 = vmatpush1.bf16.msra.mxu0 0
        %1152 = vmatprep.subr.bf16.mxu0 0
        %1153 = vmatpush1.bf16.msra.mxu0 0
        %1154 = vmatprep.subr.bf16.mxu0 0
        %1155 = vmatpush1.bf16.msra.mxu0 0
        %1156 = vmatprep.subr.bf16.mxu0 0
        %1157 = vmatpush1.bf16.msra.mxu0 0
        %1158 = vmatprep.subr.bf16.mxu0 0
        %1159 = vmatpush1.bf16.msra.mxu0 0
        %1160 = vmatprep.subr.bf16.mxu0 0
        %1161 = vmatpush1.bf16.msra.mxu0 0
        %1162 = vmatprep.subr.bf16.mxu0 0
        %1163 = vmatpush1.bf16.msra.mxu0 0
        %1164 = vmatprep.subr.bf16.mxu0 0
        %1165 = vmatpush1.bf16.msra.mxu0 0
        %1166 = vmatprep.mubr.bf16.mxu0 0
        %1167 = vmatmul.mubr.bf16.gmra.mrb[0].mxu0 %v1053
        %v1168 = vpop.f32.mrb[0].mxu0
        %v1169 = vadd.f32 %v1108, %v1168
        %v1170 = vpop.f32.mrb[0].mxu0
        %v1171 = vpop.f32.mrb[0].mxu0
        %v1172 = vpop.f32.mrb[0].mxu0
        %1173 = vdwg.mxu0
        %v1174 = vmul.f32 %v1008, 0.125
        %vm1175 = vcmask 64512
        %v1177 = vsel %vm1175, %v1174, 0
        %v1180 = vsel %vm1175, %v1090, 0
        %1182 = vmatprep.subr.mxu0 0.0
        %1183 = vmatpush1.xpose.msra.mxu0 %v1180
        %1184 = vmatprep.subr.mxu0 0.0
        %1185 = vmatpush1.xpose.msra.mxu0 0.0
        %1186 = vmatprep.subr.mxu0 0.0
        %1187 = vmatpush1.xpose.msra.mxu0 0.0
        %1188 = vmatprep.subr.mxu0 0.0
        %1189 = vmatpush1.xpose.msra.mxu0 0.0
        %1190 = vmatprep.subr.mxu0 0.0
        %1191 = vmatpush1.xpose.msra.mxu0 0.0
        %1192 = vmatprep.subr.mxu0 0.0
        %1193 = vmatpush1.xpose.msra.mxu0 0.0
        %1194 = vmatprep.subr.mxu0 0.0
        %1195 = vmatpush1.xpose.msra.mxu0 0.0
        %1196 = vmatprep.subr.mxu0 0.0
        %1197 = vmatpush1.xpose.msra.mxu0 0.0
        %1198 = vmatprep.subr.mxu0 0.0
        %1199 = vmatpush1.xpose.msra.mxu0 0.0
        %1200 = vmatprep.subr.mxu0 0.0
        %1201 = vmatpush1.xpose.msra.mxu0 0.0
        %1202 = vmatprep.subr.mxu0 0.0
        %1203 = vmatpush1.xpose.msra.mxu0 0.0
        %1204 = vmatprep.subr.mxu0 0.0
        %1205 = vmatpush1.xpose.msra.mxu0 0.0
        %1206 = vmatprep.subr.mxu0 0.0
        %1207 = vmatpush1.xpose.msra.mxu0 0.0
        %1208 = vmatprep.subr.mxu0 0.0
        %1209 = vmatpush1.xpose.msra.mxu0 0.0
        %1210 = vmatprep.subr.mxu0 0.0
        %1211 = vmatpush1.xpose.msra.mxu0 0.0
        %1212 = vmatprep.subr.mxu0 0.0
        %1213 = vmatpush1.xpose.msra.mxu0 0.0
        %1214 = vmatprep.subr.mxu0 0.0
        %1215 = vmatpush1.xpose.msra.mxu0 0.0
        %1216 = vmatprep.subr.mxu0 0.0
        %1217 = vmatpush1.xpose.msra.mxu0 0.0
        %1218 = vmatprep.subr.mxu0 0.0
        %1219 = vmatpush1.xpose.msra.mxu0 0.0
        %1220 = vmatprep.subr.mxu0 0.0
        %1221 = vmatpush1.xpose.msra.mxu0 0.0
        %1222 = vmatprep.subr.mxu0 0.0
        %1223 = vmatpush1.xpose.msra.mxu0 0.0
        %1224 = vmatprep.subr.mxu0 0.0
        %1225 = vmatpush1.xpose.msra.mxu0 0.0
        %1226 = vmatprep.subr.mxu0 0.0
        %1227 = vmatpush1.xpose.msra.mxu0 0.0
        %1228 = vmatprep.subr.mxu0 0.0
        %1229 = vmatpush1.xpose.msra.mxu0 0.0
        %1230 = vmatprep.subr.mxu0 0.0
        %1231 = vmatpush1.xpose.msra.mxu0 0.0
        %1232 = vmatprep.subr.mxu0 0.0
        %1233 = vmatpush1.xpose.msra.mxu0 0.0
        %1234 = vmatprep.subr.mxu0 0.0
        %1235 = vmatpush1.xpose.msra.mxu0 0.0
        %1236 = vmatprep.subr.mxu0 0.0
        %1237 = vmatpush1.xpose.msra.mxu0 0.0
        %1238 = vmatprep.subr.mxu0 0.0
        %1239 = vmatpush1.xpose.msra.mxu0 0.0
        %1240 = vmatprep.subr.mxu0 0.0
        %1241 = vmatpush1.xpose.msra.mxu0 0.0
        %1242 = vmatprep.subr.mxu0 0.0
        %1243 = vmatpush1.xpose.msra.mxu0 0.0
        %1244 = vmatprep.subr.mxu0 0.0
        %1245 = vmatpush1.xpose.msra.mxu0 0.0
        %1246 = vmatprep.mubr.f32.mxu0 0.0
        %1247 = vmatmul.mubr.f32.gmra.mrb[0].mxu0 %v1177
        %v1248 = vpop.f32.mrb[0].mxu0
        %v1249 = vadd.f32 0.0, %v1248
        %v1250 = vpop.f32.mrb[0].mxu0
        %1251 = vdwg.mxu0
        %v1252 = vsel %vm1175, %v1249, -inf
        %1253 = vmax.xlane.f32.xlu0 %v1252
        %v1254 = vpop.xlane.xlu0 %1253
        %v1255 = vsub.f32 %v1249, %v1254
        %v1256 = vmul.f32 %v1255, 1.442695
        %v1257 = vpow.pop %v1256
        %v1258 = vsel %vm1175, %v1257, 0.0
        %1259 = vadd.xlane.f32.xlu0 %v1258
        %v1260 = vpop.xlane.xlu0 %1259
        %v1261 = vrcp.pop %v1260
        %v1262 = vmul.f32 %v1257, %v1261
        %v1264 = vsel %vm1175, %v1262, 0
        %1266 = vmatprep.subr.mxu0 0.0
        %1267 = vmatpush1.msra.mxu0 %v1169
        %1268 = vmatprep.subr.mxu0 0.0
        %1269 = vmatpush1.msra.mxu0 0.0
        %1270 = vmatprep.subr.mxu0 0.0
        %1271 = vmatpush1.msra.mxu0 0.0
        %1272 = vmatprep.subr.mxu0 0.0
        %1273 = vmatpush1.msra.mxu0 0.0
        %1274 = vmatprep.subr.mxu0 0.0
        %1275 = vmatpush1.msra.mxu0 0.0
        %1276 = vmatprep.subr.mxu0 0.0
        %1277 = vmatpush1.msra.mxu0 0.0
        %1278 = vmatprep.subr.mxu0 0.0
        %1279 = vmatpush1.msra.mxu0 0.0
        %1280 = vmatprep.subr.mxu0 0.0
        %1281 = vmatpush1.msra.mxu0 0.0
        %1282 = vmatprep.subr.mxu0 0.0
        %1283 = vmatpush1.msra.mxu0 0.0
        %1284 = vmatprep.subr.mxu0 0.0
        %1285 = vmatpush1.msra.mxu0 0.0
        %1286 = vmatprep.subr.mxu0 0.0
        %1287 = vmatpush1.msra.mxu0 0.0
        %1288 = vmatprep.subr.mxu0 0.0
        %1289 = vmatpush1.msra.mxu0 0.0
        %1290 = vmatprep.subr.mxu0 0.0
        %1291 = vmatpush1.msra.mxu0 0.0
        %1292 = vmatprep.subr.mxu0 0.0
        %1293 = vmatpush1.msra.mxu0 0.0
        %1294 = vmatprep.subr.mxu0 0.0
        %1295 = vmatpush1.msra.mxu0 0.0
        %1296 = vmatprep.subr.mxu0 0.0
        %1297 = vmatpush1.msra.mxu0 0.0
        %1298 = vmatprep.subr.mxu0 0.0
        %1299 = vmatpush1.msra.mxu0 0.0
        %1300 = vmatprep.subr.mxu0 0.0
        %1301 = vmatpush1.msra.mxu0 0.0
        %1302 = vmatprep.subr.mxu0 0.0
        %1303 = vmatpush1.msra.mxu0 0.0
        %1304 = vmatprep.subr.mxu0 0.0
        %1305 = vmatpush1.msra.mxu0 0.0
        %1306 = vmatprep.subr.mxu0 0.0
        %1307 = vmatpush1.msra.mxu0 0.0
        %1308 = vmatprep.subr.mxu0 0.0
        %1309 = vmatpush1.msra.mxu0 0.0
        %1310 = vmatprep.subr.mxu0 0.0
        %1311 = vmatpush1.msra.mxu0 0.0
        %1312 = vmatprep.subr.mxu0 0.0
        %1313 = vmatpush1.msra.mxu0 0.0
        %1314 = vmatprep.subr.mxu0 0.0
        %1315 = vmatpush1.msra.mxu0 0.0
        %1316 = vmatprep.subr.mxu0 0.0
        %1317 = vmatpush1.msra.mxu0 0.0
        %1318 = vmatprep.subr.mxu0 0.0
        %1319 = vmatpush1.msra.mxu0 0.0
        %1320 = vmatprep.subr.mxu0 0.0
        %1321 = vmatpush1.msra.mxu0 0.0
        %1322 = vmatprep.subr.mxu0 0.0
        %1323 = vmatpush1.msra.mxu0 0.0
        %1324 = vmatprep.subr.mxu0 0.0
        %1325 = vmatpush1.msra.mxu0 0.0
        %1326 = vmatprep.subr.mxu0 0.0
        %1327 = vmatpush1.msra.mxu0 0.0
        %1328 = vmatprep.subr.mxu0 0.0
        %1329 = vmatpush1.msra.mxu0 0.0
        %1330 = vmatprep.mubr.f32.mxu0 0.0
        %1331 = vmatmul.mubr.f32.gmra.mrb[0].mxu0 %v1264
        %v1332 = vpop.f32.mrb[0].mxu0
        %v1333 = vadd.f32 0.0, %v1332
        %v1334 = vpop.f32.mrb[0].mxu0
        %1335 = vdwg.mxu0
        %1336 = vrot.lane.b32.xlu0 %v1174, 120
        %v1337 = vpop.permute.xlu0 %1336
        %1338 = vrot.lane.b32.xlu0 %v1090, 120
        %v1339 = vpop.permute.xlu0 %1338
        %v1340 = vsel %vm1175, %v1337, 0
        %v1342 = vsel %vm1175, %v1339, 0
        %1344 = vmatprep.subr.mxu0 0.0
        %1345 = vmatpush1.xpose.msra.mxu0 %v1342
        %1346 = vmatprep.subr.mxu0 0.0
        %1347 = vmatpush1.xpose.msra.mxu0 0.0
        %1348 = vmatprep.subr.mxu0 0.0
        %1349 = vmatpush1.xpose.msra.mxu0 0.0
        %1350 = vmatprep.subr.mxu0 0.0
        %1351 = vmatpush1.xpose.msra.mxu0 0.0
        %1352 = vmatprep.subr.mxu0 0.0
        %1353 = vmatpush1.xpose.msra.mxu0 0.0
        %1354 = vmatprep.subr.mxu0 0.0
        %1355 = vmatpush1.xpose.msra.mxu0 0.0
        %1356 = vmatprep.subr.mxu0 0.0
        %1357 = vmatpush1.xpose.msra.mxu0 0.0
        %1358 = vmatprep.subr.mxu0 0.0
        %1359 = vmatpush1.xpose.msra.mxu0 0.0
        %1360 = vmatprep.subr.mxu0 0.0
        %1361 = vmatpush1.xpose.msra.mxu0 0.0
        %1362 = vmatprep.subr.mxu0 0.0
        %1363 = vmatpush1.xpose.msra.mxu0 0.0
        %1364 = vmatprep.subr.mxu0 0.0
        %1365 = vmatpush1.xpose.msra.mxu0 0.0
        %1366 = vmatprep.subr.mxu0 0.0
        %1367 = vmatpush1.xpose.msra.mxu0 0.0
        %1368 = vmatprep.subr.mxu0 0.0
        %1369 = vmatpush1.xpose.msra.mxu0 0.0
        %1370 = vmatprep.subr.mxu0 0.0
        %1371 = vmatpush1.xpose.msra.mxu0 0.0
        %1372 = vmatprep.subr.mxu0 0.0
        %1373 = vmatpush1.xpose.msra.mxu0 0.0
        %1374 = vmatprep.subr.mxu0 0.0
        %1375 = vmatpush1.xpose.msra.mxu0 0.0
        %1376 = vmatprep.subr.mxu0 0.0
        %1377 = vmatpush1.xpose.msra.mxu0 0.0
        %1378 = vmatprep.subr.mxu0 0.0
        %1379 = vmatpush1.xpose.msra.mxu0 0.0
        %1380 = vmatprep.subr.mxu0 0.0
        %1381 = vmatpush1.xpose.msra.mxu0 0.0
        %1382 = vmatprep.subr.mxu0 0.0
        %1383 = vmatpush1.xpose.msra.mxu0 0.0
        %1384 = vmatprep.subr.mxu0 0.0
        %1385 = vmatpush1.xpose.msra.mxu0 0.0
        %1386 = vmatprep.subr.mxu0 0.0
        %1387 = vmatpush1.xpose.msra.mxu0 0.0
        %1388 = vmatprep.subr.mxu0 0.0
        %1389 = vmatpush1.xpose.msra.mxu0 0.0
        %1390 = vmatprep.subr.mxu0 0.0
        %1391 = vmatpush1.xpose.msra.mxu0 0.0
        %1392 = vmatprep.subr.mxu0 0.0
        %1393 = vmatpush1.xpose.msra.mxu0 0.0
        %1394 = vmatprep.subr.mxu0 0.0
        %1395 = vmatpush1.xpose.msra.mxu0 0.0
        %1396 = vmatprep.subr.mxu0 0.0
        %1397 = vmatpush1.xpose.msra.mxu0 0.0
        %1398 = vmatprep.subr.mxu0 0.0
        %1399 = vmatpush1.xpose.msra.mxu0 0.0
        %1400 = vmatprep.subr.mxu0 0.0
        %1401 = vmatpush1.xpose.msra.mxu0 0.0
        %1402 = vmatprep.subr.mxu0 0.0
        %1403 = vmatpush1.xpose.msra.mxu0 0.0
        %1404 = vmatprep.subr.mxu0 0.0
        %1405 = vmatpush1.xpose.msra.mxu0 0.0
        %1406 = vmatprep.subr.mxu0 0.0
        %1407 = vmatpush1.xpose.msra.mxu0 0.0
        %1408 = vmatprep.mubr.f32.mxu0 0.0
        %1409 = vmatmul.mubr.f32.gmra.mrb[0].mxu0 %v1340
        %v1410 = vpop.f32.mrb[0].mxu0
        %v1411 = vadd.f32 0.0, %v1410
        %v1412 = vpop.f32.mrb[0].mxu0
        %1413 = vdwg.mxu0
        %v1414 = vsel %vm1175, %v1411, -inf
        %1415 = vmax.xlane.f32.xlu0 %v1414
        %v1416 = vpop.xlane.xlu0 %1415
        %v1417 = vsub.f32 %v1411, %v1416
        %v1418 = vmul.f32 %v1417, 1.442695
        %v1419 = vpow.pop %v1418
        %v1420 = vsel %vm1175, %v1419, 0.0
        %1421 = vadd.xlane.f32.xlu0 %v1420
        %v1422 = vpop.xlane.xlu0 %1421
        %v1423 = vrcp.pop %v1422
        %v1424 = vmul.f32 %v1419, %v1423
        %1426 = vrot.lane.b32.xlu0 %v1169, 120
        %v1427 = vpop.permute.xlu0 %1426
        %v1430 = vsel %vm1175, %v1424, 0
        %1432 = vmatprep.subr.mxu0 0.0
        %1433 = vmatpush1.msra.mxu0 %v1427
        %1434 = vmatprep.subr.mxu0 0.0
        %1435 = vmatpush1.msra.mxu0 0.0
        %1436 = vmatprep.subr.mxu0 0.0
        %1437 = vmatpush1.msra.mxu0 0.0
        %1438 = vmatprep.subr.mxu0 0.0
        %1439 = vmatpush1.msra.mxu0 0.0
        %1440 = vmatprep.subr.mxu0 0.0
        %1441 = vmatpush1.msra.mxu0 0.0
        %1442 = vmatprep.subr.mxu0 0.0
        %1443 = vmatpush1.msra.mxu0 0.0
        %1444 = vmatprep.subr.mxu0 0.0
        %1445 = vmatpush1.msra.mxu0 0.0
        %1446 = vmatprep.subr.mxu0 0.0
        %1447 = vmatpush1.msra.mxu0 0.0
        %1448 = vmatprep.subr.mxu0 0.0
        %1449 = vmatpush1.msra.mxu0 0.0
        %1450 = vmatprep.subr.mxu0 0.0
        %1451 = vmatpush1.msra.mxu0 0.0
        %1452 = vmatprep.subr.mxu0 0.0
        %1453 = vmatpush1.msra.mxu0 0.0
        %1454 = vmatprep.subr.mxu0 0.0
        %1455 = vmatpush1.msra.mxu0 0.0
        %1456 = vmatprep.subr.mxu0 0.0
        %1457 = vmatpush1.msra.mxu0 0.0
        %1458 = vmatprep.subr.mxu0 0.0
        %1459 = vmatpush1.msra.mxu0 0.0
        %1460 = vmatprep.subr.mxu0 0.0
        %1461 = vmatpush1.msra.mxu0 0.0
        %1462 = vmatprep.subr.mxu0 0.0
        %1463 = vmatpush1.msra.mxu0 0.0
        %1464 = vmatprep.subr.mxu0 0.0
        %1465 = vmatpush1.msra.mxu0 0.0
        %1466 = vmatprep.subr.mxu0 0.0
        %1467 = vmatpush1.msra.mxu0 0.0
        %1468 = vmatprep.subr.mxu0 0.0
        %1469 = vmatpush1.msra.mxu0 0.0
        %1470 = vmatprep.subr.mxu0 0.0
        %1471 = vmatpush1.msra.mxu0 0.0
        %1472 = vmatprep.subr.mxu0 0.0
        %1473 = vmatpush1.msra.mxu0 0.0
        %1474 = vmatprep.subr.mxu0 0.0
        %1475 = vmatpush1.msra.mxu0 0.0
        %1476 = vmatprep.subr.mxu0 0.0
        %1477 = vmatpush1.msra.mxu0 0.0
        %1478 = vmatprep.subr.mxu0 0.0
        %1479 = vmatpush1.msra.mxu0 0.0
        %1480 = vmatprep.subr.mxu0 0.0
        %1481 = vmatpush1.msra.mxu0 0.0
        %1482 = vmatprep.subr.mxu0 0.0
        %1483 = vmatpush1.msra.mxu0 0.0
        %1484 = vmatprep.subr.mxu0 0.0
        %1485 = vmatpush1.msra.mxu0 0.0
        %1486 = vmatprep.subr.mxu0 0.0
        %1487 = vmatpush1.msra.mxu0 0.0
        %1488 = vmatprep.subr.mxu0 0.0
        %1489 = vmatpush1.msra.mxu0 0.0
        %1490 = vmatprep.subr.mxu0 0.0
        %1491 = vmatpush1.msra.mxu0 0.0
        %1492 = vmatprep.subr.mxu0 0.0
        %1493 = vmatpush1.msra.mxu0 0.0
        %1494 = vmatprep.subr.mxu0 0.0
        %1495 = vmatpush1.msra.mxu0 0.0
        %1496 = vmatprep.mubr.f32.mxu0 0.0
        %1497 = vmatmul.mubr.f32.gmra.mrb[0].mxu0 %v1430
        %v1498 = vpop.f32.mrb[0].mxu0
        %v1499 = vadd.f32 0.0, %v1498
        %v1500 = vpop.f32.mrb[0].mxu0
        %1501 = vdwg.mxu0
        %1502 = vrot.lane.b32.xlu0 %v1174, 112
        %v1503 = vpop.permute.xlu0 %1502
        %1504 = vrot.lane.b32.xlu0 %v1090, 112
        %v1505 = vpop.permute.xlu0 %1504
        %v1506 = vsel %vm1175, %v1503, 0
        %v1508 = vsel %vm1175, %v1505, 0
        %1510 = vmatprep.subr.mxu0 0.0
        %1511 = vmatpush1.xpose.msra.mxu0 %v1508
        %1512 = vmatprep.subr.mxu0 0.0
        %1513 = vmatpush1.xpose.msra.mxu0 0.0
        %1514 = vmatprep.subr.mxu0 0.0
        %1515 = vmatpush1.xpose.msra.mxu0 0.0
        %1516 = vmatprep.subr.mxu0 0.0
        %1517 = vmatpush1.xpose.msra.mxu0 0.0
        %1518 = vmatprep.subr.mxu0 0.0
        %1519 = vmatpush1.xpose.msra.mxu0 0.0
        %1520 = vmatprep.subr.mxu0 0.0
        %1521 = vmatpush1.xpose.msra.mxu0 0.0
        %1522 = vmatprep.subr.mxu0 0.0
        %1523 = vmatpush1.xpose.msra.mxu0 0.0
        %1524 = vmatprep.subr.mxu0 0.0
        %1525 = vmatpush1.xpose.msra.mxu0 0.0
        %1526 = vmatprep.subr.mxu0 0.0
        %1527 = vmatpush1.xpose.msra.mxu0 0.0
        %1528 = vmatprep.subr.mxu0 0.0
        %1529 = vmatpush1.xpose.msra.mxu0 0.0
        %1530 = vmatprep.subr.mxu0 0.0
        %1531 = vmatpush1.xpose.msra.mxu0 0.0
        %1532 = vmatprep.subr.mxu0 0.0
        %1533 = vmatpush1.xpose.msra.mxu0 0.0
        %1534 = vmatprep.subr.mxu0 0.0
        %1535 = vmatpush1.xpose.msra.mxu0 0.0
        %1536 = vmatprep.subr.mxu0 0.0
        %1537 = vmatpush1.xpose.msra.mxu0 0.0
        %1538 = vmatprep.subr.mxu0 0.0
        %1539 = vmatpush1.xpose.msra.mxu0 0.0
        %1540 = vmatprep.subr.mxu0 0.0
        %1541 = vmatpush1.xpose.msra.mxu0 0.0
        %1542 = vmatprep.subr.mxu0 0.0
        %1543 = vmatpush1.xpose.msra.mxu0 0.0
        %1544 = vmatprep.subr.mxu0 0.0
        %1545 = vmatpush1.xpose.msra.mxu0 0.0
        %1546 = vmatprep.subr.mxu0 0.0
        %1547 = vmatpush1.xpose.msra.mxu0 0.0
        %1548 = vmatprep.subr.mxu0 0.0
        %1549 = vmatpush1.xpose.msra.mxu0 0.0
        %1550 = vmatprep.subr.mxu0 0.0
        %1551 = vmatpush1.xpose.msra.mxu0 0.0
        %1552 = vmatprep.subr.mxu0 0.0
        %1553 = vmatpush1.xpose.msra.mxu0 0.0
        %1554 = vmatprep.subr.mxu0 0.0
        %1555 = vmatpush1.xpose.msra.mxu0 0.0
        %1556 = vmatprep.subr.mxu0 0.0
        %1557 = vmatpush1.xpose.msra.mxu0 0.0
        %1558 = vmatprep.subr.mxu0 0.0
        %1559 = vmatpush1.xpose.msra.mxu0 0.0
        %1560 = vmatprep.subr.mxu0 0.0
        %1561 = vmatpush1.xpose.msra.mxu0 0.0
        %1562 = vmatprep.subr.mxu0 0.0
        %1563 = vmatpush1.xpose.msra.mxu0 0.0
        %1564 = vmatprep.subr.mxu0 0.0
        %1565 = vmatpush1.xpose.msra.mxu0 0.0
        %1566 = vmatprep.subr.mxu0 0.0
        %1567 = vmatpush1.xpose.msra.mxu0 0.0
        %1568 = vmatprep.subr.mxu0 0.0
        %1569 = vmatpush1.xpose.msra.mxu0 0.0
        %1570 = vmatprep.subr.mxu0 0.0
        %1571 = vmatpush1.xpose.msra.mxu0 0.0
        %1572 = vmatprep.subr.mxu0 0.0
        %1573 = vmatpush1.xpose.msra.mxu0 0.0
        %1574 = vmatprep.mubr.f32.mxu0 0.0
        %1575 = vmatmul.mubr.f32.gmra.mrb[0].mxu0 %v1506
        %v1576 = vpop.f32.mrb[0].mxu0
        %v1577 = vadd.f32 0.0, %v1576
        %v1578 = vpop.f32.mrb[0].mxu0
        %1579 = vdwg.mxu0
        %v1580 = vsel %vm1175, %v1577, -inf
        %1581 = vmax.xlane.f32.xlu0 %v1580
        %v1582 = vpop.xlane.xlu0 %1581
        %v1583 = vsub.f32 %v1577, %v1582
        %v1584 = vmul.f32 %v1583, 1.442695
        %v1585 = vpow.pop %v1584
        %v1586 = vsel %vm1175, %v1585, 0.0
        %1587 = vadd.xlane.f32.xlu0 %v1586
        %v1588 = vpop.xlane.xlu0 %1587
        %v1589 = vrcp.pop %v1588
        %v1590 = vmul.f32 %v1585, %v1589
        %1591 = vrot.lane.b32.xlu0 %v1169, 112
        %v1592 = vpop.permute.xlu0 %1591
        %v1595 = vsel %vm1175, %v1590, 0
        %1597 = vmatprep.subr.mxu0 0.0
        %1598 = vmatpush1.msra.mxu0 %v1592
        %1599 = vmatprep.subr.mxu0 0.0
        %1600 = vmatpush1.msra.mxu0 0.0
        %1601 = vmatprep.subr.mxu0 0.0
        %1602 = vmatpush1.msra.mxu0 0.0
        %1603 = vmatprep.subr.mxu0 0.0
        %1604 = vmatpush1.msra.mxu0 0.0
        %1605 = vmatprep.subr.mxu0 0.0
        %1606 = vmatpush1.msra.mxu0 0.0
        %1607 = vmatprep.subr.mxu0 0.0
        %1608 = vmatpush1.msra.mxu0 0.0
        %1609 = vmatprep.subr.mxu0 0.0
        %1610 = vmatpush1.msra.mxu0 0.0
        %1611 = vmatprep.subr.mxu0 0.0
        %1612 = vmatpush1.msra.mxu0 0.0
        %1613 = vmatprep.subr.mxu0 0.0
        %1614 = vmatpush1.msra.mxu0 0.0
        %1615 = vmatprep.subr.mxu0 0.0
        %1616 = vmatpush1.msra.mxu0 0.0
        %1617 = vmatprep.subr.mxu0 0.0
        %1618 = vmatpush1.msra.mxu0 0.0
        %1619 = vmatprep.subr.mxu0 0.0
        %1620 = vmatpush1.msra.mxu0 0.0
        %1621 = vmatprep.subr.mxu0 0.0
        %1622 = vmatpush1.msra.mxu0 0.0
        %1623 = vmatprep.subr.mxu0 0.0
        %1624 = vmatpush1.msra.mxu0 0.0
        %1625 = vmatprep.subr.mxu0 0.0
        %1626 = vmatpush1.msra.mxu0 0.0
        %1627 = vmatprep.subr.mxu0 0.0
        %1628 = vmatpush1.msra.mxu0 0.0
        %1629 = vmatprep.subr.mxu0 0.0
        %1630 = vmatpush1.msra.mxu0 0.0
        %1631 = vmatprep.subr.mxu0 0.0
        %1632 = vmatpush1.msra.mxu0 0.0
        %1633 = vmatprep.subr.mxu0 0.0
        %1634 = vmatpush1.msra.mxu0 0.0
        %1635 = vmatprep.subr.mxu0 0.0
        %1636 = vmatpush1.msra.mxu0 0.0
        %1637 = vmatprep.subr.mxu0 0.0
        %1638 = vmatpush1.msra.mxu0 0.0
        %1639 = vmatprep.subr.mxu0 0.0
        %1640 = vmatpush1.msra.mxu0 0.0
        %1641 = vmatprep.subr.mxu0 0.0
        %1642 = vmatpush1.msra.mxu0 0.0
        %1643 = vmatprep.subr.mxu0 0.0
        %1644 = vmatpush1.msra.mxu0 0.0
        %1645 = vmatprep.subr.mxu0 0.0
        %1646 = vmatpush1.msra.mxu0 0.0
        %1647 = vmatprep.subr.mxu0 0.0
        %1648 = vmatpush1.msra.mxu0 0.0
        %1649 = vmatprep.subr.mxu0 0.0
        %1650 = vmatpush1.msra.mxu0 0.0
        %1651 = vmatprep.subr.mxu0 0.0
        %1652 = vmatpush1.msra.mxu0 0.0
        %1653 = vmatprep.subr.mxu0 0.0
        %1654 = vmatpush1.msra.mxu0 0.0
        %1655 = vmatprep.subr.mxu0 0.0
        %1656 = vmatpush1.msra.mxu0 0.0
        %1657 = vmatprep.subr.mxu0 0.0
        %1658 = vmatpush1.msra.mxu0 0.0
        %1659 = vmatprep.subr.mxu0 0.0
        %1660 = vmatpush1.msra.mxu0 0.0
        %1661 = vmatprep.mubr.f32.mxu0 0.0
        %1662 = vmatmul.mubr.f32.gmra.mrb[0].mxu0 %v1595
        %v1663 = vpop.f32.mrb[0].mxu0
        %v1664 = vadd.f32 0.0, %v1663
        %v1665 = vpop.f32.mrb[0].mxu0
        %1666 = vdwg.mxu0
        %1667 = vrot.lane.b32.xlu0 %v1174, 104
        %v1668 = vpop.permute.xlu0 %1667
        %1669 = vrot.lane.b32.xlu0 %v1090, 104
        %v1670 = vpop.permute.xlu0 %1669
        %v1671 = vsel %vm1175, %v1668, 0
        %v1673 = vsel %vm1175, %v1670, 0
        %1675 = vmatprep.subr.mxu0 0.0
        %1676 = vmatpush1.xpose.msra.mxu0 %v1673
        %1677 = vmatprep.subr.mxu0 0.0
        %1678 = vmatpush1.xpose.msra.mxu0 0.0
        %1679 = vmatprep.subr.mxu0 0.0
        %1680 = vmatpush1.xpose.msra.mxu0 0.0
        %1681 = vmatprep.subr.mxu0 0.0
        %1682 = vmatpush1.xpose.msra.mxu0 0.0
        %1683 = vmatprep.subr.mxu0 0.0
        %1684 = vmatpush1.xpose.msra.mxu0 0.0
        %1685 = vmatprep.subr.mxu0 0.0
        %1686 = vmatpush1.xpose.msra.mxu0 0.0
        %1687 = vmatprep.subr.mxu0 0.0
        %1688 = vmatpush1.xpose.msra.mxu0 0.0
        %1689 = vmatprep.subr.mxu0 0.0
        %1690 = vmatpush1.xpose.msra.mxu0 0.0
        %1691 = vmatprep.subr.mxu0 0.0
        %1692 = vmatpush1.xpose.msra.mxu0 0.0
        %1693 = vmatprep.subr.mxu0 0.0
        %1694 = vmatpush1.xpose.msra.mxu0 0.0
        %1695 = vmatprep.subr.mxu0 0.0
        %1696 = vmatpush1.xpose.msra.mxu0 0.0
        %1697 = vmatprep.subr.mxu0 0.0
        %1698 = vmatpush1.xpose.msra.mxu0 0.0
        %1699 = vmatprep.subr.mxu0 0.0
        %1700 = vmatpush1.xpose.msra.mxu0 0.0
        %1701 = vmatprep.subr.mxu0 0.0
        %1702 = vmatpush1.xpose.msra.mxu0 0.0
        %1703 = vmatprep.subr.mxu0 0.0
        %1704 = vmatpush1.xpose.msra.mxu0 0.0
        %1705 = vmatprep.subr.mxu0 0.0
        %1706 = vmatpush1.xpose.msra.mxu0 0.0
        %1707 = vmatprep.subr.mxu0 0.0
        %1708 = vmatpush1.xpose.msra.mxu0 0.0
        %1709 = vmatprep.subr.mxu0 0.0
        %1710 = vmatpush1.xpose.msra.mxu0 0.0
        %1711 = vmatprep.subr.mxu0 0.0
        %1712 = vmatpush1.xpose.msra.mxu0 0.0
        %1713 = vmatprep.subr.mxu0 0.0
        %1714 = vmatpush1.xpose.msra.mxu0 0.0
        %1715 = vmatprep.subr.mxu0 0.0
        %1716 = vmatpush1.xpose.msra.mxu0 0.0
        %1717 = vmatprep.subr.mxu0 0.0
        %1718 = vmatpush1.xpose.msra.mxu0 0.0
        %1719 = vmatprep.subr.mxu0 0.0
        %1720 = vmatpush1.xpose.msra.mxu0 0.0
        %1721 = vmatprep.subr.mxu0 0.0
        %1722 = vmatpush1.xpose.msra.mxu0 0.0
        %1723 = vmatprep.subr.mxu0 0.0
        %1724 = vmatpush1.xpose.msra.mxu0 0.0
        %1725 = vmatprep.subr.mxu0 0.0
        %1726 = vmatpush1.xpose.msra.mxu0 0.0
        %1727 = vmatprep.subr.mxu0 0.0
        %1728 = vmatpush1.xpose.msra.mxu0 0.0
        %1729 = vmatprep.subr.mxu0 0.0
        %1730 = vmatpush1.xpose.msra.mxu0 0.0
        %1731 = vmatprep.subr.mxu0 0.0
        %1732 = vmatpush1.xpose.msra.mxu0 0.0
        %1733 = vmatprep.subr.mxu0 0.0
        %1734 = vmatpush1.xpose.msra.mxu0 0.0
        %1735 = vmatprep.subr.mxu0 0.0
        %1736 = vmatpush1.xpose.msra.mxu0 0.0
        %1737 = vmatprep.subr.mxu0 0.0
        %1738 = vmatpush1.xpose.msra.mxu0 0.0
        %1739 = vmatprep.mubr.f32.mxu0 0.0
        %1740 = vmatmul.mubr.f32.gmra.mrb[0].mxu0 %v1671
        %v1741 = vpop.f32.mrb[0].mxu0
        %v1742 = vadd.f32 0.0, %v1741
        %v1743 = vpop.f32.mrb[0].mxu0
        %1744 = vdwg.mxu0
        %v1745 = vsel %vm1175, %v1742, -inf
        %1746 = vmax.xlane.f32.xlu0 %v1745
        %v1747 = vpop.xlane.xlu0 %1746
        %v1748 = vsub.f32 %v1742, %v1747
        %v1749 = vmul.f32 %v1748, 1.442695
        %v1750 = vpow.pop %v1749
        %v1751 = vsel %vm1175, %v1750, 0.0
        %1752 = vadd.xlane.f32.xlu0 %v1751
        %v1753 = vpop.xlane.xlu0 %1752
        %v1754 = vrcp.pop %v1753
        %v1755 = vmul.f32 %v1750, %v1754
        %1756 = vrot.lane.b32.xlu0 %v1169, 104
        %v1757 = vpop.permute.xlu0 %1756
        %v1760 = vsel %vm1175, %v1755, 0
        %1762 = vmatprep.subr.mxu0 0.0
        %1763 = vmatpush1.msra.mxu0 %v1757
        %1764 = vmatprep.subr.mxu0 0.0
        %1765 = vmatpush1.msra.mxu0 0.0
        %1766 = vmatprep.subr.mxu0 0.0
        %1767 = vmatpush1.msra.mxu0 0.0
        %1768 = vmatprep.subr.mxu0 0.0
        %1769 = vmatpush1.msra.mxu0 0.0
        %1770 = vmatprep.subr.mxu0 0.0
        %1771 = vmatpush1.msra.mxu0 0.0
        %1772 = vmatprep.subr.mxu0 0.0
        %1773 = vmatpush1.msra.mxu0 0.0
        %1774 = vmatprep.subr.mxu0 0.0
        %1775 = vmatpush1.msra.mxu0 0.0
        %1776 = vmatprep.subr.mxu0 0.0
        %1777 = vmatpush1.msra.mxu0 0.0
        %1778 = vmatprep.subr.mxu0 0.0
        %1779 = vmatpush1.msra.mxu0 0.0
        %1780 = vmatprep.subr.mxu0 0.0
        %1781 = vmatpush1.msra.mxu0 0.0
        %1782 = vmatprep.subr.mxu0 0.0
        %1783 = vmatpush1.msra.mxu0 0.0
        %1784 = vmatprep.subr.mxu0 0.0
        %1785 = vmatpush1.msra.mxu0 0.0
        %1786 = vmatprep.subr.mxu0 0.0
        %1787 = vmatpush1.msra.mxu0 0.0
        %1788 = vmatprep.subr.mxu0 0.0
        %1789 = vmatpush1.msra.mxu0 0.0
        %1790 = vmatprep.subr.mxu0 0.0
        %1791 = vmatpush1.msra.mxu0 0.0
        %1792 = vmatprep.subr.mxu0 0.0
        %1793 = vmatpush1.msra.mxu0 0.0
        %1794 = vmatprep.subr.mxu0 0.0
        %1795 = vmatpush1.msra.mxu0 0.0
        %1796 = vmatprep.subr.mxu0 0.0
        %1797 = vmatpush1.msra.mxu0 0.0
        %1798 = vmatprep.subr.mxu0 0.0
        %1799 = vmatpush1.msra.mxu0 0.0
        %1800 = vmatprep.subr.mxu0 0.0
        %1801 = vmatpush1.msra.mxu0 0.0
        %1802 = vmatprep.subr.mxu0 0.0
        %1803 = vmatpush1.msra.mxu0 0.0
        %1804 = vmatprep.subr.mxu0 0.0
        %1805 = vmatpush1.msra.mxu0 0.0
        %1806 = vmatprep.subr.mxu0 0.0
        %1807 = vmatpush1.msra.mxu0 0.0
        %1808 = vmatprep.subr.mxu0 0.0
        %1809 = vmatpush1.msra.mxu0 0.0
        %1810 = vmatprep.subr.mxu0 0.0
        %1811 = vmatpush1.msra.mxu0 0.0
        %1812 = vmatprep.subr.mxu0 0.0
        %1813 = vmatpush1.msra.mxu0 0.0
        %1814 = vmatprep.subr.mxu0 0.0
        %1815 = vmatpush1.msra.mxu0 0.0
        %1816 = vmatprep.subr.mxu0 0.0
        %1817 = vmatpush1.msra.mxu0 0.0
        %1818 = vmatprep.subr.mxu0 0.0
        %1819 = vmatpush1.msra.mxu0 0.0
        %1820 = vmatprep.subr.mxu0 0.0
        %1821 = vmatpush1.msra.mxu0 0.0
        %1822 = vmatprep.subr.mxu0 0.0
        %1823 = vmatpush1.msra.mxu0 0.0
        %1824 = vmatprep.subr.mxu0 0.0
        %1825 = vmatpush1.msra.mxu0 0.0
        %1826 = vmatprep.mubr.f32.mxu0 0.0
        %1827 = vmatmul.mubr.f32.gmra.mrb[0].mxu0 %v1760
        %v1828 = vpop.f32.mrb[0].mxu0
        %v1829 = vadd.f32 0.0, %v1828
        %v1830 = vpop.f32.mrb[0].mxu0
        %1831 = vdwg.mxu0
        %1832 = vrot.lane.b32.xlu0 %v1174, 96
        %v1833 = vpop.permute.xlu0 %1832
        %1834 = vrot.lane.b32.xlu0 %v1090, 96
        %v1835 = vpop.permute.xlu0 %1834
        %v1836 = vsel %vm1175, %v1833, 0
        %v1838 = vsel %vm1175, %v1835, 0
        %1840 = vmatprep.subr.mxu0 0.0
        %1841 = vmatpush1.xpose.msra.mxu0 %v1838
        %1842 = vmatprep.subr.mxu0 0.0
        %1843 = vmatpush1.xpose.msra.mxu0 0.0
        %1844 = vmatprep.subr.mxu0 0.0
        %1845 = vmatpush1.xpose.msra.mxu0 0.0
        %1846 = vmatprep.subr.mxu0 0.0
        %1847 = vmatpush1.xpose.msra.mxu0 0.0
        %1848 = vmatprep.subr.mxu0 0.0
        %1849 = vmatpush1.xpose.msra.mxu0 0.0
        %1850 = vmatprep.subr.mxu0 0.0
        %1851 = vmatpush1.xpose.msra.mxu0 0.0
        %1852 = vmatprep.subr.mxu0 0.0
        %1853 = vmatpush1.xpose.msra.mxu0 0.0
        %1854 = vmatprep.subr.mxu0 0.0
        %1855 = vmatpush1.xpose.msra.mxu0 0.0
        %1856 = vmatprep.subr.mxu0 0.0
        %1857 = vmatpush1.xpose.msra.mxu0 0.0
        %1858 = vmatprep.subr.mxu0 0.0
        %1859 = vmatpush1.xpose.msra.mxu0 0.0
        %1860 = vmatprep.subr.mxu0 0.0
        %1861 = vmatpush1.xpose.msra.mxu0 0.0
        %1862 = vmatprep.subr.mxu0 0.0
        %1863 = vmatpush1.xpose.msra.mxu0 0.0
        %1864 = vmatprep.subr.mxu0 0.0
        %1865 = vmatpush1.xpose.msra.mxu0 0.0
        %1866 = vmatprep.subr.mxu0 0.0
        %1867 = vmatpush1.xpose.msra.mxu0 0.0
        %1868 = vmatprep.subr.mxu0 0.0
        %1869 = vmatpush1.xpose.msra.mxu0 0.0
        %1870 = vmatprep.subr.mxu0 0.0
        %1871 = vmatpush1.xpose.msra.mxu0 0.0
        %1872 = vmatprep.subr.mxu0 0.0
        %1873 = vmatpush1.xpose.msra.mxu0 0.0
        %1874 = vmatprep.subr.mxu0 0.0
        %1875 = vmatpush1.xpose.msra.mxu0 0.0
        %1876 = vmatprep.subr.mxu0 0.0
        %1877 = vmatpush1.xpose.msra.mxu0 0.0
        %1878 = vmatprep.subr.mxu0 0.0
        %1879 = vmatpush1.xpose.msra.mxu0 0.0
        %1880 = vmatprep.subr.mxu0 0.0
        %1881 = vmatpush1.xpose.msra.mxu0 0.0
        %1882 = vmatprep.subr.mxu0 0.0
        %1883 = vmatpush1.xpose.msra.mxu0 0.0
        %1884 = vmatprep.subr.mxu0 0.0
        %1885 = vmatpush1.xpose.msra.mxu0 0.0
        %1886 = vmatprep.subr.mxu0 0.0
        %1887 = vmatpush1.xpose.msra.mxu0 0.0
        %1888 = vmatprep.subr.mxu0 0.0
        %1889 = vmatpush1.xpose.msra.mxu0 0.0
        %1890 = vmatprep.subr.mxu0 0.0
        %1891 = vmatpush1.xpose.msra.mxu0 0.0
        %1892 = vmatprep.subr.mxu0 0.0
        %1893 = vmatpush1.xpose.msra.mxu0 0.0
        %1894 = vmatprep.subr.mxu0 0.0
        %1895 = vmatpush1.xpose.msra.mxu0 0.0
        %1896 = vmatprep.subr.mxu0 0.0
        %1897 = vmatpush1.xpose.msra.mxu0 0.0
        %1898 = vmatprep.subr.mxu0 0.0
        %1899 = vmatpush1.xpose.msra.mxu0 0.0
        %1900 = vmatprep.subr.mxu0 0.0
        %1901 = vmatpush1.xpose.msra.mxu0 0.0
        %1902 = vmatprep.subr.mxu0 0.0
        %1903 = vmatpush1.xpose.msra.mxu0 0.0
        %1904 = vmatprep.mubr.f32.mxu0 0.0
        %1905 = vmatmul.mubr.f32.gmra.mrb[0].mxu0 %v1836
        %v1906 = vpop.f32.mrb[0].mxu0
        %v1907 = vadd.f32 0.0, %v1906
        %v1908 = vpop.f32.mrb[0].mxu0
        %1909 = vdwg.mxu0
        %v1910 = vsel %vm1175, %v1907, -inf
        %1911 = vmax.xlane.f32.xlu0 %v1910
        %v1912 = vpop.xlane.xlu0 %1911
        %v1913 = vsub.f32 %v1907, %v1912
        %v1914 = vmul.f32 %v1913, 1.442695
        %v1915 = vpow.pop %v1914
        %v1916 = vsel %vm1175, %v1915, 0.0
        %1917 = vadd.xlane.f32.xlu0 %v1916
        %v1918 = vpop.xlane.xlu0 %1917
        %v1919 = vrcp.pop %v1918
        %v1920 = vmul.f32 %v1915, %v1919
        %1921 = vrot.lane.b32.xlu0 %v1169, 96
        %v1922 = vpop.permute.xlu0 %1921
        %v1925 = vsel %vm1175, %v1920, 0
        %1927 = vmatprep.subr.mxu0 0.0
        %1928 = vmatpush1.msra.mxu0 %v1922
        %1929 = vmatprep.subr.mxu0 0.0
        %1930 = vmatpush1.msra.mxu0 0.0
        %1931 = vmatprep.subr.mxu0 0.0
        %1932 = vmatpush1.msra.mxu0 0.0
        %1933 = vmatprep.subr.mxu0 0.0
        %1934 = vmatpush1.msra.mxu0 0.0
        %1935 = vmatprep.subr.mxu0 0.0
        %1936 = vmatpush1.msra.mxu0 0.0
        %1937 = vmatprep.subr.mxu0 0.0
        %1938 = vmatpush1.msra.mxu0 0.0
        %1939 = vmatprep.subr.mxu0 0.0
        %1940 = vmatpush1.msra.mxu0 0.0
        %1941 = vmatprep.subr.mxu0 0.0
        %1942 = vmatpush1.msra.mxu0 0.0
        %1943 = vmatprep.subr.mxu0 0.0
        %1944 = vmatpush1.msra.mxu0 0.0
        %1945 = vmatprep.subr.mxu0 0.0
        %1946 = vmatpush1.msra.mxu0 0.0
        %1947 = vmatprep.subr.mxu0 0.0
        %1948 = vmatpush1.msra.mxu0 0.0
        %1949 = vmatprep.subr.mxu0 0.0
        %1950 = vmatpush1.msra.mxu0 0.0
        %1951 = vmatprep.subr.mxu0 0.0
        %1952 = vmatpush1.msra.mxu0 0.0
        %1953 = vmatprep.subr.mxu0 0.0
        %1954 = vmatpush1.msra.mxu0 0.0
        %1955 = vmatprep.subr.mxu0 0.0
        %1956 = vmatpush1.msra.mxu0 0.0
        %1957 = vmatprep.subr.mxu0 0.0
        %1958 = vmatpush1.msra.mxu0 0.0
        %1959 = vmatprep.subr.mxu0 0.0
        %1960 = vmatpush1.msra.mxu0 0.0
        %1961 = vmatprep.subr.mxu0 0.0
        %1962 = vmatpush1.msra.mxu0 0.0
        %1963 = vmatprep.subr.mxu0 0.0
        %1964 = vmatpush1.msra.mxu0 0.0
        %1965 = vmatprep.subr.mxu0 0.0
        %1966 = vmatpush1.msra.mxu0 0.0
        %1967 = vmatprep.subr.mxu0 0.0
        %1968 = vmatpush1.msra.mxu0 0.0
        %1969 = vmatprep.subr.mxu0 0.0
        %1970 = vmatpush1.msra.mxu0 0.0
        %1971 = vmatprep.subr.mxu0 0.0
        %1972 = vmatpush1.msra.mxu0 0.0
        %1973 = vmatprep.subr.mxu0 0.0
        %1974 = vmatpush1.msra.mxu0 0.0
        %1975 = vmatprep.subr.mxu0 0.0
        %1976 = vmatpush1.msra.mxu0 0.0
        %1977 = vmatprep.subr.mxu0 0.0
        %1978 = vmatpush1.msra.mxu0 0.0
        %1979 = vmatprep.subr.mxu0 0.0
        %1980 = vmatpush1.msra.mxu0 0.0
        %1981 = vmatprep.subr.mxu0 0.0
        %1982 = vmatpush1.msra.mxu0 0.0
        %1983 = vmatprep.subr.mxu0 0.0
        %1984 = vmatpush1.msra.mxu0 0.0
        %1985 = vmatprep.subr.mxu0 0.0
        %1986 = vmatpush1.msra.mxu0 0.0
        %1987 = vmatprep.subr.mxu0 0.0
        %1988 = vmatpush1.msra.mxu0 0.0
        %1989 = vmatprep.subr.mxu0 0.0
        %1990 = vmatpush1.msra.mxu0 0.0
        %1991 = vmatprep.mubr.f32.mxu0 0.0
        %1992 = vmatmul.mubr.f32.gmra.mrb[0].mxu0 %v1925
        %v1993 = vpop.f32.mrb[0].mxu0
        %v1994 = vadd.f32 0.0, %v1993
        %v1995 = vpop.f32.mrb[0].mxu0
        %1996 = vdwg.mxu0
        %1997 = vrot.lane.b32.xlu0 %v1174, 88
        %v1998 = vpop.permute.xlu0 %1997
        %1999 = vrot.lane.b32.xlu0 %v1090, 88
        %v2000 = vpop.permute.xlu0 %1999
        %v2001 = vsel %vm1175, %v1998, 0
        %v2003 = vsel %vm1175, %v2000, 0
        %2005 = vmatprep.subr.mxu0 0.0
        %2006 = vmatpush1.xpose.msra.mxu0 %v2003
        %2007 = vmatprep.subr.mxu0 0.0
        %2008 = vmatpush1.xpose.msra.mxu0 0.0
        %2009 = vmatprep.subr.mxu0 0.0
        %2010 = vmatpush1.xpose.msra.mxu0 0.0
        %2011 = vmatprep.subr.mxu0 0.0
        %2012 = vmatpush1.xpose.msra.mxu0 0.0
        %2013 = vmatprep.subr.mxu0 0.0
        %2014 = vmatpush1.xpose.msra.mxu0 0.0
        %2015 = vmatprep.subr.mxu0 0.0
        %2016 = vmatpush1.xpose.msra.mxu0 0.0
        %2017 = vmatprep.subr.mxu0 0.0
        %2018 = vmatpush1.xpose.msra.mxu0 0.0
        %2019 = vmatprep.subr.mxu0 0.0
        %2020 = vmatpush1.xpose.msra.mxu0 0.0
        %2021 = vmatprep.subr.mxu0 0.0
        %2022 = vmatpush1.xpose.msra.mxu0 0.0
        %2023 = vmatprep.subr.mxu0 0.0
        %2024 = vmatpush1.xpose.msra.mxu0 0.0
        %2025 = vmatprep.subr.mxu0 0.0
        %2026 = vmatpush1.xpose.msra.mxu0 0.0
        %2027 = vmatprep.subr.mxu0 0.0
        %2028 = vmatpush1.xpose.msra.mxu0 0.0
        %2029 = vmatprep.subr.mxu0 0.0
        %2030 = vmatpush1.xpose.msra.mxu0 0.0
        %2031 = vmatprep.subr.mxu0 0.0
        %2032 = vmatpush1.xpose.msra.mxu0 0.0
        %2033 = vmatprep.subr.mxu0 0.0
        %2034 = vmatpush1.xpose.msra.mxu0 0.0
        %2035 = vmatprep.subr.mxu0 0.0
        %2036 = vmatpush1.xpose.msra.mxu0 0.0
        %2037 = vmatprep.subr.mxu0 0.0
        %2038 = vmatpush1.xpose.msra.mxu0 0.0
        %2039 = vmatprep.subr.mxu0 0.0
        %2040 = vmatpush1.xpose.msra.mxu0 0.0
        %2041 = vmatprep.subr.mxu0 0.0
        %2042 = vmatpush1.xpose.msra.mxu0 0.0
        %2043 = vmatprep.subr.mxu0 0.0
        %2044 = vmatpush1.xpose.msra.mxu0 0.0
        %2045 = vmatprep.subr.mxu0 0.0
        %2046 = vmatpush1.xpose.msra.mxu0 0.0
        %2047 = vmatprep.subr.mxu0 0.0
        %2048 = vmatpush1.xpose.msra.mxu0 0.0
        %2049 = vmatprep.subr.mxu0 0.0
        %2050 = vmatpush1.xpose.msra.mxu0 0.0
        %2051 = vmatprep.subr.mxu0 0.0
        %2052 = vmatpush1.xpose.msra.mxu0 0.0
        %2053 = vmatprep.subr.mxu0 0.0
        %2054 = vmatpush1.xpose.msra.mxu0 0.0
        %2055 = vmatprep.subr.mxu0 0.0
        %2056 = vmatpush1.xpose.msra.mxu0 0.0
        %2057 = vmatprep.subr.mxu0 0.0
        %2058 = vmatpush1.xpose.msra.mxu0 0.0
        %2059 = vmatprep.subr.mxu0 0.0
        %2060 = vmatpush1.xpose.msra.mxu0 0.0
        %2061 = vmatprep.subr.mxu0 0.0
        %2062 = vmatpush1.xpose.msra.mxu0 0.0
        %2063 = vmatprep.subr.mxu0 0.0
        %2064 = vmatpush1.xpose.msra.mxu0 0.0
        %2065 = vmatprep.subr.mxu0 0.0
        %2066 = vmatpush1.xpose.msra.mxu0 0.0
        %2067 = vmatprep.subr.mxu0 0.0
        %2068 = vmatpush1.xpose.msra.mxu0 0.0
        %2069 = vmatprep.mubr.f32.mxu0 0.0
        %2070 = vmatmul.mubr.f32.gmra.mrb[0].mxu0 %v2001
        %v2071 = vpop.f32.mrb[0].mxu0
        %v2072 = vadd.f32 0.0, %v2071
        %v2073 = vpop.f32.mrb[0].mxu0
        %2074 = vdwg.mxu0
        %v2075 = vsel %vm1175, %v2072, -inf
        %2076 = vmax.xlane.f32.xlu0 %v2075
        %v2077 = vpop.xlane.xlu0 %2076
        %v2078 = vsub.f32 %v2072, %v2077
        %v2079 = vmul.f32 %v2078, 1.442695
        %v2080 = vpow.pop %v2079
        %v2081 = vsel %vm1175, %v2080, 0.0
        %2082 = vadd.xlane.f32.xlu0 %v2081
        %v2083 = vpop.xlane.xlu0 %2082
        %v2084 = vrcp.pop %v2083
        %v2085 = vmul.f32 %v2080, %v2084
        %2086 = vrot.lane.b32.xlu0 %v1169, 88
        %v2087 = vpop.permute.xlu0 %2086
        %v2090 = vsel %vm1175, %v2085, 0
        %2092 = vmatprep.subr.mxu0 0.0
        %2093 = vmatpush1.msra.mxu0 %v2087
        %2094 = vmatprep.subr.mxu0 0.0
        %2095 = vmatpush1.msra.mxu0 0.0
        %2096 = vmatprep.subr.mxu0 0.0
        %2097 = vmatpush1.msra.mxu0 0.0
        %2098 = vmatprep.subr.mxu0 0.0
        %2099 = vmatpush1.msra.mxu0 0.0
        %2100 = vmatprep.subr.mxu0 0.0
        %2101 = vmatpush1.msra.mxu0 0.0
        %2102 = vmatprep.subr.mxu0 0.0
        %2103 = vmatpush1.msra.mxu0 0.0
        %2104 = vmatprep.subr.mxu0 0.0
        %2105 = vmatpush1.msra.mxu0 0.0
        %2106 = vmatprep.subr.mxu0 0.0
        %2107 = vmatpush1.msra.mxu0 0.0
        %2108 = vmatprep.subr.mxu0 0.0
        %2109 = vmatpush1.msra.mxu0 0.0
        %2110 = vmatprep.subr.mxu0 0.0
        %2111 = vmatpush1.msra.mxu0 0.0
        %2112 = vmatprep.subr.mxu0 0.0
        %2113 = vmatpush1.msra.mxu0 0.0
        %2114 = vmatprep.subr.mxu0 0.0
        %2115 = vmatpush1.msra.mxu0 0.0
        %2116 = vmatprep.subr.mxu0 0.0
        %2117 = vmatpush1.msra.mxu0 0.0
        %2118 = vmatprep.subr.mxu0 0.0
        %2119 = vmatpush1.msra.mxu0 0.0
        %2120 = vmatprep.subr.mxu0 0.0
        %2121 = vmatpush1.msra.mxu0 0.0
        %2122 = vmatprep.subr.mxu0 0.0
        %2123 = vmatpush1.msra.mxu0 0.0
        %2124 = vmatprep.subr.mxu0 0.0
        %2125 = vmatpush1.msra.mxu0 0.0
        %2126 = vmatprep.subr.mxu0 0.0
        %2127 = vmatpush1.msra.mxu0 0.0
        %2128 = vmatprep.subr.mxu0 0.0
        %2129 = vmatpush1.msra.mxu0 0.0
        %2130 = vmatprep.subr.mxu0 0.0
        %2131 = vmatpush1.msra.mxu0 0.0
        %2132 = vmatprep.subr.mxu0 0.0
        %2133 = vmatpush1.msra.mxu0 0.0
        %2134 = vmatprep.subr.mxu0 0.0
        %2135 = vmatpush1.msra.mxu0 0.0
        %2136 = vmatprep.subr.mxu0 0.0
        %2137 = vmatpush1.msra.mxu0 0.0
        %2138 = vmatprep.subr.mxu0 0.0
        %2139 = vmatpush1.msra.mxu0 0.0
        %2140 = vmatprep.subr.mxu0 0.0
        %2141 = vmatpush1.msra.mxu0 0.0
        %2142 = vmatprep.subr.mxu0 0.0
        %2143 = vmatpush1.msra.mxu0 0.0
        %2144 = vmatprep.subr.mxu0 0.0
        %2145 = vmatpush1.msra.mxu0 0.0
        %2146 = vmatprep.subr.mxu0 0.0
        %2147 = vmatpush1.msra.mxu0 0.0
        %2148 = vmatprep.subr.mxu0 0.0
        %2149 = vmatpush1.msra.mxu0 0.0
        %2150 = vmatprep.subr.mxu0 0.0
        %2151 = vmatpush1.msra.mxu0 0.0
        %2152 = vmatprep.subr.mxu0 0.0
        %2153 = vmatpush1.msra.mxu0 0.0
        %2154 = vmatprep.subr.mxu0 0.0
        %2155 = vmatpush1.msra.mxu0 0.0
        %2156 = vmatprep.mubr.f32.mxu0 0.0
        %2157 = vmatmul.mubr.f32.gmra.mrb[0].mxu0 %v2090
        %v2158 = vpop.f32.mrb[0].mxu0
        %v2159 = vadd.f32 0.0, %v2158
        %v2160 = vpop.f32.mrb[0].mxu0
        %2161 = vdwg.mxu0
        %2162 = vrot.lane.b32.xlu0 %v1174, 80
        %v2163 = vpop.permute.xlu0 %2162
        %2164 = vrot.lane.b32.xlu0 %v1090, 80
        %v2165 = vpop.permute.xlu0 %2164
        %v2166 = vsel %vm1175, %v2163, 0
        %v2168 = vsel %vm1175, %v2165, 0
        %2170 = vmatprep.subr.mxu0 0.0
        %2171 = vmatpush1.xpose.msra.mxu0 %v2168
        %2172 = vmatprep.subr.mxu0 0.0
        %2173 = vmatpush1.xpose.msra.mxu0 0.0
        %2174 = vmatprep.subr.mxu0 0.0
        %2175 = vmatpush1.xpose.msra.mxu0 0.0
        %2176 = vmatprep.subr.mxu0 0.0
        %2177 = vmatpush1.xpose.msra.mxu0 0.0
        %2178 = vmatprep.subr.mxu0 0.0
        %2179 = vmatpush1.xpose.msra.mxu0 0.0
        %2180 = vmatprep.subr.mxu0 0.0
        %2181 = vmatpush1.xpose.msra.mxu0 0.0
        %2182 = vmatprep.subr.mxu0 0.0
        %2183 = vmatpush1.xpose.msra.mxu0 0.0
        %2184 = vmatprep.subr.mxu0 0.0
        %2185 = vmatpush1.xpose.msra.mxu0 0.0
        %2186 = vmatprep.subr.mxu0 0.0
        %2187 = vmatpush1.xpose.msra.mxu0 0.0
        %2188 = vmatprep.subr.mxu0 0.0
        %2189 = vmatpush1.xpose.msra.mxu0 0.0
        %2190 = vmatprep.subr.mxu0 0.0
        %2191 = vmatpush1.xpose.msra.mxu0 0.0
        %2192 = vmatprep.subr.mxu0 0.0
        %2193 = vmatpush1.xpose.msra.mxu0 0.0
        %2194 = vmatprep.subr.mxu0 0.0
        %2195 = vmatpush1.xpose.msra.mxu0 0.0
        %2196 = vmatprep.subr.mxu0 0.0
        %2197 = vmatpush1.xpose.msra.mxu0 0.0
        %2198 = vmatprep.subr.mxu0 0.0
        %2199 = vmatpush1.xpose.msra.mxu0 0.0
        %2200 = vmatprep.subr.mxu0 0.0
        %2201 = vmatpush1.xpose.msra.mxu0 0.0
        %2202 = vmatprep.subr.mxu0 0.0
        %2203 = vmatpush1.xpose.msra.mxu0 0.0
        %2204 = vmatprep.subr.mxu0 0.0
        %2205 = vmatpush1.xpose.msra.mxu0 0.0
        %2206 = vmatprep.subr.mxu0 0.0
        %2207 = vmatpush1.xpose.msra.mxu0 0.0
        %2208 = vmatprep.subr.mxu0 0.0
        %2209 = vmatpush1.xpose.msra.mxu0 0.0
        %2210 = vmatprep.subr.mxu0 0.0
        %2211 = vmatpush1.xpose.msra.mxu0 0.0
        %2212 = vmatprep.subr.mxu0 0.0
        %2213 = vmatpush1.xpose.msra.mxu0 0.0
        %2214 = vmatprep.subr.mxu0 0.0
        %2215 = vmatpush1.xpose.msra.mxu0 0.0
        %2216 = vmatprep.subr.mxu0 0.0
        %2217 = vmatpush1.xpose.msra.mxu0 0.0
        %2218 = vmatprep.subr.mxu0 0.0
        %2219 = vmatpush1.xpose.msra.mxu0 0.0
        %2220 = vmatprep.subr.mxu0 0.0
        %2221 = vmatpush1.xpose.msra.mxu0 0.0
        %2222 = vmatprep.subr.mxu0 0.0
        %2223 = vmatpush1.xpose.msra.mxu0 0.0
        %2224 = vmatprep.subr.mxu0 0.0
        %2225 = vmatpush1.xpose.msra.mxu0 0.0
        %2226 = vmatprep.subr.mxu0 0.0
        %2227 = vmatpush1.xpose.msra.mxu0 0.0
        %2228 = vmatprep.subr.mxu0 0.0
        %2229 = vmatpush1.xpose.msra.mxu0 0.0
        %2230 = vmatprep.subr.mxu0 0.0
        %2231 = vmatpush1.xpose.msra.mxu0 0.0
        %2232 = vmatprep.subr.mxu0 0.0
        %2233 = vmatpush1.xpose.msra.mxu0 0.0
        %2234 = vmatprep.mubr.f32.mxu0 0.0
        %2235 = vmatmul.mubr.f32.gmra.mrb[0].mxu0 %v2166
        %v2236 = vpop.f32.mrb[0].mxu0
        %v2237 = vadd.f32 0.0, %v2236
        %v2238 = vpop.f32.mrb[0].mxu0
        %2239 = vdwg.mxu0
        %v2240 = vsel %vm1175, %v2237, -inf
        %2241 = vmax.xlane.f32.xlu0 %v2240
        %v2242 = vpop.xlane.xlu0 %2241
        %v2243 = vsub.f32 %v2237, %v2242
        %v2244 = vmul.f32 %v2243, 1.442695
        %v2245 = vpow.pop %v2244
        %v2246 = vsel %vm1175, %v2245, 0.0
        %2247 = vadd.xlane.f32.xlu0 %v2246
        %v2248 = vpop.xlane.xlu0 %2247
        %v2249 = vrcp.pop %v2248
        %v2250 = vmul.f32 %v2245, %v2249
        %2251 = vrot.lane.b32.xlu0 %v1169, 80
        %v2252 = vpop.permute.xlu0 %2251
        %v2255 = vsel %vm1175, %v2250, 0
        %2257 = vmatprep.subr.mxu0 0.0
        %2258 = vmatpush1.msra.mxu0 %v2252
        %2259 = vmatprep.subr.mxu0 0.0
        %2260 = vmatpush1.msra.mxu0 0.0
        %2261 = vmatprep.subr.mxu0 0.0
        %2262 = vmatpush1.msra.mxu0 0.0
        %2263 = vmatprep.subr.mxu0 0.0
        %2264 = vmatpush1.msra.mxu0 0.0
        %2265 = vmatprep.subr.mxu0 0.0
        %2266 = vmatpush1.msra.mxu0 0.0
        %2267 = vmatprep.subr.mxu0 0.0
        %2268 = vmatpush1.msra.mxu0 0.0
        %2269 = vmatprep.subr.mxu0 0.0
        %2270 = vmatpush1.msra.mxu0 0.0
        %2271 = vmatprep.subr.mxu0 0.0
        %2272 = vmatpush1.msra.mxu0 0.0
        %2273 = vmatprep.subr.mxu0 0.0
        %2274 = vmatpush1.msra.mxu0 0.0
        %2275 = vmatprep.subr.mxu0 0.0
        %2276 = vmatpush1.msra.mxu0 0.0
        %2277 = vmatprep.subr.mxu0 0.0
        %2278 = vmatpush1.msra.mxu0 0.0
        %2279 = vmatprep.subr.mxu0 0.0
        %2280 = vmatpush1.msra.mxu0 0.0
        %2281 = vmatprep.subr.mxu0 0.0
        %2282 = vmatpush1.msra.mxu0 0.0
        %2283 = vmatprep.subr.mxu0 0.0
        %2284 = vmatpush1.msra.mxu0 0.0
        %2285 = vmatprep.subr.mxu0 0.0
        %2286 = vmatpush1.msra.mxu0 0.0
        %2287 = vmatprep.subr.mxu0 0.0
        %2288 = vmatpush1.msra.mxu0 0.0
        %2289 = vmatprep.subr.mxu0 0.0
        %2290 = vmatpush1.msra.mxu0 0.0
        %2291 = vmatprep.subr.mxu0 0.0
        %2292 = vmatpush1.msra.mxu0 0.0
        %2293 = vmatprep.subr.mxu0 0.0
        %2294 = vmatpush1.msra.mxu0 0.0
        %2295 = vmatprep.subr.mxu0 0.0
        %2296 = vmatpush1.msra.mxu0 0.0
        %2297 = vmatprep.subr.mxu0 0.0
        %2298 = vmatpush1.msra.mxu0 0.0
        %2299 = vmatprep.subr.mxu0 0.0
        %2300 = vmatpush1.msra.mxu0 0.0
        %2301 = vmatprep.subr.mxu0 0.0
        %2302 = vmatpush1.msra.mxu0 0.0
        %2303 = vmatprep.subr.mxu0 0.0
        %2304 = vmatpush1.msra.mxu0 0.0
        %2305 = vmatprep.subr.mxu0 0.0
        %2306 = vmatpush1.msra.mxu0 0.0
        %2307 = vmatprep.subr.mxu0 0.0
        %2308 = vmatpush1.msra.mxu0 0.0
        %2309 = vmatprep.subr.mxu0 0.0
        %2310 = vmatpush1.msra.mxu0 0.0
        %2311 = vmatprep.subr.mxu0 0.0
        %2312 = vmatpush1.msra.mxu0 0.0
        %2313 = vmatprep.subr.mxu0 0.0
        %2314 = vmatpush1.msra.mxu0 0.0
        %2315 = vmatprep.subr.mxu0 0.0
        %2316 = vmatpush1.msra.mxu0 0.0
        %2317 = vmatprep.subr.mxu0 0.0
        %2318 = vmatpush1.msra.mxu0 0.0
        %2319 = vmatprep.subr.mxu0 0.0
        %2320 = vmatpush1.msra.mxu0 0.0
        %2321 = vmatprep.mubr.f32.mxu0 0.0
        %2322 = vmatmul.mubr.f32.gmra.mrb[0].mxu0 %v2255
        %v2323 = vpop.f32.mrb[0].mxu0
        %v2324 = vadd.f32 0.0, %v2323
        %v2325 = vpop.f32.mrb[0].mxu0
        %2326 = vdwg.mxu0
        %2327 = vrot.lane.b32.xlu0 %v1174, 72
        %v2328 = vpop.permute.xlu0 %2327
        %2329 = vrot.lane.b32.xlu0 %v1090, 72
        %v2330 = vpop.permute.xlu0 %2329
        %v2331 = vsel %vm1175, %v2328, 0
        %v2333 = vsel %vm1175, %v2330, 0
        %2335 = vmatprep.subr.mxu0 0.0
        %2336 = vmatpush1.xpose.msra.mxu0 %v2333
        %2337 = vmatprep.subr.mxu0 0.0
        %2338 = vmatpush1.xpose.msra.mxu0 0.0
        %2339 = vmatprep.subr.mxu0 0.0
        %2340 = vmatpush1.xpose.msra.mxu0 0.0
        %2341 = vmatprep.subr.mxu0 0.0
        %2342 = vmatpush1.xpose.msra.mxu0 0.0
        %2343 = vmatprep.subr.mxu0 0.0
        %2344 = vmatpush1.xpose.msra.mxu0 0.0
        %2345 = vmatprep.subr.mxu0 0.0
        %2346 = vmatpush1.xpose.msra.mxu0 0.0
        %2347 = vmatprep.subr.mxu0 0.0
        %2348 = vmatpush1.xpose.msra.mxu0 0.0
        %2349 = vmatprep.subr.mxu0 0.0
        %2350 = vmatpush1.xpose.msra.mxu0 0.0
        %2351 = vmatprep.subr.mxu0 0.0
        %2352 = vmatpush1.xpose.msra.mxu0 0.0
        %2353 = vmatprep.subr.mxu0 0.0
        %2354 = vmatpush1.xpose.msra.mxu0 0.0
        %2355 = vmatprep.subr.mxu0 0.0
        %2356 = vmatpush1.xpose.msra.mxu0 0.0
        %2357 = vmatprep.subr.mxu0 0.0
        %2358 = vmatpush1.xpose.msra.mxu0 0.0
        %2359 = vmatprep.subr.mxu0 0.0
        %2360 = vmatpush1.xpose.msra.mxu0 0.0
        %2361 = vmatprep.subr.mxu0 0.0
        %2362 = vmatpush1.xpose.msra.mxu0 0.0
        %2363 = vmatprep.subr.mxu0 0.0
        %2364 = vmatpush1.xpose.msra.mxu0 0.0
        %2365 = vmatprep.subr.mxu0 0.0
        %2366 = vmatpush1.xpose.msra.mxu0 0.0
        %2367 = vmatprep.subr.mxu0 0.0
        %2368 = vmatpush1.xpose.msra.mxu0 0.0
        %2369 = vmatprep.subr.mxu0 0.0
        %2370 = vmatpush1.xpose.msra.mxu0 0.0
        %2371 = vmatprep.subr.mxu0 0.0
        %2372 = vmatpush1.xpose.msra.mxu0 0.0
        %2373 = vmatprep.subr.mxu0 0.0
        %2374 = vmatpush1.xpose.msra.mxu0 0.0
        %2375 = vmatprep.subr.mxu0 0.0
        %2376 = vmatpush1.xpose.msra.mxu0 0.0
        %2377 = vmatprep.subr.mxu0 0.0
        %2378 = vmatpush1.xpose.msra.mxu0 0.0
        %2379 = vmatprep.subr.mxu0 0.0
        %2380 = vmatpush1.xpose.msra.mxu0 0.0
        %2381 = vmatprep.subr.mxu0 0.0
        %2382 = vmatpush1.xpose.msra.mxu0 0.0
        %2383 = vmatprep.subr.mxu0 0.0
        %2384 = vmatpush1.xpose.msra.mxu0 0.0
        %2385 = vmatprep.subr.mxu0 0.0
        %2386 = vmatpush1.xpose.msra.mxu0 0.0
        %2387 = vmatprep.subr.mxu0 0.0
        %2388 = vmatpush1.xpose.msra.mxu0 0.0
        %2389 = vmatprep.subr.mxu0 0.0
        %2390 = vmatpush1.xpose.msra.mxu0 0.0
        %2391 = vmatprep.subr.mxu0 0.0
        %2392 = vmatpush1.xpose.msra.mxu0 0.0
        %2393 = vmatprep.subr.mxu0 0.0
        %2394 = vmatpush1.xpose.msra.mxu0 0.0
        %2395 = vmatprep.subr.mxu0 0.0
        %2396 = vmatpush1.xpose.msra.mxu0 0.0
        %2397 = vmatprep.subr.mxu0 0.0
        %2398 = vmatpush1.xpose.msra.mxu0 0.0
        %2399 = vmatprep.mubr.f32.mxu0 0.0
        %2400 = vmatmul.mubr.f32.gmra.mrb[0].mxu0 %v2331
        %v2401 = vpop.f32.mrb[0].mxu0
        %v2402 = vadd.f32 0.0, %v2401
        %v2403 = vpop.f32.mrb[0].mxu0
        %2404 = vdwg.mxu0
        %v2405 = vsel %vm1175, %v2402, -inf
        %2406 = vmax.xlane.f32.xlu0 %v2405
        %v2407 = vpop.xlane.xlu0 %2406
        %v2408 = vsub.f32 %v2402, %v2407
        %v2409 = vmul.f32 %v2408, 1.442695
        %v2410 = vpow.pop %v2409
        %v2411 = vsel %vm1175, %v2410, 0.0
        %2412 = vadd.xlane.f32.xlu0 %v2411
        %v2413 = vpop.xlane.xlu0 %2412
        %v2414 = vrcp.pop %v2413
        %v2415 = vmul.f32 %v2410, %v2414
        %2416 = vrot.lane.b32.xlu0 %v1169, 72
        %v2417 = vpop.permute.xlu0 %2416
        %v2420 = vsel %vm1175, %v2415, 0
        %2422 = vmatprep.subr.mxu0 0.0
        %2423 = vmatpush1.msra.mxu0 %v2417
        %2424 = vmatprep.subr.mxu0 0.0
        %2425 = vmatpush1.msra.mxu0 0.0
        %2426 = vmatprep.subr.mxu0 0.0
        %2427 = vmatpush1.msra.mxu0 0.0
        %2428 = vmatprep.subr.mxu0 0.0
        %2429 = vmatpush1.msra.mxu0 0.0
        %2430 = vmatprep.subr.mxu0 0.0
        %2431 = vmatpush1.msra.mxu0 0.0
        %2432 = vmatprep.subr.mxu0 0.0
        %2433 = vmatpush1.msra.mxu0 0.0
        %2434 = vmatprep.subr.mxu0 0.0
        %2435 = vmatpush1.msra.mxu0 0.0
        %2436 = vmatprep.subr.mxu0 0.0
        %2437 = vmatpush1.msra.mxu0 0.0
        %2438 = vmatprep.subr.mxu0 0.0
        %2439 = vmatpush1.msra.mxu0 0.0
        %2440 = vmatprep.subr.mxu0 0.0
        %2441 = vmatpush1.msra.mxu0 0.0
        %2442 = vmatprep.subr.mxu0 0.0
        %2443 = vmatpush1.msra.mxu0 0.0
        %2444 = vmatprep.subr.mxu0 0.0
        %2445 = vmatpush1.msra.mxu0 0.0
        %2446 = vmatprep.subr.mxu0 0.0
        %2447 = vmatpush1.msra.mxu0 0.0
        %2448 = vmatprep.subr.mxu0 0.0
        %2449 = vmatpush1.msra.mxu0 0.0
        %2450 = vmatprep.subr.mxu0 0.0
        %2451 = vmatpush1.msra.mxu0 0.0
        %2452 = vmatprep.subr.mxu0 0.0
        %2453 = vmatpush1.msra.mxu0 0.0
        %2454 = vmatprep.subr.mxu0 0.0
        %2455 = vmatpush1.msra.mxu0 0.0
        %2456 = vmatprep.subr.mxu0 0.0
        %2457 = vmatpush1.msra.mxu0 0.0
        %2458 = vmatprep.subr.mxu0 0.0
        %2459 = vmatpush1.msra.mxu0 0.0
        %2460 = vmatprep.subr.mxu0 0.0
        %2461 = vmatpush1.msra.mxu0 0.0
        %2462 = vmatprep.subr.mxu0 0.0
        %2463 = vmatpush1.msra.mxu0 0.0
        %2464 = vmatprep.subr.mxu0 0.0
        %2465 = vmatpush1.msra.mxu0 0.0
        %2466 = vmatprep.subr.mxu0 0.0
        %2467 = vmatpush1.msra.mxu0 0.0
        %2468 = vmatprep.subr.mxu0 0.0
        %2469 = vmatpush1.msra.mxu0 0.0
        %2470 = vmatprep.subr.mxu0 0.0
        %2471 = vmatpush1.msra.mxu0 0.0
        %2472 = vmatprep.subr.mxu0 0.0
        %2473 = vmatpush1.msra.mxu0 0.0
        %2474 = vmatprep.subr.mxu0 0.0
        %2475 = vmatpush1.msra.mxu0 0.0
        %2476 = vmatprep.subr.mxu0 0.0
        %2477 = vmatpush1.msra.mxu0 0.0
        %2478 = vmatprep.subr.mxu0 0.0
        %2479 = vmatpush1.msra.mxu0 0.0
        %2480 = vmatprep.subr.mxu0 0.0
        %2481 = vmatpush1.msra.mxu0 0.0
        %2482 = vmatprep.subr.mxu0 0.0
        %2483 = vmatpush1.msra.mxu0 0.0
        %2484 = vmatprep.subr.mxu0 0.0
        %2485 = vmatpush1.msra.mxu0 0.0
        %2486 = vmatprep.mubr.f32.mxu0 0.0
        %2487 = vmatmul.mubr.f32.gmra.mrb[0].mxu0 %v2420
        %v2488 = vpop.f32.mrb[0].mxu0
        %v2489 = vadd.f32 0.0, %v2488
        %v2490 = vpop.f32.mrb[0].mxu0
        %2491 = vdwg.mxu0
        %2493 = vrot.lane.b32.xlu0 %v1499, 8
        %v2494 = vpop.permute.xlu0 %2493
        %2497 = vrot.lane.b32.xlu0 %v1664, 16
        %v2498 = vpop.permute.xlu0 %2497
        %2501 = vrot.lane.b32.xlu0 %v1829, 24
        %v2502 = vpop.permute.xlu0 %2501
        %2505 = vrot.lane.b32.xlu0 %v1994, 32
        %v2506 = vpop.permute.xlu0 %2505
        %2509 = vrot.lane.b32.xlu0 %v2159, 40
        %v2510 = vpop.permute.xlu0 %2509
        %2513 = vrot.lane.b32.xlu0 %v2324, 48
        %v2514 = vpop.permute.xlu0 %2513
        %2517 = vrot.lane.b32.xlu0 %v2489, 56
        %v2518 = vpop.permute.xlu0 %2517
        %v2520 = vsel %vm1175, %v1333, %v2494
        %vm2521 = vcmask 130048
        %v2522 = vsel %vm2521, %v2520, %v2498
        %vm2523 = vcmask 195584
        %v2524 = vsel %vm2523, %v2522, %v2502
        %vm2525 = vcmask 261120
        %v2526 = vsel %vm2525, %v2524, %v2506
        %vm2527 = vcmask 326656
        %v2528 = vsel %vm2527, %v2526, %v2510
        %vm2529 = vcmask 392192
        %v2530 = vsel %vm2529, %v2528, %v2514
        %vm2531 = vcmask 457728
        %v2532 = vsel %vm2531, %v2530, %v2518
        %v2533 = vmul.f32 %v1008, %v1008
        %v2534 = vsel %vm969, %v2533, 0.0
        %2535 = vadd.xlane.f32.xlu0 %v2534
        %v2536 = vpop.xlane.xlu0 %2535
        %v2537 = vrsqrt.pop %v2536
        %v2538 = vmul.f32 %v2536, %v2537
        %vm2539 = vcmp.eq.f32.partialorder %v2536, inf
        %v2540 = vsel %vm2539, %v2536, %v2538
        %vm2541 = vcmp.eq.f32.partialorder %v2536, 0.0
        %v2542 = vand.u32 %v2536, 2147483648
        %v2543 = vsel %vm2541, %v2542, %v2540
        %v2544 = vmul.f32 %v2532, %v2532
        %v2545 = vsel %vm969, %v2544, 0.0
        %2546 = vadd.xlane.f32.xlu0 %v2545
        %v2547 = vpop.xlane.xlu0 %2546
        %v2548 = vrsqrt.pop %v2547
        %v2549 = vmul.f32 %v2547, %v2548
        %vm2550 = vcmp.eq.f32.partialorder %v2547, inf
        %v2551 = vsel %vm2550, %v2547, %v2549
        %vm2552 = vcmp.eq.f32.partialorder %v2547, 0.0
        %v2553 = vand.u32 %v2547, 2147483648
        %v2554 = vsel %vm2552, %v2553, %v2551
        %v2556 = vsel %vm969, %v1008, 0
        %v2559 = vsel %vm969, %v2532, 0
        %2561 = vmatprep.subr.mxu0 0.0
        %2562 = vmatpush1.xpose.msra.mxu0 %v2559
        %2563 = vmatprep.subr.mxu0 0.0
        %2564 = vmatpush1.xpose.msra.mxu0 0.0
        %2565 = vmatprep.subr.mxu0 0.0
        %2566 = vmatpush1.xpose.msra.mxu0 0.0
        %2567 = vmatprep.subr.mxu0 0.0
        %2568 = vmatpush1.xpose.msra.mxu0 0.0
        %2569 = vmatprep.subr.mxu0 0.0
        %2570 = vmatpush1.xpose.msra.mxu0 0.0
        %2571 = vmatprep.subr.mxu0 0.0
        %2572 = vmatpush1.xpose.msra.mxu0 0.0
        %2573 = vmatprep.subr.mxu0 0.0
        %2574 = vmatpush1.xpose.msra.mxu0 0.0
        %2575 = vmatprep.subr.mxu0 0.0
        %2576 = vmatpush1.xpose.msra.mxu0 0.0
        %2577 = vmatprep.subr.mxu0 0.0
        %2578 = vmatpush1.xpose.msra.mxu0 0.0
        %2579 = vmatprep.subr.mxu0 0.0
        %2580 = vmatpush1.xpose.msra.mxu0 0.0
        %2581 = vmatprep.subr.mxu0 0.0
        %2582 = vmatpush1.xpose.msra.mxu0 0.0
        %2583 = vmatprep.subr.mxu0 0.0
        %2584 = vmatpush1.xpose.msra.mxu0 0.0
        %2585 = vmatprep.subr.mxu0 0.0
        %2586 = vmatpush1.xpose.msra.mxu0 0.0
        %2587 = vmatprep.subr.mxu0 0.0
        %2588 = vmatpush1.xpose.msra.mxu0 0.0
        %2589 = vmatprep.subr.mxu0 0.0
        %2590 = vmatpush1.xpose.msra.mxu0 0.0
        %2591 = vmatprep.subr.mxu0 0.0
        %2592 = vmatpush1.xpose.msra.mxu0 0.0
        %2593 = vmatprep.subr.mxu0 0.0
        %2594 = vmatpush1.xpose.msra.mxu0 0.0
        %2595 = vmatprep.subr.mxu0 0.0
        %2596 = vmatpush1.xpose.msra.mxu0 0.0
        %2597 = vmatprep.subr.mxu0 0.0
        %2598 = vmatpush1.xpose.msra.mxu0 0.0
        %2599 = vmatprep.subr.mxu0 0.0
        %2600 = vmatpush1.xpose.msra.mxu0 0.0
        %2601 = vmatprep.subr.mxu0 0.0
        %2602 = vmatpush1.xpose.msra.mxu0 0.0
        %2603 = vmatprep.subr.mxu0 0.0
        %2604 = vmatpush1.xpose.msra.mxu0 0.0
        %2605 = vmatprep.subr.mxu0 0.0
        %2606 = vmatpush1.xpose.msra.mxu0 0.0
        %2607 = vmatprep.subr.mxu0 0.0
        %2608 = vmatpush1.xpose.msra.mxu0 0.0
        %2609 = vmatprep.subr.mxu0 0.0
        %2610 = vmatpush1.xpose.msra.mxu0 0.0
        %2611 = vmatprep.subr.mxu0 0.0
        %2612 = vmatpush1.xpose.msra.mxu0 0.0
        %2613 = vmatprep.subr.mxu0 0.0
        %2614 = vmatpush1.xpose.msra.mxu0 0.0
        %2615 = vmatprep.subr.mxu0 0.0
        %2616 = vmatpush1.xpose.msra.mxu0 0.0
        %2617 = vmatprep.subr.mxu0 0.0
        %2618 = vmatpush1.xpose.msra.mxu0 0.0
        %2619 = vmatprep.subr.mxu0 0.0
        %2620 = vmatpush1.xpose.msra.mxu0 0.0
        %2621 = vmatprep.subr.mxu0 0.0
        %2622 = vmatpush1.xpose.msra.mxu0 0.0
        %2623 = vmatprep.subr.mxu0 0.0
        %2624 = vmatpush1.xpose.msra.mxu0 0.0
        %2625 = vmatprep.mubr.f32.mxu0 0.0
        %2626 = vmatmul.mubr.f32.gmra.mrb[0].mxu0 %v2556
        %v2627 = vpop.f32.mrb[0].mxu0
        %v2628 = vadd.f32 0.0, %v2627
        %v2629 = vpop.f32.mrb[0].mxu0
        %2630 = vdwg.mxu0
        %vm2631 = vcmask 7168
        %v2633 = vsel %vm2631, %v2543, 0
        %v2636 = vsel %vm2631, %v2554, 0
        %2638 = vmatprep.subr.mxu0 0.0
        %2639 = vmatpush1.xpose.msra.mxu0 %v2636
        %2640 = vmatprep.subr.mxu0 0.0
        %2641 = vmatpush1.xpose.msra.mxu0 0.0
        %2642 = vmatprep.subr.mxu0 0.0
        %2643 = vmatpush1.xpose.msra.mxu0 0.0
        %2644 = vmatprep.subr.mxu0 0.0
        %2645 = vmatpush1.xpose.msra.mxu0 0.0
        %2646 = vmatprep.subr.mxu0 0.0
        %2647 = vmatpush1.xpose.msra.mxu0 0.0
        %2648 = vmatprep.subr.mxu0 0.0
        %2649 = vmatpush1.xpose.msra.mxu0 0.0
        %2650 = vmatprep.subr.mxu0 0.0
        %2651 = vmatpush1.xpose.msra.mxu0 0.0
        %2652 = vmatprep.subr.mxu0 0.0
        %2653 = vmatpush1.xpose.msra.mxu0 0.0
        %2654 = vmatprep.subr.mxu0 0.0
        %2655 = vmatpush1.xpose.msra.mxu0 0.0
        %2656 = vmatprep.subr.mxu0 0.0
        %2657 = vmatpush1.xpose.msra.mxu0 0.0
        %2658 = vmatprep.subr.mxu0 0.0
        %2659 = vmatpush1.xpose.msra.mxu0 0.0
        %2660 = vmatprep.subr.mxu0 0.0
        %2661 = vmatpush1.xpose.msra.mxu0 0.0
        %2662 = vmatprep.subr.mxu0 0.0
        %2663 = vmatpush1.xpose.msra.mxu0 0.0
        %2664 = vmatprep.subr.mxu0 0.0
        %2665 = vmatpush1.xpose.msra.mxu0 0.0
        %2666 = vmatprep.subr.mxu0 0.0
        %2667 = vmatpush1.xpose.msra.mxu0 0.0
        %2668 = vmatprep.subr.mxu0 0.0
        %2669 = vmatpush1.xpose.msra.mxu0 0.0
        %2670 = vmatprep.subr.mxu0 0.0
        %2671 = vmatpush1.xpose.msra.mxu0 0.0
        %2672 = vmatprep.subr.mxu0 0.0
        %2673 = vmatpush1.xpose.msra.mxu0 0.0
        %2674 = vmatprep.subr.mxu0 0.0
        %2675 = vmatpush1.xpose.msra.mxu0 0.0
        %2676 = vmatprep.subr.mxu0 0.0
        %2677 = vmatpush1.xpose.msra.mxu0 0.0
        %2678 = vmatprep.subr.mxu0 0.0
        %2679 = vmatpush1.xpose.msra.mxu0 0.0
        %2680 = vmatprep.subr.mxu0 0.0
        %2681 = vmatpush1.xpose.msra.mxu0 0.0
        %2682 = vmatprep.subr.mxu0 0.0
        %2683 = vmatpush1.xpose.msra.mxu0 0.0
        %2684 = vmatprep.subr.mxu0 0.0
        %2685 = vmatpush1.xpose.msra.mxu0 0.0
        %2686 = vmatprep.subr.mxu0 0.0
        %2687 = vmatpush1.xpose.msra.mxu0 0.0
        %2688 = vmatprep.subr.mxu0 0.0
        %2689 = vmatpush1.xpose.msra.mxu0 0.0
        %2690 = vmatprep.subr.mxu0 0.0
        %2691 = vmatpush1.xpose.msra.mxu0 0.0
        %2692 = vmatprep.subr.mxu0 0.0
        %2693 = vmatpush1.xpose.msra.mxu0 0.0
        %2694 = vmatprep.subr.mxu0 0.0
        %2695 = vmatpush1.xpose.msra.mxu0 0.0
        %2696 = vmatprep.subr.mxu0 0.0
        %2697 = vmatpush1.xpose.msra.mxu0 0.0
        %2698 = vmatprep.subr.mxu0 0.0
        %2699 = vmatpush1.xpose.msra.mxu0 0.0
        %2700 = vmatprep.subr.mxu0 0.0
        %2701 = vmatpush1.xpose.msra.mxu0 0.0
        %2702 = vmatprep.mubr.f32.mxu0 0.0
        %2703 = vmatmul.mubr.f32.gmra.mrb[0].mxu0 %v2633
        %v2704 = vpop.f32.mrb[0].mxu0
        %v2705 = vadd.f32 0.0, %v2704
        %v2706 = vpop.f32.mrb[0].mxu0
        %2707 = vdwg.mxu0
        %v2708 = vmax.f32 %v2705, 1e-08
        %v2709 = vrcp.pop %v2708
        %v2710 = vmul.f32 %v2628, %v2709
        %v2711 = vsel %vm1175, %v2710, 0.0
        %2712 = vadd.xlane.f32.xlu0 %v2711
        %v2713 = vpop.xlane.xlu0 %2712
        %v2714 = vrcp.pop %v2713
        %v2715 = vmul.f32 %v2710, %v2714
        %v2716 = vsel %vm1175, %v2715, -inf
        %2717 = vmax.xlane.f32.xlu0 %v2716
        %v2718 = vpop.xlane.xlu0 %2717
        %v2719 = vsub.f32 %v2715, %v2718
        %v2720 = vmul.f32 %v2719, 1.442695
        %v2721 = vpow.pop %v2720
        %v2722 = vsel %vm1175, %v2721, 0.0
        %2723 = vadd.xlane.f32.xlu0 %v2722
        %v2724 = vpop.xlane.xlu0 %2723
        %v2725 = vrcp.pop %v2724
        %v2726 = vmul.f32 %v2721, %v2725
        %v2728 = vsel %vm1175, %v2726, 0
        %2730 = vmatprep.subr.mxu0 0.0
        %2731 = vmatpush1.msra.mxu0 %v2532
        %2732 = vmatprep.subr.mxu0 0.0
        %2733 = vmatpush1.msra.mxu0 0.0
        %2734 = vmatprep.subr.mxu0 0.0
        %2735 = vmatpush1.msra.mxu0 0.0
        %2736 = vmatprep.subr.mxu0 0.0
        %2737 = vmatpush1.msra.mxu0 0.0
        %2738 = vmatprep.subr.mxu0 0.0
        %2739 = vmatpush1.msra.mxu0 0.0
        %2740 = vmatprep.subr.mxu0 0.0
        %2741 = vmatpush1.msra.mxu0 0.0
        %2742 = vmatprep.subr.mxu0 0.0
        %2743 = vmatpush1.msra.mxu0 0.0
        %2744 = vmatprep.subr.mxu0 0.0
        %2745 = vmatpush1.msra.mxu0 0.0
        %2746 = vmatprep.subr.mxu0 0.0
        %2747 = vmatpush1.msra.mxu0 0.0
        %2748 = vmatprep.subr.mxu0 0.0
        %2749 = vmatpush1.msra.mxu0 0.0
        %2750 = vmatprep.subr.mxu0 0.0
        %2751 = vmatpush1.msra.mxu0 0.0
        %2752 = vmatprep.subr.mxu0 0.0
        %2753 = vmatpush1.msra.mxu0 0.0
        %2754 = vmatprep.subr.mxu0 0.0
        %2755 = vmatpush1.msra.mxu0 0.0
        %2756 = vmatprep.subr.mxu0 0.0
        %2757 = vmatpush1.msra.mxu0 0.0
        %2758 = vmatprep.subr.mxu0 0.0
        %2759 = vmatpush1.msra.mxu0 0.0
        %2760 = vmatprep.subr.mxu0 0.0
        %2761 = vmatpush1.msra.mxu0 0.0
        %2762 = vmatprep.subr.mxu0 0.0
        %2763 = vmatpush1.msra.mxu0 0.0
        %2764 = vmatprep.subr.mxu0 0.0
        %2765 = vmatpush1.msra.mxu0 0.0
        %2766 = vmatprep.subr.mxu0 0.0
        %2767 = vmatpush1.msra.mxu0 0.0
        %2768 = vmatprep.subr.mxu0 0.0
        %2769 = vmatpush1.msra.mxu0 0.0
        %2770 = vmatprep.subr.mxu0 0.0
        %2771 = vmatpush1.msra.mxu0 0.0
        %2772 = vmatprep.subr.mxu0 0.0
        %2773 = vmatpush1.msra.mxu0 0.0
        %2774 = vmatprep.subr.mxu0 0.0
        %2775 = vmatpush1.msra.mxu0 0.0
        %2776 = vmatprep.subr.mxu0 0.0
        %2777 = vmatpush1.msra.mxu0 0.0
        %2778 = vmatprep.subr.mxu0 0.0
        %2779 = vmatpush1.msra.mxu0 0.0
        %2780 = vmatprep.subr.mxu0 0.0
        %2781 = vmatpush1.msra.mxu0 0.0
        %2782 = vmatprep.subr.mxu0 0.0
        %2783 = vmatpush1.msra.mxu0 0.0
        %2784 = vmatprep.subr.mxu0 0.0
        %2785 = vmatpush1.msra.mxu0 0.0
        %2786 = vmatprep.subr.mxu0 0.0
        %2787 = vmatpush1.msra.mxu0 0.0
        %2788 = vmatprep.subr.mxu0 0.0
        %2789 = vmatpush1.msra.mxu0 0.0
        %2790 = vmatprep.subr.mxu0 0.0
        %2791 = vmatpush1.msra.mxu0 0.0
        %2792 = vmatprep.subr.mxu0 0.0
        %2793 = vmatpush1.msra.mxu0 0.0
        %2794 = vmatprep.mubr.f32.mxu0 0.0
        %2795 = vmatmul.mubr.f32.gmra.mrb[0].mxu0 %v2728
        %v2796 = vpop.f32.mrb[0].mxu0
        %v2797 = vadd.f32 0.0, %v2796
        %v2798 = vpop.f32.mrb[0].mxu0
        %2799 = vdwg.mxu0
        %v2800 = vpack.c.bf16 %v2797, %v2797
        %v2801 = vld [vmem:[#allocation16] sm:$0xf]
        %v2802 = vld [vmem:[#allocation16 + $0x4] sm:$0xf]
        %v2803 = vld [vmem:[#allocation16 + $0x8] sm:$0xf]
        %v2804 = vld [vmem:[#allocation16 + $0xc] sm:$0xf]
        %v2805 = vld [vmem:[#allocation16 + $0x10] sm:$0xf]
        %v2806 = vld [vmem:[#allocation16 + $0x14] sm:$0xf]
        %v2807 = vld [vmem:[#allocation16 + $0x18] sm:$0xf]
        %v2808 = vld [vmem:[#allocation16 + $0x1c] sm:$0xf]
        %v2809 = vpack.c.bf16 %v1008, %v1008
        %v2810 = vld [vmem:[#allocation17] sm:$0xf]
        %v2811 = vld [vmem:[#allocation17 + $0x4] sm:$0xf]
        %v2812 = vld [vmem:[#allocation17 + $0x8] sm:$0xf]
        %v2813 = vld [vmem:[#allocation17 + $0xc] sm:$0xf]
        %v2814 = vld [vmem:[#allocation17 + $0x10] sm:$0xf]
        %v2815 = vld [vmem:[#allocation17 + $0x14] sm:$0xf]
        %v2816 = vld [vmem:[#allocation17 + $0x18] sm:$0xf]
        %v2817 = vld [vmem:[#allocation17 + $0x1c] sm:$0xf]
        %v2826 = vunpack.c.l.b16 %v2810
        %v2827 = vunpack.c.l.b16 %v2811
        %v2828 = vunpack.c.l.b16 %v2812
        %v2829 = vunpack.c.l.b16 %v2813
        %v2830 = vunpack.c.l.b16 %v2814
        %v2831 = vunpack.c.l.b16 %v2815
        %v2832 = vunpack.c.l.b16 %v2816
        %v2833 = vunpack.c.l.b16 %v2817
        %v2834 = vpack.c.b16 %v2827, %v2826
        %v2835 = vpack.c.b16 %v2829, %v2828
        %v2836 = vpack.c.b16 %v2831, %v2830
        %v2837 = vpack.c.b16 %v2833, %v2832
        %v2843 = vsel %vm969, %v2809, 0
        %2845 = vmatprep.subr.bf16.mxu0 0
        %2846 = vmatpush1.bf16.msra.mxu0 %v2834
        %2847 = vmatprep.subr.bf16.mxu0 0
        %2848 = vmatpush1.bf16.msra.mxu0 %v2835
        %2849 = vmatprep.subr.bf16.mxu0 0
        %2850 = vmatpush1.bf16.msra.mxu0 %v2836
        %2851 = vmatprep.subr.bf16.mxu0 0
        %2852 = vmatpush1.bf16.msra.mxu0 %v2837
        %2853 = vmatprep.subr.bf16.mxu0 0
        %2854 = vmatpush1.bf16.msra.mxu0 0
        %2855 = vmatprep.subr.bf16.mxu0 0
        %2856 = vmatpush1.bf16.msra.mxu0 0
        %2857 = vmatprep.subr.bf16.mxu0 0
        %2858 = vmatpush1.bf16.msra.mxu0 0
        %2859 = vmatprep.subr.bf16.mxu0 0
        %2860 = vmatpush1.bf16.msra.mxu0 0
        %2861 = vmatprep.subr.bf16.mxu0 0
        %2862 = vmatpush1.bf16.msra.mxu0 0
        %2863 = vmatprep.subr.bf16.mxu0 0
        %2864 = vmatpush1.bf16.msra.mxu0 0
        %2865 = vmatprep.subr.bf16.mxu0 0
        %2866 = vmatpush1.bf16.msra.mxu0 0
        %2867 = vmatprep.subr.bf16.mxu0 0
        %2868 = vmatpush1.bf16.msra.mxu0 0
        %2869 = vmatprep.subr.bf16.mxu0 0
        %2870 = vmatpush1.bf16.msra.mxu0 0
        %2871 = vmatprep.subr.bf16.mxu0 0
        %2872 = vmatpush1.bf16.msra.mxu0 0
        %2873 = vmatprep.subr.bf16.mxu0 0
        %2874 = vmatpush1.bf16.msra.mxu0 0
        %2875 = vmatprep.subr.bf16.mxu0 0
        %2876 = vmatpush1.bf16.msra.mxu0 0
        %2877 = vmatprep.mubr.bf16.mxu0 0
        %2878 = vmatmul.mubr.bf16.gmra.mrb[0].mxu0 %v2843
        %v2879 = vpop.f32.mrb[0].mxu0
        %v2880 = vadd.f32 0.0, %v2879
        %v2881 = vpop.f32.mrb[0].mxu0
        %v2882 = vpop.f32.mrb[0].mxu0
        %v2883 = vpop.f32.mrb[0].mxu0
        %2884 = vdwg.mxu0
        %v2893 = vunpack.c.l.b16 %v2801
        %v2894 = vunpack.c.l.b16 %v2802
        %v2895 = vunpack.c.l.b16 %v2803
        %v2896 = vunpack.c.l.b16 %v2804
        %v2897 = vunpack.c.l.b16 %v2805
        %v2898 = vunpack.c.l.b16 %v2806
        %v2899 = vunpack.c.l.b16 %v2807
        %v2900 = vunpack.c.l.b16 %v2808
        %v2901 = vpack.c.b16 %v2894, %v2893
        %v2902 = vpack.c.b16 %v2896, %v2895
        %v2903 = vpack.c.b16 %v2898, %v2897
        %v2904 = vpack.c.b16 %v2900, %v2899
        %v2910 = vsel %vm969, %v2800, 0
        %2912 = vmatprep.subr.bf16.mxu0 0
        %2913 = vmatpush1.bf16.msra.mxu0 %v2901
        %2914 = vmatprep.subr.bf16.mxu0 0
        %2915 = vmatpush1.bf16.msra.mxu0 %v2902
        %2916 = vmatprep.subr.bf16.mxu0 0
        %2917 = vmatpush1.bf16.msra.mxu0 %v2903
        %2918 = vmatprep.subr.bf16.mxu0 0
        %2919 = vmatpush1.bf16.msra.mxu0 %v2904
        %2920 = vmatprep.subr.bf16.mxu0 0
        %2921 = vmatpush1.bf16.msra.mxu0 0
        %2922 = vmatprep.subr.bf16.mxu0 0
        %2923 = vmatpush1.bf16.msra.mxu0 0
        %2924 = vmatprep.subr.bf16.mxu0 0
        %2925 = vmatpush1.bf16.msra.mxu0 0
        %2926 = vmatprep.subr.bf16.mxu0 0
        %2927 = vmatpush1.bf16.msra.mxu0 0
        %2928 = vmatprep.subr.bf16.mxu0 0
        %2929 = vmatpush1.bf16.msra.mxu0 0
        %2930 = vmatprep.subr.bf16.mxu0 0
        %2931 = vmatpush1.bf16.msra.mxu0 0
        %2932 = vmatprep.subr.bf16.mxu0 0
        %2933 = vmatpush1.bf16.msra.mxu0 0
        %2934 = vmatprep.subr.bf16.mxu0 0
        %2935 = vmatpush1.bf16.msra.mxu0 0
        %2936 = vmatprep.subr.bf16.mxu0 0
        %2937 = vmatpush1.bf16.msra.mxu0 0
        %2938 = vmatprep.subr.bf16.mxu0 0
        %2939 = vmatpush1.bf16.msra.mxu0 0
        %2940 = vmatprep.subr.bf16.mxu0 0
        %2941 = vmatpush1.bf16.msra.mxu0 0
        %2942 = vmatprep.subr.bf16.mxu0 0
        %2943 = vmatpush1.bf16.msra.mxu0 0
        %2944 = vmatprep.mubr.bf16.mxu0 0
        %2945 = vmatmul.mubr.bf16.gmra.mrb[0].mxu0 %v2910
        %v2946 = vpop.f32.mrb[0].mxu0
        %v2947 = vadd.f32 %v2880, %v2946
        %v2948 = vpop.f32.mrb[0].mxu0
        %v2949 = vpop.f32.mrb[0].mxu0
        %v2950 = vpop.f32.mrb[0].mxu0
        %2951 = vdwg.mxu0
        %v2952 = vld [vmem:[#allocation19] sm:$0x1]
        %v2954 = vlaneseq
        %v2955 = vshrl.u32 %v2954, 7
        %v2956 = vsub.s32 0, %v2955
        %v2957 = vrot.slane %v2952, %v2956
        %v2959 = vadd.f32 %v2947, %v2957
        %v2960 = vxor.u32 %v2959, 2147483648
        %v2961 = vmul.f32 %v2960, 1.442695
        %v2962 = vpow.pop %v2961
        %v2963 = vadd.f32 %v2962, 1.0
        %v2964 = vrcp.pop %v2963
        %v2965 = vmul.f32 1.0, %v2964
        %2967 = vrot.lane.b32.xlu0 %v2959, 64
        %v2968 = vpop.permute.xlu0 %2967
        %v2970 = vmul.f32 %v2965, %v2968
        %v2971 = vadd.f32 %v2970, %v927
        %v2972 = vsel %vm969, %v2971, 0.0
        %2973 = vadd.xlane.f32.xlu0 %v2972
        %v2974 = vpop.xlane.xlu0 %2973
        %v2975 = vrcp.pop 64.0
        %v2976 = vmul.f32 %v2974, %v2975
        %v2977 = vsub.f32 %v2971, %v2976
        %v2978 = vmul.f32 %v2977, %v2977
        %v2979 = vsel %vm969, %v2978, 0.0
        %2980 = vadd.xlane.f32.xlu0 %v2979
        %v2981 = vpop.xlane.xlu0 %2980
        %v2982 = vmul.f32 %v2981, %v2975
        %v2983 = vadd.f32 %v2982, 1e-05
        %v2984 = vrsqrt.pop %v2983
        %v2985 = vmul.f32 %v2977, %v2984
        %v2986 = vld [vmem:[#allocation20] sm:$0x1]
        %v2988 = vlaneseq
        %v2989 = vshrl.u32 %v2988, 7
        %v2990 = vsub.s32 0, %v2989
        %v2991 = vrot.slane %v2986, %v2990
        %v2993 = vmul.f32 %v2985, %v2991
        %v2994 = vld [vmem:[#allocation22] sm:$0x1]
        %v2996 = vlaneseq
        %v2997 = vshrl.u32 %v2996, 7
        %v2998 = vsub.s32 0, %v2997
        %v2999 = vrot.slane %v2994, %v2998
        %v3001 = vadd.f32 %v2993, %v2999
        %v3002 = vadd.f32 %v926, %v3001
        %v3003 = vpack.c.bf16 %v3002, %v3002
        %v3004 = vld [vmem:[#allocation23] sm:$0xf]
        %v3005 = vld [vmem:[#allocation23 + $0x4] sm:$0xf]
        %v3006 = vld [vmem:[#allocation23 + $0x8] sm:$0xf]
        %v3007 = vld [vmem:[#allocation23 + $0xc] sm:$0xf]
        %v3008 = vld [vmem:[#allocation23 + $0x10] sm:$0xf]
        %v3009 = vld [vmem:[#allocation23 + $0x14] sm:$0xf]
        %v3010 = vld [vmem:[#allocation23 + $0x18] sm:$0xf]
        %v3011 = vld [vmem:[#allocation23 + $0x1c] sm:$0xf]
        %v3012 = vld [vmem:[#allocation25] sm:$0x1]
        %v3014 = vlaneseq
        %v3015 = vshrl.u32 %v3014, 7
        %v3016 = vsub.s32 0, %v3015
        %v3017 = vrot.slane %v3012, %v3016
        %v3027 = vunpack.c.l.b16 %v3004
        %v3028 = vunpack.c.l.b16 %v3005
        %v3029 = vunpack.c.l.b16 %v3006
        %v3030 = vunpack.c.l.b16 %v3007
        %v3031 = vunpack.c.l.b16 %v3008
        %v3032 = vunpack.c.l.b16 %v3009
        %v3033 = vunpack.c.l.b16 %v3010
        %v3034 = vunpack.c.l.b16 %v3011
        %v3035 = vpack.c.b16 %v3028, %v3027
        %v3036 = vpack.c.b16 %v3030, %v3029
        %v3037 = vpack.c.b16 %v3032, %v3031
        %v3038 = vpack.c.b16 %v3034, %v3033
        %v3044 = vsel %vm969, %v3003, 0
        %3046 = vmatprep.subr.bf16.mxu0 0
        %3047 = vmatpush1.bf16.msra.mxu0 %v3035
        %3048 = vmatprep.subr.bf16.mxu0 0
        %3049 = vmatpush1.bf16.msra.mxu0 %v3036
        %3050 = vmatprep.subr.bf16.mxu0 0
        %3051 = vmatpush1.bf16.msra.mxu0 %v3037
        %3052 = vmatprep.subr.bf16.mxu0 0
        %3053 = vmatpush1.bf16.msra.mxu0 %v3038
        %3054 = vmatprep.subr.bf16.mxu0 0
        %3055 = vmatpush1.bf16.msra.mxu0 0
        %3056 = vmatprep.subr.bf16.mxu0 0
        %3057 = vmatpush1.bf16.msra.mxu0 0
        %3058 = vmatprep.subr.bf16.mxu0 0
        %3059 = vmatpush1.bf16.msra.mxu0 0
        %3060 = vmatprep.subr.bf16.mxu0 0
        %3061 = vmatpush1.bf16.msra.mxu0 0
        %3062 = vmatprep.subr.bf16.mxu0 0
        %3063 = vmatpush1.bf16.msra.mxu0 0
        %3064 = vmatprep.subr.bf16.mxu0 0
        %3065 = vmatpush1.bf16.msra.mxu0 0
        %3066 = vmatprep.subr.bf16.mxu0 0
        %3067 = vmatpush1.bf16.msra.mxu0 0
        %3068 = vmatprep.subr.bf16.mxu0 0
        %3069 = vmatpush1.bf16.msra.mxu0 0
        %3070 = vmatprep.subr.bf16.mxu0 0
        %3071 = vmatpush1.bf16.msra.mxu0 0
        %3072 = vmatprep.subr.bf16.mxu0 0
        %3073 = vmatpush1.bf16.msra.mxu0 0
        %3074 = vmatprep.subr.bf16.mxu0 0
        %3075 = vmatpush1.bf16.msra.mxu0 0
        %3076 = vmatprep.subr.bf16.mxu0 0
        %3077 = vmatpush1.bf16.msra.mxu0 0
        %3078 = vmatprep.mubr.bf16.mxu0 0
        %3079 = vmatmul.mubr.bf16.gmra.mrb[0].mxu0 %v3044
        %v3080 = vpop.f32.mrb[0].mxu0
        %v3081 = vadd.f32 %v3017, %v3080
        %v3082 = vpop.f32.mrb[0].mxu0
        %v3083 = vpop.f32.mrb[0].mxu0
        %v3084 = vpop.f32.mrb[0].mxu0
        %3085 = vdwg.mxu0
        %v3086 = vmax.f32 %v3081, 0.0
        %v3087 = vpack.c.bf16 %v3086, %v3086
        %v3088 = vld [vmem:[#allocation26] sm:$0xf]
        %v3089 = vld [vmem:[#allocation26 + $0x4] sm:$0xf]
        %v3090 = vld [vmem:[#allocation26 + $0x8] sm:$0xf]
        %v3091 = vld [vmem:[#allocation26 + $0xc] sm:$0xf]
        %v3092 = vld [vmem:[#allocation26 + $0x10] sm:$0xf]
        %v3093 = vld [vmem:[#allocation26 + $0x14] sm:$0xf]
        %v3094 = vld [vmem:[#allocation26 + $0x18] sm:$0xf]
        %v3095 = vld [vmem:[#allocation26 + $0x1c] sm:$0xf]
        %v3096 = vld [vmem:[#allocation28] sm:$0x1]
        %v3098 = vlaneseq
        %v3099 = vshrl.u32 %v3098, 7
        %v3100 = vsub.s32 0, %v3099
        %v3101 = vrot.slane %v3096, %v3100
        %v3111 = vunpack.c.l.b16 %v3088
        %v3112 = vunpack.c.l.b16 %v3089
        %v3113 = vunpack.c.l.b16 %v3090
        %v3114 = vunpack.c.l.b16 %v3091
        %v3115 = vunpack.c.l.b16 %v3092
        %v3116 = vunpack.c.l.b16 %v3093
        %v3117 = vunpack.c.l.b16 %v3094
        %v3118 = vunpack.c.l.b16 %v3095
        %v3119 = vpack.c.b16 %v3112, %v3111
        %v3120 = vpack.c.b16 %v3114, %v3113
        %v3121 = vpack.c.b16 %v3116, %v3115
        %v3122 = vpack.c.b16 %v3118, %v3117
        %v3128 = vsel %vm969, %v3087, 0
        %3130 = vmatprep.subr.bf16.mxu0 0
        %3131 = vmatpush1.bf16.msra.mxu0 %v3119
        %3132 = vmatprep.subr.bf16.mxu0 0
        %3133 = vmatpush1.bf16.msra.mxu0 %v3120
        %3134 = vmatprep.subr.bf16.mxu0 0
        %3135 = vmatpush1.bf16.msra.mxu0 %v3121
        %3136 = vmatprep.subr.bf16.mxu0 0
        %3137 = vmatpush1.bf16.msra.mxu0 %v3122
        %3138 = vmatprep.subr.bf16.mxu0 0
        %3139 = vmatpush1.bf16.msra.mxu0 0
        %3140 = vmatprep.subr.bf16.mxu0 0
        %3141 = vmatpush1.bf16.msra.mxu0 0
        %3142 = vmatprep.subr.bf16.mxu0 0
        %3143 = vmatpush1.bf16.msra.mxu0 0
        %3144 = vmatprep.subr.bf16.mxu0 0
        %3145 = vmatpush1.bf16.msra.mxu0 0
        %3146 = vmatprep.subr.bf16.mxu0 0
        %3147 = vmatpush1.bf16.msra.mxu0 0
        %3148 = vmatprep.subr.bf16.mxu0 0
        %3149 = vmatpush1.bf16.msra.mxu0 0
        %3150 = vmatprep.subr.bf16.mxu0 0
        %3151 = vmatpush1.bf16.msra.mxu0 0
        %3152 = vmatprep.subr.bf16.mxu0 0
        %3153 = vmatpush1.bf16.msra.mxu0 0
        %3154 = vmatprep.subr.bf16.mxu0 0
        %3155 = vmatpush1.bf16.msra.mxu0 0
        %3156 = vmatprep.subr.bf16.mxu0 0
        %3157 = vmatpush1.bf16.msra.mxu0 0
        %3158 = vmatprep.subr.bf16.mxu0 0
        %3159 = vmatpush1.bf16.msra.mxu0 0
        %3160 = vmatprep.subr.bf16.mxu0 0
        %3161 = vmatpush1.bf16.msra.mxu0 0
        %3162 = vmatprep.mubr.bf16.mxu0 0
        %3163 = vmatmul.mubr.bf16.gmra.mrb[0].mxu0 %v3128
        %v3164 = vpop.f32.mrb[0].mxu0
        %v3165 = vadd.f32 %v3101, %v3164
        %v3166 = vpop.f32.mrb[0].mxu0
        %v3167 = vpop.f32.mrb[0].mxu0
        %v3168 = vpop.f32.mrb[0].mxu0
        %3169 = vdwg.mxu0
        %v3170 = vmax.f32 %v3165, 0.0
        %v3171 = vadd.f32 %v3002, %v3170
        %v3172 = vld [vmem:[#allocation29] sm:$0xf]
        %v3173 = vld [vmem:[#allocation29 + $0x4] sm:$0xf]
        %v3174 = vld [vmem:[#allocation29 + $0x8] sm:$0xf]
        %v3175 = vld [vmem:[#allocation29 + $0xc] sm:$0xf]
        %v3176 = vld [vmem:[#allocation29 + $0x10] sm:$0xf]
        %v3177 = vld [vmem:[#allocation29 + $0x14] sm:$0xf]
        %v3178 = vld [vmem:[#allocation29 + $0x18] sm:$0xf]
        %v3179 = vld [vmem:[#allocation29 + $0x1c] sm:$0xf]
        %v3180 = vtanh.pop %v927
        %v3181 = vpack.c.bf16 %v3180, %v3180
        %v3182 = vld [vmem:[#allocation31] sm:$0xf]
        %v3183 = vld [vmem:[#allocation31 + $0x4] sm:$0xf]
        %v3184 = vld [vmem:[#allocation31 + $0x8] sm:$0xf]
        %v3185 = vld [vmem:[#allocation31 + $0xc] sm:$0xf]
        %v3186 = vld [vmem:[#allocation31 + $0x10] sm:$0xf]
        %v3187 = vld [vmem:[#allocation31 + $0x14] sm:$0xf]
        %v3188 = vld [vmem:[#allocation31 + $0x18] sm:$0xf]
        %v3189 = vld [vmem:[#allocation31 + $0x1c] sm:$0xf]
        %v3198 = vunpack.c.l.b16 %v3182
        %v3199 = vunpack.c.l.b16 %v3183
        %v3200 = vunpack.c.l.b16 %v3184
        %v3201 = vunpack.c.l.b16 %v3185
        %v3202 = vunpack.c.l.b16 %v3186
        %v3203 = vunpack.c.l.b16 %v3187
        %v3204 = vunpack.c.l.b16 %v3188
        %v3205 = vunpack.c.l.b16 %v3189
        %v3206 = vpack.c.b16 %v3199, %v3198
        %v3207 = vpack.c.b16 %v3201, %v3200
        %v3208 = vpack.c.b16 %v3203, %v3202
        %v3209 = vpack.c.b16 %v3205, %v3204
        %v3215 = vsel %vm969, %v3181, 0
        %3217 = vmatprep.subr.bf16.mxu0 0
        %3218 = vmatpush1.bf16.msra.mxu0 %v3206
        %3219 = vmatprep.subr.bf16.mxu0 0
        %3220 = vmatpush1.bf16.msra.mxu0 %v3207
        %3221 = vmatprep.subr.bf16.mxu0 0
        %3222 = vmatpush1.bf16.msra.mxu0 %v3208
        %3223 = vmatprep.subr.bf16.mxu0 0
        %3224 = vmatpush1.bf16.msra.mxu0 %v3209
        %3225 = vmatprep.subr.bf16.mxu0 0
        %3226 = vmatpush1.bf16.msra.mxu0 0
        %3227 = vmatprep.subr.bf16.mxu0 0
        %3228 = vmatpush1.bf16.msra.mxu0 0
        %3229 = vmatprep.subr.bf16.mxu0 0
        %3230 = vmatpush1.bf16.msra.mxu0 0
        %3231 = vmatprep.subr.bf16.mxu0 0
        %3232 = vmatpush1.bf16.msra.mxu0 0
        %3233 = vmatprep.subr.bf16.mxu0 0
        %3234 = vmatpush1.bf16.msra.mxu0 0
        %3235 = vmatprep.subr.bf16.mxu0 0
        %3236 = vmatpush1.bf16.msra.mxu0 0
        %3237 = vmatprep.subr.bf16.mxu0 0
        %3238 = vmatpush1.bf16.msra.mxu0 0
        %3239 = vmatprep.subr.bf16.mxu0 0
        %3240 = vmatpush1.bf16.msra.mxu0 0
        %3241 = vmatprep.subr.bf16.mxu0 0
        %3242 = vmatpush1.bf16.msra.mxu0 0
        %3243 = vmatprep.subr.bf16.mxu0 0
        %3244 = vmatpush1.bf16.msra.mxu0 0
        %3245 = vmatprep.subr.bf16.mxu0 0
        %3246 = vmatpush1.bf16.msra.mxu0 0
        %3247 = vmatprep.subr.bf16.mxu0 0
        %3248 = vmatpush1.bf16.msra.mxu0 0
        %3249 = vmatprep.mubr.bf16.mxu0 0
        %3250 = vmatmul.mubr.bf16.gmra.mrb[0].mxu0 %v3215
        %v3251 = vpop.f32.mrb[0].mxu0
        %v3252 = vadd.f32 0.0, %v3251
        %v3253 = vpop.f32.mrb[0].mxu0
        %v3254 = vpop.f32.mrb[0].mxu0
        %v3255 = vpop.f32.mrb[0].mxu0
        %3256 = vdwg.mxu0
        %v3265 = vunpack.c.l.b16 %v3172
        %v3266 = vunpack.c.l.b16 %v3173
        %v3267 = vunpack.c.l.b16 %v3174
        %v3268 = vunpack.c.l.b16 %v3175
        %v3269 = vunpack.c.l.b16 %v3176
        %v3270 = vunpack.c.l.b16 %v3177
        %v3271 = vunpack.c.l.b16 %v3178
        %v3272 = vunpack.c.l.b16 %v3179
        %v3273 = vpack.c.b16 %v3266, %v3265
        %v3274 = vpack.c.b16 %v3268, %v3267
        %v3275 = vpack.c.b16 %v3270, %v3269
        %v3276 = vpack.c.b16 %v3272, %v3271
        %3281 = vmatprep.subr.bf16.mxu0 0
        %3282 = vmatpush1.bf16.msra.mxu0 %v3273
        %3283 = vmatprep.subr.bf16.mxu0 0
        %3284 = vmatpush1.bf16.msra.mxu0 %v3274
        %3285 = vmatprep.subr.bf16.mxu0 0
        %3286 = vmatpush1.bf16.msra.mxu0 %v3275
        %3287 = vmatprep.subr.bf16.mxu0 0
        %3288 = vmatpush1.bf16.msra.mxu0 %v3276
        %3289 = vmatprep.subr.bf16.mxu0 0
        %3290 = vmatpush1.bf16.msra.mxu0 0
        %3291 = vmatprep.subr.bf16.mxu0 0
        %3292 = vmatpush1.bf16.msra.mxu0 0
        %3293 = vmatprep.subr.bf16.mxu0 0
        %3294 = vmatpush1.bf16.msra.mxu0 0
        %3295 = vmatprep.subr.bf16.mxu0 0
        %3296 = vmatpush1.bf16.msra.mxu0 0
        %3297 = vmatprep.subr.bf16.mxu0 0
        %3298 = vmatpush1.bf16.msra.mxu0 0
        %3299 = vmatprep.subr.bf16.mxu0 0
        %3300 = vmatpush1.bf16.msra.mxu0 0
        %3301 = vmatprep.subr.bf16.mxu0 0
        %3302 = vmatpush1.bf16.msra.mxu0 0
        %3303 = vmatprep.subr.bf16.mxu0 0
        %3304 = vmatpush1.bf16.msra.mxu0 0
        %3305 = vmatprep.subr.bf16.mxu0 0
        %3306 = vmatpush1.bf16.msra.mxu0 0
        %3307 = vmatprep.subr.bf16.mxu0 0
        %3308 = vmatpush1.bf16.msra.mxu0 0
        %3309 = vmatprep.subr.bf16.mxu0 0
        %3310 = vmatpush1.bf16.msra.mxu0 0
        %3311 = vmatprep.subr.bf16.mxu0 0
        %3312 = vmatpush1.bf16.msra.mxu0 0
        %3313 = vmatprep.mubr.bf16.mxu0 0
        %3314 = vmatmul.mubr.bf16.gmra.mrb[0].mxu0 %v971
        %v3315 = vpop.f32.mrb[0].mxu0
        %v3316 = vadd.f32 %v3252, %v3315
        %v3317 = vpop.f32.mrb[0].mxu0
        %v3318 = vpop.f32.mrb[0].mxu0
        %v3319 = vpop.f32.mrb[0].mxu0
        %3320 = vdwg.mxu0
        %v3321 = vld [vmem:[#allocation32] sm:$0x1]
        %v3323 = vlaneseq
        %v3324 = vshrl.u32 %v3323, 7
        %v3325 = vsub.s32 0, %v3324
        %v3326 = vrot.slane %v3321, %v3325
        %v3328 = vadd.f32 %v3316, %v3326
        %v3329 = vxor.u32 %v3328, 2147483648
        %v3330 = vmul.f32 %v3329, 1.442695
        %v3331 = vpow.pop %v3330
        %v3332 = vadd.f32 %v3331, 1.0
        %v3333 = vrcp.pop %v3332
        %v3334 = vmul.f32 1.0, %v3333
        %v3335 = vtanh.pop %v3171
        %v3336 = vmul.f32 %v3334, %v3335
        %3338 = vrot.lane.b32.xlu0 %v926, 64
        %v3339 = vpop.permute.xlu0 %3338
        %v3341 = vmul.f32 %v3334, %v3339
        %3343 = vrot.lane.b32.xlu0 %v3341, 64
        %v3344 = vpop.permute.xlu0 %3343
        %v3346 = vadd.f32 %v3336, %v3344
        %3347 = vst.msk [vmem:[%s924] sm:$0xff] %vm969, %v3346
        %s3348 = sand.u32 %s487, 1
        %s3349 = scalar_lea.sflag [#allocation4], %s3348
        %s3350 = sand.u32 %s487, 1
        %s3351 = smul.addr %s3350, 8
        %s3352 = scalar_lea.vmem [#allocation34], %s3351
        // Predicated region
        $region181: #{tpu_custom_call.1} parent=99 // pred_check
          %p3353 = pneg %p497
        $region182: #{tpu_custom_call.1} parent=99 // pred_check_branch
          %3355 = sbr.rel (%p3353) target = $region184
        $region183: #{tpu_custom_call.1} parent=99 // pred_region
          %s3357 = ssub.s32 128, 128
          %3358 = vsyncadd %s3349, %s3357
          %s3359 = smul.addr %s49, 128
          %s3360 = scalar_lea.hbm %s20, %s3359
          %s3362 = sshll.u32 %s3352, 4
          %s3363 = int_to_ptr.vmem [resolvable:$true] %s3362
          %3365 = dma.vmem_to_hbm [thread:$0]  %s3363, 128, %s3360, %s3349
        $region184: #{tpu_custom_call.1} parent=99 // pred_fallthru
          _
      $region100: #{tpu_custom_call.1} parent=5 // pred_fallthru
        _
      %p3366 = scmp.le.s32.totalorder 2, %s44
      // Predicated region
      $region185: #{tpu_custom_call.1} parent=5 // pred_check
        %p3367 = pneg %p3366
      $region186: #{tpu_custom_call.1} parent=5 // pred_check_branch
        %3369 = sbr.rel (%p3367) target = $region188
      $region187: #{tpu_custom_call.1} parent=5 // pred_region
        %s3370 = ssub.s32 %s44, 2
        // Predicated region
        $region189: #{tpu_custom_call.1} parent=187 // pred_check
          %p3371 = pneg %p503
        $region190: #{tpu_custom_call.1} parent=187 // pred_check_branch
          %3373 = sbr.rel (%p3371) target = $region192
        $region191: #{tpu_custom_call.1} parent=187 // pred_region
          %s3374 = sand.u32 %s488, 1
          %s3375 = scalar_lea.sflag [#allocation4], %s3374
          %s3376 = sand.u32 %s488, 1
          %s3377 = smul.addr %s3376, 8
          %s3378 = scalar_lea.vmem [#allocation34], %s3377
          %3379 = dma.done %s3375, 128
        $region192: #{tpu_custom_call.1} parent=187 // pred_fallthru
          _
      $region188: #{tpu_custom_call.1} parent=5 // pred_fallthru
        _
    $region6: #{tpu_custom_call.1} parent=1 // loop_footer
      %s48 = sadd.s32 1, %s44
    $region7: #{tpu_custom_call.1} parent=1 // loop_footer_branch
      %43 = sbr.rel target = $region3
    $region8: #{tpu_custom_call.1} parent=1 // loop_exit
      _
    %3380 = vsyncpa [#allocation3], 1
    %s3381 = scalar_lea.sflag [#allocation3], 1
    %3382 = vsyncpa %s3381, 1
    %3383 = vsyncpa [#allocation6], 1
    %s3384 = scalar_lea.sflag [#allocation6], 1
    %3385 = vsyncpa %s3384, 1
    %3386 = vsyncpa [#allocation9], 1
    %3387 = vsyncpa [#allocation12], 1
    %3388 = vsyncpa [#allocation15], 1
    %3389 = vsyncpa [#allocation18], 1
    %3390 = vsyncpa [#allocation21], 1
    %3391 = vsyncpa [#allocation24], 1
    %3392 = vsyncpa [#allocation27], 1
    %3393 = vsyncpa [#allocation30], 1
    %3394 = vsyncpa [#allocation33], 1
    %3395 = vsyncpa [#allocation4], 1
    %s3396 = scalar_lea.sflag [#allocation4], 1
    %3397 = vsyncpa %s3396, 1

// kernel: tpu_custom_call.1
$region0: #{tpu_custom_call.1}
  #allocation0 [shape = 'u32[]', space=smem, size = 0x4, offset = 0x4, fixed_abs, tag = 'smem constant byte address 0x4 - core index']
  #allocation1 [shape = 'u32[144,128]{1,0:T(1,128)}', space=vmem, size = 0x12000, scoped, tag = 'internal scratch']
  %s0 = inlined_call_operand.hbm [shape: f32[2,8,64], index: 0, kind: input, shape index: {}]
  %s1 = inlined_call_operand.hbm [shape: f32[2,8,64], index: 1, kind: input, shape index: {}]
  %s2 = inlined_call_operand.hbm [shape: bf16[64,64], index: 2, kind: input, shape index: {}]
  %s3 = inlined_call_operand.hbm [shape: f32[1,64], index: 3, kind: input, shape index: {}]
  %s4 = inlined_call_operand.hbm [shape: bf16[64,64], index: 4, kind: input, shape index: {}]
  %s5 = inlined_call_operand.hbm [shape: f32[1,64], index: 5, kind: input, shape index: {}]
  %s6 = inlined_call_operand.hbm [shape: bf16[64,64], index: 6, kind: input, shape index: {}]
  %s7 = inlined_call_operand.hbm [shape: f32[1,64], index: 7, kind: input, shape index: {}]
  %s8 = inlined_call_operand.hbm [shape: bf16[64,128], index: 8, kind: input, shape index: {}]
  %s9 = inlined_call_operand.hbm [shape: bf16[64,128], index: 9, kind: input, shape index: {}]
  %s10 = inlined_call_operand.hbm [shape: f32[1,128], index: 10, kind: input, shape index: {}]
  %s11 = inlined_call_operand.hbm [shape: f32[1,64], index: 11, kind: input, shape index: {}]
  %s12 = inlined_call_operand.hbm [shape: f32[1,64], index: 12, kind: input, shape index: {}]
  %s13 = inlined_call_operand.hbm [shape: bf16[64,64], index: 13, kind: input, shape index: {}]
  %s14 = inlined_call_operand.hbm [shape: f32[1,64], index: 14, kind: input, shape index: {}]
  %s15 = inlined_call_operand.hbm [shape: bf16[64,64], index: 15, kind: input, shape index: {}]
  %s16 = inlined_call_operand.hbm [shape: f32[1,64], index: 16, kind: input, shape index: {}]
  %s17 = inlined_call_operand.hbm [shape: bf16[64,128], index: 17, kind: input, shape index: {}]
  %s18 = inlined_call_operand.hbm [shape: bf16[64,128], index: 18, kind: input, shape index: {}]
  %s19 = inlined_call_operand.hbm [shape: f32[1,128], index: 19, kind: input, shape index: {}]
  %s20 = inlined_call_operand.hbm [shape: f32[2,8,64], index: 20, kind: output, shape index: {}]
  %s21 = sld [smem:[#allocation0]]
  $region193: #{tpu_custom_call.1} parent=0
    _
  %s23 = ssub.s32 1, %s21
  %s24 = scalar_select 0, %s23, %s21
  $region1: #{tpu_custom_call.1} parent=0
    #allocation2 [shape = 'u8[8192]{0}', space=vmem, size = 0x2000, scoped, tag = 'input window, operand 0']
    #allocation3 [shape = 's32[2]{0}', space=sflag, size = 0x8, scoped, tag = 'scoped memory for tpu_custom_call.1']
    #allocation4 [shape = 's32[2]{0}', space=sflag, size = 0x8, scoped, tag = 'scoped memory for tpu_custom_call.1']
    #allocation5 [shape = 'u8[8192]{0}', space=vmem, size = 0x2000, scoped, tag = 'input window, operand 1']
    #allocation6 [shape = 's32[2]{0}', space=sflag, size = 0x8, scoped, tag = 'scoped memory for tpu_custom_call.1']
    #allocation7 [shape = 'u8[16384]{0}', space=vmem, size = 0x4000, scoped, tag = 'input window, operand 2, single buffered']
    #allocation8 [shape = 'u8[512]{0}', space=vmem, size = 0x400, scoped, tag = 'input window, operand 3, single buffered']
    #allocation9 [shape = 's32[1]{0}', space=sflag, size = 0x4, scoped, tag = 'scoped memory for tpu_custom_call.1']
    #allocation10 [shape = 'u8[16384]{0}', space=vmem, size = 0x4000, scoped, tag = 'input window, operand 4, single buffered']
    #allocation11 [shape = 'u8[512]{0}', space=vmem, size = 0x400, scoped, tag = 'input window, operand 5, single buffered']
    #allocation12 [shape = 's32[1]{0}', space=sflag, size = 0x4, scoped, tag = 'scoped memory for tpu_custom_call.1']
    #allocation13 [shape = 'u8[16384]{0}', space=vmem, size = 0x4000, scoped, tag = 'input window, operand 6, single buffered']
    #allocation14 [shape = 'u8[512]{0}', space=vmem, size = 0x400, scoped, tag = 'input window, operand 7, single buffered']
    #allocation15 [shape = 's32[1]{0}', space=sflag, size = 0x4, scoped, tag = 'scoped memory for tpu_custom_call.1']
    #allocation16 [shape = 'u8[16384]{0}', space=vmem, size = 0x4000, scoped, tag = 'input window, operand 8, single buffered']
    #allocation17 [shape = 'u8[16384]{0}', space=vmem, size = 0x4000, scoped, tag = 'input window, operand 9, single buffered']
    #allocation18 [shape = 's32[1]{0}', space=sflag, size = 0x4, scoped, tag = 'scoped memory for tpu_custom_call.1']
    #allocation19 [shape = 'u8[512]{0}', space=vmem, size = 0x400, scoped, tag = 'input window, operand 10, single buffered']
    #allocation20 [shape = 'u8[512]{0}', space=vmem, size = 0x400, scoped, tag = 'input window, operand 11, single buffered']
    #allocation21 [shape = 's32[1]{0}', space=sflag, size = 0x4, scoped, tag = 'scoped memory for tpu_custom_call.1']
    #allocation22 [shape = 'u8[512]{0}', space=vmem, size = 0x400, scoped, tag = 'input window, operand 12, single buffered']
    #allocation23 [shape = 'u8[16384]{0}', space=vmem, size = 0x4000, scoped, tag = 'input window, operand 13, single buffered']
    #allocation24 [shape = 's32[1]{0}', space=sflag, size = 0x4, scoped, tag = 'scoped memory for tpu_custom_call.1']
    #allocation25 [shape = 'u8[512]{0}', space=vmem, size = 0x400, scoped, tag = 'input window, operand 14, single buffered']
    #allocation26 [shape = 'u8[16384]{0}', space=vmem, size = 0x4000, scoped, tag = 'input window, operand 15, single buffered']
    #allocation27 [shape = 's32[1]{0}', space=sflag, size = 0x4, scoped, tag = 'scoped memory for tpu_custom_call.1']
    #allocation28 [shape = 'u8[512]{0}', space=vmem, size = 0x400, scoped, tag = 'input window, operand 16, single buffered']
    #allocation29 [shape = 'u8[16384]{0}', space=vmem, size = 0x4000, scoped, tag = 'input window, operand 17, single buffered']
    #allocation30 [shape = 's32[1]{0}', space=sflag, size = 0x4, scoped, tag = 'scoped memory for tpu_custom_call.1']
    #allocation31 [shape = 'u8[16384]{0}', space=vmem, size = 0x4000, scoped, tag = 'input window, operand 18, single buffered']
    #allocation32 [shape = 'u8[512]{0}', space=vmem, size = 0x400, scoped, tag = 'input window, operand 19, single buffered']
    #allocation33 [shape = 's32[1]{0}', space=sflag, size = 0x4, scoped, tag = 'scoped memory for tpu_custom_call.1']
    #allocation34 [shape = 'u8[8192]{0}', space=vmem, size = 0x2000, scoped, tag = 'output window, operand 0']
    %25 = vsyncpa [#allocation3], 0
    %s26 = scalar_lea.sflag [#allocation3], 1
    %27 = vsyncpa %s26, 0
    %28 = vsyncpa [#allocation6], 0
    %s29 = scalar_lea.sflag [#allocation6], 1
    %30 = vsyncpa %s29, 0
    %31 = vsyncpa [#allocation9], 0
    %32 = vsyncpa [#allocation12], 0
    %33 = vsyncpa [#allocation15], 0
    %34 = vsyncpa [#allocation18], 0
    %35 = vsyncpa [#allocation21], 0
    %36 = vsyncpa [#allocation24], 0
    %37 = vsyncpa [#allocation27], 0
    %38 = vsyncpa [#allocation30], 0
    %39 = vsyncpa [#allocation33], 0
    %40 = vsyncpa [#allocation4], 0
    %s41 = scalar_lea.sflag [#allocation4], 1
    %42 = vsyncpa %s41, 0
    loop: start=0, step=1, limit=4
    $region2: #{tpu_custom_call.1} parent=1 // loop_pre_header
      _
    $region3: #{tpu_custom_call.1} parent=1 // loop_header
      %s44 = sphi 0, %s48
      %p45 = scmp.ge.s32.totalorder %s44, 4
      %s54 = sphi 0, %s56
      %s57 = sphi 0, %s54
      %s58 = sphi 0, %s57
      %s74 = sphi 0, %s58
      %s80 = sphi 0, %s82
      %s83 = sphi 0, %s80
      %s84 = sphi 0, %s83
      %s100 = sphi 0, %s84
      %s104 = sphi 0, %s104
      %s106 = sphi 0, %s104
      %s107 = sphi 0, %s106
      %s121 = sphi 0, %s107
      %s125 = sphi 0, %s125
      %s127 = sphi 0, %s125
      %s128 = sphi 0, %s127
      %s142 = sphi 0, %s128
      %s146 = sphi 0, %s146
      %s148 = sphi 0, %s146
      %s149 = sphi 0, %s148
      %s163 = sphi 0, %s149
      %s167 = sphi 0, %s167
      %s169 = sphi 0, %s167
      %s170 = sphi 0, %s169
      %s184 = sphi 0, %s170
      %s188 = sphi 0, %s188
      %s190 = sphi 0, %s188
      %s191 = sphi 0, %s190
      %s205 = sphi 0, %s191
      %s209 = sphi 0, %s209
      %s211 = sphi 0, %s209
      %s212 = sphi 0, %s211
      %s226 = sphi 0, %s212
      %s230 = sphi 0, %s230
      %s232 = sphi 0, %s230
      %s233 = sphi 0, %s232
      %s247 = sphi 0, %s233
      %s251 = sphi 0, %s251
      %s253 = sphi 0, %s251
      %s254 = sphi 0, %s253
      %s268 = sphi 0, %s254
      %s272 = sphi 0, %s272
      %s274 = sphi 0, %s272
      %s275 = sphi 0, %s274
      %s289 = sphi 0, %s275
      %s293 = sphi 0, %s293
      %s295 = sphi 0, %s293
      %s296 = sphi 0, %s295
      %s310 = sphi 0, %s296
      %s314 = sphi 0, %s314
      %s316 = sphi 0, %s314
      %s317 = sphi 0, %s316
      %s331 = sphi 0, %s317
      %s335 = sphi 0, %s335
      %s337 = sphi 0, %s335
      %s338 = sphi 0, %s337
      %s352 = sphi 0, %s338
      %s356 = sphi 0, %s356
      %s358 = sphi 0, %s356
      %s359 = sphi 0, %s358
      %s373 = sphi 0, %s359
      %s377 = sphi 0, %s377
      %s379 = sphi 0, %s377
      %s380 = sphi 0, %s379
      %s394 = sphi 0, %s380
      %s398 = sphi 0, %s398
      %s400 = sphi 0, %s398
      %s401 = sphi 0, %s400
      %s415 = sphi 0, %s401
      %s419 = sphi 0, %s419
      %s421 = sphi 0, %s419
      %s422 = sphi 0, %s421
      %s436 = sphi 0, %s422
      %s440 = sphi 0, %s440
      %s442 = sphi 0, %s440
      %s443 = sphi 0, %s442
      %s457 = sphi 0, %s443
      %s461 = sphi 0, %s461
      %s463 = sphi 0, %s461
      %s464 = sphi 0, %s463
      %s478 = sphi 0, %s464
      %s484 = sphi 0, %s486
      %s487 = sphi 0, %s484
      %s488 = sphi 0, %s487
      %s504 = sphi 0, %s488
    $region4: #{tpu_custom_call.1} parent=1 // loop_header_branch
      %47 = sbr.rel (%p45) target = $region8
    $region5: #{tpu_custom_call.1} parent=1 // loop_body
      %s49 = ssub.s32 %s44, 1
      %s50 = ssub.s32 %s44, 2
      %s51 = sadd.s32 %s44, 1
      %s52 = ssub.s32 %s44, %s51
      %p53 = scmp.eq.s32.totalorder %s52, 0
      %s55 = sadd.s32 %s54, 1
      %s56 = scalar_select %p53, %s54, %s55
      %p59 = pneg %p53
      %p60 = scmp.eq.s32.totalorder %s44, 1
      %p61 = por %p59, %p60
      %p62 = scmp.ne.s32.totalorder %s54, %s57
      %p63 = scmp.eq.s32.totalorder %s44, 0
      %p64 = por %p62, %p63
      %p65 = scmp.ne.s32.totalorder %s54, %s57
      %p66 = scmp.eq.s32.totalorder %s49, 1
      %p67 = por %p65, %p66
      %p68 = scmp.ne.s32.totalorder %s57, %s58
      %p69 = scmp.eq.s32.totalorder %s49, 0
      %p70 = por %p68, %p69
      %p71 = scmp.ne.s32.totalorder %s57, %s58
      %p72 = scmp.eq.s32.totalorder %s50, 1
      %p73 = por %p71, %p72
      %p75 = scmp.ne.s32.totalorder %s58, %s74
      %p76 = scmp.eq.s32.totalorder %s50, 0
      %p77 = por %p75, %p76
      %s78 = ssub.s32 %s44, %s51
      %p79 = scmp.eq.s32.totalorder %s78, 0
      %s81 = sadd.s32 %s80, 1
      %s82 = scalar_select %p79, %s80, %s81
      %p85 = pneg %p79
      %p86 = scmp.eq.s32.totalorder %s44, 1
      %p87 = por %p85, %p86
      %p88 = scmp.ne.s32.totalorder %s80, %s83
      %p89 = scmp.eq.s32.totalorder %s44, 0
      %p90 = por %p88, %p89
      %p91 = scmp.ne.s32.totalorder %s80, %s83
      %p92 = scmp.eq.s32.totalorder %s49, 1
      %p93 = por %p91, %p92
      %p94 = scmp.ne.s32.totalorder %s83, %s84
      %p95 = scmp.eq.s32.totalorder %s49, 0
      %p96 = por %p94, %p95
      %p97 = scmp.ne.s32.totalorder %s83, %s84
      %p98 = scmp.eq.s32.totalorder %s50, 1
      %p99 = por %p97, %p98
      %p101 = scmp.ne.s32.totalorder %s84, %s100
      %p102 = scmp.eq.s32.totalorder %s50, 0
      %p103 = por %p101, %p102
      %s105 = sadd.s32 %s104, 1
      %p108 = scmp.eq.s32.totalorder %s44, 1
      %p109 = scmp.ne.s32.totalorder %s104, %s106
      %p110 = scmp.eq.s32.totalorder %s44, 0
      %p111 = por %p109, %p110
      %p112 = scmp.ne.s32.totalorder %s104, %s106
      %p113 = scmp.eq.s32.totalorder %s49, 1
      %p114 = por %p112, %p113
      %p115 = scmp.ne.s32.totalorder %s106, %s107
      %p116 = scmp.eq.s32.totalorder %s49, 0
      %p117 = por %p115, %p116
      %p118 = scmp.ne.s32.totalorder %s106, %s107
      %p119 = scmp.eq.s32.totalorder %s50, 1
      %p120 = por %p118, %p119
      %p122 = scmp.ne.s32.totalorder %s107, %s121
      %p123 = scmp.eq.s32.totalorder %s50, 0
      %p124 = por %p122, %p123
      %s126 = sadd.s32 %s125, 1
      %p129 = scmp.eq.s32.totalorder %s44, 1
      %p130 = scmp.ne.s32.totalorder %s125, %s127
      %p131 = scmp.eq.s32.totalorder %s44, 0
      %p132 = por %p130, %p131
      %p133 = scmp.ne.s32.totalorder %s125, %s127
      %p134 = scmp.eq.s32.totalorder %s49, 1
      %p135 = por %p133, %p134
      %p136 = scmp.ne.s32.totalorder %s127, %s128
      %p137 = scmp.eq.s32.totalorder %s49, 0
      %p138 = por %p136, %p137
      %p139 = scmp.ne.s32.totalorder %s127, %s128
      %p140 = scmp.eq.s32.totalorder %s50, 1
      %p141 = por %p139, %p140
      %p143 = scmp.ne.s32.totalorder %s128, %s142
      %p144 = scmp.eq.s32.totalorder %s50, 0
      %p145 = por %p143, %p144
      %s147 = sadd.s32 %s146, 1
      %p150 = scmp.eq.s32.totalorder %s44, 1
      %p151 = scmp.ne.s32.totalorder %s146, %s148
      %p152 = scmp.eq.s32.totalorder %s44, 0
      %p153 = por %p151, %p152
      %p154 = scmp.ne.s32.totalorder %s146, %s148
      %p155 = scmp.eq.s32.totalorder %s49, 1
      %p156 = por %p154, %p155
      %p157 = scmp.ne.s32.totalorder %s148, %s149
      %p158 = scmp.eq.s32.totalorder %s49, 0
      %p159 = por %p157, %p158
      %p160 = scmp.ne.s32.totalorder %s148, %s149
      %p161 = scmp.eq.s32.totalorder %s50, 1
      %p162 = por %p160, %p161
      %p164 = scmp.ne.s32.totalorder %s149, %s163
      %p165 = scmp.eq.s32.totalorder %s50, 0
      %p166 = por %p164, %p165
      %s168 = sadd.s32 %s167, 1
      %p171 = scmp.eq.s32.totalorder %s44, 1
      %p172 = scmp.ne.s32.totalorder %s167, %s169
      %p173 = scmp.eq.s32.totalorder %s44, 0
      %p174 = por %p172, %p173
      %p175 = scmp.ne.s32.totalorder %s167, %s169
      %p176 = scmp.eq.s32.totalorder %s49, 1
      %p177 = por %p175, %p176
      %p178 = scmp.ne.s32.totalorder %s169, %s170
      %p179 = scmp.eq.s32.totalorder %s49, 0
      %p180 = por %p178, %p179
      %p181 = scmp.ne.s32.totalorder %s169, %s170
      %p182 = scmp.eq.s32.totalorder %s50, 1
      %p183 = por %p181, %p182
      %p185 = scmp.ne.s32.totalorder %s170, %s184
      %p186 = scmp.eq.s32.totalorder %s50, 0
      %p187 = por %p185, %p186
      %s189 = sadd.s32 %s188, 1
      %p192 = scmp.eq.s32.totalorder %s44, 1
      %p193 = scmp.ne.s32.totalorder %s188, %s190
      %p194 = scmp.eq.s32.totalorder %s44, 0
      %p195 = por %p193, %p194
      %p196 = scmp.ne.s32.totalorder %s188, %s190
      %p197 = scmp.eq.s32.totalorder %s49, 1
      %p198 = por %p196, %p197
      %p199 = scmp.ne.s32.totalorder %s190, %s191
      %p200 = scmp.eq.s32.totalorder %s49, 0
      %p201 = por %p199, %p200
      %p202 = scmp.ne.s32.totalorder %s190, %s191
      %p203 = scmp.eq.s32.totalorder %s50, 1
      %p204 = por %p202, %p203
      %p206 = scmp.ne.s32.totalorder %s191, %s205
      %p207 = scmp.eq.s32.totalorder %s50, 0
      %p208 = por %p206, %p207
      %s210 = sadd.s32 %s209, 1
      %p213 = scmp.eq.s32.totalorder %s44, 1
      %p214 = scmp.ne.s32.totalorder %s209, %s211
      %p215 = scmp.eq.s32.totalorder %s44, 0
      %p216 = por %p214, %p215
      %p217 = scmp.ne.s32.totalorder %s209, %s211
      %p218 = scmp.eq.s32.totalorder %s49, 1
      %p219 = por %p217, %p218
      %p220 = scmp.ne.s32.totalorder %s211, %s212
      %p221 = scmp.eq.s32.totalorder %s49, 0
      %p222 = por %p220, %p221
      %p223 = scmp.ne.s32.totalorder %s211, %s212
      %p224 = scmp.eq.s32.totalorder %s50, 1
      %p225 = por %p223, %p224
      %p227 = scmp.ne.s32.totalorder %s212, %s226
      %p228 = scmp.eq.s32.totalorder %s50, 0
      %p229 = por %p227, %p228
      %s231 = sadd.s32 %s230, 1
      %p234 = scmp.eq.s32.totalorder %s44, 1
      %p235 = scmp.ne.s32.totalorder %s230, %s232
      %p236 = scmp.eq.s32.totalorder %s44, 0
      %p237 = por %p235, %p236
      %p238 = scmp.ne.s32.totalorder %s230, %s232
      %p239 = scmp.eq.s32.totalorder %s49, 1
      %p240 = por %p238, %p239
      %p241 = scmp.ne.s32.totalorder %s232, %s233
      %p242 = scmp.eq.s32.totalorder %s49, 0
      %p243 = por %p241, %p242
      %p244 = scmp.ne.s32.totalorder %s232, %s233
      %p245 = scmp.eq.s32.totalorder %s50, 1
      %p246 = por %p244, %p245
      %p248 = scmp.ne.s32.totalorder %s233, %s247
      %p249 = scmp.eq.s32.totalorder %s50, 0
      %p250 = por %p248, %p249
      %s252 = sadd.s32 %s251, 1
      %p255 = scmp.eq.s32.totalorder %s44, 1
      %p256 = scmp.ne.s32.totalorder %s251, %s253
      %p257 = scmp.eq.s32.totalorder %s44, 0
      %p258 = por %p256, %p257
      %p259 = scmp.ne.s32.totalorder %s251, %s253
      %p260 = scmp.eq.s32.totalorder %s49, 1
      %p261 = por %p259, %p260
      %p262 = scmp.ne.s32.totalorder %s253, %s254
      %p263 = scmp.eq.s32.totalorder %s49, 0
      %p264 = por %p262, %p263
      %p265 = scmp.ne.s32.totalorder %s253, %s254
      %p266 = scmp.eq.s32.totalorder %s50, 1
      %p267 = por %p265, %p266
      %p269 = scmp.ne.s32.totalorder %s254, %s268
      %p270 = scmp.eq.s32.totalorder %s50, 0
      %p271 = por %p269, %p270
      %s273 = sadd.s32 %s272, 1
      %p276 = scmp.eq.s32.totalorder %s44, 1
      %p277 = scmp.ne.s32.totalorder %s272, %s274
      %p278 = scmp.eq.s32.totalorder %s44, 0
      %p279 = por %p277, %p278
      %p280 = scmp.ne.s32.totalorder %s272, %s274
      %p281 = scmp.eq.s32.totalorder %s49, 1
      %p282 = por %p280, %p281
      %p283 = scmp.ne.s32.totalorder %s274, %s275
      %p284 = scmp.eq.s32.totalorder %s49, 0
      %p285 = por %p283, %p284
      %p286 = scmp.ne.s32.totalorder %s274, %s275
      %p287 = scmp.eq.s32.totalorder %s50, 1
      %p288 = por %p286, %p287
      %p290 = scmp.ne.s32.totalorder %s275, %s289
      %p291 = scmp.eq.s32.totalorder %s50, 0
      %p292 = por %p290, %p291
      %s294 = sadd.s32 %s293, 1
      %p297 = scmp.eq.s32.totalorder %s44, 1
      %p298 = scmp.ne.s32.totalorder %s293, %s295
      %p299 = scmp.eq.s32.totalorder %s44, 0
      %p300 = por %p298, %p299
      %p301 = scmp.ne.s32.totalorder %s293, %s295
      %p302 = scmp.eq.s32.totalorder %s49, 1
      %p303 = por %p301, %p302
      %p304 = scmp.ne.s32.totalorder %s295, %s296
      %p305 = scmp.eq.s32.totalorder %s49, 0
      %p306 = por %p304, %p305
      %p307 = scmp.ne.s32.totalorder %s295, %s296
      %p308 = scmp.eq.s32.totalorder %s50, 1
      %p309 = por %p307, %p308
      %p311 = scmp.ne.s32.totalorder %s296, %s310
      %p312 = scmp.eq.s32.totalorder %s50, 0
      %p313 = por %p311, %p312
      %s315 = sadd.s32 %s314, 1
      %p318 = scmp.eq.s32.totalorder %s44, 1
      %p319 = scmp.ne.s32.totalorder %s314, %s316
      %p320 = scmp.eq.s32.totalorder %s44, 0
      %p321 = por %p319, %p320
      %p322 = scmp.ne.s32.totalorder %s314, %s316
      %p323 = scmp.eq.s32.totalorder %s49, 1
      %p324 = por %p322, %p323
      %p325 = scmp.ne.s32.totalorder %s316, %s317
      %p326 = scmp.eq.s32.totalorder %s49, 0
      %p327 = por %p325, %p326
      %p328 = scmp.ne.s32.totalorder %s316, %s317
      %p329 = scmp.eq.s32.totalorder %s50, 1
      %p330 = por %p328, %p329
      %p332 = scmp.ne.s32.totalorder %s317, %s331
      %p333 = scmp.eq.s32.totalorder %s50, 0
      %p334 = por %p332, %p333
      %s336 = sadd.s32 %s335, 1
      %p339 = scmp.eq.s32.totalorder %s44, 1
      %p340 = scmp.ne.s32.totalorder %s335, %s337
      %p341 = scmp.eq.s32.totalorder %s44, 0
      %p342 = por %p340, %p341
      %p343 = scmp.ne.s32.totalorder %s335, %s337
      %p344 = scmp.eq.s32.totalorder %s49, 1
      %p345 = por %p343, %p344
      %p346 = scmp.ne.s32.totalorder %s337, %s338
      %p347 = scmp.eq.s32.totalorder %s49, 0
      %p348 = por %p346, %p347
      %p349 = scmp.ne.s32.totalorder %s337, %s338
      %p350 = scmp.eq.s32.totalorder %s50, 1
      %p351 = por %p349, %p350
      %p353 = scmp.ne.s32.totalorder %s338, %s352
      %p354 = scmp.eq.s32.totalorder %s50, 0
      %p355 = por %p353, %p354
      %s357 = sadd.s32 %s356, 1
      %p360 = scmp.eq.s32.totalorder %s44, 1
      %p361 = scmp.ne.s32.totalorder %s356, %s358
      %p362 = scmp.eq.s32.totalorder %s44, 0
      %p363 = por %p361, %p362
      %p364 = scmp.ne.s32.totalorder %s356, %s358
      %p365 = scmp.eq.s32.totalorder %s49, 1
      %p366 = por %p364, %p365
      %p367 = scmp.ne.s32.totalorder %s358, %s359
      %p368 = scmp.eq.s32.totalorder %s49, 0
      %p369 = por %p367, %p368
      %p370 = scmp.ne.s32.totalorder %s358, %s359
      %p371 = scmp.eq.s32.totalorder %s50, 1
      %p372 = por %p370, %p371
      %p374 = scmp.ne.s32.totalorder %s359, %s373
      %p375 = scmp.eq.s32.totalorder %s50, 0
      %p376 = por %p374, %p375
      %s378 = sadd.s32 %s377, 1
      %p381 = scmp.eq.s32.totalorder %s44, 1
      %p382 = scmp.ne.s32.totalorder %s377, %s379
      %p383 = scmp.eq.s32.totalorder %s44, 0
      %p384 = por %p382, %p383
      %p385 = scmp.ne.s32.totalorder %s377, %s379
      %p386 = scmp.eq.s32.totalorder %s49, 1
      %p387 = por %p385, %p386
      %p388 = scmp.ne.s32.totalorder %s379, %s380
      %p389 = scmp.eq.s32.totalorder %s49, 0
      %p390 = por %p388, %p389
      %p391 = scmp.ne.s32.totalorder %s379, %s380
      %p392 = scmp.eq.s32.totalorder %s50, 1
      %p393 = por %p391, %p392
      %p395 = scmp.ne.s32.totalorder %s380, %s394
      %p396 = scmp.eq.s32.totalorder %s50, 0
      %p397 = por %p395, %p396
      %s399 = sadd.s32 %s398, 1
      %p402 = scmp.eq.s32.totalorder %s44, 1
      %p403 = scmp.ne.s32.totalorder %s398, %s400
      %p404 = scmp.eq.s32.totalorder %s44, 0
      %p405 = por %p403, %p404
      %p406 = scmp.ne.s32.totalorder %s398, %s400
      %p407 = scmp.eq.s32.totalorder %s49, 1
      %p408 = por %p406, %p407
      %p409 = scmp.ne.s32.totalorder %s400, %s401
      %p410 = scmp.eq.s32.totalorder %s49, 0
      %p411 = por %p409, %p410
      %p412 = scmp.ne.s32.totalorder %s400, %s401
      %p413 = scmp.eq.s32.totalorder %s50, 1
      %p414 = por %p412, %p413
      %p416 = scmp.ne.s32.totalorder %s401, %s415
      %p417 = scmp.eq.s32.totalorder %s50, 0
      %p418 = por %p416, %p417
      %s420 = sadd.s32 %s419, 1
      %p423 = scmp.eq.s32.totalorder %s44, 1
      %p424 = scmp.ne.s32.totalorder %s419, %s421
      %p425 = scmp.eq.s32.totalorder %s44, 0
      %p426 = por %p424, %p425
      %p427 = scmp.ne.s32.totalorder %s419, %s421
      %p428 = scmp.eq.s32.totalorder %s49, 1
      %p429 = por %p427, %p428
      %p430 = scmp.ne.s32.totalorder %s421, %s422
      %p431 = scmp.eq.s32.totalorder %s49, 0
      %p432 = por %p430, %p431
      %p433 = scmp.ne.s32.totalorder %s421, %s422
      %p434 = scmp.eq.s32.totalorder %s50, 1
      %p435 = por %p433, %p434
      %p437 = scmp.ne.s32.totalorder %s422, %s436
      %p438 = scmp.eq.s32.totalorder %s50, 0
      %p439 = por %p437, %p438
      %s441 = sadd.s32 %s440, 1
      %p444 = scmp.eq.s32.totalorder %s44, 1
      %p445 = scmp.ne.s32.totalorder %s440, %s442
      %p446 = scmp.eq.s32.totalorder %s44, 0
      %p447 = por %p445, %p446
      %p448 = scmp.ne.s32.totalorder %s440, %s442
      %p449 = scmp.eq.s32.totalorder %s49, 1
      %p450 = por %p448, %p449
      %p451 = scmp.ne.s32.totalorder %s442, %s443
      %p452 = scmp.eq.s32.totalorder %s49, 0
      %p453 = por %p451, %p452
      %p454 = scmp.ne.s32.totalorder %s442, %s443
      %p455 = scmp.eq.s32.totalorder %s50, 1
      %p456 = por %p454, %p455
      %p458 = scmp.ne.s32.totalorder %s443, %s457
      %p459 = scmp.eq.s32.totalorder %s50, 0
      %p460 = por %p458, %p459
      %s462 = sadd.s32 %s461, 1
      %p465 = scmp.eq.s32.totalorder %s44, 1
      %p466 = scmp.ne.s32.totalorder %s461, %s463
      %p467 = scmp.eq.s32.totalorder %s44, 0
      %p468 = por %p466, %p467
      %p469 = scmp.ne.s32.totalorder %s461, %s463
      %p470 = scmp.eq.s32.totalorder %s49, 1
      %p471 = por %p469, %p470
      %p472 = scmp.ne.s32.totalorder %s463, %s464
      %p473 = scmp.eq.s32.totalorder %s49, 0
      %p474 = por %p472, %p473
      %p475 = scmp.ne.s32.totalorder %s463, %s464
      %p476 = scmp.eq.s32.totalorder %s50, 1
      %p477 = por %p475, %p476
      %p479 = scmp.ne.s32.totalorder %s464, %s478
      %p480 = scmp.eq.s32.totalorder %s50, 0
      %p481 = por %p479, %p480
      %s482 = ssub.s32 %s44, %s51
      %p483 = scmp.eq.s32.totalorder %s482, 0
      %s485 = sadd.s32 %s484, 1
      %s486 = scalar_select %p483, %s484, %s485
      %p489 = pneg %p483
      %p490 = scmp.eq.s32.totalorder %s44, 1
      %p491 = por %p489, %p490
      %p492 = scmp.ne.s32.totalorder %s484, %s487
      %p493 = scmp.eq.s32.totalorder %s44, 0
      %p494 = por %p492, %p493
      %p495 = scmp.ne.s32.totalorder %s484, %s487
      %p496 = scmp.eq.s32.totalorder %s49, 1
      %p497 = por %p495, %p496
      %p498 = scmp.ne.s32.totalorder %s487, %s488
      %p499 = scmp.eq.s32.totalorder %s49, 0
      %p500 = por %p498, %p499
      %p501 = scmp.ne.s32.totalorder %s487, %s488
      %p502 = scmp.eq.s32.totalorder %s50, 1
      %p503 = por %p501, %p502
      %p505 = scmp.ne.s32.totalorder %s488, %s504
      %p506 = scmp.eq.s32.totalorder %s50, 0
      %p507 = por %p505, %p506
      %p508 = scmp.le.s32.totalorder 1, %s44
      %p509 = scmp.lt.s32.totalorder %s44, 3
      %p510 = pnand %p508, %p509
      %p511 = pneg %p510
      // Predicated region
      $region9: #{tpu_custom_call.1} parent=5 // pred_check
        _
      $region10: #{tpu_custom_call.1} parent=5 // pred_check_branch
        %513 = sbr.rel (%p510) target = $region12
      $region11: #{tpu_custom_call.1} parent=5 // pred_region
        %s514 = ssub.s32 %s44, 1
        // Predicated region
        $region13: #{tpu_custom_call.1} parent=11 // pred_check
          %p515 = pneg %p117
        $region14: #{tpu_custom_call.1} parent=11 // pred_check_branch
          %517 = sbr.rel (%p515) target = $region16
        $region15: #{tpu_custom_call.1} parent=11 // pred_region
          %s519 = ssub.s32 512, 512
          %520 = vsyncadd [#allocation6], %s519
          %s521 = sshll.u32 [#allocation7], 4
          %s522 = int_to_ptr.vmem [resolvable:$true] %s521
          %527 = dma.hbm_to_vmem [thread:$0]  %s2, 512, %s522, [#allocation6], 64, 64, 4
        $region16: #{tpu_custom_call.1} parent=11 // pred_fallthru
          _
        // Predicated region
        $region17: #{tpu_custom_call.1} parent=11 // pred_check
          %p528 = pneg %p138
        $region18: #{tpu_custom_call.1} parent=11 // pred_check_branch
          %530 = sbr.rel (%p528) target = $region20
        $region19: #{tpu_custom_call.1} parent=11 // pred_region
          %s532 = ssub.s32 16, 16
          %533 = vsyncadd [#allocation9], %s532
          %s535 = sshll.u32 [#allocation8], 4
          %s536 = int_to_ptr.vmem [resolvable:$true] %s535
          %538 = dma.hbm_to_vmem [thread:$0]  %s3, 16, %s536, [#allocation9]
        $region20: #{tpu_custom_call.1} parent=11 // pred_fallthru
          _
        // Predicated region
        $region21: #{tpu_custom_call.1} parent=11 // pred_check
          %p539 = pneg %p159
        $region22: #{tpu_custom_call.1} parent=11 // pred_check_branch
          %541 = sbr.rel (%p539) target = $region24
        $region23: #{tpu_custom_call.1} parent=11 // pred_region
          %s543 = ssub.s32 512, 512
          %544 = vsyncadd [#allocation9], %s543
          %s545 = sshll.u32 [#allocation10], 4
          %s546 = int_to_ptr.vmem [resolvable:$true] %s545
          %551 = dma.hbm_to_vmem [thread:$0]  %s4, 512, %s546, [#allocation9], 64, 64, 4
        $region24: #{tpu_custom_call.1} parent=11 // pred_fallthru
          _
        // Predicated region
        $region25: #{tpu_custom_call.1} parent=11 // pred_check
          %p552 = pneg %p180
        $region26: #{tpu_custom_call.1} parent=11 // pred_check_branch
          %554 = sbr.rel (%p552) target = $region28
        $region27: #{tpu_custom_call.1} parent=11 // pred_region
          %s556 = ssub.s32 16, 16
          %557 = vsyncadd [#allocation12], %s556
          %s559 = sshll.u32 [#allocation11], 4
          %s560 = int_to_ptr.vmem [resolvable:$true] %s559
          %562 = dma.hbm_to_vmem [thread:$0]  %s5, 16, %s560, [#allocation12]
        $region28: #{tpu_custom_call.1} parent=11 // pred_fallthru
          _
        // Predicated region
        $region29: #{tpu_custom_call.1} parent=11 // pred_check
          %p563 = pneg %p201
        $region30: #{tpu_custom_call.1} parent=11 // pred_check_branch
          %565 = sbr.rel (%p563) target = $region32
        $region31: #{tpu_custom_call.1} parent=11 // pred_region
          %s567 = ssub.s32 512, 512
          %568 = vsyncadd [#allocation12], %s567
          %s569 = sshll.u32 [#allocation13], 4
          %s570 = int_to_ptr.vmem [resolvable:$true] %s569
          %575 = dma.hbm_to_vmem [thread:$0]  %s6, 512, %s570, [#allocation12], 64, 64, 4
        $region32: #{tpu_custom_call.1} parent=11 // pred_fallthru
          _
        // Predicated region
        $region33: #{tpu_custom_call.1} parent=11 // pred_check
          %p576 = pneg %p222
        $region34: #{tpu_custom_call.1} parent=11 // pred_check_branch
          %578 = sbr.rel (%p576) target = $region36
        $region35: #{tpu_custom_call.1} parent=11 // pred_region
          %s580 = ssub.s32 16, 16
          %581 = vsyncadd [#allocation15], %s580
          %s583 = sshll.u32 [#allocation14], 4
          %s584 = int_to_ptr.vmem [resolvable:$true] %s583
          %586 = dma.hbm_to_vmem [thread:$0]  %s7, 16, %s584, [#allocation15]
        $region36: #{tpu_custom_call.1} parent=11 // pred_fallthru
          _
        // Predicated region
        $region37: #{tpu_custom_call.1} parent=11 // pred_check
          %p587 = pneg %p243
        $region38: #{tpu_custom_call.1} parent=11 // pred_check_branch
          %589 = sbr.rel (%p587) target = $region40
        $region39: #{tpu_custom_call.1} parent=11 // pred_region
          %s591 = ssub.s32 512, 512
          %592 = vsyncadd [#allocation15], %s591
          %s593 = sshll.u32 [#allocation16], 4
          %s594 = int_to_ptr.vmem [resolvable:$true] %s593
          %599 = dma.hbm_to_vmem [thread:$0]  %s8, 512, %s594, [#allocation15], 64, 64, 4
        $region40: #{tpu_custom_call.1} parent=11 // pred_fallthru
          _
        // Predicated region
        $region41: #{tpu_custom_call.1} parent=11 // pred_check
          %p600 = pneg %p264
        $region42: #{tpu_custom_call.1} parent=11 // pred_check_branch
          %602 = sbr.rel (%p600) target = $region44
        $region43: #{tpu_custom_call.1} parent=11 // pred_region
          %s604 = ssub.s32 512, 512
          %605 = vsyncadd [#allocation18], %s604
          %s606 = sshll.u32 [#allocation17], 4
          %s607 = int_to_ptr.vmem [resolvable:$true] %s606
          %612 = dma.hbm_to_vmem [thread:$0]  %s9, 512, %s607, [#allocation18], 64, 64, 4
        $region44: #{tpu_custom_call.1} parent=11 // pred_fallthru
          _
        // Predicated region
        $region45: #{tpu_custom_call.1} parent=11 // pred_check
          %p613 = pneg %p285
        $region46: #{tpu_custom_call.1} parent=11 // pred_check_branch
          %615 = sbr.rel (%p613) target = $region48
        $region47: #{tpu_custom_call.1} parent=11 // pred_region
          %s617 = ssub.s32 16, 16
          %618 = vsyncadd [#allocation18], %s617
          %s620 = sshll.u32 [#allocation19], 4
          %s621 = int_to_ptr.vmem [resolvable:$true] %s620
          %623 = dma.hbm_to_vmem [thread:$0]  %s10, 16, %s621, [#allocation18]
        $region48: #{tpu_custom_call.1} parent=11 // pred_fallthru
          _
        // Predicated region
        $region49: #{tpu_custom_call.1} parent=11 // pred_check
          %p624 = pneg %p306
        $region50: #{tpu_custom_call.1} parent=11 // pred_check_branch
          %626 = sbr.rel (%p624) target = $region52
        $region51: #{tpu_custom_call.1} parent=11 // pred_region
          %s628 = ssub.s32 16, 16
          %629 = vsyncadd [#allocation21], %s628
          %s631 = sshll.u32 [#allocation20], 4
          %s632 = int_to_ptr.vmem [resolvable:$true] %s631
          %634 = dma.hbm_to_vmem [thread:$0]  %s11, 16, %s632, [#allocation21]
        $region52: #{tpu_custom_call.1} parent=11 // pred_fallthru
          _
        // Predicated region
        $region53: #{tpu_custom_call.1} parent=11 // pred_check
          %p635 = pneg %p327
        $region54: #{tpu_custom_call.1} parent=11 // pred_check_branch
          %637 = sbr.rel (%p635) target = $region56
        $region55: #{tpu_custom_call.1} parent=11 // pred_region
          %s639 = ssub.s32 16, 16
          %640 = vsyncadd [#allocation21], %s639
          %s642 = sshll.u32 [#allocation22], 4
          %s643 = int_to_ptr.vmem [resolvable:$true] %s642
          %645 = dma.hbm_to_vmem [thread:$0]  %s12, 16, %s643, [#allocation21]
        $region56: #{tpu_custom_call.1} parent=11 // pred_fallthru
          _
        // Predicated region
        $region57: #{tpu_custom_call.1} parent=11 // pred_check
          %p646 = pneg %p348
        $region58: #{tpu_custom_call.1} parent=11 // pred_check_branch
          %648 = sbr.rel (%p646) target = $region60
        $region59: #{tpu_custom_call.1} parent=11 // pred_region
          %s650 = ssub.s32 512, 512
          %651 = vsyncadd [#allocation24], %s650
          %s652 = sshll.u32 [#allocation23], 4
          %s653 = int_to_ptr.vmem [resolvable:$true] %s652
          %658 = dma.hbm_to_vmem [thread:$0]  %s13, 512, %s653, [#allocation24], 64, 64, 4
        $region60: #{tpu_custom_call.1} parent=11 // pred_fallthru
          _
        // Predicated region
        $region61: #{tpu_custom_call.1} parent=11 // pred_check
          %p659 = pneg %p369
        $region62: #{tpu_custom_call.1} parent=11 // pred_check_branch
          %661 = sbr.rel (%p659) target = $region64
        $region63: #{tpu_custom_call.1} parent=11 // pred_region
          %s663 = ssub.s32 16, 16
          %664 = vsyncadd [#allocation24], %s663
          %s666 = sshll.u32 [#allocation25], 4
          %s667 = int_to_ptr.vmem [resolvable:$true] %s666
          %669 = dma.hbm_to_vmem [thread:$0]  %s14, 16, %s667, [#allocation24]
        $region64: #{tpu_custom_call.1} parent=11 // pred_fallthru
          _
        // Predicated region
        $region65: #{tpu_custom_call.1} parent=11 // pred_check
          %p670 = pneg %p390
        $region66: #{tpu_custom_call.1} parent=11 // pred_check_branch
          %672 = sbr.rel (%p670) target = $region68
        $region67: #{tpu_custom_call.1} parent=11 // pred_region
          %s674 = ssub.s32 512, 512
          %675 = vsyncadd [#allocation27], %s674
          %s676 = sshll.u32 [#allocation26], 4
          %s677 = int_to_ptr.vmem [resolvable:$true] %s676
          %682 = dma.hbm_to_vmem [thread:$0]  %s15, 512, %s677, [#allocation27], 64, 64, 4
        $region68: #{tpu_custom_call.1} parent=11 // pred_fallthru
          _
        // Predicated region
        $region69: #{tpu_custom_call.1} parent=11 // pred_check
          %p683 = pneg %p411
        $region70: #{tpu_custom_call.1} parent=11 // pred_check_branch
          %685 = sbr.rel (%p683) target = $region72
        $region71: #{tpu_custom_call.1} parent=11 // pred_region
          %s687 = ssub.s32 16, 16
          %688 = vsyncadd [#allocation27], %s687
          %s690 = sshll.u32 [#allocation28], 4
          %s691 = int_to_ptr.vmem [resolvable:$true] %s690
          %693 = dma.hbm_to_vmem [thread:$0]  %s16, 16, %s691, [#allocation27]
        $region72: #{tpu_custom_call.1} parent=11 // pred_fallthru
          _
        // Predicated region
        $region73: #{tpu_custom_call.1} parent=11 // pred_check
          %p694 = pneg %p432
        $region74: #{tpu_custom_call.1} parent=11 // pred_check_branch
          %696 = sbr.rel (%p694) target = $region76
        $region75: #{tpu_custom_call.1} parent=11 // pred_region
          %s698 = ssub.s32 512, 512
          %699 = vsyncadd [#allocation30], %s698
          %s700 = sshll.u32 [#allocation29], 4
          %s701 = int_to_ptr.vmem [resolvable:$true] %s700
          %706 = dma.hbm_to_vmem [thread:$0]  %s17, 512, %s701, [#allocation30], 64, 64, 4
        $region76: #{tpu_custom_call.1} parent=11 // pred_fallthru
          _
        // Predicated region
        $region77: #{tpu_custom_call.1} parent=11 // pred_check
          %p707 = pneg %p453
        $region78: #{tpu_custom_call.1} parent=11 // pred_check_branch
          %709 = sbr.rel (%p707) target = $region80
        $region79: #{tpu_custom_call.1} parent=11 // pred_region
          %s711 = ssub.s32 512, 512
          %712 = vsyncadd [#allocation30], %s711
          %s713 = sshll.u32 [#allocation31], 4
          %s714 = int_to_ptr.vmem [resolvable:$true] %s713
          %719 = dma.hbm_to_vmem [thread:$0]  %s18, 512, %s714, [#allocation30], 64, 64, 4
        $region80: #{tpu_custom_call.1} parent=11 // pred_fallthru
          _
        // Predicated region
        $region81: #{tpu_custom_call.1} parent=11 // pred_check
          %p720 = pneg %p474
        $region82: #{tpu_custom_call.1} parent=11 // pred_check_branch
          %722 = sbr.rel (%p720) target = $region84
        $region83: #{tpu_custom_call.1} parent=11 // pred_region
          %s724 = ssub.s32 16, 16
          %725 = vsyncadd [#allocation33], %s724
          %s727 = sshll.u32 [#allocation32], 4
          %s728 = int_to_ptr.vmem [resolvable:$true] %s727
          %730 = dma.hbm_to_vmem [thread:$0]  %s19, 16, %s728, [#allocation33]
        $region84: #{tpu_custom_call.1} parent=11 // pred_fallthru
          _
      $region12: #{tpu_custom_call.1} parent=5 // pred_fallthru
        _
      %p731 = scmp.lt.s32.totalorder %s44, 2
      // Predicated region
      $region85: #{tpu_custom_call.1} parent=5 // pred_check
        %p732 = pneg %p731
      $region86: #{tpu_custom_call.1} parent=5 // pred_check_branch
        %734 = sbr.rel (%p732) target = $region88
      $region87: #{tpu_custom_call.1} parent=5 // pred_region
        // Predicated region
        $region89: #{tpu_custom_call.1} parent=87 // pred_check
          %p735 = pneg %p64
        $region90: #{tpu_custom_call.1} parent=87 // pred_check_branch
          %737 = sbr.rel (%p735) target = $region92
        $region91: #{tpu_custom_call.1} parent=87 // pred_region
          %s738 = sand.u32 %s54, 1
          %s739 = scalar_lea.sflag [#allocation3], %s738
          %s740 = sand.u32 %s54, 1
          %s741 = smul.addr %s740, 8
          %s742 = scalar_lea.vmem [#allocation2], %s741
          %s744 = ssub.s32 128, 128
          %745 = vsyncadd %s739, %s744
          %s746 = smul.addr %s44, 128
          %s747 = scalar_lea.hbm %s0, %s746
          %s749 = sshll.u32 %s742, 4
          %s750 = int_to_ptr.vmem [resolvable:$true] %s749
          %752 = dma.hbm_to_vmem [thread:$0]  %s747, 128, %s750, %s739
        $region92: #{tpu_custom_call.1} parent=87 // pred_fallthru
          _
        // Predicated region
        $region93: #{tpu_custom_call.1} parent=87 // pred_check
          %p753 = pneg %p90
        $region94: #{tpu_custom_call.1} parent=87 // pred_check_branch
          %755 = sbr.rel (%p753) target = $region96
        $region95: #{tpu_custom_call.1} parent=87 // pred_region
          %s756 = sand.u32 %s44, 1
          %s757 = scalar_lea.sflag [#allocation6], %s756
          %s758 = sand.u32 %s80, 1
          %s759 = smul.addr %s758, 8
          %s760 = scalar_lea.vmem [#allocation5], %s759
          %s762 = ssub.s32 128, 128
          %763 = vsyncadd %s757, %s762
          %s764 = smul.addr %s44, 128
          %s765 = scalar_lea.hbm %s1, %s764
          %s767 = sshll.u32 %s760, 4
          %s768 = int_to_ptr.vmem [resolvable:$true] %s767
          %770 = dma.hbm_to_vmem [thread:$0]  %s765, 128, %s768, %s757
        $region96: #{tpu_custom_call.1} parent=87 // pred_fallthru
          _
      $region88: #{tpu_custom_call.1} parent=5 // pred_fallthru
        _
      %p771 = scmp.le.s32.totalorder 1, %s44
      %p772 = scmp.lt.s32.totalorder %s44, 3
      %p773 = pnand %p771, %p772
      %p774 = pneg %p773
      // Predicated region
      $region97: #{tpu_custom_call.1} parent=5 // pred_check
        _
      $region98: #{tpu_custom_call.1} parent=5 // pred_check_branch
        %776 = sbr.rel (%p773) target = $region100
      $region99: #{tpu_custom_call.1} parent=5 // pred_region
        %s777 = ssub.s32 %s44, 1
        %s778 = sand.u32 %s57, 1
        %s779 = scalar_lea.sflag [#allocation3], %s778
        %s780 = sand.u32 %s57, 1
        %s781 = smul.addr %s780, 8
        %s782 = scalar_lea.vmem [#allocation2], %s781
        // Predicated region
        $region101: #{tpu_custom_call.1} parent=99 // pred_check
          %p783 = pneg %p70
        $region102: #{tpu_custom_call.1} parent=99 // pred_check_branch
          %785 = sbr.rel (%p783) target = $region104
        $region103: #{tpu_custom_call.1} parent=99 // pred_region
          %786 = dma.done %s779, 128
        $region104: #{tpu_custom_call.1} parent=99 // pred_fallthru
          _
        %s787 = sand.u32 %s49, 1
        %s788 = scalar_lea.sflag [#allocation6], %s787
        %s789 = sand.u32 %s83, 1
        %s790 = smul.addr %s789, 8
        %s791 = scalar_lea.vmem [#allocation5], %s790
        // Predicated region
        $region105: #{tpu_custom_call.1} parent=99 // pred_check
          %p792 = pneg %p96
        $region106: #{tpu_custom_call.1} parent=99 // pred_check_branch
          %794 = sbr.rel (%p792) target = $region108
        $region107: #{tpu_custom_call.1} parent=99 // pred_region
          %795 = dma.done %s788, 128
        $region108: #{tpu_custom_call.1} parent=99 // pred_fallthru
          _
        // Predicated region
        $region109: #{tpu_custom_call.1} parent=99 // pred_check
          %p796 = pneg %p117
        $region110: #{tpu_custom_call.1} parent=99 // pred_check_branch
          %798 = sbr.rel (%p796) target = $region112
        $region111: #{tpu_custom_call.1} parent=99 // pred_region
          %799 = dma.done [#allocation6], 512
        $region112: #{tpu_custom_call.1} parent=99 // pred_fallthru
          _
        // Predicated region
        $region113: #{tpu_custom_call.1} parent=99 // pred_check
          %p800 = pneg %p138
        $region114: #{tpu_custom_call.1} parent=99 // pred_check_branch
          %802 = sbr.rel (%p800) target = $region116
        $region115: #{tpu_custom_call.1} parent=99 // pred_region
          %803 = dma.done [#allocation9], 16
        $region116: #{tpu_custom_call.1} parent=99 // pred_fallthru
          _
        // Predicated region
        $region117: #{tpu_custom_call.1} parent=99 // pred_check
          %p804 = pneg %p159
        $region118: #{tpu_custom_call.1} parent=99 // pred_check_branch
          %806 = sbr.rel (%p804) target = $region120
        $region119: #{tpu_custom_call.1} parent=99 // pred_region
          %807 = dma.done [#allocation9], 512
        $region120: #{tpu_custom_call.1} parent=99 // pred_fallthru
          _
        // Predicated region
        $region121: #{tpu_custom_call.1} parent=99 // pred_check
          %p808 = pneg %p180
        $region122: #{tpu_custom_call.1} parent=99 // pred_check_branch
          %810 = sbr.rel (%p808) target = $region124
        $region123: #{tpu_custom_call.1} parent=99 // pred_region
          %811 = dma.done [#allocation12], 16
        $region124: #{tpu_custom_call.1} parent=99 // pred_fallthru
          _
        // Predicated region
        $region125: #{tpu_custom_call.1} parent=99 // pred_check
          %p812 = pneg %p201
        $region126: #{tpu_custom_call.1} parent=99 // pred_check_branch
          %814 = sbr.rel (%p812) target = $region128
        $region127: #{tpu_custom_call.1} parent=99 // pred_region
          %815 = dma.done [#allocation12], 512
        $region128: #{tpu_custom_call.1} parent=99 // pred_fallthru
          _
        // Predicated region
        $region129: #{tpu_custom_call.1} parent=99 // pred_check
          %p816 = pneg %p222
        $region130: #{tpu_custom_call.1} parent=99 // pred_check_branch
          %818 = sbr.rel (%p816) target = $region132
        $region131: #{tpu_custom_call.1} parent=99 // pred_region
          %819 = dma.done [#allocation15], 16
        $region132: #{tpu_custom_call.1} parent=99 // pred_fallthru
          _
        // Predicated region
        $region133: #{tpu_custom_call.1} parent=99 // pred_check
          %p820 = pneg %p243
        $region134: #{tpu_custom_call.1} parent=99 // pred_check_branch
          %822 = sbr.rel (%p820) target = $region136
        $region135: #{tpu_custom_call.1} parent=99 // pred_region
          %823 = dma.done [#allocation15], 512
        $region136: #{tpu_custom_call.1} parent=99 // pred_fallthru
          _
        // Predicated region
        $region137: #{tpu_custom_call.1} parent=99 // pred_check
          %p824 = pneg %p264
        $region138: #{tpu_custom_call.1} parent=99 // pred_check_branch
          %826 = sbr.rel (%p824) target = $region140
        $region139: #{tpu_custom_call.1} parent=99 // pred_region
          %827 = dma.done [#allocation18], 512
        $region140: #{tpu_custom_call.1} parent=99 // pred_fallthru
          _
        // Predicated region
        $region141: #{tpu_custom_call.1} parent=99 // pred_check
          %p828 = pneg %p285
        $region142: #{tpu_custom_call.1} parent=99 // pred_check_branch
          %830 = sbr.rel (%p828) target = $region144
        $region143: #{tpu_custom_call.1} parent=99 // pred_region
          %831 = dma.done [#allocation18], 16
        $region144: #{tpu_custom_call.1} parent=99 // pred_fallthru
          _
        // Predicated region
        $region145: #{tpu_custom_call.1} parent=99 // pred_check
          %p832 = pneg %p306
        $region146: #{tpu_custom_call.1} parent=99 // pred_check_branch
          %834 = sbr.rel (%p832) target = $region148
        $region147: #{tpu_custom_call.1} parent=99 // pred_region
          %835 = dma.done [#allocation21], 16
        $region148: #{tpu_custom_call.1} parent=99 // pred_fallthru
          _
        // Predicated region
        $region149: #{tpu_custom_call.1} parent=99 // pred_check
          %p836 = pneg %p327
        $region150: #{tpu_custom_call.1} parent=99 // pred_check_branch
          %838 = sbr.rel (%p836) target = $region152
        $region151: #{tpu_custom_call.1} parent=99 // pred_region
          %839 = dma.done [#allocation21], 16
        $region152: #{tpu_custom_call.1} parent=99 // pred_fallthru
          _
        // Predicated region
        $region153: #{tpu_custom_call.1} parent=99 // pred_check
          %p840 = pneg %p348
        $region154: #{tpu_custom_call.1} parent=99 // pred_check_branch
          %842 = sbr.rel (%p840) target = $region156
        $region155: #{tpu_custom_call.1} parent=99 // pred_region
          %843 = dma.done [#allocation24], 512
        $region156: #{tpu_custom_call.1} parent=99 // pred_fallthru
          _
        // Predicated region
        $region157: #{tpu_custom_call.1} parent=99 // pred_check
          %p844 = pneg %p369
        $region158: #{tpu_custom_call.1} parent=99 // pred_check_branch
          %846 = sbr.rel (%p844) target = $region160
        $region159: #{tpu_custom_call.1} parent=99 // pred_region
          %847 = dma.done [#allocation24], 16
        $region160: #{tpu_custom_call.1} parent=99 // pred_fallthru
          _
        // Predicated region
        $region161: #{tpu_custom_call.1} parent=99 // pred_check
          %p848 = pneg %p390
        $region162: #{tpu_custom_call.1} parent=99 // pred_check_branch
          %850 = sbr.rel (%p848) target = $region164
        $region163: #{tpu_custom_call.1} parent=99 // pred_region
          %851 = dma.done [#allocation27], 512
        $region164: #{tpu_custom_call.1} parent=99 // pred_fallthru
          _
        // Predicated region
        $region165: #{tpu_custom_call.1} parent=99 // pred_check
          %p852 = pneg %p411
        $region166: #{tpu_custom_call.1} parent=99 // pred_check_branch
          %854 = sbr.rel (%p852) target = $region168
        $region167: #{tpu_custom_call.1} parent=99 // pred_region
          %855 = dma.done [#allocation27], 16
        $region168: #{tpu_custom_call.1} parent=99 // pred_fallthru
          _
        // Predicated region
        $region169: #{tpu_custom_call.1} parent=99 // pred_check
          %p856 = pneg %p432
        $region170: #{tpu_custom_call.1} parent=99 // pred_check_branch
          %858 = sbr.rel (%p856) target = $region172
        $region171: #{tpu_custom_call.1} parent=99 // pred_region
          %859 = dma.done [#allocation30], 512
        $region172: #{tpu_custom_call.1} parent=99 // pred_fallthru
          _
        // Predicated region
        $region173: #{tpu_custom_call.1} parent=99 // pred_check
          %p860 = pneg %p453
        $region174: #{tpu_custom_call.1} parent=99 // pred_check_branch
          %862 = sbr.rel (%p860) target = $region176
        $region175: #{tpu_custom_call.1} parent=99 // pred_region
          %863 = dma.done [#allocation30], 512
        $region176: #{tpu_custom_call.1} parent=99 // pred_fallthru
          _
        // Predicated region
        $region177: #{tpu_custom_call.1} parent=99 // pred_check
          %p864 = pneg %p474
        $region178: #{tpu_custom_call.1} parent=99 // pred_check_branch
          %866 = sbr.rel (%p864) target = $region180
        $region179: #{tpu_custom_call.1} parent=99 // pred_region
          %867 = dma.done [#allocation33], 16
        $region180: #{tpu_custom_call.1} parent=99 // pred_fallthru
          _
        %s868 = sand.u32 %s57, 1
        %s869 = scalar_lea.sflag [#allocation3], %s868
        %s870 = sand.u32 %s57, 1
        %s871 = smul.addr %s870, 8
        %s872 = scalar_lea.vmem [#allocation2], %s871
        %p873 = pneg %p70
        %p874 = pneg %p67
        %s875 = sand.u32 %s49, 1
        %s876 = scalar_lea.sflag [#allocation6], %s875
        %s877 = sand.u32 %s83, 1
        %s878 = smul.addr %s877, 8
        %s879 = scalar_lea.vmem [#allocation5], %s878
        %p880 = pneg %p96
        %p881 = pneg %p93
        %p882 = pneg %p117
        %p883 = pneg %p114
        %p884 = pneg %p138
        %p885 = pneg %p135
        %p886 = pneg %p159
        %p887 = pneg %p156
        %p888 = pneg %p180
        %p889 = pneg %p177
        %p890 = pneg %p201
        %p891 = pneg %p198
        %p892 = pneg %p222
        %p893 = pneg %p219
        %p894 = pneg %p243
        %p895 = pneg %p240
        %p896 = pneg %p264
        %p897 = pneg %p261
        %p898 = pneg %p285
        %p899 = pneg %p282
        %p900 = pneg %p306
        %p901 = pneg %p303
        %p902 = pneg %p327
        %p903 = pneg %p324
        %p904 = pneg %p348
        %p905 = pneg %p345
        %p906 = pneg %p369
        %p907 = pneg %p366
        %p908 = pneg %p390
        %p909 = pneg %p387
        %p910 = pneg %p411
        %p911 = pneg %p408
        %p912 = pneg %p432
        %p913 = pneg %p429
        %p914 = pneg %p453
        %p915 = pneg %p450
        %p916 = pneg %p474
        %p917 = pneg %p471
        %p918 = pneg %p500
        %p919 = pneg %p497
        %s920 = sand.u32 %s487, 1
        %s921 = scalar_lea.sflag [#allocation4], %s920
        %s922 = sand.u32 %s487, 1
        %s923 = smul.addr %s922, 8
        %s924 = scalar_lea.vmem [#allocation34], %s923
        %v926 = vld [vmem:[%s782] sm:$0xff]
        %v927 = vld [vmem:[%s791] sm:$0xff]
        %v928 = vpack.c.bf16 %v926, %v926
        %v929 = vpack.c.bf16 %v927, %v927
        %v930 = vld [vmem:[#allocation7] sm:$0xf]
        %v931 = vld [vmem:[#allocation7 + $0x4] sm:$0xf]
        %v932 = vld [vmem:[#allocation7 + $0x8] sm:$0xf]
        %v933 = vld [vmem:[#allocation7 + $0xc] sm:$0xf]
        %v934 = vld [vmem:[#allocation7 + $0x10] sm:$0xf]
        %v935 = vld [vmem:[#allocation7 + $0x14] sm:$0xf]
        %v936 = vld [vmem:[#allocation7 + $0x18] sm:$0xf]
        %v937 = vld [vmem:[#allocation7 + $0x1c] sm:$0xf]
        %v938 = vld [vmem:[#allocation8] sm:$0x1]
        %v940 = vlaneseq
        %v941 = vshrl.u32 %v940, 7
        %v942 = vsub.s32 0, %v941
        %v943 = vrot.slane %v938, %v942
        %v953 = vunpack.c.l.b16 %v930
        %v954 = vunpack.c.l.b16 %v931
        %v955 = vunpack.c.l.b16 %v932
        %v956 = vunpack.c.l.b16 %v933
        %v957 = vunpack.c.l.b16 %v934
        %v958 = vunpack.c.l.b16 %v935
        %v959 = vunpack.c.l.b16 %v936
        %v960 = vunpack.c.l.b16 %v937
        %v961 = vpack.c.b16 %v954, %v953
        %v962 = vpack.c.b16 %v956, %v955
        %v963 = vpack.c.b16 %v958, %v957
        %v964 = vpack.c.b16 %v960, %v959
        %vm969 = vcmask 523264
        %v971 = vsel %vm969, %v928, 0
        %973 = vmatprep.subr.bf16.mxu0 0
        %974 = vmatpush1.bf16.msra.mxu0 %v961
        %975 = vmatprep.subr.bf16.mxu0 0
        %976 = vmatpush1.bf16.msra.mxu0 %v962
        %977 = vmatprep.subr.bf16.mxu0 0
        %978 = vmatpush1.bf16.msra.mxu0 %v963
        %979 = vmatprep.subr.bf16.mxu0 0
        %980 = vmatpush1.bf16.msra.mxu0 %v964
        %981 = vmatprep.subr.bf16.mxu0 0
        %982 = vmatpush1.bf16.msra.mxu0 0
        %983 = vmatprep.subr.bf16.mxu0 0
        %984 = vmatpush1.bf16.msra.mxu0 0
        %985 = vmatprep.subr.bf16.mxu0 0
        %986 = vmatpush1.bf16.msra.mxu0 0
        %987 = vmatprep.subr.bf16.mxu0 0
        %988 = vmatpush1.bf16.msra.mxu0 0
        %989 = vmatprep.subr.bf16.mxu0 0
        %990 = vmatpush1.bf16.msra.mxu0 0
        %991 = vmatprep.subr.bf16.mxu0 0
        %992 = vmatpush1.bf16.msra.mxu0 0
        %993 = vmatprep.subr.bf16.mxu0 0
        %994 = vmatpush1.bf16.msra.mxu0 0
        %995 = vmatprep.subr.bf16.mxu0 0
        %996 = vmatpush1.bf16.msra.mxu0 0
        %997 = vmatprep.subr.bf16.mxu0 0
        %998 = vmatpush1.bf16.msra.mxu0 0
        %999 = vmatprep.subr.bf16.mxu0 0
        %1000 = vmatpush1.bf16.msra.mxu0 0
        %1001 = vmatprep.subr.bf16.mxu0 0
        %1002 = vmatpush1.bf16.msra.mxu0 0
        %1003 = vmatprep.subr.bf16.mxu0 0
        %1004 = vmatpush1.bf16.msra.mxu0 0
        %1005 = vmatprep.mubr.bf16.mxu0 0
        %1006 = vmatmul.mubr.bf16.gmra.mrb[0].mxu0 %v971
        %v1007 = vpop.f32.mrb[0].mxu0
        %v1008 = vadd.f32 %v943, %v1007
        %v1009 = vpop.f32.mrb[0].mxu0
        %v1010 = vpop.f32.mrb[0].mxu0
        %v1011 = vpop.f32.mrb[0].mxu0
        %1012 = vdwg.mxu0
        %v1013 = vld [vmem:[#allocation10] sm:$0xf]
        %v1014 = vld [vmem:[#allocation10 + $0x4] sm:$0xf]
        %v1015 = vld [vmem:[#allocation10 + $0x8] sm:$0xf]
        %v1016 = vld [vmem:[#allocation10 + $0xc] sm:$0xf]
        %v1017 = vld [vmem:[#allocation10 + $0x10] sm:$0xf]
        %v1018 = vld [vmem:[#allocation10 + $0x14] sm:$0xf]
        %v1019 = vld [vmem:[#allocation10 + $0x18] sm:$0xf]
        %v1020 = vld [vmem:[#allocation10 + $0x1c] sm:$0xf]
        %v1021 = vld [vmem:[#allocation11] sm:$0x1]
        %v1023 = vlaneseq
        %v1024 = vshrl.u32 %v1023, 7
        %v1025 = vsub.s32 0, %v1024
        %v1026 = vrot.slane %v1021, %v1025
        %v1036 = vunpack.c.l.b16 %v1013
        %v1037 = vunpack.c.l.b16 %v1014
        %v1038 = vunpack.c.l.b16 %v1015
        %v1039 = vunpack.c.l.b16 %v1016
        %v1040 = vunpack.c.l.b16 %v1017
        %v1041 = vunpack.c.l.b16 %v1018
        %v1042 = vunpack.c.l.b16 %v1019
        %v1043 = vunpack.c.l.b16 %v1020
        %v1044 = vpack.c.b16 %v1037, %v1036
        %v1045 = vpack.c.b16 %v1039, %v1038
        %v1046 = vpack.c.b16 %v1041, %v1040
        %v1047 = vpack.c.b16 %v1043, %v1042
        %v1053 = vsel %vm969, %v929, 0
        %1055 = vmatprep.subr.bf16.mxu0 0
        %1056 = vmatpush1.bf16.msra.mxu0 %v1044
        %1057 = vmatprep.subr.bf16.mxu0 0
        %1058 = vmatpush1.bf16.msra.mxu0 %v1045
        %1059 = vmatprep.subr.bf16.mxu0 0
        %1060 = vmatpush1.bf16.msra.mxu0 %v1046
        %1061 = vmatprep.subr.bf16.mxu0 0
        %1062 = vmatpush1.bf16.msra.mxu0 %v1047
        %1063 = vmatprep.subr.bf16.mxu0 0
        %1064 = vmatpush1.bf16.msra.mxu0 0
        %1065 = vmatprep.subr.bf16.mxu0 0
        %1066 = vmatpush1.bf16.msra.mxu0 0
        %1067 = vmatprep.subr.bf16.mxu0 0
        %1068 = vmatpush1.bf16.msra.mxu0 0
        %1069 = vmatprep.subr.bf16.mxu0 0
        %1070 = vmatpush1.bf16.msra.mxu0 0
        %1071 = vmatprep.subr.bf16.mxu0 0
        %1072 = vmatpush1.bf16.msra.mxu0 0
        %1073 = vmatprep.subr.bf16.mxu0 0
        %1074 = vmatpush1.bf16.msra.mxu0 0
        %1075 = vmatprep.subr.bf16.mxu0 0
        %1076 = vmatpush1.bf16.msra.mxu0 0
        %1077 = vmatprep.subr.bf16.mxu0 0
        %1078 = vmatpush1.bf16.msra.mxu0 0
        %1079 = vmatprep.subr.bf16.mxu0 0
        %1080 = vmatpush1.bf16.msra.mxu0 0
        %1081 = vmatprep.subr.bf16.mxu0 0
        %1082 = vmatpush1.bf16.msra.mxu0 0
        %1083 = vmatprep.subr.bf16.mxu0 0
        %1084 = vmatpush1.bf16.msra.mxu0 0
        %1085 = vmatprep.subr.bf16.mxu0 0
        %1086 = vmatpush1.bf16.msra.mxu0 0
        %1087 = vmatprep.mubr.bf16.mxu0 0
        %1088 = vmatmul.mubr.bf16.gmra.mrb[0].mxu0 %v1053
        %v1089 = vpop.f32.mrb[0].mxu0
        %v1090 = vadd.f32 %v1026, %v1089
        %v1091 = vpop.f32.mrb[0].mxu0
        %v1092 = vpop.f32.mrb[0].mxu0
        %v1093 = vpop.f32.mrb[0].mxu0
        %1094 = vdwg.mxu0
        %v1095 = vld [vmem:[#allocation13] sm:$0xf]
        %v1096 = vld [vmem:[#allocation13 + $0x4] sm:$0xf]
        %v1097 = vld [vmem:[#allocation13 + $0x8] sm:$0xf]
        %v1098 = vld [vmem:[#allocation13 + $0xc] sm:$0xf]
        %v1099 = vld [vmem:[#allocation13 + $0x10] sm:$0xf]
        %v1100 = vld [vmem:[#allocation13 + $0x14] sm:$0xf]
        %v1101 = vld [vmem:[#allocation13 + $0x18] sm:$0xf]
        %v1102 = vld [vmem:[#allocation13 + $0x1c] sm:$0xf]
        %v1103 = vld [vmem:[#allocation14] sm:$0x1]
        %v1105 = vlaneseq
        %v1106 = vshrl.u32 %v1105, 7
        %v1107 = vsub.s32 0, %v1106
        %v1108 = vrot.slane %v1103, %v1107
        %v1118 = vunpack.c.l.b16 %v1095
        %v1119 = vunpack.c.l.b16 %v1096
        %v1120 = vunpack.c.l.b16 %v1097
        %v1121 = vunpack.c.l.b16 %v1098
        %v1122 = vunpack.c.l.b16 %v1099
        %v1123 = vunpack.c.l.b16 %v1100
        %v1124 = vunpack.c.l.b16 %v1101
        %v1125 = vunpack.c.l.b16 %v1102
        %v1126 = vpack.c.b16 %v1119, %v1118
        %v1127 = vpack.c.b16 %v1121, %v1120
        %v1128 = vpack.c.b16 %v1123, %v1122
        %v1129 = vpack.c.b16 %v1125, %v1124
        %1134 = vmatprep.subr.bf16.mxu0 0
        %1135 = vmatpush1.bf16.msra.mxu0 %v1126
        %1136 = vmatprep.subr.bf16.mxu0 0
        %1137 = vmatpush1.bf16.msra.mxu0 %v1127
        %1138 = vmatprep.subr.bf16.mxu0 0
        %1139 = vmatpush1.bf16.msra.mxu0 %v1128
        %1140 = vmatprep.subr.bf16.mxu0 0
        %1141 = vmatpush1.bf16.msra.mxu0 %v1129
        %1142 = vmatprep.subr.bf16.mxu0 0
        %1143 = vmatpush1.bf16.msra.mxu0 0
        %1144 = vmatprep.subr.bf16.mxu0 0
        %1145 = vmatpush1.bf16.msra.mxu0 0
        %1146 = vmatprep.subr.bf16.mxu0 0
        %1147 = vmatpush1.bf16.msra.mxu0 0
        %1148 = vmatprep.subr.bf16.mxu0 0
        %1149 = vmatpush1.bf16.msra.mxu0 0
        %1150 = vmatprep.subr.bf16.mxu0 0
        %1151 = vmatpush1.bf16.msra.mxu0 0
        %1152 = vmatprep.subr.bf16.mxu0 0
        %1153 = vmatpush1.bf16.msra.mxu0 0
        %1154 = vmatprep.subr.bf16.mxu0 0
        %1155 = vmatpush1.bf16.msra.mxu0 0
        %1156 = vmatprep.subr.bf16.mxu0 0
        %1157 = vmatpush1.bf16.msra.mxu0 0
        %1158 = vmatprep.subr.bf16.mxu0 0
        %1159 = vmatpush1.bf16.msra.mxu0 0
        %1160 = vmatprep.subr.bf16.mxu0 0
        %1161 = vmatpush1.bf16.msra.mxu0 0
        %1162 = vmatprep.subr.bf16.mxu0 0
        %1163 = vmatpush1.bf16.msra.mxu0 0
        %1164 = vmatprep.subr.bf16.mxu0 0
        %1165 = vmatpush1.bf16.msra.mxu0 0
        %1166 = vmatprep.mubr.bf16.mxu0 0
        %1167 = vmatmul.mubr.bf16.gmra.mrb[0].mxu0 %v1053
        %v1168 = vpop.f32.mrb[0].mxu0
        %v1169 = vadd.f32 %v1108, %v1168
        %v1170 = vpop.f32.mrb[0].mxu0
        %v1171 = vpop.f32.mrb[0].mxu0
        %v1172 = vpop.f32.mrb[0].mxu0
        %1173 = vdwg.mxu0
        %v1174 = vmul.f32 %v1008, 0.125
        %vm1175 = vcmask 64512
        %v1177 = vsel %vm1175, %v1174, 0
        %v1180 = vsel %vm1175, %v1090, 0
        %1182 = vmatprep.subr.mxu0 0.0
        %1183 = vmatpush1.xpose.msra.mxu0 %v1180
        %1184 = vmatprep.subr.mxu0 0.0
        %1185 = vmatpush1.xpose.msra.mxu0 0.0
        %1186 = vmatprep.subr.mxu0 0.0
        %1187 = vmatpush1.xpose.msra.mxu0 0.0
        %1188 = vmatprep.subr.mxu0 0.0
        %1189 = vmatpush1.xpose.msra.mxu0 0.0
        %1190 = vmatprep.subr.mxu0 0.0
        %1191 = vmatpush1.xpose.msra.mxu0 0.0
        %1192 = vmatprep.subr.mxu0 0.0
        %1193 = vmatpush1.xpose.msra.mxu0 0.0
        %1194 = vmatprep.subr.mxu0 0.0
        %1195 = vmatpush1.xpose.msra.mxu0 0.0
        %1196 = vmatprep.subr.mxu0 0.0
        %1197 = vmatpush1.xpose.msra.mxu0 0.0
        %1198 = vmatprep.subr.mxu0 0.0
        %1199 = vmatpush1.xpose.msra.mxu0 0.0
        %1200 = vmatprep.subr.mxu0 0.0
        %1201 = vmatpush1.xpose.msra.mxu0 0.0
        %1202 = vmatprep.subr.mxu0 0.0
        %1203 = vmatpush1.xpose.msra.mxu0 0.0
        %1204 = vmatprep.subr.mxu0 0.0
        %1205 = vmatpush1.xpose.msra.mxu0 0.0
        %1206 = vmatprep.subr.mxu0 0.0
        %1207 = vmatpush1.xpose.msra.mxu0 0.0
        %1208 = vmatprep.subr.mxu0 0.0
        %1209 = vmatpush1.xpose.msra.mxu0 0.0
        %1210 = vmatprep.subr.mxu0 0.0
        %1211 = vmatpush1.xpose.msra.mxu0 0.0
        %1212 = vmatprep.subr.mxu0 0.0
        %1213 = vmatpush1.xpose.msra.mxu0 0.0
        %1214 = vmatprep.subr.mxu0 0.0
        %1215 = vmatpush1.xpose.msra.mxu0 0.0
        %1216 = vmatprep.subr.mxu0 0.0
        %1217 = vmatpush1.xpose.msra.mxu0 0.0
        %1218 = vmatprep.subr.mxu0 0.0
        %1219 = vmatpush1.xpose.msra.mxu0 0.0
        %1220 = vmatprep.subr.mxu0 0.0
        %1221 = vmatpush1.xpose.msra.mxu0 0.0
        %1222 = vmatprep.subr.mxu0 0.0
        %1223 = vmatpush1.xpose.msra.mxu0 0.0
        %1224 = vmatprep.subr.mxu0 0.0
        %1225 = vmatpush1.xpose.msra.mxu0 0.0
        %1226 = vmatprep.subr.mxu0 0.0
        %1227 = vmatpush1.xpose.msra.mxu0 0.0
        %1228 = vmatprep.subr.mxu0 0.0
        %1229 = vmatpush1.xpose.msra.mxu0 0.0
        %1230 = vmatprep.subr.mxu0 0.0
        %1231 = vmatpush1.xpose.msra.mxu0 0.0
        %1232 = vmatprep.subr.mxu0 0.0
        %1233 = vmatpush1.xpose.msra.mxu0 0.0
        %1234 = vmatprep.subr.mxu0 0.0
        %1235 = vmatpush1.xpose.msra.mxu0 0.0
        %1236 = vmatprep.subr.mxu0 0.0
        %1237 = vmatpush1.xpose.msra.mxu0 0.0
        %1238 = vmatprep.subr.mxu0 0.0
        %1239 = vmatpush1.xpose.msra.mxu0 0.0
        %1240 = vmatprep.subr.mxu0 0.0
        %1241 = vmatpush1.xpose.msra.mxu0 0.0
        %1242 = vmatprep.subr.mxu0 0.0
        %1243 = vmatpush1.xpose.msra.mxu0 0.0
        %1244 = vmatprep.subr.mxu0 0.0
        %1245 = vmatpush1.xpose.msra.mxu0 0.0
        %1246 = vmatprep.mubr.f32.mxu0 0.0
        %1247 = vmatmul.mubr.f32.gmra.mrb[0].mxu0 %v1177
        %v1248 = vpop.f32.mrb[0].mxu0
        %v1249 = vadd.f32 0.0, %v1248
        %v1250 = vpop.f32.mrb[0].mxu0
        %1251 = vdwg.mxu0
        %v1252 = vsel %vm1175, %v1249, -inf
        %1253 = vmax.xlane.f32.xlu0 %v1252
        %v1254 = vpop.xlane.xlu0 %1253
        %v1255 = vsub.f32 %v1249, %v1254
        %v1256 = vmul.f32 %v1255, 1.442695
        %v1257 = vpow.pop %v1256
        %v1258 = vsel %vm1175, %v1257, 0.0
        %1259 = vadd.xlane.f32.xlu0 %v1258
        %v1260 = vpop.xlane.xlu0 %1259
        %v1261 = vrcp.pop %v1260
        %v1262 = vmul.f32 %v1257, %v1261
        %v1264 = vsel %vm1175, %v1262, 0
        %1266 = vmatprep.subr.mxu0 0.0
        %1267 = vmatpush1.msra.mxu0 %v1169
        %1268 = vmatprep.subr.mxu0 0.0
        %1269 = vmatpush1.msra.mxu0 0.0
        %1270 = vmatprep.subr.mxu0 0.0
        %1271 = vmatpush1.msra.mxu0 0.0
        %1272 = vmatprep.subr.mxu0 0.0
        %1273 = vmatpush1.msra.mxu0 0.0
        %1274 = vmatprep.subr.mxu0 0.0
        %1275 = vmatpush1.msra.mxu0 0.0
        %1276 = vmatprep.subr.mxu0 0.0
        %1277 = vmatpush1.msra.mxu0 0.0
        %1278 = vmatprep.subr.mxu0 0.0
        %1279 = vmatpush1.msra.mxu0 0.0
        %1280 = vmatprep.subr.mxu0 0.0
        %1281 = vmatpush1.msra.mxu0 0.0
        %1282 = vmatprep.subr.mxu0 0.0
        %1283 = vmatpush1.msra.mxu0 0.0
        %1284 = vmatprep.subr.mxu0 0.0
        %1285 = vmatpush1.msra.mxu0 0.0
        %1286 = vmatprep.subr.mxu0 0.0
        %1287 = vmatpush1.msra.mxu0 0.0
        %1288 = vmatprep.subr.mxu0 0.0
        %1289 = vmatpush1.msra.mxu0 0.0
        %1290 = vmatprep.subr.mxu0 0.0
        %1291 = vmatpush1.msra.mxu0 0.0
        %1292 = vmatprep.subr.mxu0 0.0
        %1293 = vmatpush1.msra.mxu0 0.0
        %1294 = vmatprep.subr.mxu0 0.0
        %1295 = vmatpush1.msra.mxu0 0.0
        %1296 = vmatprep.subr.mxu0 0.0
        %1297 = vmatpush1.msra.mxu0 0.0
        %1298 = vmatprep.subr.mxu0 0.0
        %1299 = vmatpush1.msra.mxu0 0.0
        %1300 = vmatprep.subr.mxu0 0.0
        %1301 = vmatpush1.msra.mxu0 0.0
        %1302 = vmatprep.subr.mxu0 0.0
        %1303 = vmatpush1.msra.mxu0 0.0
        %1304 = vmatprep.subr.mxu0 0.0
        %1305 = vmatpush1.msra.mxu0 0.0
        %1306 = vmatprep.subr.mxu0 0.0
        %1307 = vmatpush1.msra.mxu0 0.0
        %1308 = vmatprep.subr.mxu0 0.0
        %1309 = vmatpush1.msra.mxu0 0.0
        %1310 = vmatprep.subr.mxu0 0.0
        %1311 = vmatpush1.msra.mxu0 0.0
        %1312 = vmatprep.subr.mxu0 0.0
        %1313 = vmatpush1.msra.mxu0 0.0
        %1314 = vmatprep.subr.mxu0 0.0
        %1315 = vmatpush1.msra.mxu0 0.0
        %1316 = vmatprep.subr.mxu0 0.0
        %1317 = vmatpush1.msra.mxu0 0.0
        %1318 = vmatprep.subr.mxu0 0.0
        %1319 = vmatpush1.msra.mxu0 0.0
        %1320 = vmatprep.subr.mxu0 0.0
        %1321 = vmatpush1.msra.mxu0 0.0
        %1322 = vmatprep.subr.mxu0 0.0
        %1323 = vmatpush1.msra.mxu0 0.0
        %1324 = vmatprep.subr.mxu0 0.0
        %1325 = vmatpush1.msra.mxu0 0.0
        %1326 = vmatprep.subr.mxu0 0.0
        %1327 = vmatpush1.msra.mxu0 0.0
        %1328 = vmatprep.subr.mxu0 0.0
        %1329 = vmatpush1.msra.mxu0 0.0
        %1330 = vmatprep.mubr.f32.mxu0 0.0
        %1331 = vmatmul.mubr.f32.gmra.mrb[0].mxu0 %v1264
        %v1332 = vpop.f32.mrb[0].mxu0
        %v1333 = vadd.f32 0.0, %v1332
        %v1334 = vpop.f32.mrb[0].mxu0
        %1335 = vdwg.mxu0
        %1336 = vrot.lane.b32.xlu0 %v1174, 120
        %v1337 = vpop.permute.xlu0 %1336
        %1338 = vrot.lane.b32.xlu0 %v1090, 120
        %v1339 = vpop.permute.xlu0 %1338
        %v1340 = vsel %vm1175, %v1337, 0
        %v1342 = vsel %vm1175, %v1339, 0
        %1344 = vmatprep.subr.mxu0 0.0
        %1345 = vmatpush1.xpose.msra.mxu0 %v1342
        %1346 = vmatprep.subr.mxu0 0.0
        %1347 = vmatpush1.xpose.msra.mxu0 0.0
        %1348 = vmatprep.subr.mxu0 0.0
        %1349 = vmatpush1.xpose.msra.mxu0 0.0
        %1350 = vmatprep.subr.mxu0 0.0
        %1351 = vmatpush1.xpose.msra.mxu0 0.0
        %1352 = vmatprep.subr.mxu0 0.0
        %1353 = vmatpush1.xpose.msra.mxu0 0.0
        %1354 = vmatprep.subr.mxu0 0.0
        %1355 = vmatpush1.xpose.msra.mxu0 0.0
        %1356 = vmatprep.subr.mxu0 0.0
        %1357 = vmatpush1.xpose.msra.mxu0 0.0
        %1358 = vmatprep.subr.mxu0 0.0
        %1359 = vmatpush1.xpose.msra.mxu0 0.0
        %1360 = vmatprep.subr.mxu0 0.0
        %1361 = vmatpush1.xpose.msra.mxu0 0.0
        %1362 = vmatprep.subr.mxu0 0.0
        %1363 = vmatpush1.xpose.msra.mxu0 0.0
        %1364 = vmatprep.subr.mxu0 0.0
        %1365 = vmatpush1.xpose.msra.mxu0 0.0
        %1366 = vmatprep.subr.mxu0 0.0
        %1367 = vmatpush1.xpose.msra.mxu0 0.0
        %1368 = vmatprep.subr.mxu0 0.0
        %1369 = vmatpush1.xpose.msra.mxu0 0.0
        %1370 = vmatprep.subr.mxu0 0.0
        %1371 = vmatpush1.xpose.msra.mxu0 0.0
        %1372 = vmatprep.subr.mxu0 0.0
        %1373 = vmatpush1.xpose.msra.mxu0 0.0
        %1374 = vmatprep.subr.mxu0 0.0
        %1375 = vmatpush1.xpose.msra.mxu0 0.0
        %1376 = vmatprep.subr.mxu0 0.0
        %1377 = vmatpush1.xpose.msra.mxu0 0.0
        %1378 = vmatprep.subr.mxu0 0.0
        %1379 = vmatpush1.xpose.msra.mxu0 0.0
        %1380 = vmatprep.subr.mxu0 0.0
        %1381 = vmatpush1.xpose.msra.mxu0 0.0
        %1382 = vmatprep.subr.mxu0 0.0
        %1383 = vmatpush1.xpose.msra.mxu0 0.0
        %1384 = vmatprep.subr.mxu0 0.0
        %1385 = vmatpush1.xpose.msra.mxu0 0.0
        %1386 = vmatprep.subr.mxu0 0.0
        %1387 = vmatpush1.xpose.msra.mxu0 0.0
        %1388 = vmatprep.subr.mxu0 0.0
        %1389 = vmatpush1.xpose.msra.mxu0 0.0
        %1390 = vmatprep.subr.mxu0 0.0
        %1391 = vmatpush1.xpose.msra.mxu0 0.0
        %1392 = vmatprep.subr.mxu0 0.0
        %1393 = vmatpush1.xpose.msra.mxu0 0.0
        %1394 = vmatprep.subr.mxu0 0.0
        %1395 = vmatpush1.xpose.msra.mxu0 0.0
        %1396 = vmatprep.subr.mxu0 0.0
        %1397 = vmatpush1.xpose.msra.mxu0 0.0
        %1398 = vmatprep.subr.mxu0 0.0
        %1399 = vmatpush1.xpose.msra.mxu0 0.0
        %1400 = vmatprep.subr.mxu0 0.0
        %1401 = vmatpush1.xpose.msra.mxu0 0.0
        %1402 = vmatprep.subr.mxu0 0.0
        %1403 = vmatpush1.xpose.msra.mxu0 0.0
        %1404 = vmatprep.subr.mxu0 0.0
        %1405 = vmatpush1.xpose.msra.mxu0 0.0
        %1406 = vmatprep.subr.mxu0 0.0
        %1407 = vmatpush1.xpose.msra.mxu0 0.0
        %1408 = vmatprep.mubr.f32.mxu0 0.0
        %1409 = vmatmul.mubr.f32.gmra.mrb[0].mxu0 %v1340
        %v1410 = vpop.f32.mrb[0].mxu0
        %v1411 = vadd.f32 0.0, %v1410
        %v1412 = vpop.f32.mrb[0].mxu0
        %1413 = vdwg.mxu0
        %v1414 = vsel %vm1175, %v1411, -inf
        %1415 = vmax.xlane.f32.xlu0 %v1414
        %v1416 = vpop.xlane.xlu0 %1415
        %v1417 = vsub.f32 %v1411, %v1416
        %v1418 = vmul.f32 %v1417, 1.442695
        %v1419 = vpow.pop %v1418
        %v1420 = vsel %vm1175, %v1419, 0.0
        %1421 = vadd.xlane.f32.xlu0 %v1420
        %v1422 = vpop.xlane.xlu0 %1421
        %v1423 = vrcp.pop %v1422
        %v1424 = vmul.f32 %v1419, %v1423
        %1426 = vrot.lane.b32.xlu0 %v1169, 120
        %v1427 = vpop.permute.xlu0 %1426
        %v1430 = vsel %vm1175, %v1424, 0
        %1432 = vmatprep.subr.mxu0 0.0
        %1433 = vmatpush1.msra.mxu0 %v1427
        %1434 = vmatprep.subr.mxu0 0.0
        %1435 = vmatpush1.msra.mxu0 0.0
        %1436 = vmatprep.subr.mxu0 0.0
        %1437 = vmatpush1.msra.mxu0 0.0
        %1438 = vmatprep.subr.mxu0 0.0
        %1439 = vmatpush1.msra.mxu0 0.0
        %1440 = vmatprep.subr.mxu0 0.0
        %1441 = vmatpush1.msra.mxu0 0.0
        %1442 = vmatprep.subr.mxu0 0.0
        %1443 = vmatpush1.msra.mxu0 0.0
        %1444 = vmatprep.subr.mxu0 0.0
        %1445 = vmatpush1.msra.mxu0 0.0
        %1446 = vmatprep.subr.mxu0 0.0
        %1447 = vmatpush1.msra.mxu0 0.0
        %1448 = vmatprep.subr.mxu0 0.0
        %1449 = vmatpush1.msra.mxu0 0.0
        %1450 = vmatprep.subr.mxu0 0.0
        %1451 = vmatpush1.msra.mxu0 0.0
        %1452 = vmatprep.subr.mxu0 0.0
        %1453 = vmatpush1.msra.mxu0 0.0
        %1454 = vmatprep.subr.mxu0 0.0
        %1455 = vmatpush1.msra.mxu0 0.0
        %1456 = vmatprep.subr.mxu0 0.0
        %1457 = vmatpush1.msra.mxu0 0.0
        %1458 = vmatprep.subr.mxu0 0.0
        %1459 = vmatpush1.msra.mxu0 0.0
        %1460 = vmatprep.subr.mxu0 0.0
        %1461 = vmatpush1.msra.mxu0 0.0
        %1462 = vmatprep.subr.mxu0 0.0
        %1463 = vmatpush1.msra.mxu0 0.0
        %1464 = vmatprep.subr.mxu0 0.0
        %1465 = vmatpush1.msra.mxu0 0.0
        %1466 = vmatprep.subr.mxu0 0.0
        %1467 = vmatpush1.msra.mxu0 0.0
        %1468 = vmatprep.subr.mxu0 0.0
        %1469 = vmatpush1.msra.mxu0 0.0
        %1470 = vmatprep.subr.mxu0 0.0
        %1471 = vmatpush1.msra.mxu0 0.0
        %1472 = vmatprep.subr.mxu0 0.0
        %1473 = vmatpush1.msra.mxu0 0.0
        %1474 = vmatprep.subr.mxu0 0.0
        %1475 = vmatpush1.msra.mxu0 0.0
        %1476 = vmatprep.subr.mxu0 0.0
        %1477 = vmatpush1.msra.mxu0 0.0
        %1478 = vmatprep.subr.mxu0 0.0
        %1479 = vmatpush1.msra.mxu0 0.0
        %1480 = vmatprep.subr.mxu0 0.0
        %1481 = vmatpush1.msra.mxu0 0.0
        %1482 = vmatprep.subr.mxu0 0.0
        %1483 = vmatpush1.msra.mxu0 0.0
        %1484 = vmatprep.subr.mxu0 0.0
        %1485 = vmatpush1.msra.mxu0 0.0
        %1486 = vmatprep.subr.mxu0 0.0
        %1487 = vmatpush1.msra.mxu0 0.0
        %1488 = vmatprep.subr.mxu0 0.0
        %1489 = vmatpush1.msra.mxu0 0.0
        %1490 = vmatprep.subr.mxu0 0.0
        %1491 = vmatpush1.msra.mxu0 0.0
        %1492 = vmatprep.subr.mxu0 0.0
        %1493 = vmatpush1.msra.mxu0 0.0
        %1494 = vmatprep.subr.mxu0 0.0
        %1495 = vmatpush1.msra.mxu0 0.0
        %1496 = vmatprep.mubr.f32.mxu0 0.0
        %1497 = vmatmul.mubr.f32.gmra.mrb[0].mxu0 %v1430
        %v1498 = vpop.f32.mrb[0].mxu0
        %v1499 = vadd.f32 0.0, %v1498
        %v1500 = vpop.f32.mrb[0].mxu0
        %1501 = vdwg.mxu0
        %1502 = vrot.lane.b32.xlu0 %v1174, 112
        %v1503 = vpop.permute.xlu0 %1502
        %1504 = vrot.lane.b32.xlu0 %v1090, 112
        %v1505 = vpop.permute.xlu0 %1504
        %v1506 = vsel %vm1175, %v1503, 0
        %v1508 = vsel %vm1175, %v1505, 0
        %1510 = vmatprep.subr.mxu0 0.0
        %1511 = vmatpush1.xpose.msra.mxu0 %v1508
        %1512 = vmatprep.subr.mxu0 0.0
        %1513 = vmatpush1.xpose.msra.mxu0 0.0
        %1514 = vmatprep.subr.mxu0 0.0
        %1515 = vmatpush1.xpose.msra.mxu0 0.0
        %1516 = vmatprep.subr.mxu0 0.0
        %1517 = vmatpush1.xpose.msra.mxu0 0.0
        %1518 = vmatprep.subr.mxu0 0.0
        %1519 = vmatpush1.xpose.msra.mxu0 0.0
        %1520 = vmatprep.subr.mxu0 0.0
        %1521 = vmatpush1.xpose.msra.mxu0 0.0
        %1522 = vmatprep.subr.mxu0 0.0
        %1523 = vmatpush1.xpose.msra.mxu0 0.0
        %1524 = vmatprep.subr.mxu0 0.0
        %1525 = vmatpush1.xpose.msra.mxu0 0.0
        %1526 = vmatprep.subr.mxu0 0.0
        %1527 = vmatpush1.xpose.msra.mxu0 0.0
        %1528 = vmatprep.subr.mxu0 0.0
        %1529 = vmatpush1.xpose.msra.mxu0 0.0
        %1530 = vmatprep.subr.mxu0 0.0
        %1531 = vmatpush1.xpose.msra.mxu0 0.0
        %1532 = vmatprep.subr.mxu0 0.0
        %1533 = vmatpush1.xpose.msra.mxu0 0.0
        %1534 = vmatprep.subr.mxu0 0.0
        %1535 = vmatpush1.xpose.msra.mxu0 0.0
        %1536 = vmatprep.subr.mxu0 0.0
        %1537 = vmatpush1.xpose.msra.mxu0 0.0
        %1538 = vmatprep.subr.mxu0 0.0
        %1539 = vmatpush1.xpose.msra.mxu0 0.0
        %1540 = vmatprep.subr.mxu0 0.0
        %1541 = vmatpush1.xpose.msra.mxu0 0.0
        %1542 = vmatprep.subr.mxu0 0.0
        %1543 = vmatpush1.xpose.msra.mxu0 0.0
        %1544 = vmatprep.subr.mxu0 0.0
        %1545 = vmatpush1.xpose.msra.mxu0 0.0
        %1546 = vmatprep.subr.mxu0 0.0
        %1547 = vmatpush1.xpose.msra.mxu0 0.0
        %1548 = vmatprep.subr.mxu0 0.0
        %1549 = vmatpush1.xpose.msra.mxu0 0.0
        %1550 = vmatprep.subr.mxu0 0.0
        %1551 = vmatpush1.xpose.msra.mxu0 0.0
        %1552 = vmatprep.subr.mxu0 0.0
        %1553 = vmatpush1.xpose.msra.mxu0 0.0
        %1554 = vmatprep.subr.mxu0 0.0
        %1555 = vmatpush1.xpose.msra.mxu0 0.0
        %1556 = vmatprep.subr.mxu0 0.0
        %1557 = vmatpush1.xpose.msra.mxu0 0.0
        %1558 = vmatprep.subr.mxu0 0.0
        %1559 = vmatpush1.xpose.msra.mxu0 0.0
        %1560 = vmatprep.subr.mxu0 0.0
        %1561 = vmatpush1.xpose.msra.mxu0 0.0
        %1562 = vmatprep.subr.mxu0 0.0
        %1563 = vmatpush1.xpose.msra.mxu0 0.0
        %1564 = vmatprep.subr.mxu0 0.0
        %1565 = vmatpush1.xpose.msra.mxu0 0.0
        %1566 = vmatprep.subr.mxu0 0.0
        %1567 = vmatpush1.xpose.msra.mxu0 0.0
        %1568 = vmatprep.subr.mxu0 0.0
        %1569 = vmatpush1.xpose.msra.mxu0 0.0
        %1570 = vmatprep.subr.mxu0 0.0
        %1571 = vmatpush1.xpose.msra.mxu0 0.0
        %1572 = vmatprep.subr.mxu0 0.0
        %1573 = vmatpush1.xpose.msra.mxu0 0.0
        %1574 = vmatprep.mubr.f32.mxu0 0.0
        %1575 = vmatmul.mubr.f32.gmra.mrb[0].mxu0 %v1506
        %v1576 = vpop.f32.mrb[0].mxu0
        %v1577 = vadd.f32 0.0, %v1576
        %v1578 = vpop.f32.mrb[0].mxu0
        %1579 = vdwg.mxu0
        %v1580 = vsel %vm1175, %v1577, -inf
        %1581 = vmax.xlane.f32.xlu0 %v1580
        %v1582 = vpop.xlane.xlu0 %1581
        %v1583 = vsub.f32 %v1577, %v1582
        %v1584 = vmul.f32 %v1583, 1.442695
        %v1585 = vpow.pop %v1584
        %v1586 = vsel %vm1175, %v1585, 0.0
        %1587 = vadd.xlane.f32.xlu0 %v1586
        %v1588 = vpop.xlane.xlu0 %1587
        %v1589 = vrcp.pop %v1588
        %v1590 = vmul.f32 %v1585, %v1589
        %1591 = vrot.lane.b32.xlu0 %v1169, 112
        %v1592 = vpop.permute.xlu0 %1591
        %v1595 = vsel %vm1175, %v1590, 0
        %1597 = vmatprep.subr.mxu0 0.0
        %1598 = vmatpush1.msra.mxu0 %v1592
        %1599 = vmatprep.subr.mxu0 0.0
        %1600 = vmatpush1.msra.mxu0 0.0
        %1601 = vmatprep.subr.mxu0 0.0
        %1602 = vmatpush1.msra.mxu0 0.0
        %1603 = vmatprep.subr.mxu0 0.0
        %1604 = vmatpush1.msra.mxu0 0.0
        %1605 = vmatprep.subr.mxu0 0.0
        %1606 = vmatpush1.msra.mxu0 0.0
        %1607 = vmatprep.subr.mxu0 0.0
        %1608 = vmatpush1.msra.mxu0 0.0
        %1609 = vmatprep.subr.mxu0 0.0
        %1610 = vmatpush1.msra.mxu0 0.0
        %1611 = vmatprep.subr.mxu0 0.0
        %1612 = vmatpush1.msra.mxu0 0.0
        %1613 = vmatprep.subr.mxu0 0.0
        %1614 = vmatpush1.msra.mxu0 0.0
        %1615 = vmatprep.subr.mxu0 0.0
        %1616 = vmatpush1.msra.mxu0 0.0
        %1617 = vmatprep.subr.mxu0 0.0
        %1618 = vmatpush1.msra.mxu0 0.0
        %1619 = vmatprep.subr.mxu0 0.0
        %1620 = vmatpush1.msra.mxu0 0.0
        %1621 = vmatprep.subr.mxu0 0.0
        %1622 = vmatpush1.msra.mxu0 0.0
        %1623 = vmatprep.subr.mxu0 0.0
        %1624 = vmatpush1.msra.mxu0 0.0
        %1625 = vmatprep.subr.mxu0 0.0
        %1626 = vmatpush1.msra.mxu0 0.0
        %1627 = vmatprep.subr.mxu0 0.0
        %1628 = vmatpush1.msra.mxu0 0.0
        %1629 = vmatprep.subr.mxu0 0.0
        %1630 = vmatpush1.msra.mxu0 0.0
        %1631 = vmatprep.subr.mxu0 0.0
        %1632 = vmatpush1.msra.mxu0 0.0
        %1633 = vmatprep.subr.mxu0 0.0
        %1634 = vmatpush1.msra.mxu0 0.0
        %1635 = vmatprep.subr.mxu0 0.0
        %1636 = vmatpush1.msra.mxu0 0.0
        %1637 = vmatprep.subr.mxu0 0.0
        %1638 = vmatpush1.msra.mxu0 0.0
        %1639 = vmatprep.subr.mxu0 0.0
        %1640 = vmatpush1.msra.mxu0 0.0
        %1641 = vmatprep.subr.mxu0 0.0
        %1642 = vmatpush1.msra.mxu0 0.0
        %1643 = vmatprep.subr.mxu0 0.0
        %1644 = vmatpush1.msra.mxu0 0.0
        %1645 = vmatprep.subr.mxu0 0.0
        %1646 = vmatpush1.msra.mxu0 0.0
        %1647 = vmatprep.subr.mxu0 0.0
        %1648 = vmatpush1.msra.mxu0 0.0
        %1649 = vmatprep.subr.mxu0 0.0
        %1650 = vmatpush1.msra.mxu0 0.0
        %1651 = vmatprep.subr.mxu0 0.0
        %1652 = vmatpush1.msra.mxu0 0.0
        %1653 = vmatprep.subr.mxu0 0.0
        %1654 = vmatpush1.msra.mxu0 0.0
        %1655 = vmatprep.subr.mxu0 0.0
        %1656 = vmatpush1.msra.mxu0 0.0
        %1657 = vmatprep.subr.mxu0 0.0
        %1658 = vmatpush1.msra.mxu0 0.0
        %1659 = vmatprep.subr.mxu0 0.0
        %1660 = vmatpush1.msra.mxu0 0.0
        %1661 = vmatprep.mubr.f32.mxu0 0.0
        %1662 = vmatmul.mubr.f32.gmra.mrb[0].mxu0 %v1595
        %v1663 = vpop.f32.mrb[0].mxu0
        %v1664 = vadd.f32 0.0, %v1663
        %v1665 = vpop.f32.mrb[0].mxu0
        %1666 = vdwg.mxu0
        %1667 = vrot.lane.b32.xlu0 %v1174, 104
        %v1668 = vpop.permute.xlu0 %1667
        %1669 = vrot.lane.b32.xlu0 %v1090, 104
        %v1670 = vpop.permute.xlu0 %1669
        %v1671 = vsel %vm1175, %v1668, 0
        %v1673 = vsel %vm1175, %v1670, 0
        %1675 = vmatprep.subr.mxu0 0.0
        %1676 = vmatpush1.xpose.msra.mxu0 %v1673
        %1677 = vmatprep.subr.mxu0 0.0
        %1678 = vmatpush1.xpose.msra.mxu0 0.0
        %1679 = vmatprep.subr.mxu0 0.0
        %1680 = vmatpush1.xpose.msra.mxu0 0.0
        %1681 = vmatprep.subr.mxu0 0.0
        %1682 = vmatpush1.xpose.msra.mxu0 0.0
        %1683 = vmatprep.subr.mxu0 0.0
        %1684 = vmatpush1.xpose.msra.mxu0 0.0
        %1685 = vmatprep.subr.mxu0 0.0
        %1686 = vmatpush1.xpose.msra.mxu0 0.0
        %1687 = vmatprep.subr.mxu0 0.0
        %1688 = vmatpush1.xpose.msra.mxu0 0.0
        %1689 = vmatprep.subr.mxu0 0.0
        %1690 = vmatpush1.xpose.msra.mxu0 0.0
        %1691 = vmatprep.subr.mxu0 0.0
        %1692 = vmatpush1.xpose.msra.mxu0 0.0
        %1693 = vmatprep.subr.mxu0 0.0
        %1694 = vmatpush1.xpose.msra.mxu0 0.0
        %1695 = vmatprep.subr.mxu0 0.0
        %1696 = vmatpush1.xpose.msra.mxu0 0.0
        %1697 = vmatprep.subr.mxu0 0.0
        %1698 = vmatpush1.xpose.msra.mxu0 0.0
        %1699 = vmatprep.subr.mxu0 0.0
        %1700 = vmatpush1.xpose.msra.mxu0 0.0
        %1701 = vmatprep.subr.mxu0 0.0
        %1702 = vmatpush1.xpose.msra.mxu0 0.0
        %1703 = vmatprep.subr.mxu0 0.0
        %1704 = vmatpush1.xpose.msra.mxu0 0.0
        %1705 = vmatprep.subr.mxu0 0.0
        %1706 = vmatpush1.xpose.msra.mxu0 0.0
        %1707 = vmatprep.subr.mxu0 0.0
        %1708 = vmatpush1.xpose.msra.mxu0 0.0
        %1709 = vmatprep.subr.mxu0 0.0
        %1710 = vmatpush1.xpose.msra.mxu0 0.0
        %1711 = vmatprep.subr.mxu0 0.0
        %1712 = vmatpush1.xpose.msra.mxu0 0.0
        %1713 = vmatprep.subr.mxu0 0.0
        %1714 = vmatpush1.xpose.msra.mxu0 0.0
        %1715 = vmatprep.subr.mxu0 0.0
        %1716 = vmatpush1.xpose.msra.mxu0 0.0
        %1717 = vmatprep.subr.mxu0 0.0
        %1718 = vmatpush1.xpose.msra.mxu0 0.0
        %1719 = vmatprep.subr.mxu0 0.0
        %1720 = vmatpush1.xpose.msra.mxu0 0.0
        %1721 = vmatprep.subr.mxu0 0.0
        %1722 = vmatpush1.xpose.msra.mxu0 0.0
        %1723 = vmatprep.subr.mxu0 0.0
        %1724 = vmatpush1.xpose.msra.mxu0 0.0
        %1725 = vmatprep.subr.mxu0 0.0
        %1726 = vmatpush1.xpose.msra.mxu0 0.0
        %1727 = vmatprep.subr.mxu0 0.0
        %1728 = vmatpush1.xpose.msra.mxu0 0.0
        %1729 = vmatprep.subr.mxu0 0.0
        %1730 = vmatpush1.xpose.msra.mxu0 0.0
        %1731 = vmatprep.subr.mxu0 0.0
        %1732 = vmatpush1.xpose.msra.mxu0 0.0
        %1733 = vmatprep.subr.mxu0 0.0
        %1734 = vmatpush1.xpose.msra.mxu0 0.0
        %1735 = vmatprep.subr.mxu0 0.0
        %1736 = vmatpush1.xpose.msra.mxu0 0.0
        %1737 = vmatprep.subr.mxu0 0.0
        %1738 = vmatpush1.xpose.msra.mxu0 0.0
        %1739 = vmatprep.mubr.f32.mxu0 0.0
        %1740 = vmatmul.mubr.f32.gmra.mrb[0].mxu0 %v1671
        %v1741 = vpop.f32.mrb[0].mxu0
        %v1742 = vadd.f32 0.0, %v1741
        %v1743 = vpop.f32.mrb[0].mxu0
        %1744 = vdwg.mxu0
        %v1745 = vsel %vm1175, %v1742, -inf
        %1746 = vmax.xlane.f32.xlu0 %v1745
        %v1747 = vpop.xlane.xlu0 %1746
        %v1748 = vsub.f32 %v1742, %v1747
        %v1749 = vmul.f32 %v1748, 1.442695
        %v1750 = vpow.pop %v1749
        %v1751 = vsel %vm1175, %v1750, 0.0
        %1752 = vadd.xlane.f32.xlu0 %v1751
        %v1753 = vpop.xlane.xlu0 %1752
        %v1754 = vrcp.pop %v1753
        %v1755 = vmul.f32 %v1750, %v1754
        %1756 = vrot.lane.b32.xlu0 %v1169, 104
        %v1757 = vpop.permute.xlu0 %1756
        %v1760 = vsel %vm1175, %v1755, 0
        %1762 = vmatprep.subr.mxu0 0.0
        %1763 = vmatpush1.msra.mxu0 %v1757
        %1764 = vmatprep.subr.mxu0 0.0
        %1765 = vmatpush1.msra.mxu0 0.0
        %1766 = vmatprep.subr.mxu0 0.0
        %1767 = vmatpush1.msra.mxu0 0.0
        %1768 = vmatprep.subr.mxu0 0.0
        %1769 = vmatpush1.msra.mxu0 0.0
        %1770 = vmatprep.subr.mxu0 0.0
        %1771 = vmatpush1.msra.mxu0 0.0
        %1772 = vmatprep.subr.mxu0 0.0
        %1773 = vmatpush1.msra.mxu0 0.0
        %1774 = vmatprep.subr.mxu0 0.0
        %1775 = vmatpush1.msra.mxu0 0.0
        %1776 = vmatprep.subr.mxu0 0.0
        %1777 = vmatpush1.msra.mxu0 0.0
        %1778 = vmatprep.subr.mxu0 0.0
        %1779 = vmatpush1.msra.mxu0 0.0
        %1780 = vmatprep.subr.mxu0 0.0
        %1781 = vmatpush1.msra.mxu0 0.0
        %1782 = vmatprep.subr.mxu0 0.0
        %1783 = vmatpush1.msra.mxu0 0.0
        %1784 = vmatprep.subr.mxu0 0.0
        %1785 = vmatpush1.msra.mxu0 0.0
        %1786 = vmatprep.subr.mxu0 0.0
        %1787 = vmatpush1.msra.mxu0 0.0
        %1788 = vmatprep.subr.mxu0 0.0
        %1789 = vmatpush1.msra.mxu0 0.0
        %1790 = vmatprep.subr.mxu0 0.0
        %1791 = vmatpush1.msra.mxu0 0.0
        %1792 = vmatprep.subr.mxu0 0.0
        %1793 = vmatpush1.msra.mxu0 0.0
        %1794 = vmatprep.subr.mxu0 0.0
        %1795 = vmatpush1.msra.mxu0 0.0
        %1796 = vmatprep.subr.mxu0 0.0
        %1797 = vmatpush1.msra.mxu0 0.0
        %1798 = vmatprep.subr.mxu0 0.0
        %1799 = vmatpush1.msra.mxu0 0.0
        %1800 = vmatprep.subr.mxu0 0.0
        %1801 = vmatpush1.msra.mxu0 0.0
        %1802 = vmatprep.subr.mxu0 0.0
        %1803 = vmatpush1.msra.mxu0 0.0
        %1804 = vmatprep.subr.mxu0 0.0
        %1805 = vmatpush1.msra.mxu0 0.0
        %1806 = vmatprep.subr.mxu0 0.0
        %1807 = vmatpush1.msra.mxu0 0.0
        %1808 = vmatprep.subr.mxu0 0.0
        %1809 = vmatpush1.msra.mxu0 0.0
        %1810 = vmatprep.subr.mxu0 0.0
        %1811 = vmatpush1.msra.mxu0 0.0
        %1812 = vmatprep.subr.mxu0 0.0
        %1813 = vmatpush1.msra.mxu0 0.0
        %1814 = vmatprep.subr.mxu0 0.0
        %1815 = vmatpush1.msra.mxu0 0.0
        %1816 = vmatprep.subr.mxu0 0.0
        %1817 = vmatpush1.msra.mxu0 0.0
        %1818 = vmatprep.subr.mxu0 0.0
        %1819 = vmatpush1.msra.mxu0 0.0
        %1820 = vmatprep.subr.mxu0 0.0
        %1821 = vmatpush1.msra.mxu0 0.0
        %1822 = vmatprep.subr.mxu0 0.0
        %1823 = vmatpush1.msra.mxu0 0.0
        %1824 = vmatprep.subr.mxu0 0.0
        %1825 = vmatpush1.msra.mxu0 0.0
        %1826 = vmatprep.mubr.f32.mxu0 0.0
        %1827 = vmatmul.mubr.f32.gmra.mrb[0].mxu0 %v1760
        %v1828 = vpop.f32.mrb[0].mxu0
        %v1829 = vadd.f32 0.0, %v1828
        %v1830 = vpop.f32.mrb[0].mxu0
        %1831 = vdwg.mxu0
        %1832 = vrot.lane.b32.xlu0 %v1174, 96
        %v1833 = vpop.permute.xlu0 %1832
        %1834 = vrot.lane.b32.xlu0 %v1090, 96
        %v1835 = vpop.permute.xlu0 %1834
        %v1836 = vsel %vm1175, %v1833, 0
        %v1838 = vsel %vm1175, %v1835, 0
        %1840 = vmatprep.subr.mxu0 0.0
        %1841 = vmatpush1.xpose.msra.mxu0 %v1838
        %1842 = vmatprep.subr.mxu0 0.0
        %1843 = vmatpush1.xpose.msra.mxu0 0.0
        %1844 = vmatprep.subr.mxu0 0.0
        %1845 = vmatpush1.xpose.msra.mxu0 0.0
        %1846 = vmatprep.subr.mxu0 0.0
        %1847 = vmatpush1.xpose.msra.mxu0 0.0
        %1848 = vmatprep.subr.mxu0 0.0
        %1849 = vmatpush1.xpose.msra.mxu0 0.0
        %1850 = vmatprep.subr.mxu0 0.0
        %1851 = vmatpush1.xpose.msra.mxu0 0.0
        %1852 = vmatprep.subr.mxu0 0.0
        %1853 = vmatpush1.xpose.msra.mxu0 0.0
        %1854 = vmatprep.subr.mxu0 0.0
        %1855 = vmatpush1.xpose.msra.mxu0 0.0
        %1856 = vmatprep.subr.mxu0 0.0
        %1857 = vmatpush1.xpose.msra.mxu0 0.0
        %1858 = vmatprep.subr.mxu0 0.0
        %1859 = vmatpush1.xpose.msra.mxu0 0.0
        %1860 = vmatprep.subr.mxu0 0.0
        %1861 = vmatpush1.xpose.msra.mxu0 0.0
        %1862 = vmatprep.subr.mxu0 0.0
        %1863 = vmatpush1.xpose.msra.mxu0 0.0
        %1864 = vmatprep.subr.mxu0 0.0
        %1865 = vmatpush1.xpose.msra.mxu0 0.0
        %1866 = vmatprep.subr.mxu0 0.0
        %1867 = vmatpush1.xpose.msra.mxu0 0.0
        %1868 = vmatprep.subr.mxu0 0.0
        %1869 = vmatpush1.xpose.msra.mxu0 0.0
        %1870 = vmatprep.subr.mxu0 0.0
        %1871 = vmatpush1.xpose.msra.mxu0 0.0
        %1872 = vmatprep.subr.mxu0 0.0
        %1873 = vmatpush1.xpose.msra.mxu0 0.0
        %1874 = vmatprep.subr.mxu0 0.0
        %1875 = vmatpush1.xpose.msra.mxu0 0.0
        %1876 = vmatprep.subr.mxu0 0.0
        %1877 = vmatpush1.xpose.msra.mxu0 0.0
        %1878 = vmatprep.subr.mxu0 0.0
        %1879 = vmatpush1.xpose.msra.mxu0 0.0
        %1880 = vmatprep.subr.mxu0 0.0
        %1881 = vmatpush1.xpose.msra.mxu0 0.0
        %1882 = vmatprep.subr.mxu0 0.0
        %1883 = vmatpush1.xpose.msra.mxu0 0.0
        %1884 = vmatprep.subr.mxu0 0.0
        %1885 = vmatpush1.xpose.msra.mxu0 0.0
        %1886 = vmatprep.subr.mxu0 0.0
        %1887 = vmatpush1.xpose.msra.mxu0 0.0
        %1888 = vmatprep.subr.mxu0 0.0
        %1889 = vmatpush1.xpose.msra.mxu0 0.0
        %1890 = vmatprep.subr.mxu0 0.0
        %1891 = vmatpush1.xpose.msra.mxu0 0.0
        %1892 = vmatprep.subr.mxu0 0.0
        %1893 = vmatpush1.xpose.msra.mxu0 0.0
        %1894 = vmatprep.subr.mxu0 0.0
        %1895 = vmatpush1.xpose.msra.mxu0 0.0
        %1896 = vmatprep.subr.mxu0 0.0
        %1897 = vmatpush1.xpose.msra.mxu0 0.0
        %1898 = vmatprep.subr.mxu0 0.0
        %1899 = vmatpush1.xpose.msra.mxu0 0.0
        %1900 = vmatprep.subr.mxu0 0.0
        %1901 = vmatpush1.xpose.msra.mxu0 0.0
        %1902 = vmatprep.subr.mxu0 0.0
        %1903 = vmatpush1.xpose.msra.mxu0 0.0
        %1904 = vmatprep.mubr.f32.mxu0 0.0
        %1905 = vmatmul.mubr.f32.gmra.mrb[0].mxu0 %v1836
        %v1906 = vpop.f32.mrb[0].mxu0
        %v1907 = vadd.f32 0.0, %v1906
        %v1908 = vpop.f32.mrb[0].mxu0
        %1909 = vdwg.mxu0
        %v1910 = vsel %vm1175, %v1907, -inf
        %1911 = vmax.xlane.f32.xlu0 %v1910
        %v1912 = vpop.xlane.xlu0 %1911
        %v1913 = vsub.f32 %v1907, %v1912
        %v1914 = vmul.f32 %v1913, 1.442695
        %v1915 = vpow.pop %v1914
        %v1916 = vsel %vm1175, %v1915, 0.0
        %1917 = vadd.xlane.f32.xlu0 %v1916
        %v1918 = vpop.xlane.xlu0 %1917
        %v1919 = vrcp.pop %v1918
        %v1920 = vmul.f32 %v1915, %v1919
        %1921 = vrot.lane.b32.xlu0 %v1169, 96
        %v1922 = vpop.permute.xlu0 %1921
        %v1925 = vsel %vm1175, %v1920, 0
        %1927 = vmatprep.subr.mxu0 0.0
        %1928 = vmatpush1.msra.mxu0 %v1922
        %1929 = vmatprep.subr.mxu0 0.0
        %1930 = vmatpush1.msra.mxu0 0.0
        %1931 = vmatprep.subr.mxu0 0.0
        %1932 = vmatpush1.msra.mxu0 0.0
        %1933 = vmatprep.subr.mxu0 0.0
        %1934 = vmatpush1.msra.mxu0 0.0
        %1935 = vmatprep.subr.mxu0 0.0
        %1936 = vmatpush1.msra.mxu0 0.0
        %1937 = vmatprep.subr.mxu0 0.0
        %1938 = vmatpush1.msra.mxu0 0.0
        %1939 = vmatprep.subr.mxu0 0.0
        %1940 = vmatpush1.msra.mxu0 0.0
        %1941 = vmatprep.subr.mxu0 0.0
        %1942 = vmatpush1.msra.mxu0 0.0
        %1943 = vmatprep.subr.mxu0 0.0
        %1944 = vmatpush1.msra.mxu0 0.0
        %1945 = vmatprep.subr.mxu0 0.0
        %1946 = vmatpush1.msra.mxu0 0.0
        %1947 = vmatprep.subr.mxu0 0.0
        %1948 = vmatpush1.msra.mxu0 0.0
        %1949 = vmatprep.subr.mxu0 0.0
        %1950 = vmatpush1.msra.mxu0 0.0
        %1951 = vmatprep.subr.mxu0 0.0
        %1952 = vmatpush1.msra.mxu0 0.0
        %1953 = vmatprep.subr.mxu0 0.0
        %1954 = vmatpush1.msra.mxu0 0.0
        %1955 = vmatprep.subr.mxu0 0.0
        %1956 = vmatpush1.msra.mxu0 0.0
        %1957 = vmatprep.subr.mxu0 0.0
        %1958 = vmatpush1.msra.mxu0 0.0
        %1959 = vmatprep.subr.mxu0 0.0
        %1960 = vmatpush1.msra.mxu0 0.0
        %1961 = vmatprep.subr.mxu0 0.0
        %1962 = vmatpush1.msra.mxu0 0.0
        %1963 = vmatprep.subr.mxu0 0.0
        %1964 = vmatpush1.msra.mxu0 0.0
        %1965 = vmatprep.subr.mxu0 0.0
        %1966 = vmatpush1.msra.mxu0 0.0
        %1967 = vmatprep.subr.mxu0 0.0
        %1968 = vmatpush1.msra.mxu0 0.0
        %1969 = vmatprep.subr.mxu0 0.0
        %1970 = vmatpush1.msra.mxu0 0.0
        %1971 = vmatprep.subr.mxu0 0.0
        %1972 = vmatpush1.msra.mxu0 0.0
        %1973 = vmatprep.subr.mxu0 0.0
        %1974 = vmatpush1.msra.mxu0 0.0
        %1975 = vmatprep.subr.mxu0 0.0
        %1976 = vmatpush1.msra.mxu0 0.0
        %1977 = vmatprep.subr.mxu0 0.0
        %1978 = vmatpush1.msra.mxu0 0.0
        %1979 = vmatprep.subr.mxu0 0.0
        %1980 = vmatpush1.msra.mxu0 0.0
        %1981 = vmatprep.subr.mxu0 0.0
        %1982 = vmatpush1.msra.mxu0 0.0
        %1983 = vmatprep.subr.mxu0 0.0
        %1984 = vmatpush1.msra.mxu0 0.0
        %1985 = vmatprep.subr.mxu0 0.0
        %1986 = vmatpush1.msra.mxu0 0.0
        %1987 = vmatprep.subr.mxu0 0.0
        %1988 = vmatpush1.msra.mxu0 0.0
        %1989 = vmatprep.subr.mxu0 0.0
        %1990 = vmatpush1.msra.mxu0 0.0
        %1991 = vmatprep.mubr.f32.mxu0 0.0
        %1992 = vmatmul.mubr.f32.gmra.mrb[0].mxu0 %v1925
        %v1993 = vpop.f32.mrb[0].mxu0
        %v1994 = vadd.f32 0.0, %v1993
        %v1995 = vpop.f32.mrb[0].mxu0
        %1996 = vdwg.mxu0
        %1997 = vrot.lane.b32.xlu0 %v1174, 88
        %v1998 = vpop.permute.xlu0 %1997
        %1999 = vrot.lane.b32.xlu0 %v1090, 88
        %v2000 = vpop.permute.xlu0 %1999
        %v2001 = vsel %vm1175, %v1998, 0
        %v2003 = vsel %vm1175, %v2000, 0
        %2005 = vmatprep.subr.mxu0 0.0
        %2006 = vmatpush1.xpose.msra.mxu0 %v2003
        %2007 = vmatprep.subr.mxu0 0.0
        %2008 = vmatpush1.xpose.msra.mxu0 0.0
        %2009 = vmatprep.subr.mxu0 0.0
        %2010 = vmatpush1.xpose.msra.mxu0 0.0
        %2011 = vmatprep.subr.mxu0 0.0
        %2012 = vmatpush1.xpose.msra.mxu0 0.0
        %2013 = vmatprep.subr.mxu0 0.0
        %2014 = vmatpush1.xpose.msra.mxu0 0.0
        %2015 = vmatprep.subr.mxu0 0.0
        %2016 = vmatpush1.xpose.msra.mxu0 0.0
        %2017 = vmatprep.subr.mxu0 0.0
        %2018 = vmatpush1.xpose.msra.mxu0 0.0
        %2019 = vmatprep.subr.mxu0 0.0
        %2020 = vmatpush1.xpose.msra.mxu0 0.0
        %2021 = vmatprep.subr.mxu0 0.0
        %2022 = vmatpush1.xpose.msra.mxu0 0.0
        %2023 = vmatprep.subr.mxu0 0.0
        %2024 = vmatpush1.xpose.msra.mxu0 0.0
        %2025 = vmatprep.subr.mxu0 0.0
        %2026 = vmatpush1.xpose.msra.mxu0 0.0
        %2027 = vmatprep.subr.mxu0 0.0
        %2028 = vmatpush1.xpose.msra.mxu0 0.0
        %2029 = vmatprep.subr.mxu0 0.0
        %2030 = vmatpush1.xpose.msra.mxu0 0.0
        %2031 = vmatprep.subr.mxu0 0.0
        %2032 = vmatpush1.xpose.msra.mxu0 0.0
        %2033 = vmatprep.subr.mxu0 0.0
        %2034 = vmatpush1.xpose.msra.mxu0 0.0
        %2035 = vmatprep.subr.mxu0 0.0
        %2036 = vmatpush1.xpose.msra.mxu0 0.0
        %2037 = vmatprep.subr.mxu0 0.0
        %2038 = vmatpush1.xpose.msra.mxu0 0.0
        %2039 = vmatprep.subr.mxu0 0.0
        %2040 = vmatpush1.xpose.msra.mxu0 0.0
        %2041 = vmatprep.subr.mxu0 0.0
        %2042 = vmatpush1.xpose.msra.mxu0 0.0
        %2043 = vmatprep.subr.mxu0 0.0
        %2044 = vmatpush1.xpose.msra.mxu0 0.0
        %2045 = vmatprep.subr.mxu0 0.0
        %2046 = vmatpush1.xpose.msra.mxu0 0.0
        %2047 = vmatprep.subr.mxu0 0.0
        %2048 = vmatpush1.xpose.msra.mxu0 0.0
        %2049 = vmatprep.subr.mxu0 0.0
        %2050 = vmatpush1.xpose.msra.mxu0 0.0
        %2051 = vmatprep.subr.mxu0 0.0
        %2052 = vmatpush1.xpose.msra.mxu0 0.0
        %2053 = vmatprep.subr.mxu0 0.0
        %2054 = vmatpush1.xpose.msra.mxu0 0.0
        %2055 = vmatprep.subr.mxu0 0.0
        %2056 = vmatpush1.xpose.msra.mxu0 0.0
        %2057 = vmatprep.subr.mxu0 0.0
        %2058 = vmatpush1.xpose.msra.mxu0 0.0
        %2059 = vmatprep.subr.mxu0 0.0
        %2060 = vmatpush1.xpose.msra.mxu0 0.0
        %2061 = vmatprep.subr.mxu0 0.0
        %2062 = vmatpush1.xpose.msra.mxu0 0.0
        %2063 = vmatprep.subr.mxu0 0.0
        %2064 = vmatpush1.xpose.msra.mxu0 0.0
        %2065 = vmatprep.subr.mxu0 0.0
        %2066 = vmatpush1.xpose.msra.mxu0 0.0
        %2067 = vmatprep.subr.mxu0 0.0
        %2068 = vmatpush1.xpose.msra.mxu0 0.0
        %2069 = vmatprep.mubr.f32.mxu0 0.0
        %2070 = vmatmul.mubr.f32.gmra.mrb[0].mxu0 %v2001
        %v2071 = vpop.f32.mrb[0].mxu0
        %v2072 = vadd.f32 0.0, %v2071
        %v2073 = vpop.f32.mrb[0].mxu0
        %2074 = vdwg.mxu0
        %v2075 = vsel %vm1175, %v2072, -inf
        %2076 = vmax.xlane.f32.xlu0 %v2075
        %v2077 = vpop.xlane.xlu0 %2076
        %v2078 = vsub.f32 %v2072, %v2077
        %v2079 = vmul.f32 %v2078, 1.442695
        %v2080 = vpow.pop %v2079
        %v2081 = vsel %vm1175, %v2080, 0.0
        %2082 = vadd.xlane.f32.xlu0 %v2081
        %v2083 = vpop.xlane.xlu0 %2082
        %v2084 = vrcp.pop %v2083
        %v2085 = vmul.f32 %v2080, %v2084
        %2086 = vrot.lane.b32.xlu0 %v1169, 88
        %v2087 = vpop.permute.xlu0 %2086
        %v2090 = vsel %vm1175, %v2085, 0
        %2092 = vmatprep.subr.mxu0 0.0
        %2093 = vmatpush1.msra.mxu0 %v2087
        %2094 = vmatprep.subr.mxu0 0.0
        %2095 = vmatpush1.msra.mxu0 0.0
        %2096 = vmatprep.subr.mxu0 0.0
        %2097 = vmatpush1.msra.mxu0 0.0
        %2098 = vmatprep.subr.mxu0 0.0
        %2099 = vmatpush1.msra.mxu0 0.0
        %2100 = vmatprep.subr.mxu0 0.0
        %2101 = vmatpush1.msra.mxu0 0.0
        %2102 = vmatprep.subr.mxu0 0.0
        %2103 = vmatpush1.msra.mxu0 0.0
        %2104 = vmatprep.subr.mxu0 0.0
        %2105 = vmatpush1.msra.mxu0 0.0
        %2106 = vmatprep.subr.mxu0 0.0
        %2107 = vmatpush1.msra.mxu0 0.0
        %2108 = vmatprep.subr.mxu0 0.0
        %2109 = vmatpush1.msra.mxu0 0.0
        %2110 = vmatprep.subr.mxu0 0.0
        %2111 = vmatpush1.msra.mxu0 0.0
        %2112 = vmatprep.subr.mxu0 0.0
        %2113 = vmatpush1.msra.mxu0 0.0
        %2114 = vmatprep.subr.mxu0 0.0
        %2115 = vmatpush1.msra.mxu0 0.0
        %2116 = vmatprep.subr.mxu0 0.0
        %2117 = vmatpush1.msra.mxu0 0.0
        %2118 = vmatprep.subr.mxu0 0.0
        %2119 = vmatpush1.msra.mxu0 0.0
        %2120 = vmatprep.subr.mxu0 0.0
        %2121 = vmatpush1.msra.mxu0 0.0
        %2122 = vmatprep.subr.mxu0 0.0
        %2123 = vmatpush1.msra.mxu0 0.0
        %2124 = vmatprep.subr.mxu0 0.0
        %2125 = vmatpush1.msra.mxu0 0.0
        %2126 = vmatprep.subr.mxu0 0.0
        %2127 = vmatpush1.msra.mxu0 0.0
        %2128 = vmatprep.subr.mxu0 0.0
        %2129 = vmatpush1.msra.mxu0 0.0
        %2130 = vmatprep.subr.mxu0 0.0
        %2131 = vmatpush1.msra.mxu0 0.0
        %2132 = vmatprep.subr.mxu0 0.0
        %2133 = vmatpush1.msra.mxu0 0.0
        %2134 = vmatprep.subr.mxu0 0.0
        %2135 = vmatpush1.msra.mxu0 0.0
        %2136 = vmatprep.subr.mxu0 0.0
        %2137 = vmatpush1.msra.mxu0 0.0
        %2138 = vmatprep.subr.mxu0 0.0
        %2139 = vmatpush1.msra.mxu0 0.0
        %2140 = vmatprep.subr.mxu0 0.0
        %2141 = vmatpush1.msra.mxu0 0.0
        %2142 = vmatprep.subr.mxu0 0.0
        %2143 = vmatpush1.msra.mxu0 0.0
        %2144 = vmatprep.subr.mxu0 0.0
        %2145 = vmatpush1.msra.mxu0 0.0
        %2146 = vmatprep.subr.mxu0 0.0
        %2147 = vmatpush1.msra.mxu0 0.0
        %2148 = vmatprep.subr.mxu0 0.0
        %2149 = vmatpush1.msra.mxu0 0.0
        %2150 = vmatprep.subr.mxu0 0.0
        %2151 = vmatpush1.msra.mxu0 0.0
        %2152 = vmatprep.subr.mxu0 0.0
        %2153 = vmatpush1.msra.mxu0 0.0
        %2154 = vmatprep.subr.mxu0 0.0
        %2155 = vmatpush1.msra.mxu0 0.0
        %2156 = vmatprep.mubr.f32.mxu0 0.0
        %2157 = vmatmul.mubr.f32.gmra.mrb[0].mxu0 %v2090
        %v2158 = vpop.f32.mrb[0].mxu0
        %v2159 = vadd.f32 0.0, %v2158
        %v2160 = vpop.f32.mrb[0].mxu0
        %2161 = vdwg.mxu0
        %2162 = vrot.lane.b32.xlu0 %v1174, 80
        %v2163 = vpop.permute.xlu0 %2162
        %2164 = vrot.lane.b32.xlu0 %v1090, 80
        %v2165 = vpop.permute.xlu0 %2164
        %v2166 = vsel %vm1175, %v2163, 0
        %v2168 = vsel %vm1175, %v2165, 0
        %2170 = vmatprep.subr.mxu0 0.0
        %2171 = vmatpush1.xpose.msra.mxu0 %v2168
        %2172 = vmatprep.subr.mxu0 0.0
        %2173 = vmatpush1.xpose.msra.mxu0 0.0
        %2174 = vmatprep.subr.mxu0 0.0
        %2175 = vmatpush1.xpose.msra.mxu0 0.0
        %2176 = vmatprep.subr.mxu0 0.0
        %2177 = vmatpush1.xpose.msra.mxu0 0.0
        %2178 = vmatprep.subr.mxu0 0.0
        %2179 = vmatpush1.xpose.msra.mxu0 0.0
        %2180 = vmatprep.subr.mxu0 0.0
        %2181 = vmatpush1.xpose.msra.mxu0 0.0
        %2182 = vmatprep.subr.mxu0 0.0
        %2183 = vmatpush1.xpose.msra.mxu0 0.0
        %2184 = vmatprep.subr.mxu0 0.0
        %2185 = vmatpush1.xpose.msra.mxu0 0.0
        %2186 = vmatprep.subr.mxu0 0.0
        %2187 = vmatpush1.xpose.msra.mxu0 0.0
        %2188 = vmatprep.subr.mxu0 0.0
        %2189 = vmatpush1.xpose.msra.mxu0 0.0
        %2190 = vmatprep.subr.mxu0 0.0
        %2191 = vmatpush1.xpose.msra.mxu0 0.0
        %2192 = vmatprep.subr.mxu0 0.0
        %2193 = vmatpush1.xpose.msra.mxu0 0.0
        %2194 = vmatprep.subr.mxu0 0.0
        %2195 = vmatpush1.xpose.msra.mxu0 0.0
        %2196 = vmatprep.subr.mxu0 0.0
        %2197 = vmatpush1.xpose.msra.mxu0 0.0
        %2198 = vmatprep.subr.mxu0 0.0
        %2199 = vmatpush1.xpose.msra.mxu0 0.0
        %2200 = vmatprep.subr.mxu0 0.0
        %2201 = vmatpush1.xpose.msra.mxu0 0.0
        %2202 = vmatprep.subr.mxu0 0.0
        %2203 = vmatpush1.xpose.msra.mxu0 0.0
        %2204 = vmatprep.subr.mxu0 0.0
        %2205 = vmatpush1.xpose.msra.mxu0 0.0
        %2206 = vmatprep.subr.mxu0 0.0
        %2207 = vmatpush1.xpose.msra.mxu0 0.0
        %2208 = vmatprep.subr.mxu0 0.0
        %2209 = vmatpush1.xpose.msra.mxu0 0.0
        %2210 = vmatprep.subr.mxu0 0.0
        %2211 = vmatpush1.xpose.msra.mxu0 0.0
        %2212 = vmatprep.subr.mxu0 0.0
        %2213 = vmatpush1.xpose.msra.mxu0 0.0
        %2214 = vmatprep.subr.mxu0 0.0
        %2215 = vmatpush1.xpose.msra.mxu0 0.0
        %2216 = vmatprep.subr.mxu0 0.0
        %2217 = vmatpush1.xpose.msra.mxu0 0.0
        %2218 = vmatprep.subr.mxu0 0.0
        %2219 = vmatpush1.xpose.msra.mxu0 0.0
        %2220 = vmatprep.subr.mxu0 0.0
        %2221 = vmatpush1.xpose.msra.mxu0 0.0
        %2222 = vmatprep.subr.mxu0 0.0
        %2223 = vmatpush1.xpose.msra.mxu0 0.0
        %2224 = vmatprep.subr.mxu0 0.0
        %2225 = vmatpush1.xpose.msra.mxu0 0.0
        %2226 = vmatprep.subr.mxu0 0.0
        %2227 = vmatpush1.xpose.msra.mxu0 0.0
        %2228 = vmatprep.subr.mxu0 0.0
        %2229 = vmatpush1.xpose.msra.mxu0 0.0
        %2230 = vmatprep.subr.mxu0 0.0
        %2231 = vmatpush1.xpose.msra.mxu0 0.0
        %2232 = vmatprep.subr.mxu0 0.0
        %2233 = vmatpush1.xpose.msra.mxu0 0.0
        %2234 = vmatprep.mubr.f32.mxu0 0.0
        %2235 = vmatmul.mubr.f32.gmra.mrb[0].mxu0 %v2166
        %v2236 = vpop.f32.mrb[0].mxu0
        %v2237 = vadd.f32 0.0, %v2236
        %v2238 = vpop.f32.mrb[0].mxu0
        %2239 = vdwg.mxu0
        %v2240 = vsel %vm1175, %v2237, -inf
        %2241 = vmax.xlane.f32.xlu0 %v2240
        %v2242 = vpop.xlane.xlu0 %2241
        %v2243 = vsub.f32 %v2237, %v2242
        %v2244 = vmul.f32 %v2243, 1.442695
        %v2245 = vpow.pop %v2244
        %v2246 = vsel %vm1175, %v2245, 0.0
        %2247 = vadd.xlane.f32.xlu0 %v2246
        %v2248 = vpop.xlane.xlu0 %2247
        %v2249 = vrcp.pop %v2248
        %v2250 = vmul.f32 %v2245, %v2249
        %2251 = vrot.lane.b32.xlu0 %v1169, 80
        %v2252 = vpop.permute.xlu0 %2251
        %v2255 = vsel %vm1175, %v2250, 0
        %2257 = vmatprep.subr.mxu0 0.0
        %2258 = vmatpush1.msra.mxu0 %v2252
        %2259 = vmatprep.subr.mxu0 0.0
        %2260 = vmatpush1.msra.mxu0 0.0
        %2261 = vmatprep.subr.mxu0 0.0
        %2262 = vmatpush1.msra.mxu0 0.0
        %2263 = vmatprep.subr.mxu0 0.0
        %2264 = vmatpush1.msra.mxu0 0.0
        %2265 = vmatprep.subr.mxu0 0.0
        %2266 = vmatpush1.msra.mxu0 0.0
        %2267 = vmatprep.subr.mxu0 0.0
        %2268 = vmatpush1.msra.mxu0 0.0
        %2269 = vmatprep.subr.mxu0 0.0
        %2270 = vmatpush1.msra.mxu0 0.0
        %2271 = vmatprep.subr.mxu0 0.0
        %2272 = vmatpush1.msra.mxu0 0.0
        %2273 = vmatprep.subr.mxu0 0.0
        %2274 = vmatpush1.msra.mxu0 0.0
        %2275 = vmatprep.subr.mxu0 0.0
        %2276 = vmatpush1.msra.mxu0 0.0
        %2277 = vmatprep.subr.mxu0 0.0
        %2278 = vmatpush1.msra.mxu0 0.0
        %2279 = vmatprep.subr.mxu0 0.0
        %2280 = vmatpush1.msra.mxu0 0.0
        %2281 = vmatprep.subr.mxu0 0.0
        %2282 = vmatpush1.msra.mxu0 0.0
        %2283 = vmatprep.subr.mxu0 0.0
        %2284 = vmatpush1.msra.mxu0 0.0
        %2285 = vmatprep.subr.mxu0 0.0
        %2286 = vmatpush1.msra.mxu0 0.0
        %2287 = vmatprep.subr.mxu0 0.0
        %2288 = vmatpush1.msra.mxu0 0.0
        %2289 = vmatprep.subr.mxu0 0.0
        %2290 = vmatpush1.msra.mxu0 0.0
        %2291 = vmatprep.subr.mxu0 0.0
        %2292 = vmatpush1.msra.mxu0 0.0
        %2293 = vmatprep.subr.mxu0 0.0
        %2294 = vmatpush1.msra.mxu0 0.0
        %2295 = vmatprep.subr.mxu0 0.0
        %2296 = vmatpush1.msra.mxu0 0.0
        %2297 = vmatprep.subr.mxu0 0.0
        %2298 = vmatpush1.msra.mxu0 0.0
        %2299 = vmatprep.subr.mxu0 0.0
        %2300 = vmatpush1.msra.mxu0 0.0
        %2301 = vmatprep.subr.mxu0 0.0
        %2302 = vmatpush1.msra.mxu0 0.0
        %2303 = vmatprep.subr.mxu0 0.0
        %2304 = vmatpush1.msra.mxu0 0.0
        %2305 = vmatprep.subr.mxu0 0.0
        %2306 = vmatpush1.msra.mxu0 0.0
        %2307 = vmatprep.subr.mxu0 0.0
        %2308 = vmatpush1.msra.mxu0 0.0
        %2309 = vmatprep.subr.mxu0 0.0
        %2310 = vmatpush1.msra.mxu0 0.0
        %2311 = vmatprep.subr.mxu0 0.0
        %2312 = vmatpush1.msra.mxu0 0.0
        %2313 = vmatprep.subr.mxu0 0.0
        %2314 = vmatpush1.msra.mxu0 0.0
        %2315 = vmatprep.subr.mxu0 0.0
        %2316 = vmatpush1.msra.mxu0 0.0
        %2317 = vmatprep.subr.mxu0 0.0
        %2318 = vmatpush1.msra.mxu0 0.0
        %2319 = vmatprep.subr.mxu0 0.0
        %2320 = vmatpush1.msra.mxu0 0.0
        %2321 = vmatprep.mubr.f32.mxu0 0.0
        %2322 = vmatmul.mubr.f32.gmra.mrb[0].mxu0 %v2255
        %v2323 = vpop.f32.mrb[0].mxu0
        %v2324 = vadd.f32 0.0, %v2323
        %v2325 = vpop.f32.mrb[0].mxu0
        %2326 = vdwg.mxu0
        %2327 = vrot.lane.b32.xlu0 %v1174, 72
        %v2328 = vpop.permute.xlu0 %2327
        %2329 = vrot.lane.b32.xlu0 %v1090, 72
        %v2330 = vpop.permute.xlu0 %2329
        %v2331 = vsel %vm1175, %v2328, 0
        %v2333 = vsel %vm1175, %v2330, 0
        %2335 = vmatprep.subr.mxu0 0.0
        %2336 = vmatpush1.xpose.msra.mxu0 %v2333
        %2337 = vmatprep.subr.mxu0 0.0
        %2338 = vmatpush1.xpose.msra.mxu0 0.0
        %2339 = vmatprep.subr.mxu0 0.0
        %2340 = vmatpush1.xpose.msra.mxu0 0.0
        %2341 = vmatprep.subr.mxu0 0.0
        %2342 = vmatpush1.xpose.msra.mxu0 0.0
        %2343 = vmatprep.subr.mxu0 0.0
        %2344 = vmatpush1.xpose.msra.mxu0 0.0
        %2345 = vmatprep.subr.mxu0 0.0
        %2346 = vmatpush1.xpose.msra.mxu0 0.0
        %2347 = vmatprep.subr.mxu0 0.0
        %2348 = vmatpush1.xpose.msra.mxu0 0.0
        %2349 = vmatprep.subr.mxu0 0.0
        %2350 = vmatpush1.xpose.msra.mxu0 0.0
        %2351 = vmatprep.subr.mxu0 0.0
        %2352 = vmatpush1.xpose.msra.mxu0 0.0
        %2353 = vmatprep.subr.mxu0 0.0
        %2354 = vmatpush1.xpose.msra.mxu0 0.0
        %2355 = vmatprep.subr.mxu0 0.0
        %2356 = vmatpush1.xpose.msra.mxu0 0.0
        %2357 = vmatprep.subr.mxu0 0.0
        %2358 = vmatpush1.xpose.msra.mxu0 0.0
        %2359 = vmatprep.subr.mxu0 0.0
        %2360 = vmatpush1.xpose.msra.mxu0 0.0
        %2361 = vmatprep.subr.mxu0 0.0
        %2362 = vmatpush1.xpose.msra.mxu0 0.0
        %2363 = vmatprep.subr.mxu0 0.0
        %2364 = vmatpush1.xpose.msra.mxu0 0.0
        %2365 = vmatprep.subr.mxu0 0.0
        %2366 = vmatpush1.xpose.msra.mxu0 0.0
        %2367 = vmatprep.subr.mxu0 0.0
        %2368 = vmatpush1.xpose.msra.mxu0 0.0
        %2369 = vmatprep.subr.mxu0 0.0
        %2370 = vmatpush1.xpose.msra.mxu0 0.0
        %2371 = vmatprep.subr.mxu0 0.0
        %2372 = vmatpush1.xpose.msra.mxu0 0.0
        %2373 = vmatprep.subr.mxu0 0.0
        %2374 = vmatpush1.xpose.msra.mxu0 0.0
        %2375 = vmatprep.subr.mxu0 0.0
        %2376 = vmatpush1.xpose.msra.mxu0 0.0
        %2377 = vmatprep.subr.mxu0 0.0
        %2378 = vmatpush1.xpose.msra.mxu0 0.0
        %2379 = vmatprep.subr.mxu0 0.0
        %2380 = vmatpush1.xpose.msra.mxu0 0.0
        %2381 = vmatprep.subr.mxu0 0.0
        %2382 = vmatpush1.xpose.msra.mxu0 0.0
        %2383 = vmatprep.subr.mxu0 0.0
        %2384 = vmatpush1.xpose.msra.mxu0 0.0
        %2385 = vmatprep.subr.mxu0 0.0
        %2386 = vmatpush1.xpose.msra.mxu0 0.0
        %2387 = vmatprep.subr.mxu0 0.0
        %2388 = vmatpush1.xpose.msra.mxu0 0.0
        %2389 = vmatprep.subr.mxu0 0.0
        %2390 = vmatpush1.xpose.msra.mxu0 0.0
        %2391 = vmatprep.subr.mxu0 0.0
        %2392 = vmatpush1.xpose.msra.mxu0 0.0
        %2393 = vmatprep.subr.mxu0 0.0
        %2394 = vmatpush1.xpose.msra.mxu0 0.0
        %2395 = vmatprep.subr.mxu0 0.0
        %2396 = vmatpush1.xpose.msra.mxu0 0.0
        %2397 = vmatprep.subr.mxu0 0.0
        %2398 = vmatpush1.xpose.msra.mxu0 0.0
        %2399 = vmatprep.mubr.f32.mxu0 0.0
        %2400 = vmatmul.mubr.f32.gmra.mrb[0].mxu0 %v2331
        %v2401 = vpop.f32.mrb[0].mxu0
        %v2402 = vadd.f32 0.0, %v2401
        %v2403 = vpop.f32.mrb[0].mxu0
        %2404 = vdwg.mxu0
        %v2405 = vsel %vm1175, %v2402, -inf
        %2406 = vmax.xlane.f32.xlu0 %v2405
        %v2407 = vpop.xlane.xlu0 %2406
        %v2408 = vsub.f32 %v2402, %v2407
        %v2409 = vmul.f32 %v2408, 1.442695
        %v2410 = vpow.pop %v2409
        %v2411 = vsel %vm1175, %v2410, 0.0
        %2412 = vadd.xlane.f32.xlu0 %v2411
        %v2413 = vpop.xlane.xlu0 %2412
        %v2414 = vrcp.pop %v2413
        %v2415 = vmul.f32 %v2410, %v2414
        %2416 = vrot.lane.b32.xlu0 %v1169, 72
        %v2417 = vpop.permute.xlu0 %2416
        %v2420 = vsel %vm1175, %v2415, 0
        %2422 = vmatprep.subr.mxu0 0.0
        %2423 = vmatpush1.msra.mxu0 %v2417
        %2424 = vmatprep.subr.mxu0 0.0
        %2425 = vmatpush1.msra.mxu0 0.0
        %2426 = vmatprep.subr.mxu0 0.0
        %2427 = vmatpush1.msra.mxu0 0.0
        %2428 = vmatprep.subr.mxu0 0.0
        %2429 = vmatpush1.msra.mxu0 0.0
        %2430 = vmatprep.subr.mxu0 0.0
        %2431 = vmatpush1.msra.mxu0 0.0
        %2432 = vmatprep.subr.mxu0 0.0
        %2433 = vmatpush1.msra.mxu0 0.0
        %2434 = vmatprep.subr.mxu0 0.0
        %2435 = vmatpush1.msra.mxu0 0.0
        %2436 = vmatprep.subr.mxu0 0.0
        %2437 = vmatpush1.msra.mxu0 0.0
        %2438 = vmatprep.subr.mxu0 0.0
        %2439 = vmatpush1.msra.mxu0 0.0
        %2440 = vmatprep.subr.mxu0 0.0
        %2441 = vmatpush1.msra.mxu0 0.0
        %2442 = vmatprep.subr.mxu0 0.0
        %2443 = vmatpush1.msra.mxu0 0.0
        %2444 = vmatprep.subr.mxu0 0.0
        %2445 = vmatpush1.msra.mxu0 0.0
        %2446 = vmatprep.subr.mxu0 0.0
        %2447 = vmatpush1.msra.mxu0 0.0
        %2448 = vmatprep.subr.mxu0 0.0
        %2449 = vmatpush1.msra.mxu0 0.0
        %2450 = vmatprep.subr.mxu0 0.0
        %2451 = vmatpush1.msra.mxu0 0.0
        %2452 = vmatprep.subr.mxu0 0.0
        %2453 = vmatpush1.msra.mxu0 0.0
        %2454 = vmatprep.subr.mxu0 0.0
        %2455 = vmatpush1.msra.mxu0 0.0
        %2456 = vmatprep.subr.mxu0 0.0
        %2457 = vmatpush1.msra.mxu0 0.0
        %2458 = vmatprep.subr.mxu0 0.0
        %2459 = vmatpush1.msra.mxu0 0.0
        %2460 = vmatprep.subr.mxu0 0.0
        %2461 = vmatpush1.msra.mxu0 0.0
        %2462 = vmatprep.subr.mxu0 0.0
        %2463 = vmatpush1.msra.mxu0 0.0
        %2464 = vmatprep.subr.mxu0 0.0
        %2465 = vmatpush1.msra.mxu0 0.0
        %2466 = vmatprep.subr.mxu0 0.0
        %2467 = vmatpush1.msra.mxu0 0.0
        %2468 = vmatprep.subr.mxu0 0.0
        %2469 = vmatpush1.msra.mxu0 0.0
        %2470 = vmatprep.subr.mxu0 0.0
        %2471 = vmatpush1.msra.mxu0 0.0
        %2472 = vmatprep.subr.mxu0 0.0
        %2473 = vmatpush1.msra.mxu0 0.0
        %2474 = vmatprep.subr.mxu0 0.0
        %2475 = vmatpush1.msra.mxu0 0.0
        %2476 = vmatprep.subr.mxu0 0.0
        %2477 = vmatpush1.msra.mxu0 0.0
        %2478 = vmatprep.subr.mxu0 0.0
        %2479 = vmatpush1.msra.mxu0 0.0
        %2480 = vmatprep.subr.mxu0 0.0
        %2481 = vmatpush1.msra.mxu0 0.0
        %2482 = vmatprep.subr.mxu0 0.0
        %2483 = vmatpush1.msra.mxu0 0.0
        %2484 = vmatprep.subr.mxu0 0.0
        %2485 = vmatpush1.msra.mxu0 0.0
        %2486 = vmatprep.mubr.f32.mxu0 0.0
        %2487 = vmatmul.mubr.f32.gmra.mrb[0].mxu0 %v2420
        %v2488 = vpop.f32.mrb[0].mxu0
        %v2489 = vadd.f32 0.0, %v2488
        %v2490 = vpop.f32.mrb[0].mxu0
        %2491 = vdwg.mxu0
        %2493 = vrot.lane.b32.xlu0 %v1499, 8
        %v2494 = vpop.permute.xlu0 %2493
        %2497 = vrot.lane.b32.xlu0 %v1664, 16
        %v2498 = vpop.permute.xlu0 %2497
        %2501 = vrot.lane.b32.xlu0 %v1829, 24
        %v2502 = vpop.permute.xlu0 %2501
        %2505 = vrot.lane.b32.xlu0 %v1994, 32
        %v2506 = vpop.permute.xlu0 %2505
        %2509 = vrot.lane.b32.xlu0 %v2159, 40
        %v2510 = vpop.permute.xlu0 %2509
        %2513 = vrot.lane.b32.xlu0 %v2324, 48
        %v2514 = vpop.permute.xlu0 %2513
        %2517 = vrot.lane.b32.xlu0 %v2489, 56
        %v2518 = vpop.permute.xlu0 %2517
        %v2520 = vsel %vm1175, %v1333, %v2494
        %vm2521 = vcmask 130048
        %v2522 = vsel %vm2521, %v2520, %v2498
        %vm2523 = vcmask 195584
        %v2524 = vsel %vm2523, %v2522, %v2502
        %vm2525 = vcmask 261120
        %v2526 = vsel %vm2525, %v2524, %v2506
        %vm2527 = vcmask 326656
        %v2528 = vsel %vm2527, %v2526, %v2510
        %vm2529 = vcmask 392192
        %v2530 = vsel %vm2529, %v2528, %v2514
        %vm2531 = vcmask 457728
        %v2532 = vsel %vm2531, %v2530, %v2518
        %v2533 = vmul.f32 %v1008, %v1008
        %v2534 = vsel %vm969, %v2533, 0.0
        %2535 = vadd.xlane.f32.xlu0 %v2534
        %v2536 = vpop.xlane.xlu0 %2535
        %v2537 = vrsqrt.pop %v2536
        %v2538 = vmul.f32 %v2536, %v2537
        %vm2539 = vcmp.eq.f32.partialorder %v2536, inf
        %v2540 = vsel %vm2539, %v2536, %v2538
        %vm2541 = vcmp.eq.f32.partialorder %v2536, 0.0
        %v2542 = vand.u32 %v2536, 2147483648
        %v2543 = vsel %vm2541, %v2542, %v2540
        %v2544 = vmul.f32 %v2532, %v2532
        %v2545 = vsel %vm969, %v2544, 0.0
        %2546 = vadd.xlane.f32.xlu0 %v2545
        %v2547 = vpop.xlane.xlu0 %2546
        %v2548 = vrsqrt.pop %v2547
        %v2549 = vmul.f32 %v2547, %v2548
        %vm2550 = vcmp.eq.f32.partialorder %v2547, inf
        %v2551 = vsel %vm2550, %v2547, %v2549
        %vm2552 = vcmp.eq.f32.partialorder %v2547, 0.0
        %v2553 = vand.u32 %v2547, 2147483648
        %v2554 = vsel %vm2552, %v2553, %v2551
        %v2556 = vsel %vm969, %v1008, 0
        %v2559 = vsel %vm969, %v2532, 0
        %2561 = vmatprep.subr.mxu0 0.0
        %2562 = vmatpush1.xpose.msra.mxu0 %v2559
        %2563 = vmatprep.subr.mxu0 0.0
        %2564 = vmatpush1.xpose.msra.mxu0 0.0
        %2565 = vmatprep.subr.mxu0 0.0
        %2566 = vmatpush1.xpose.msra.mxu0 0.0
        %2567 = vmatprep.subr.mxu0 0.0
        %2568 = vmatpush1.xpose.msra.mxu0 0.0
        %2569 = vmatprep.subr.mxu0 0.0
        %2570 = vmatpush1.xpose.msra.mxu0 0.0
        %2571 = vmatprep.subr.mxu0 0.0
        %2572 = vmatpush1.xpose.msra.mxu0 0.0
        %2573 = vmatprep.subr.mxu0 0.0
        %2574 = vmatpush1.xpose.msra.mxu0 0.0
        %2575 = vmatprep.subr.mxu0 0.0
        %2576 = vmatpush1.xpose.msra.mxu0 0.0
        %2577 = vmatprep.subr.mxu0 0.0
        %2578 = vmatpush1.xpose.msra.mxu0 0.0
        %2579 = vmatprep.subr.mxu0 0.0
        %2580 = vmatpush1.xpose.msra.mxu0 0.0
        %2581 = vmatprep.subr.mxu0 0.0
        %2582 = vmatpush1.xpose.msra.mxu0 0.0
        %2583 = vmatprep.subr.mxu0 0.0
        %2584 = vmatpush1.xpose.msra.mxu0 0.0
        %2585 = vmatprep.subr.mxu0 0.0
        %2586 = vmatpush1.xpose.msra.mxu0 0.0
        %2587 = vmatprep.subr.mxu0 0.0
        %2588 = vmatpush1.xpose.msra.mxu0 0.0
        %2589 = vmatprep.subr.mxu0 0.0
        %2590 = vmatpush1.xpose.msra.mxu0 0.0
        %2591 = vmatprep.subr.mxu0 0.0
        %2592 = vmatpush1.xpose.msra.mxu0 0.0
        %2593 = vmatprep.subr.mxu0 0.0
        %2594 = vmatpush1.xpose.msra.mxu0 0.0
        %2595 = vmatprep.subr.mxu0 0.0
        %2596 = vmatpush1.xpose.msra.mxu0 0.0
        %2597 = vmatprep.subr.mxu0 0.0
        %2598 = vmatpush1.xpose.msra.mxu0 0.0
        %2599 = vmatprep.subr.mxu0 0.0
        %2600 = vmatpush1.xpose.msra.mxu0 0.0
        %2601 = vmatprep.subr.mxu0 0.0
        %2602 = vmatpush1.xpose.msra.mxu0 0.0
        %2603 = vmatprep.subr.mxu0 0.0
        %2604 = vmatpush1.xpose.msra.mxu0 0.0
        %2605 = vmatprep.subr.mxu0 0.0
        %2606 = vmatpush1.xpose.msra.mxu0 0.0
        %2607 = vmatprep.subr.mxu0 0.0
        %2608 = vmatpush1.xpose.msra.mxu0 0.0
        %2609 = vmatprep.subr.mxu0 0.0
        %2610 = vmatpush1.xpose.msra.mxu0 0.0
        %2611 = vmatprep.subr.mxu0 0.0
        %2612 = vmatpush1.xpose.msra.mxu0 0.0
        %2613 = vmatprep.subr.mxu0 0.0
        %2614 = vmatpush1.xpose.msra.mxu0 0.0
        %2615 = vmatprep.subr.mxu0 0.0
        %2616 = vmatpush1.xpose.msra.mxu0 0.0
        %2617 = vmatprep.subr.mxu0 0.0
        %2618 = vmatpush1.xpose.msra.mxu0 0.0
        %2619 = vmatprep.subr.mxu0 0.0
        %2620 = vmatpush1.xpose.msra.mxu0 0.0
        %2621 = vmatprep.subr.mxu0 0.0
        %2622 = vmatpush1.xpose.msra.mxu0 0.0
        %2623 = vmatprep.subr.mxu0 0.0
        %2624 = vmatpush1.xpose.msra.mxu0 0.0
        %2625 = vmatprep.mubr.f32.mxu0 0.0
        %2626 = vmatmul.mubr.f32.gmra.mrb[0].mxu0 %v2556
        %v2627 = vpop.f32.mrb[0].mxu0
        %v2628 = vadd.f32 0.0, %v2627
        %v2629 = vpop.f32.mrb[0].mxu0
        %2630 = vdwg.mxu0
        %vm2631 = vcmask 7168
        %v2633 = vsel %vm2631, %v2543, 0
        %v2636 = vsel %vm2631, %v2554, 0
        %2638 = vmatprep.subr.mxu0 0.0
        %2639 = vmatpush1.xpose.msra.mxu0 %v2636
        %2640 = vmatprep.subr.mxu0 0.0
        %2641 = vmatpush1.xpose.msra.mxu0 0.0
        %2642 = vmatprep.subr.mxu0 0.0
        %2643 = vmatpush1.xpose.msra.mxu0 0.0
        %2644 = vmatprep.subr.mxu0 0.0
        %2645 = vmatpush1.xpose.msra.mxu0 0.0
        %2646 = vmatprep.subr.mxu0 0.0
        %2647 = vmatpush1.xpose.msra.mxu0 0.0
        %2648 = vmatprep.subr.mxu0 0.0
        %2649 = vmatpush1.xpose.msra.mxu0 0.0
        %2650 = vmatprep.subr.mxu0 0.0
        %2651 = vmatpush1.xpose.msra.mxu0 0.0
        %2652 = vmatprep.subr.mxu0 0.0
        %2653 = vmatpush1.xpose.msra.mxu0 0.0
        %2654 = vmatprep.subr.mxu0 0.0
        %2655 = vmatpush1.xpose.msra.mxu0 0.0
        %2656 = vmatprep.subr.mxu0 0.0
        %2657 = vmatpush1.xpose.msra.mxu0 0.0
        %2658 = vmatprep.subr.mxu0 0.0
        %2659 = vmatpush1.xpose.msra.mxu0 0.0
        %2660 = vmatprep.subr.mxu0 0.0
        %2661 = vmatpush1.xpose.msra.mxu0 0.0
        %2662 = vmatprep.subr.mxu0 0.0
        %2663 = vmatpush1.xpose.msra.mxu0 0.0
        %2664 = vmatprep.subr.mxu0 0.0
        %2665 = vmatpush1.xpose.msra.mxu0 0.0
        %2666 = vmatprep.subr.mxu0 0.0
        %2667 = vmatpush1.xpose.msra.mxu0 0.0
        %2668 = vmatprep.subr.mxu0 0.0
        %2669 = vmatpush1.xpose.msra.mxu0 0.0
        %2670 = vmatprep.subr.mxu0 0.0
        %2671 = vmatpush1.xpose.msra.mxu0 0.0
        %2672 = vmatprep.subr.mxu0 0.0
        %2673 = vmatpush1.xpose.msra.mxu0 0.0
        %2674 = vmatprep.subr.mxu0 0.0
        %2675 = vmatpush1.xpose.msra.mxu0 0.0
        %2676 = vmatprep.subr.mxu0 0.0
        %2677 = vmatpush1.xpose.msra.mxu0 0.0
        %2678 = vmatprep.subr.mxu0 0.0
        %2679 = vmatpush1.xpose.msra.mxu0 0.0
        %2680 = vmatprep.subr.mxu0 0.0
        %2681 = vmatpush1.xpose.msra.mxu0 0.0
        %2682 = vmatprep.subr.mxu0 0.0
        %2683 = vmatpush1.xpose.msra.mxu0 0.0
        %2684 = vmatprep.subr.mxu0 0.0
        %2685 = vmatpush1.xpose.msra.mxu0 0.0
        %2686 = vmatprep.subr.mxu0 0.0
        %2687 = vmatpush1.xpose.msra.mxu0 0.0
        %2688 = vmatprep.subr.mxu0 0.0
        %2689 = vmatpush1.xpose.msra.mxu0 0.0
        %2690 = vmatprep.subr.mxu0 0.0
        %2691 = vmatpush1.xpose.msra.mxu0 0.0
        %2692 = vmatprep.subr.mxu0 0.0
        %2693 = vmatpush1.xpose.msra.mxu0 0.0
        %2694 = vmatprep.subr.mxu0 0.0
        %2695 = vmatpush1.xpose.msra.mxu0 0.0
        %2696 = vmatprep.subr.mxu0 0.0
        %2697 = vmatpush1.xpose.msra.mxu0 0.0
        %2698 = vmatprep.subr.mxu0 0.0
        %2699 = vmatpush1.xpose.msra.mxu0 0.0
        %2700 = vmatprep.subr.mxu0 0.0
        %2701 = vmatpush1.xpose.msra.mxu0 0.0
        %2702 = vmatprep.mubr.f32.mxu0 0.0
        %2703 = vmatmul.mubr.f32.gmra.mrb[0].mxu0 %v2633
        %v2704 = vpop.f32.mrb[0].mxu0
        %v2705 = vadd.f32 0.0, %v2704
        %v2706 = vpop.f32.mrb[0].mxu0
        %2707 = vdwg.mxu0
        %v2708 = vmax.f32 %v2705, 1e-08
        %v2709 = vrcp.pop %v2708
        %v2710 = vmul.f32 %v2628, %v2709
        %v2711 = vsel %vm1175, %v2710, 0.0
        %2712 = vadd.xlane.f32.xlu0 %v2711
        %v2713 = vpop.xlane.xlu0 %2712
        %v2714 = vrcp.pop %v2713
        %v2715 = vmul.f32 %v2710, %v2714
        %v2716 = vsel %vm1175, %v2715, -inf
        %2717 = vmax.xlane.f32.xlu0 %v2716
        %v2718 = vpop.xlane.xlu0 %2717
        %v2719 = vsub.f32 %v2715, %v2718
        %v2720 = vmul.f32 %v2719, 1.442695
        %v2721 = vpow.pop %v2720
        %v2722 = vsel %vm1175, %v2721, 0.0
        %2723 = vadd.xlane.f32.xlu0 %v2722
        %v2724 = vpop.xlane.xlu0 %2723
        %v2725 = vrcp.pop %v2724
        %v2726 = vmul.f32 %v2721, %v2725
        %v2728 = vsel %vm1175, %v2726, 0
        %2730 = vmatprep.subr.mxu0 0.0
        %2731 = vmatpush1.msra.mxu0 %v2532
        %2732 = vmatprep.subr.mxu0 0.0
        %2733 = vmatpush1.msra.mxu0 0.0
        %2734 = vmatprep.subr.mxu0 0.0
        %2735 = vmatpush1.msra.mxu0 0.0
        %2736 = vmatprep.subr.mxu0 0.0
        %2737 = vmatpush1.msra.mxu0 0.0
        %2738 = vmatprep.subr.mxu0 0.0
        %2739 = vmatpush1.msra.mxu0 0.0
        %2740 = vmatprep.subr.mxu0 0.0
        %2741 = vmatpush1.msra.mxu0 0.0
        %2742 = vmatprep.subr.mxu0 0.0
        %2743 = vmatpush1.msra.mxu0 0.0
        %2744 = vmatprep.subr.mxu0 0.0
        %2745 = vmatpush1.msra.mxu0 0.0
        %2746 = vmatprep.subr.mxu0 0.0
        %2747 = vmatpush1.msra.mxu0 0.0
        %2748 = vmatprep.subr.mxu0 0.0
        %2749 = vmatpush1.msra.mxu0 0.0
        %2750 = vmatprep.subr.mxu0 0.0
        %2751 = vmatpush1.msra.mxu0 0.0
        %2752 = vmatprep.subr.mxu0 0.0
        %2753 = vmatpush1.msra.mxu0 0.0
        %2754 = vmatprep.subr.mxu0 0.0
        %2755 = vmatpush1.msra.mxu0 0.0
        %2756 = vmatprep.subr.mxu0 0.0
        %2757 = vmatpush1.msra.mxu0 0.0
        %2758 = vmatprep.subr.mxu0 0.0
        %2759 = vmatpush1.msra.mxu0 0.0
        %2760 = vmatprep.subr.mxu0 0.0
        %2761 = vmatpush1.msra.mxu0 0.0
        %2762 = vmatprep.subr.mxu0 0.0
        %2763 = vmatpush1.msra.mxu0 0.0
        %2764 = vmatprep.subr.mxu0 0.0
        %2765 = vmatpush1.msra.mxu0 0.0
        %2766 = vmatprep.subr.mxu0 0.0
        %2767 = vmatpush1.msra.mxu0 0.0
        %2768 = vmatprep.subr.mxu0 0.0
        %2769 = vmatpush1.msra.mxu0 0.0
        %2770 = vmatprep.subr.mxu0 0.0
        %2771 = vmatpush1.msra.mxu0 0.0
        %2772 = vmatprep.subr.mxu0 0.0
        %2773 = vmatpush1.msra.mxu0 0.0
        %2774 = vmatprep.subr.mxu0 0.0
        %2775 = vmatpush1.msra.mxu0 0.0
        %2776 = vmatprep.subr.mxu0 0.0
        %2777 = vmatpush1.msra.mxu0 0.0
        %2778 = vmatprep.subr.mxu0 0.0
        %2779 = vmatpush1.msra.mxu0 0.0
        %2780 = vmatprep.subr.mxu0 0.0
        %2781 = vmatpush1.msra.mxu0 0.0
        %2782 = vmatprep.subr.mxu0 0.0
        %2783 = vmatpush1.msra.mxu0 0.0
        %2784 = vmatprep.subr.mxu0 0.0
        %2785 = vmatpush1.msra.mxu0 0.0
        %2786 = vmatprep.subr.mxu0 0.0
        %2787 = vmatpush1.msra.mxu0 0.0
        %2788 = vmatprep.subr.mxu0 0.0
        %2789 = vmatpush1.msra.mxu0 0.0
        %2790 = vmatprep.subr.mxu0 0.0
        %2791 = vmatpush1.msra.mxu0 0.0
        %2792 = vmatprep.subr.mxu0 0.0
        %2793 = vmatpush1.msra.mxu0 0.0
        %2794 = vmatprep.mubr.f32.mxu0 0.0
        %2795 = vmatmul.mubr.f32.gmra.mrb[0].mxu0 %v2728
        %v2796 = vpop.f32.mrb[0].mxu0
        %v2797 = vadd.f32 0.0, %v2796
        %v2798 = vpop.f32.mrb[0].mxu0
        %2799 = vdwg.mxu0
        %v2800 = vpack.c.bf16 %v2797, %v2797
        %v2801 = vld [vmem:[#allocation16] sm:$0xf]
        %v2802 = vld [vmem:[#allocation16 + $0x4] sm:$0xf]
        %v2803 = vld [vmem:[#allocation16 + $0x8] sm:$0xf]
        %v2804 = vld [vmem:[#allocation16 + $0xc] sm:$0xf]
        %v2805 = vld [vmem:[#allocation16 + $0x10] sm:$0xf]
        %v2806 = vld [vmem:[#allocation16 + $0x14] sm:$0xf]
        %v2807 = vld [vmem:[#allocation16 + $0x18] sm:$0xf]
        %v2808 = vld [vmem:[#allocation16 + $0x1c] sm:$0xf]
        %v2809 = vpack.c.bf16 %v1008, %v1008
        %v2810 = vld [vmem:[#allocation17] sm:$0xf]
        %v2811 = vld [vmem:[#allocation17 + $0x4] sm:$0xf]
        %v2812 = vld [vmem:[#allocation17 + $0x8] sm:$0xf]
        %v2813 = vld [vmem:[#allocation17 + $0xc] sm:$0xf]
        %v2814 = vld [vmem:[#allocation17 + $0x10] sm:$0xf]
        %v2815 = vld [vmem:[#allocation17 + $0x14] sm:$0xf]
        %v2816 = vld [vmem:[#allocation17 + $0x18] sm:$0xf]
        %v2817 = vld [vmem:[#allocation17 + $0x1c] sm:$0xf]
        %v2826 = vunpack.c.l.b16 %v2810
        %v2827 = vunpack.c.l.b16 %v2811
        %v2828 = vunpack.c.l.b16 %v2812
        %v2829 = vunpack.c.l.b16 %v2813
        %v2830 = vunpack.c.l.b16 %v2814
        %v2831 = vunpack.c.l.b16 %v2815
        %v2832 = vunpack.c.l.b16 %v2816
        %v2833 = vunpack.c.l.b16 %v2817
        %v2834 = vpack.c.b16 %v2827, %v2826
        %v2835 = vpack.c.b16 %v2829, %v2828
        %v2836 = vpack.c.b16 %v2831, %v2830
        %v2837 = vpack.c.b16 %v2833, %v2832
        %v2843 = vsel %vm969, %v2809, 0
        %2845 = vmatprep.subr.bf16.mxu0 0
        %2846 = vmatpush1.bf16.msra.mxu0 %v2834
        %2847 = vmatprep.subr.bf16.mxu0 0
        %2848 = vmatpush1.bf16.msra.mxu0 %v2835
        %2849 = vmatprep.subr.bf16.mxu0 0
        %2850 = vmatpush1.bf16.msra.mxu0 %v2836
        %2851 = vmatprep.subr.bf16.mxu0 0
        %2852 = vmatpush1.bf16.msra.mxu0 %v2837
        %2853 = vmatprep.subr.bf16.mxu0 0
        %2854 = vmatpush1.bf16.msra.mxu0 0
        %2855 = vmatprep.subr.bf16.mxu0 0
        %2856 = vmatpush1.bf16.msra.mxu0 0
        %2857 = vmatprep.subr.bf16.mxu0 0
        %2858 = vmatpush1.bf16.msra.mxu0 0
        %2859 = vmatprep.subr.bf16.mxu0 0
        %2860 = vmatpush1.bf16.msra.mxu0 0
        %2861 = vmatprep.subr.bf16.mxu0 0
        %2862 = vmatpush1.bf16.msra.mxu0 0
        %2863 = vmatprep.subr.bf16.mxu0 0
        %2864 = vmatpush1.bf16.msra.mxu0 0
        %2865 = vmatprep.subr.bf16.mxu0 0
        %2866 = vmatpush1.bf16.msra.mxu0 0
        %2867 = vmatprep.subr.bf16.mxu0 0
        %2868 = vmatpush1.bf16.msra.mxu0 0
        %2869 = vmatprep.subr.bf16.mxu0 0
        %2870 = vmatpush1.bf16.msra.mxu0 0
        %2871 = vmatprep.subr.bf16.mxu0 0
        %2872 = vmatpush1.bf16.msra.mxu0 0
        %2873 = vmatprep.subr.bf16.mxu0 0
        %2874 = vmatpush1.bf16.msra.mxu0 0
        %2875 = vmatprep.subr.bf16.mxu0 0
        %2876 = vmatpush1.bf16.msra.mxu0 0
        %2877 = vmatprep.mubr.bf16.mxu0 0
        %2878 = vmatmul.mubr.bf16.gmra.mrb[0].mxu0 %v2843
        %v2879 = vpop.f32.mrb[0].mxu0
        %v2880 = vadd.f32 0.0, %v2879
        %v2881 = vpop.f32.mrb[0].mxu0
        %v2882 = vpop.f32.mrb[0].mxu0
        %v2883 = vpop.f32.mrb[0].mxu0
        %2884 = vdwg.mxu0
        %v2893 = vunpack.c.l.b16 %v2801
        %v2894 = vunpack.c.l.b16 %v2802
        %v2895 = vunpack.c.l.b16 %v2803
        %v2896 = vunpack.c.l.b16 %v2804
        %v2897 = vunpack.c.l.b16 %v2805
        %v2898 = vunpack.c.l.b16 %v2806
        %v2899 = vunpack.c.l.b16 %v2807
        %v2900 = vunpack.c.l.b16 %v2808
        %v2901 = vpack.c.b16 %v2894, %v2893
        %v2902 = vpack.c.b16 %v2896, %v2895
        %v2903 = vpack.c.b16 %v2898, %v2897
        %v2904 = vpack.c.b16 %v2900, %v2899
        %v2910 = vsel %vm969, %v2800, 0
        %2912 = vmatprep.subr.bf16.mxu0 0
        %2913 = vmatpush1.bf16.msra.mxu0 %v2901
        %2914 = vmatprep.subr.bf16.mxu0 0
        %2915 = vmatpush1.bf16.msra.mxu0 %v2902
        %2916 = vmatprep.subr.bf16.mxu0 0
        %2917 = vmatpush1.bf16.msra.mxu0 %v2903
        %2918 = vmatprep.subr.bf16.mxu0 0
        %2919 = vmatpush1.bf16.msra.mxu0 %v2904
        %2920 = vmatprep.subr.bf16.mxu0 0
        %2921 = vmatpush1.bf16.msra.mxu0 0
        %2922 = vmatprep.subr.bf16.mxu0 0
        %2923 = vmatpush1.bf16.msra.mxu0 0
        %2924 = vmatprep.subr.bf16.mxu0 0
        %2925 = vmatpush1.bf16.msra.mxu0 0
        %2926 = vmatprep.subr.bf16.mxu0 0
        %2927 = vmatpush1.bf16.msra.mxu0 0
        %2928 = vmatprep.subr.bf16.mxu0 0
        %2929 = vmatpush1.bf16.msra.mxu0 0
        %2930 = vmatprep.subr.bf16.mxu0 0
        %2931 = vmatpush1.bf16.msra.mxu0 0
        %2932 = vmatprep.subr.bf16.mxu0 0
        %2933 = vmatpush1.bf16.msra.mxu0 0
        %2934 = vmatprep.subr.bf16.mxu0 0
        %2935 = vmatpush1.bf16.msra.mxu0 0
        %2936 = vmatprep.subr.bf16.mxu0 0
        %2937 = vmatpush1.bf16.msra.mxu0 0
        %2938 = vmatprep.subr.bf16.mxu0 0
        %2939 = vmatpush1.bf16.msra.mxu0 0
        %2940 = vmatprep.subr.bf16.mxu0 0
        %2941 = vmatpush1.bf16.msra.mxu0 0
        %2942 = vmatprep.subr.bf16.mxu0 0
        %2943 = vmatpush1.bf16.msra.mxu0 0
        %2944 = vmatprep.mubr.bf16.mxu0 0
        %2945 = vmatmul.mubr.bf16.gmra.mrb[0].mxu0 %v2910
        %v2946 = vpop.f32.mrb[0].mxu0
        %v2947 = vadd.f32 %v2880, %v2946
        %v2948 = vpop.f32.mrb[0].mxu0
        %v2949 = vpop.f32.mrb[0].mxu0
        %v2950 = vpop.f32.mrb[0].mxu0
        %2951 = vdwg.mxu0
        %v2952 = vld [vmem:[#allocation19] sm:$0x1]
        %v2954 = vlaneseq
        %v2955 = vshrl.u32 %v2954, 7
        %v2956 = vsub.s32 0, %v2955
        %v2957 = vrot.slane %v2952, %v2956
        %v2959 = vadd.f32 %v2947, %v2957
        %v2960 = vxor.u32 %v2959, 2147483648
        %v2961 = vmul.f32 %v2960, 1.442695
        %v2962 = vpow.pop %v2961
        %v2963 = vadd.f32 %v2962, 1.0
        %v2964 = vrcp.pop %v2963
        %v2965 = vmul.f32 1.0, %v2964
        %2967 = vrot.lane.b32.xlu0 %v2959, 64
        %v2968 = vpop.permute.xlu0 %2967
        %v2970 = vmul.f32 %v2965, %v2968
        %v2971 = vadd.f32 %v2970, %v927
        %v2972 = vsel %vm969, %v2971, 0.0
        %2973 = vadd.xlane.f32.xlu0 %v2972
        %v2974 = vpop.xlane.xlu0 %2973
        %v2975 = vrcp.pop 64.0
        %v2976 = vmul.f32 %v2974, %v2975
        %v2977 = vsub.f32 %v2971, %v2976
        %v2978 = vmul.f32 %v2977, %v2977
        %v2979 = vsel %vm969, %v2978, 0.0
        %2980 = vadd.xlane.f32.xlu0 %v2979
        %v2981 = vpop.xlane.xlu0 %2980
        %v2982 = vmul.f32 %v2981, %v2975
        %v2983 = vadd.f32 %v2982, 1e-05
        %v2984 = vrsqrt.pop %v2983
        %v2985 = vmul.f32 %v2977, %v2984
        %v2986 = vld [vmem:[#allocation20] sm:$0x1]
        %v2988 = vlaneseq
        %v2989 = vshrl.u32 %v2988, 7
        %v2990 = vsub.s32 0, %v2989
        %v2991 = vrot.slane %v2986, %v2990
        %v2993 = vmul.f32 %v2985, %v2991
        %v2994 = vld [vmem:[#allocation22] sm:$0x1]
        %v2996 = vlaneseq
        %v2997 = vshrl.u32 %v2996, 7
        %v2998 = vsub.s32 0, %v2997
        %v2999 = vrot.slane %v2994, %v2998
        %v3001 = vadd.f32 %v2993, %v2999
        %v3002 = vadd.f32 %v926, %v3001
        %v3003 = vpack.c.bf16 %v3002, %v3002
        %v3004 = vld [vmem:[#allocation23] sm:$0xf]
        %v3005 = vld [vmem:[#allocation23 + $0x4] sm:$0xf]
        %v3006 = vld [vmem:[#allocation23 + $0x8] sm:$0xf]
        %v3007 = vld [vmem:[#allocation23 + $0xc] sm:$0xf]
        %v3008 = vld [vmem:[#allocation23 + $0x10] sm:$0xf]
        %v3009 = vld [vmem:[#allocation23 + $0x14] sm:$0xf]
        %v3010 = vld [vmem:[#allocation23 + $0x18] sm:$0xf]
        %v3011 = vld [vmem:[#allocation23 + $0x1c] sm:$0xf]
        %v3012 = vld [vmem:[#allocation25] sm:$0x1]
        %v3014 = vlaneseq
        %v3015 = vshrl.u32 %v3014, 7
        %v3016 = vsub.s32 0, %v3015
        %v3017 = vrot.slane %v3012, %v3016
        %v3027 = vunpack.c.l.b16 %v3004
        %v3028 = vunpack.c.l.b16 %v3005
        %v3029 = vunpack.c.l.b16 %v3006
        %v3030 = vunpack.c.l.b16 %v3007
        %v3031 = vunpack.c.l.b16 %v3008
        %v3032 = vunpack.c.l.b16 %v3009
        %v3033 = vunpack.c.l.b16 %v3010
        %v3034 = vunpack.c.l.b16 %v3011
        %v3035 = vpack.c.b16 %v3028, %v3027
        %v3036 = vpack.c.b16 %v3030, %v3029
        %v3037 = vpack.c.b16 %v3032, %v3031
        %v3038 = vpack.c.b16 %v3034, %v3033
        %v3044 = vsel %vm969, %v3003, 0
        %3046 = vmatprep.subr.bf16.mxu0 0
        %3047 = vmatpush1.bf16.msra.mxu0 %v3035
        %3048 = vmatprep.subr.bf16.mxu0 0
        %3049 = vmatpush1.bf16.msra.mxu0 %v3036
        %3050 = vmatprep.subr.bf16.mxu0 0
        %3051 = vmatpush1.bf16.msra.mxu0 %v3037
        %3052 = vmatprep.subr.bf16.mxu0 0
        %3053 = vmatpush1.bf16.msra.mxu0 %v3038
        %3054 = vmatprep.subr.bf16.mxu0 0
        %3055 = vmatpush1.bf16.msra.mxu0 0
        %3056 = vmatprep.subr.bf16.mxu0 0
        %3057 = vmatpush1.bf16.msra.mxu0 0
        %3058 = vmatprep.subr.bf16.mxu0 0
        %3059 = vmatpush1.bf16.msra.mxu0 0
        %3060 = vmatprep.subr.bf16.mxu0 0
        %3061 = vmatpush1.bf16.msra.mxu0 0
        %3062 = vmatprep.subr.bf16.mxu0 0
        %3063 = vmatpush1.bf16.msra.mxu0 0
        %3064 = vmatprep.subr.bf16.mxu0 0
        %3065 = vmatpush1.bf16.msra.mxu0 0
        %3066 = vmatprep.subr.bf16.mxu0 0
        %3067 = vmatpush1.bf16.msra.mxu0 0
        %3068 = vmatprep.subr.bf16.mxu0 0
        %3069 = vmatpush1.bf16.msra.mxu0 0
        %3070 = vmatprep.subr.bf16.mxu0 0
        %3071 = vmatpush1.bf16.msra.mxu0 0
        %3072 = vmatprep.subr.bf16.mxu0 0
        %3073 = vmatpush1.bf16.msra.mxu0 0
        %3074 = vmatprep.subr.bf16.mxu0 0
        %3075 = vmatpush1.bf16.msra.mxu0 0
        %3076 = vmatprep.subr.bf16.mxu0 0
        %3077 = vmatpush1.bf16.msra.mxu0 0
        %3078 = vmatprep.mubr.bf16.mxu0 0
        %3079 = vmatmul.mubr.bf16.gmra.mrb[0].mxu0 %v3044
        %v3080 = vpop.f32.mrb[0].mxu0
        %v3081 = vadd.f32 %v3017, %v3080
        %v3082 = vpop.f32.mrb[0].mxu0
        %v3083 = vpop.f32.mrb[0].mxu0
        %v3084 = vpop.f32.mrb[0].mxu0
        %3085 = vdwg.mxu0
        %v3086 = vmax.f32 %v3081, 0.0
        %v3087 = vpack.c.bf16 %v3086, %v3086
        %v3088 = vld [vmem:[#allocation26] sm:$0xf]
        %v3089 = vld [vmem:[#allocation26 + $0x4] sm:$0xf]
        %v3090 = vld [vmem:[#allocation26 + $0x8] sm:$0xf]
        %v3091 = vld [vmem:[#allocation26 + $0xc] sm:$0xf]
        %v3092 = vld [vmem:[#allocation26 + $0x10] sm:$0xf]
        %v3093 = vld [vmem:[#allocation26 + $0x14] sm:$0xf]
        %v3094 = vld [vmem:[#allocation26 + $0x18] sm:$0xf]
        %v3095 = vld [vmem:[#allocation26 + $0x1c] sm:$0xf]
        %v3096 = vld [vmem:[#allocation28] sm:$0x1]
        %v3098 = vlaneseq
        %v3099 = vshrl.u32 %v3098, 7
        %v3100 = vsub.s32 0, %v3099
        %v3101 = vrot.slane %v3096, %v3100
        %v3111 = vunpack.c.l.b16 %v3088
        %v3112 = vunpack.c.l.b16 %v3089
        %v3113 = vunpack.c.l.b16 %v3090
        %v3114 = vunpack.c.l.b16 %v3091
        %v3115 = vunpack.c.l.b16 %v3092
        %v3116 = vunpack.c.l.b16 %v3093
        %v3117 = vunpack.c.l.b16 %v3094
        %v3118 = vunpack.c.l.b16 %v3095
        %v3119 = vpack.c.b16 %v3112, %v3111
        %v3120 = vpack.c.b16 %v3114, %v3113
        %v3121 = vpack.c.b16 %v3116, %v3115
        %v3122 = vpack.c.b16 %v3118, %v3117
        %v3128 = vsel %vm969, %v3087, 0
        %3130 = vmatprep.subr.bf16.mxu0 0
        %3131 = vmatpush1.bf16.msra.mxu0 %v3119
        %3132 = vmatprep.subr.bf16.mxu0 0
        %3133 = vmatpush1.bf16.msra.mxu0 %v3120
        %3134 = vmatprep.subr.bf16.mxu0 0
        %3135 = vmatpush1.bf16.msra.mxu0 %v3121
        %3136 = vmatprep.subr.bf16.mxu0 0
        %3137 = vmatpush1.bf16.msra.mxu0 %v3122
        %3138 = vmatprep.subr.bf16.mxu0 0
        %3139 = vmatpush1.bf16.msra.mxu0 0
        %3140 = vmatprep.subr.bf16.mxu0 0
        %3141 = vmatpush1.bf16.msra.mxu0 0
        %3142 = vmatprep.subr.bf16.mxu0 0
        %3143 = vmatpush1.bf16.msra.mxu0 0
        %3144 = vmatprep.subr.bf16.mxu0 0
        %3145 = vmatpush1.bf16.msra.mxu0 0
        %3146 = vmatprep.subr.bf16.mxu0 0
        %3147 = vmatpush1.bf16.msra.mxu0 0
        %3148 = vmatprep.subr.bf16.mxu0 0
        %3149 = vmatpush1.bf16.msra.mxu0 0
        %3150 = vmatprep.subr.bf16.mxu0 0
        %3151 = vmatpush1.bf16.msra.mxu0 0
        %3152 = vmatprep.subr.bf16.mxu0 0
        %3153 = vmatpush1.bf16.msra.mxu0 0
        %3154 = vmatprep.subr.bf16.mxu0 0
        %3155 = vmatpush1.bf16.msra.mxu0 0
        %3156 = vmatprep.subr.bf16.mxu0 0
        %3157 = vmatpush1.bf16.msra.mxu0 0
        %3158 = vmatprep.subr.bf16.mxu0 0
        %3159 = vmatpush1.bf16.msra.mxu0 0
        %3160 = vmatprep.subr.bf16.mxu0 0
        %3161 = vmatpush1.bf16.msra.mxu0 0
        %3162 = vmatprep.mubr.bf16.mxu0 0
        %3163 = vmatmul.mubr.bf16.gmra.mrb[0].mxu0 %v3128
        %v3164 = vpop.f32.mrb[0].mxu0
        %v3165 = vadd.f32 %v3101, %v3164
        %v3166 = vpop.f32.mrb[0].mxu0
        %v3167 = vpop.f32.mrb[0].mxu0
        %v3168 = vpop.f32.mrb[0].mxu0
        %3169 = vdwg.mxu0
        %v3170 = vmax.f32 %v3165, 0.0
        %v3171 = vadd.f32 %v3002, %v3170
        %v3172 = vld [vmem:[#allocation29] sm:$0xf]
        %v3173 = vld [vmem:[#allocation29 + $0x4] sm:$0xf]
        %v3174 = vld [vmem:[#allocation29 + $0x8] sm:$0xf]
        %v3175 = vld [vmem:[#allocation29 + $0xc] sm:$0xf]
        %v3176 = vld [vmem:[#allocation29 + $0x10] sm:$0xf]
        %v3177 = vld [vmem:[#allocation29 + $0x14] sm:$0xf]
        %v3178 = vld [vmem:[#allocation29 + $0x18] sm:$0xf]
        %v3179 = vld [vmem:[#allocation29 + $0x1c] sm:$0xf]
        %v3180 = vtanh.pop %v927
        %v3181 = vpack.c.bf16 %v3180, %v3180
        %v3182 = vld [vmem:[#allocation31] sm:$0xf]
        %v3183 = vld [vmem:[#allocation31 + $0x4] sm:$0xf]
        %v3184 = vld [vmem:[#allocation31 + $0x8] sm:$0xf]
        %v3185 = vld [vmem:[#allocation31 + $0xc] sm:$0xf]
        %v3186 = vld [vmem:[#allocation31 + $0x10] sm:$0xf]
        %v3187 = vld [vmem:[#allocation31 + $0x14] sm:$0xf]
        %v3188 = vld [vmem:[#allocation31 + $0x18] sm:$0xf]
        %v3189 = vld [vmem:[#allocation31 + $0x1c] sm:$0xf]
        %v3198 = vunpack.c.l.b16 %v3182
        %v3199 = vunpack.c.l.b16 %v3183
        %v3200 = vunpack.c.l.b16 %v3184
        %v3201 = vunpack.c.l.b16 %v3185
        %v3202 = vunpack.c.l.b16 %v3186
        %v3203 = vunpack.c.l.b16 %v3187
        %v3204 = vunpack.c.l.b16 %v3188
        %v3205 = vunpack.c.l.b16 %v3189
        %v3206 = vpack.c.b16 %v3199, %v3198
        %v3207 = vpack.c.b16 %v3201, %v3200
        %v3208 = vpack.c.b16 %v3203, %v3202
        %v3209 = vpack.c.b16 %v3205, %v3204
        %v3215 = vsel %vm969, %v3181, 0
        %3217 = vmatprep.subr.bf16.mxu0 0
        %3218 = vmatpush1.bf16.msra.mxu0 %v3206
        %3219 = vmatprep.subr.bf16.mxu0 0
        %3220 = vmatpush1.bf16.msra.mxu0 %v3207
        %3221 = vmatprep.subr.bf16.mxu0 0
        %3222 = vmatpush1.bf16.msra.mxu0 %v3208
        %3223 = vmatprep.subr.bf16.mxu0 0
        %3224 = vmatpush1.bf16.msra.mxu0 %v3209
        %3225 = vmatprep.subr.bf16.mxu0 0
        %3226 = vmatpush1.bf16.msra.mxu0 0
        %3227 = vmatprep.subr.bf16.mxu0 0
        %3228 = vmatpush1.bf16.msra.mxu0 0
        %3229 = vmatprep.subr.bf16.mxu0 0
        %3230 = vmatpush1.bf16.msra.mxu0 0
        %3231 = vmatprep.subr.bf16.mxu0 0
        %3232 = vmatpush1.bf16.msra.mxu0 0
        %3233 = vmatprep.subr.bf16.mxu0 0
        %3234 = vmatpush1.bf16.msra.mxu0 0
        %3235 = vmatprep.subr.bf16.mxu0 0
        %3236 = vmatpush1.bf16.msra.mxu0 0
        %3237 = vmatprep.subr.bf16.mxu0 0
        %3238 = vmatpush1.bf16.msra.mxu0 0
        %3239 = vmatprep.subr.bf16.mxu0 0
        %3240 = vmatpush1.bf16.msra.mxu0 0
        %3241 = vmatprep.subr.bf16.mxu0 0
        %3242 = vmatpush1.bf16.msra.mxu0 0
        %3243 = vmatprep.subr.bf16.mxu0 0
        %3244 = vmatpush1.bf16.msra.mxu0 0
        %3245 = vmatprep.subr.bf16.mxu0 0
        %3246 = vmatpush1.bf16.msra.mxu0 0
        %3247 = vmatprep.subr.bf16.mxu0 0
        %3248 = vmatpush1.bf16.msra.mxu0 0
        %3249 = vmatprep.mubr.bf16.mxu0 0
        %3250 = vmatmul.mubr.bf16.gmra.mrb[0].mxu0 %v3215
        %v3251 = vpop.f32.mrb[0].mxu0
        %v3252 = vadd.f32 0.0, %v3251
        %v3253 = vpop.f32.mrb[0].mxu0
        %v3254 = vpop.f32.mrb[0].mxu0
        %v3255 = vpop.f32.mrb[0].mxu0
        %3256 = vdwg.mxu0
        %v3265 = vunpack.c.l.b16 %v3172
        %v3266 = vunpack.c.l.b16 %v3173
        %v3267 = vunpack.c.l.b16 %v3174
        %v3268 = vunpack.c.l.b16 %v3175
        %v3269 = vunpack.c.l.b16 %v3176
        %v3270 = vunpack.c.l.b16 %v3177
        %v3271 = vunpack.c.l.b16 %v3178
        %v3272 = vunpack.c.l.b16 %v3179
        %v3273 = vpack.c.b16 %v3266, %v3265
        %v3274 = vpack.c.b16 %v3268, %v3267
        %v3275 = vpack.c.b16 %v3270, %v3269
        %v3276 = vpack.c.b16 %v3272, %v3271
        %3281 = vmatprep.subr.bf16.mxu0 0
        %3282 = vmatpush1.bf16.msra.mxu0 %v3273
        %3283 = vmatprep.subr.bf16.mxu0 0
        %3284 = vmatpush1.bf16.msra.mxu0 %v3274
        %3285 = vmatprep.subr.bf16.mxu0 0
        %3286 = vmatpush1.bf16.msra.mxu0 %v3275
        %3287 = vmatprep.subr.bf16.mxu0 0
        %3288 = vmatpush1.bf16.msra.mxu0 %v3276
        %3289 = vmatprep.subr.bf16.mxu0 0
        %3290 = vmatpush1.bf16.msra.mxu0 0
        %3291 = vmatprep.subr.bf16.mxu0 0
        %3292 = vmatpush1.bf16.msra.mxu0 0
        %3293 = vmatprep.subr.bf16.mxu0 0
        %3294 = vmatpush1.bf16.msra.mxu0 0
        %3295 = vmatprep.subr.bf16.mxu0 0
        %3296 = vmatpush1.bf16.msra.mxu0 0
        %3297 = vmatprep.subr.bf16.mxu0 0
        %3298 = vmatpush1.bf16.msra.mxu0 0
        %3299 = vmatprep.subr.bf16.mxu0 0
        %3300 = vmatpush1.bf16.msra.mxu0 0
        %3301 = vmatprep.subr.bf16.mxu0 0
        %3302 = vmatpush1.bf16.msra.mxu0 0
        %3303 = vmatprep.subr.bf16.mxu0 0
        %3304 = vmatpush1.bf16.msra.mxu0 0
        %3305 = vmatprep.subr.bf16.mxu0 0
        %3306 = vmatpush1.bf16.msra.mxu0 0
        %3307 = vmatprep.subr.bf16.mxu0 0
        %3308 = vmatpush1.bf16.msra.mxu0 0
        %3309 = vmatprep.subr.bf16.mxu0 0
        %3310 = vmatpush1.bf16.msra.mxu0 0
        %3311 = vmatprep.subr.bf16.mxu0 0
        %3312 = vmatpush1.bf16.msra.mxu0 0
        %3313 = vmatprep.mubr.bf16.mxu0 0
        %3314 = vmatmul.mubr.bf16.gmra.mrb[0].mxu0 %v971
        %v3315 = vpop.f32.mrb[0].mxu0
        %v3316 = vadd.f32 %v3252, %v3315
        %v3317 = vpop.f32.mrb[0].mxu0
        %v3318 = vpop.f32.mrb[0].mxu0
        %v3319 = vpop.f32.mrb[0].mxu0
        %3320 = vdwg.mxu0
        %v3321 = vld [vmem:[#allocation32] sm:$0x1]
        %v3323 = vlaneseq
        %v3324 = vshrl.u32 %v3323, 7
        %v3325 = vsub.s32 0, %v3324
        %v3326 = vrot.slane %v3321, %v3325
        %v3328 = vadd.f32 %v3316, %v3326
        %v3329 = vxor.u32 %v3328, 2147483648
        %v3330 = vmul.f32 %v3329, 1.442695
        %v3331 = vpow.pop %v3330
        %v3332 = vadd.f32 %v3331, 1.0
        %v3333 = vrcp.pop %v3332
        %v3334 = vmul.f32 1.0, %v3333
        %v3335 = vtanh.pop %v3171
        %v3336 = vmul.f32 %v3334, %v3335
        %3338 = vrot.lane.b32.xlu0 %v926, 64
        %v3339 = vpop.permute.xlu0 %3338
        %v3341 = vmul.f32 %v3334, %v3339
        %3343 = vrot.lane.b32.xlu0 %v3341, 64
        %v3344 = vpop.permute.xlu0 %3343
        %v3346 = vadd.f32 %v3336, %v3344
        %3347 = vst.msk [vmem:[%s924] sm:$0xff] %vm969, %v3346
        %s3348 = sand.u32 %s487, 1
        %s3349 = scalar_lea.sflag [#allocation4], %s3348
        %s3350 = sand.u32 %s487, 1
        %s3351 = smul.addr %s3350, 8
        %s3352 = scalar_lea.vmem [#allocation34], %s3351
        // Predicated region
        $region181: #{tpu_custom_call.1} parent=99 // pred_check
          %p3353 = pneg %p497
        $region182: #{tpu_custom_call.1} parent=99 // pred_check_branch
          %3355 = sbr.rel (%p3353) target = $region184
        $region183: #{tpu_custom_call.1} parent=99 // pred_region
          %s3357 = ssub.s32 128, 128
          %3358 = vsyncadd %s3349, %s3357
          %s3359 = smul.addr %s49, 128
          %s3360 = scalar_lea.hbm %s20, %s3359
          %s3362 = sshll.u32 %s3352, 4
          %s3363 = int_to_ptr.vmem [resolvable:$true] %s3362
          %3365 = dma.vmem_to_hbm [thread:$0]  %s3363, 128, %s3360, %s3349
        $region184: #{tpu_custom_call.1} parent=99 // pred_fallthru
          _
      $region100: #{tpu_custom_call.1} parent=5 // pred_fallthru
        _
      %p3366 = scmp.le.s32.totalorder 2, %s44
      // Predicated region
      $region185: #{tpu_custom_call.1} parent=5 // pred_check
        %p3367 = pneg %p3366
      $region186: #{tpu_custom_call.1} parent=5 // pred_check_branch
        %3369 = sbr.rel (%p3367) target = $region188
      $region187: #{tpu_custom_call.1} parent=5 // pred_region
        %s3370 = ssub.s32 %s44, 2
        // Predicated region
        $region189: #{tpu_custom_call.1} parent=187 // pred_check
          %p3371 = pneg %p503
        $region190: #{tpu_custom_call.1} parent=187 // pred_check_branch
          %3373 = sbr.rel (%p3371) target = $region192
        $region191: #{tpu_custom_call.1} parent=187 // pred_region
          %s3374 = sand.u32 %s488, 1
          %s3375 = scalar_lea.sflag [#allocation4], %s3374
          %s3376 = sand.u32 %s488, 1
          %s3377 = smul.addr %s3376, 8
          %s3378 = scalar_lea.vmem [#allocation34], %s3377
          %3379 = dma.done %s3375, 128
        $region192: #{tpu_custom_call.1} parent=187 // pred_fallthru
          _
      $region188: #{tpu_custom_call.1} parent=5 // pred_fallthru
        _
    $region6: #{tpu_custom_call.1} parent=1 // loop_footer
      %s48 = sadd.s32 1, %s44
    $region7: #{tpu_custom_call.1} parent=1 // loop_footer_branch
      %43 = sbr.rel target = $region3
    $region8: #{tpu_custom_call.1} parent=1 // loop_exit
      _
    %3380 = vsyncpa [#allocation3], 1
    %s3381 = scalar_lea.sflag [#allocation3], 1
    %3382 = vsyncpa %s3381, 1
    %3383 = vsyncpa [#allocation6], 1
    %s3384 = scalar_lea.sflag [#allocation6], 1
    %3385 = vsyncpa %s3384, 1
    %3386 = vsyncpa [#allocation9], 1
    %3387 = vsyncpa [#allocation12], 1
    %3388 = vsyncpa [#allocation15], 1
    %3389 = vsyncpa [#allocation18], 1
    %3390 = vsyncpa [#allocation21], 1
    %3391 = vsyncpa [#allocation24], 1
    %3392 = vsyncpa [#allocation27], 1
    %3393 = vsyncpa [#allocation30], 1
    %3394 = vsyncpa [#allocation33], 1
    %3395 = vsyncpa [#allocation4], 1
    %s3396 = scalar_lea.sflag [#allocation4], 1
    %3397 = vsyncpa %s3396, 1

</llo_original>
